<compile_context>
chip_gen: v7x
topology: tpu7x:2x2x1
jax: 0.10.0
libtpu: 0.0.40
codegen_flags: <defaults>
</compile_context>

<pallas_src>
import jax
import jax.numpy as jnp
from jax.experimental import pallas as pl
from jax.experimental.pallas import tpu as pltpu


# ----------------------------------------------------------------------------
# Fused forward kernel (one grid step == one batch element)
# ----------------------------------------------------------------------------
def _cnn_fused_kernel(x_ref, w1_ref, s1_ref, t1_ref, w2_ref, s2_ref, t2_ref,
                      w3_ref, s3_ref, t3_ref, w4_ref, s4_ref, t4_ref,
                      wfc_ref, bfc_ref, out_ref,
                      a1, a2, p1, a3p, a4, p2):
    f32 = jnp.float32

    def sel_even_odd(rows, cols):
        """0/1 matrices selecting columns 2r / 2r+1 (used instead of strided loads)."""
        r = jax.lax.broadcasted_iota(jnp.int32, (rows, cols), 0)
        c = jax.lax.broadcasted_iota(jnp.int32, (rows, cols), 1)
        return (c == 2 * r).astype(f32), (c == 2 * r + 1).astype(f32)

    def conv_rows(src, dst, w_ref, s_ref, t_ref, kh, kw, lead_idx=None, dst_off=0):
        """VALID stride-1 conv + per-channel scale/shift + ReLU, one output row
        per loop iteration.  Patches are accumulated in-register over the
        kh*kw taps (in-kernel im2col)."""
        cin, cout = w_ref.shape[1], w_ref.shape[2]
        h_out = dst.shape[0] - 2 * dst_off
        w_out = dst.shape[1] - 2 * dst_off
        scale = s_ref[...]          # (1, cout) -- loaded once, loop-invariant
        shift = t_ref[...]

        def body(ho, carry):
            acc = jnp.zeros((w_out, cout), f32)
            for i in range(kh):
                for j in range(kw):
                    if lead_idx is None:
                        slab = src[ho + i, pl.ds(j, w_out), :]            # (w_out, cin)
                    else:
                        slab = src[lead_idx, ho + i, pl.ds(j, w_out), :]
                    wtap = w_ref[i * kw + j]                              # (cin, cout)
                    if cin == 1:
                        acc = acc + slab * wtap                           # VPU MAC
                    else:
                        acc = acc + jnp.dot(slab, wtap,
                                            preferred_element_type=f32)   # MXU
            y = jnp.maximum(acc * scale + shift, 0.0)
            dst[dst_off + ho, pl.ds(dst_off, w_out), :] = y
            return carry

        jax.lax.fori_loop(0, h_out, body, 0)

    def maxpool2(src, dst):
        """2x2 max pool, stride 2. Row pairs via elementwise max, column pairs
        via even/odd selection matmuls (no strided reads)."""
        h_out, w_out = dst.shape[0], dst.shape[1]
        w_in = src.shape[1]
        se, so = sel_even_odd(w_out, w_in)

        def body(ph, carry):
            m = jnp.maximum(src[2 * ph, :, :], src[2 * ph + 1, :, :])
            dst[ph, :, :] = jnp.maximum(
                jnp.dot(se, m, preferred_element_type=f32),
                jnp.dot(so, m, preferred_element_type=f32))
            return carry

        jax.lax.fori_loop(0, h_out, body, 0)

    # conv1 (5x5, Cin->32) + ReLU                          x -> a1
    conv_rows(x_ref, a1, w1_ref, s1_ref, t1_ref, 5, 5, lead_idx=0)
    # conv2 (5x5, 32->32) + BatchNorm1 (folded) + ReLU     a1 -> a2
    conv_rows(a1, a2, w2_ref, s2_ref, t2_ref, 5, 5)
    # maxpool 2x2 (+ dropout = identity in eval)           a2 -> p1
    maxpool2(a2, p1)
    # conv3 (3x3, 32->64) + ReLU, written into the interior of a zero-padded
    # buffer so conv4's padding=1 requires no extra copy   p1 -> a3p[1:-1,1:-1]
    a3p[...] = jnp.zeros(a3p.shape, f32)
    conv_rows(p1, a3p, w3_ref, s3_ref, t3_ref, 3, 3, dst_off=1)
    # conv4 (3x3, stride 2, pad 1, 64->64) + BatchNorm2 (folded) + ReLU
    # Compute the stride-1 row at 2*ho on the padded input and keep the even
    # columns via a 0/1 selection matmul (avoids strided loads).
    h4, w4_out, c4 = a4.shape
    w_s1 = a3p.shape[1] - 2
    sel4, _ = sel_even_odd(w4_out, w_s1)
    s4 = s4_ref[...]
    t4 = t4_ref[...]

    def body4(ho, carry):
        acc = jnp.zeros((w_s1, c4), f32)
        for i in range(3):
            for j in range(3):
                slab = a3p[2 * ho + i, pl.ds(j, w_s1), :]                 # (w_s1, 64)
                acc = acc + jnp.dot(slab, w4_ref[i * 3 + j],
                                    preferred_element_type=f32)
        acc = jnp.dot(sel4, acc, preferred_element_type=f32)              # even cols
        a4[ho, :, :] = jnp.maximum(acc * s4 + t4, 0.0)
        return carry

    jax.lax.fori_loop(0, h4, body4, 0)
    # maxpool 2x2 (+ dropout = identity in eval)           a4 -> p2
    maxpool2(a4, p2)
    # classifier: Flatten (PyTorch NCHW order folded into wfc's row order) +
    # Linear(64*2*2 -> num_classes), accumulated over the 4 spatial positions.
    acc = bfc_ref[...]                                                    # (1, nc)
    ph2, pw2 = p2.shape[0], p2.shape[1]
    for hh in range(ph2):
        for ww in range(pw2):
            v = p2[hh, pl.ds(ww, 1), :]                                   # (1, 64)
            acc = acc + jnp.dot(v, wfc_ref[hh * pw2 + ww],
                                preferred_element_type=f32)
    out_ref[0, :, :] = acc


# ----------------------------------------------------------------------------
# Parameter folding / packing (XLA-side, tiny)
# ----------------------------------------------------------------------------
def _bn_fold(conv_bias, gamma, beta, mean, var, eps=1e-5):
    """Fold Conv bias + eval-mode BatchNorm into per-channel (scale, shift)."""
    scale = gamma / jnp.sqrt(var + eps)
    shift = (conv_bias - mean) * scale + beta
    return scale, shift


def _prep_kernel_inputs(p, in_channels, num_classes):
    f32 = jnp.float32
    one32 = jnp.ones((1, 32), f32)
    one64 = jnp.ones((1, 64), f32)
    s2, t2 = _bn_fold(p["b2"], p["bn1_g"], p["bn1_b"], p["bn1_m"], p["bn1_v"])
    s4, t4 = _bn_fold(p["b4"], p["bn2_g"], p["bn2_b"], p["bn2_m"], p["bn2_v"])
    # Linear weight rows reordered from PyTorch NCHW-flatten order (c*4+h*2+w)
    # to per-(h,w) channel blocks so the kernel consumes NHWC activations.
    wfc = (p["wfc"].reshape(64, 2, 2, num_classes)
                   .transpose(1, 2, 0, 3)
                   .reshape(4, 64, num_classes))
    return [
        p["w1"].reshape(25, in_channels, 32), one32, p["b1"].reshape(1, 32),
        p["w2"].reshape(25, 32, 32), s2.reshape(1, 32), t2.reshape(1, 32),
        p["w3"].reshape(9, 32, 64), one64, p["b3"].reshape(1, 64),
        p["w4"].reshape(9, 64, 64), s4.reshape(1, 64), t4.reshape(1, 64),
        wfc, p["bfc"].reshape(1, num_classes),
    ]


# ----------------------------------------------------------------------------
# Forward pass (mirrors CNN.forward) -- one fused pallas_call
# ----------------------------------------------------------------------------
@jax.jit
def cnn_forward(params, x_nchw):
    n, cin, h, w = x_nchw.shape
    num_classes = params["bfc"].shape[0]
    x = jnp.transpose(x_nchw, (0, 2, 3, 1)).astype(jnp.float32)   # NCHW -> NHWC

    # layer geometry (28x28 input required by Linear(64*2*2, num_classes))
    h1, w1 = h - 4, w - 4                       # conv1 5x5 valid
    h2, w2 = h1 - 4, w1 - 4                     # conv2 5x5 valid
    hp1, wp1 = h2 // 2, w2 // 2                 # maxpool 2
    h3, w3 = hp1 - 2, wp1 - 2                   # conv3 3x3 valid
    h4, w4 = (h3 - 1) // 2 + 1, (w3 - 1) // 2 + 1   # conv4 3x3 s2 p1
    hp2, wp2 = h4 // 2, w4 // 2                 # maxpool 2
    assert hp2 * wp2 * 64 == params["wfc"].shape[0], (
        "classifier Linear(64*2*2, .) requires 28x28 inputs")

    weights = _prep_kernel_inputs(params, cin, num_classes)

    def _shared(arr):
        nd = arr.ndim
        return pl.BlockSpec(arr.shape, lambda i, _nd=nd: (0,) * _nd)

    in_specs = [pl.BlockSpec((1, h, w, cin), lambda i: (i, 0, 0, 0))]
    in_specs += [_shared(a) for a in weights]

    out = pl.pallas_call(
        _cnn_fused_kernel,
        out_shape=jax.ShapeDtypeStruct((n, 1, num_classes), jnp.float32),
        grid=(n,),
        in_specs=in_specs,
        out_specs=pl.BlockSpec((1, 1, num_classes), lambda i: (i, 0, 0)),
        scratch_shapes=[
            pltpu.VMEM((h1, w1, 32), jnp.float32),        # conv1 out
            pltpu.VMEM((h2, w2, 32), jnp.float32),        # conv2+bn1 out
            pltpu.VMEM((hp1, wp1, 32), jnp.float32),      # pool1 out
            pltpu.VMEM((h3 + 2, w3 + 2, 64), jnp.float32),  # conv3 out (padded)
            pltpu.VMEM((h4, w4, 64), jnp.float32),        # conv4+bn2 out
            pltpu.VMEM((hp2, wp2, 64), jnp.float32),      # pool2 out
        ],
        compiler_params=pltpu.CompilerParams(
            dimension_semantics=("parallel",)),           # batch across cores (v7x)
    )(x, *weights)
    return out.reshape(n, num_classes)


# ----------------------------------------------------------------------------
# Parameter construction (deterministic, synthetic)
# ----------------------------------------------------------------------------
def init_params(key, in_channels=1, num_classes=10):
    ks = jax.random.split(key, 18)
    p = {}
    # conv weights in HWIO layout (Kh, Kw, Cin, Cout)
    p["w1"] = 0.1 * jax.random.normal(ks[0], (5, 5, in_channels, 32), jnp.float32)
    p["b1"] = 0.1 * jax.random.normal(ks[1], (32,), jnp.float32)
    p["w2"] = 0.05 * jax.random.normal(ks[2], (5, 5, 32, 32), jnp.float32)
    p["b2"] = 0.1 * jax.random.normal(ks[3], (32,), jnp.float32)
    p["w3"] = 0.05 * jax.random.normal(ks[4], (3, 3, 32, 64), jnp.float32)
    p["b3"] = 0.1 * jax.random.normal(ks[5], (64,), jnp.float32)
    p["w4"] = 0.05 * jax.random.normal(ks[6], (3, 3, 64, 64), jnp.float32)
    p["b4"] = 0.1 * jax.random.normal(ks[7], (64,), jnp.float32)
    # batchnorm1 (32 features)
    p["bn1_g"] = 1.0 + 0.1 * jax.random.normal(ks[8], (32,), jnp.float32)
    p["bn1_b"] = 0.1 * jax.random.normal(ks[9], (32,), jnp.float32)
    p["bn1_m"] = 0.1 * jax.random.normal(ks[10], (32,), jnp.float32)
    p["bn1_v"] = 1.0 + 0.1 * jnp.abs(jax.random.normal(ks[11], (32,), jnp.float32))
    # batchnorm2 (64 features)
    p["bn2_g"] = 1.0 + 0.1 * jax.random.normal(ks[12], (64,), jnp.float32)
    p["bn2_b"] = 0.1 * jax.random.normal(ks[13], (64,), jnp.float32)
    p["bn2_m"] = 0.1 * jax.random.normal(ks[14], (64,), jnp.float32)
    p["bn2_v"] = 1.0 + 0.1 * jnp.abs(jax.random.normal(ks[15], (64,), jnp.float32))
    # classifier Linear(64*2*2 -> num_classes), stored transposed (K, N)
    p["wfc"] = 0.05 * jax.random.normal(ks[16], (64 * 2 * 2, num_classes), jnp.float32)
    p["bfc"] = 0.1 * jax.random.normal(ks[17], (num_classes,), jnp.float32)
    return p


if __name__ == "__main__":
    key = jax.random.PRNGKey(0)
    pkey, xkey = jax.random.split(key)
    params = init_params(pkey, in_channels=1, num_classes=10)
    # input: (batch=2, channels=1, 28, 28) -- 28x28 required by Linear(64*2*2, 10)
    x = jax.random.normal(xkey, (2, 1, 28, 28), jnp.float32)

    out = cnn_forward(params, x)
    out = jax.block_until_ready(out)
    assert out.shape == (2, 10) and out.dtype == jnp.float32
    print("KERNEL_OK")
</pallas_src>

<mosaic_0001>
module attributes {stable_mosaic.version = 11 : i64} {
  func.func @_cnn_fused_kernel(%arg0: i32, %arg1: memref<1x28x28x1xf32, #tpu.memory_space<vmem>>, %arg2: memref<25x1x32xf32, #tpu.memory_space<vmem>>, %arg3: memref<1x32xf32, #tpu.memory_space<vmem>>, %arg4: memref<1x32xf32, #tpu.memory_space<vmem>>, %arg5: memref<25x32x32xf32, #tpu.memory_space<vmem>>, %arg6: memref<1x32xf32, #tpu.memory_space<vmem>>, %arg7: memref<1x32xf32, #tpu.memory_space<vmem>>, %arg8: memref<9x32x64xf32, #tpu.memory_space<vmem>>, %arg9: memref<1x64xf32, #tpu.memory_space<vmem>>, %arg10: memref<1x64xf32, #tpu.memory_space<vmem>>, %arg11: memref<9x64x64xf32, #tpu.memory_space<vmem>>, %arg12: memref<1x64xf32, #tpu.memory_space<vmem>>, %arg13: memref<1x64xf32, #tpu.memory_space<vmem>>, %arg14: memref<4x64x10xf32, #tpu.memory_space<vmem>>, %arg15: memref<1x10xf32, #tpu.memory_space<vmem>>, %arg16: memref<1x1x10xf32, #tpu.memory_space<vmem>>, %arg17: memref<24x24x32xf32, #tpu.memory_space<vmem>>, %arg18: memref<20x20x32xf32, #tpu.memory_space<vmem>>, %arg19: memref<10x10x32xf32, #tpu.memory_space<vmem>>, %arg20: memref<10x10x64xf32, #tpu.memory_space<vmem>>, %arg21: memref<4x4x64xf32, #tpu.memory_space<vmem>>, %arg22: memref<2x2x64xf32, #tpu.memory_space<vmem>>) attributes {dimension_semantics = [#tpu.dimension_semantics<parallel>], iteration_bounds = array<i64: 2>, scalar_prefetch = 0 : i64, scratch_operands = 6 : i64, tpu.core_type = #tpu.core_type<tc>, window_params = [{transform_indices = @transform_0, window_bounds = array<i64: 1, 28, 28, 1>}, {pipeline_mode = #tpu.pipeline_mode<synchronous>, transform_indices = @transform_1, window_bounds = array<i64: 25, 1, 32>}, {pipeline_mode = #tpu.pipeline_mode<synchronous>, transform_indices = @transform_2, window_bounds = array<i64: 1, 32>}, {pipeline_mode = #tpu.pipeline_mode<synchronous>, transform_indices = @transform_3, window_bounds = array<i64: 1, 32>}, {pipeline_mode = #tpu.pipeline_mode<synchronous>, transform_indices = @transform_4, window_bounds = array<i64: 25, 32, 32>}, {pipeline_mode = #tpu.pipeline_mode<synchronous>, transform_indices = @transform_5, window_bounds = array<i64: 1, 32>}, {pipeline_mode = #tpu.pipeline_mode<synchronous>, transform_indices = @transform_6, window_bounds = array<i64: 1, 32>}, {pipeline_mode = #tpu.pipeline_mode<synchronous>, transform_indices = @transform_7, window_bounds = array<i64: 9, 32, 64>}, {pipeline_mode = #tpu.pipeline_mode<synchronous>, transform_indices = @transform_8, window_bounds = array<i64: 1, 64>}, {pipeline_mode = #tpu.pipeline_mode<synchronous>, transform_indices = @transform_9, window_bounds = array<i64: 1, 64>}, {pipeline_mode = #tpu.pipeline_mode<synchronous>, transform_indices = @transform_10, window_bounds = array<i64: 9, 64, 64>}, {pipeline_mode = #tpu.pipeline_mode<synchronous>, transform_indices = @transform_11, window_bounds = array<i64: 1, 64>}, {pipeline_mode = #tpu.pipeline_mode<synchronous>, transform_indices = @transform_12, window_bounds = array<i64: 1, 64>}, {pipeline_mode = #tpu.pipeline_mode<synchronous>, transform_indices = @transform_13, window_bounds = array<i64: 4, 64, 10>}, {pipeline_mode = #tpu.pipeline_mode<synchronous>, transform_indices = @transform_14, window_bounds = array<i64: 1, 10>}, {transform_indices = @transform_15, window_bounds = array<i64: 1, 1, 10>}]} {
    %c0 = arith.constant 0 : index
    %c0_0 = arith.constant 0 : index
    %0 = vector.load %arg3[%c0, %c0_0] : memref<1x32xf32, #tpu.memory_space<vmem>>, vector<1x32xf32>
    %c0_1 = arith.constant 0 : index
    %c0_2 = arith.constant 0 : index
    %1 = vector.load %arg4[%c0_1, %c0_2] : memref<1x32xf32, #tpu.memory_space<vmem>>, vector<1x32xf32>
    %c0_i32 = arith.constant 0 : i32
    %c24_i32 = arith.constant 24 : i32
    %2 = arith.addi %c0_i32, %c24_i32 : i32
    %c1_i32 = arith.constant 1 : i32
    scf.for %arg23 = %c0_i32 to %2 step %c1_i32  : i32 {
      %cst_71 = arith.constant 0.000000e+00 : f32
      %79 = vector.broadcast %cst_71 : f32 to vector<24x32xf32>
      %c0_i32_72 = arith.constant 0 : i32
      %80 = arith.addi %arg23, %c0_i32_72 : i32
      %c0_73 = arith.constant 0 : index
      %81 = arith.index_cast %80 : i32 to index
      %c0_74 = arith.constant 0 : index
      %c0_75 = arith.constant 0 : index
      %82 = vector.load %arg1[%c0_73, %81, %c0_74, %c0_75] : memref<1x28x28x1xf32, #tpu.memory_space<vmem>>, vector<1x1x24x1xf32>
      %83 = vector.shape_cast %82 : vector<1x1x24x1xf32> to vector<24x1xf32>
      %c0_76 = arith.constant 0 : index
      %c0_77 = arith.constant 0 : index
      %c0_78 = arith.constant 0 : index
      %84 = vector.load %arg2[%c0_76, %c0_77, %c0_78] : memref<25x1x32xf32, #tpu.memory_space<vmem>>, vector<1x1x32xf32>
      %85 = vector.shape_cast %84 : vector<1x1x32xf32> to vector<1x32xf32>
      %86 = vector.broadcast %83 : vector<24x1xf32> to vector<24x32xf32>
      %87 = vector.broadcast %85 : vector<1x32xf32> to vector<24x32xf32>
      %88 = arith.mulf %86, %87 : vector<24x32xf32>
      %89 = arith.addf %79, %88 : vector<24x32xf32>
      %c0_i32_79 = arith.constant 0 : i32
      %90 = arith.addi %arg23, %c0_i32_79 : i32
      %c0_80 = arith.constant 0 : index
      %91 = arith.index_cast %90 : i32 to index
      %c1_81 = arith.constant 1 : index
      %c0_82 = arith.constant 0 : index
      %92 = vector.load %arg1[%c0_80, %91, %c1_81, %c0_82] : memref<1x28x28x1xf32, #tpu.memory_space<vmem>>, vector<1x1x24x1xf32>
      %93 = vector.shape_cast %92 : vector<1x1x24x1xf32> to vector<24x1xf32>
      %c1_83 = arith.constant 1 : index
      %c0_84 = arith.constant 0 : index
      %c0_85 = arith.constant 0 : index
      %94 = vector.load %arg2[%c1_83, %c0_84, %c0_85] : memref<25x1x32xf32, #tpu.memory_space<vmem>>, vector<1x1x32xf32>
      %95 = vector.shape_cast %94 : vector<1x1x32xf32> to vector<1x32xf32>
      %96 = vector.broadcast %93 : vector<24x1xf32> to vector<24x32xf32>
      %97 = vector.broadcast %95 : vector<1x32xf32> to vector<24x32xf32>
      %98 = arith.mulf %96, %97 : vector<24x32xf32>
      %99 = arith.addf %89, %98 : vector<24x32xf32>
      %c0_i32_86 = arith.constant 0 : i32
      %100 = arith.addi %arg23, %c0_i32_86 : i32
      %c0_87 = arith.constant 0 : index
      %101 = arith.index_cast %100 : i32 to index
      %c2_88 = arith.constant 2 : index
      %c0_89 = arith.constant 0 : index
      %102 = vector.load %arg1[%c0_87, %101, %c2_88, %c0_89] : memref<1x28x28x1xf32, #tpu.memory_space<vmem>>, vector<1x1x24x1xf32>
      %103 = vector.shape_cast %102 : vector<1x1x24x1xf32> to vector<24x1xf32>
      %c2_90 = arith.constant 2 : index
      %c0_91 = arith.constant 0 : index
      %c0_92 = arith.constant 0 : index
      %104 = vector.load %arg2[%c2_90, %c0_91, %c0_92] : memref<25x1x32xf32, #tpu.memory_space<vmem>>, vector<1x1x32xf32>
      %105 = vector.shape_cast %104 : vector<1x1x32xf32> to vector<1x32xf32>
      %106 = vector.broadcast %103 : vector<24x1xf32> to vector<24x32xf32>
      %107 = vector.broadcast %105 : vector<1x32xf32> to vector<24x32xf32>
      %108 = arith.mulf %106, %107 : vector<24x32xf32>
      %109 = arith.addf %99, %108 : vector<24x32xf32>
      %c0_i32_93 = arith.constant 0 : i32
      %110 = arith.addi %arg23, %c0_i32_93 : i32
      %c0_94 = arith.constant 0 : index
      %111 = arith.index_cast %110 : i32 to index
      %c3_95 = arith.constant 3 : index
      %c0_96 = arith.constant 0 : index
      %112 = vector.load %arg1[%c0_94, %111, %c3_95, %c0_96] : memref<1x28x28x1xf32, #tpu.memory_space<vmem>>, vector<1x1x24x1xf32>
      %113 = vector.shape_cast %112 : vector<1x1x24x1xf32> to vector<24x1xf32>
      %c3_97 = arith.constant 3 : index
      %c0_98 = arith.constant 0 : index
      %c0_99 = arith.constant 0 : index
      %114 = vector.load %arg2[%c3_97, %c0_98, %c0_99] : memref<25x1x32xf32, #tpu.memory_space<vmem>>, vector<1x1x32xf32>
      %115 = vector.shape_cast %114 : vector<1x1x32xf32> to vector<1x32xf32>
      %116 = vector.broadcast %113 : vector<24x1xf32> to vector<24x32xf32>
      %117 = vector.broadcast %115 : vector<1x32xf32> to vector<24x32xf32>
      %118 = arith.mulf %116, %117 : vector<24x32xf32>
      %119 = arith.addf %109, %118 : vector<24x32xf32>
      %c0_i32_100 = arith.constant 0 : i32
      %120 = arith.addi %arg23, %c0_i32_100 : i32
      %c0_101 = arith.constant 0 : index
      %121 = arith.index_cast %120 : i32 to index
      %c4 = arith.constant 4 : index
      %c0_102 = arith.constant 0 : index
      %122 = vector.load %arg1[%c0_101, %121, %c4, %c0_102] : memref<1x28x28x1xf32, #tpu.memory_space<vmem>>, vector<1x1x24x1xf32>
      %123 = vector.shape_cast %122 : vector<1x1x24x1xf32> to vector<24x1xf32>
      %c4_103 = arith.constant 4 : index
      %c0_104 = arith.constant 0 : index
      %c0_105 = arith.constant 0 : index
      %124 = vector.load %arg2[%c4_103, %c0_104, %c0_105] : memref<25x1x32xf32, #tpu.memory_space<vmem>>, vector<1x1x32xf32>
      %125 = vector.shape_cast %124 : vector<1x1x32xf32> to vector<1x32xf32>
      %126 = vector.broadcast %123 : vector<24x1xf32> to vector<24x32xf32>
      %127 = vector.broadcast %125 : vector<1x32xf32> to vector<24x32xf32>
      %128 = arith.mulf %126, %127 : vector<24x32xf32>
      %129 = arith.addf %119, %128 : vector<24x32xf32>
      %c1_i32_106 = arith.constant 1 : i32
      %130 = arith.addi %arg23, %c1_i32_106 : i32
      %c0_107 = arith.constant 0 : index
      %131 = arith.index_cast %130 : i32 to index
      %c0_108 = arith.constant 0 : index
      %c0_109 = arith.constant 0 : index
      %132 = vector.load %arg1[%c0_107, %131, %c0_108, %c0_109] : memref<1x28x28x1xf32, #tpu.memory_space<vmem>>, vector<1x1x24x1xf32>
      %133 = vector.shape_cast %132 : vector<1x1x24x1xf32> to vector<24x1xf32>
      %c5 = arith.constant 5 : index
      %c0_110 = arith.constant 0 : index
      %c0_111 = arith.constant 0 : index
      %134 = vector.load %arg2[%c5, %c0_110, %c0_111] : memref<25x1x32xf32, #tpu.memory_space<vmem>>, vector<1x1x32xf32>
      %135 = vector.shape_cast %134 : vector<1x1x32xf32> to vector<1x32xf32>
      %136 = vector.broadcast %133 : vector<24x1xf32> to vector<24x32xf32>
      %137 = vector.broadcast %135 : vector<1x32xf32> to vector<24x32xf32>
      %138 = arith.mulf %136, %137 : vector<24x32xf32>
      %139 = arith.addf %129, %138 : vector<24x32xf32>
      %c1_i32_112 = arith.constant 1 : i32
      %140 = arith.addi %arg23, %c1_i32_112 : i32
      %c0_113 = arith.constant 0 : index
      %141 = arith.index_cast %140 : i32 to index
      %c1_114 = arith.constant 1 : index
      %c0_115 = arith.constant 0 : index
      %142 = vector.load %arg1[%c0_113, %141, %c1_114, %c0_115] : memref<1x28x28x1xf32, #tpu.memory_space<vmem>>, vector<1x1x24x1xf32>
      %143 = vector.shape_cast %142 : vector<1x1x24x1xf32> to vector<24x1xf32>
      %c6 = arith.constant 6 : index
      %c0_116 = arith.constant 0 : index
      %c0_117 = arith.constant 0 : index
      %144 = vector.load %arg2[%c6, %c0_116, %c0_117] : memref<25x1x32xf32, #tpu.memory_space<vmem>>, vector<1x1x32xf32>
      %145 = vector.shape_cast %144 : vector<1x1x32xf32> to vector<1x32xf32>
      %146 = vector.broadcast %143 : vector<24x1xf32> to vector<24x32xf32>
      %147 = vector.broadcast %145 : vector<1x32xf32> to vector<24x32xf32>
      %148 = arith.mulf %146, %147 : vector<24x32xf32>
      %149 = arith.addf %139, %148 : vector<24x32xf32>
      %c1_i32_118 = arith.constant 1 : i32
      %150 = arith.addi %arg23, %c1_i32_118 : i32
      %c0_119 = arith.constant 0 : index
      %151 = arith.index_cast %150 : i32 to index
      %c2_120 = arith.constant 2 : index
      %c0_121 = arith.constant 0 : index
      %152 = vector.load %arg1[%c0_119, %151, %c2_120, %c0_121] : memref<1x28x28x1xf32, #tpu.memory_space<vmem>>, vector<1x1x24x1xf32>
      %153 = vector.shape_cast %152 : vector<1x1x24x1xf32> to vector<24x1xf32>
      %c7 = arith.constant 7 : index
      %c0_122 = arith.constant 0 : index
      %c0_123 = arith.constant 0 : index
      %154 = vector.load %arg2[%c7, %c0_122, %c0_123] : memref<25x1x32xf32, #tpu.memory_space<vmem>>, vector<1x1x32xf32>
      %155 = vector.shape_cast %154 : vector<1x1x32xf32> to vector<1x32xf32>
      %156 = vector.broadcast %153 : vector<24x1xf32> to vector<24x32xf32>
      %157 = vector.broadcast %155 : vector<1x32xf32> to vector<24x32xf32>
      %158 = arith.mulf %156, %157 : vector<24x32xf32>
      %159 = arith.addf %149, %158 : vector<24x32xf32>
      %c1_i32_124 = arith.constant 1 : i32
      %160 = arith.addi %arg23, %c1_i32_124 : i32
      %c0_125 = arith.constant 0 : index
      %161 = arith.index_cast %160 : i32 to index
      %c3_126 = arith.constant 3 : index
      %c0_127 = arith.constant 0 : index
      %162 = vector.load %arg1[%c0_125, %161, %c3_126, %c0_127] : memref<1x28x28x1xf32, #tpu.memory_space<vmem>>, vector<1x1x24x1xf32>
      %163 = vector.shape_cast %162 : vector<1x1x24x1xf32> to vector<24x1xf32>
      %c8 = arith.constant 8 : index
      %c0_128 = arith.constant 0 : index
      %c0_129 = arith.constant 0 : index
      %164 = vector.load %arg2[%c8, %c0_128, %c0_129] : memref<25x1x32xf32, #tpu.memory_space<vmem>>, vector<1x1x32xf32>
      %165 = vector.shape_cast %164 : vector<1x1x32xf32> to vector<1x32xf32>
      %166 = vector.broadcast %163 : vector<24x1xf32> to vector<24x32xf32>
      %167 = vector.broadcast %165 : vector<1x32xf32> to vector<24x32xf32>
      %168 = arith.mulf %166, %167 : vector<24x32xf32>
      %169 = arith.addf %159, %168 : vector<24x32xf32>
      %c1_i32_130 = arith.constant 1 : i32
      %170 = arith.addi %arg23, %c1_i32_130 : i32
      %c0_131 = arith.constant 0 : index
      %171 = arith.index_cast %170 : i32 to index
      %c4_132 = arith.constant 4 : index
      %c0_133 = arith.constant 0 : index
      %172 = vector.load %arg1[%c0_131, %171, %c4_132, %c0_133] : memref<1x28x28x1xf32, #tpu.memory_space<vmem>>, vector<1x1x24x1xf32>
      %173 = vector.shape_cast %172 : vector<1x1x24x1xf32> to vector<24x1xf32>
      %c9 = arith.constant 9 : index
      %c0_134 = arith.constant 0 : index
      %c0_135 = arith.constant 0 : index
      %174 = vector.load %arg2[%c9, %c0_134, %c0_135] : memref<25x1x32xf32, #tpu.memory_space<vmem>>, vector<1x1x32xf32>
      %175 = vector.shape_cast %174 : vector<1x1x32xf32> to vector<1x32xf32>
      %176 = vector.broadcast %173 : vector<24x1xf32> to vector<24x32xf32>
      %177 = vector.broadcast %175 : vector<1x32xf32> to vector<24x32xf32>
      %178 = arith.mulf %176, %177 : vector<24x32xf32>
      %179 = arith.addf %169, %178 : vector<24x32xf32>
      %c2_i32_136 = arith.constant 2 : i32
      %180 = arith.addi %arg23, %c2_i32_136 : i32
      %c0_137 = arith.constant 0 : index
      %181 = arith.index_cast %180 : i32 to index
      %c0_138 = arith.constant 0 : index
      %c0_139 = arith.constant 0 : index
      %182 = vector.load %arg1[%c0_137, %181, %c0_138, %c0_139] : memref<1x28x28x1xf32, #tpu.memory_space<vmem>>, vector<1x1x24x1xf32>
      %183 = vector.shape_cast %182 : vector<1x1x24x1xf32> to vector<24x1xf32>
      %c10 = arith.constant 10 : index
      %c0_140 = arith.constant 0 : index
      %c0_141 = arith.constant 0 : index
      %184 = vector.load %arg2[%c10, %c0_140, %c0_141] : memref<25x1x32xf32, #tpu.memory_space<vmem>>, vector<1x1x32xf32>
      %185 = vector.shape_cast %184 : vector<1x1x32xf32> to vector<1x32xf32>
      %186 = vector.broadcast %183 : vector<24x1xf32> to vector<24x32xf32>
      %187 = vector.broadcast %185 : vector<1x32xf32> to vector<24x32xf32>
      %188 = arith.mulf %186, %187 : vector<24x32xf32>
      %189 = arith.addf %179, %188 : vector<24x32xf32>
      %c2_i32_142 = arith.constant 2 : i32
      %190 = arith.addi %arg23, %c2_i32_142 : i32
      %c0_143 = arith.constant 0 : index
      %191 = arith.index_cast %190 : i32 to index
      %c1_144 = arith.constant 1 : index
      %c0_145 = arith.constant 0 : index
      %192 = vector.load %arg1[%c0_143, %191, %c1_144, %c0_145] : memref<1x28x28x1xf32, #tpu.memory_space<vmem>>, vector<1x1x24x1xf32>
      %193 = vector.shape_cast %192 : vector<1x1x24x1xf32> to vector<24x1xf32>
      %c11 = arith.constant 11 : index
      %c0_146 = arith.constant 0 : index
      %c0_147 = arith.constant 0 : index
      %194 = vector.load %arg2[%c11, %c0_146, %c0_147] : memref<25x1x32xf32, #tpu.memory_space<vmem>>, vector<1x1x32xf32>
      %195 = vector.shape_cast %194 : vector<1x1x32xf32> to vector<1x32xf32>
      %196 = vector.broadcast %193 : vector<24x1xf32> to vector<24x32xf32>
      %197 = vector.broadcast %195 : vector<1x32xf32> to vector<24x32xf32>
      %198 = arith.mulf %196, %197 : vector<24x32xf32>
      %199 = arith.addf %189, %198 : vector<24x32xf32>
      %c2_i32_148 = arith.constant 2 : i32
      %200 = arith.addi %arg23, %c2_i32_148 : i32
      %c0_149 = arith.constant 0 : index
      %201 = arith.index_cast %200 : i32 to index
      %c2_150 = arith.constant 2 : index
      %c0_151 = arith.constant 0 : index
      %202 = vector.load %arg1[%c0_149, %201, %c2_150, %c0_151] : memref<1x28x28x1xf32, #tpu.memory_space<vmem>>, vector<1x1x24x1xf32>
      %203 = vector.shape_cast %202 : vector<1x1x24x1xf32> to vector<24x1xf32>
      %c12 = arith.constant 12 : index
      %c0_152 = arith.constant 0 : index
      %c0_153 = arith.constant 0 : index
      %204 = vector.load %arg2[%c12, %c0_152, %c0_153] : memref<25x1x32xf32, #tpu.memory_space<vmem>>, vector<1x1x32xf32>
      %205 = vector.shape_cast %204 : vector<1x1x32xf32> to vector<1x32xf32>
      %206 = vector.broadcast %203 : vector<24x1xf32> to vector<24x32xf32>
      %207 = vector.broadcast %205 : vector<1x32xf32> to vector<24x32xf32>
      %208 = arith.mulf %206, %207 : vector<24x32xf32>
      %209 = arith.addf %199, %208 : vector<24x32xf32>
      %c2_i32_154 = arith.constant 2 : i32
      %210 = arith.addi %arg23, %c2_i32_154 : i32
      %c0_155 = arith.constant 0 : index
      %211 = arith.index_cast %210 : i32 to index
      %c3_156 = arith.constant 3 : index
      %c0_157 = arith.constant 0 : index
      %212 = vector.load %arg1[%c0_155, %211, %c3_156, %c0_157] : memref<1x28x28x1xf32, #tpu.memory_space<vmem>>, vector<1x1x24x1xf32>
      %213 = vector.shape_cast %212 : vector<1x1x24x1xf32> to vector<24x1xf32>
      %c13 = arith.constant 13 : index
      %c0_158 = arith.constant 0 : index
      %c0_159 = arith.constant 0 : index
      %214 = vector.load %arg2[%c13, %c0_158, %c0_159] : memref<25x1x32xf32, #tpu.memory_space<vmem>>, vector<1x1x32xf32>
      %215 = vector.shape_cast %214 : vector<1x1x32xf32> to vector<1x32xf32>
      %216 = vector.broadcast %213 : vector<24x1xf32> to vector<24x32xf32>
      %217 = vector.broadcast %215 : vector<1x32xf32> to vector<24x32xf32>
      %218 = arith.mulf %216, %217 : vector<24x32xf32>
      %219 = arith.addf %209, %218 : vector<24x32xf32>
      %c2_i32_160 = arith.constant 2 : i32
      %220 = arith.addi %arg23, %c2_i32_160 : i32
      %c0_161 = arith.constant 0 : index
      %221 = arith.index_cast %220 : i32 to index
      %c4_162 = arith.constant 4 : index
      %c0_163 = arith.constant 0 : index
      %222 = vector.load %arg1[%c0_161, %221, %c4_162, %c0_163] : memref<1x28x28x1xf32, #tpu.memory_space<vmem>>, vector<1x1x24x1xf32>
      %223 = vector.shape_cast %222 : vector<1x1x24x1xf32> to vector<24x1xf32>
      %c14 = arith.constant 14 : index
      %c0_164 = arith.constant 0 : index
      %c0_165 = arith.constant 0 : index
      %224 = vector.load %arg2[%c14, %c0_164, %c0_165] : memref<25x1x32xf32, #tpu.memory_space<vmem>>, vector<1x1x32xf32>
      %225 = vector.shape_cast %224 : vector<1x1x32xf32> to vector<1x32xf32>
      %226 = vector.broadcast %223 : vector<24x1xf32> to vector<24x32xf32>
      %227 = vector.broadcast %225 : vector<1x32xf32> to vector<24x32xf32>
      %228 = arith.mulf %226, %227 : vector<24x32xf32>
      %229 = arith.addf %219, %228 : vector<24x32xf32>
      %c3_i32 = arith.constant 3 : i32
      %230 = arith.addi %arg23, %c3_i32 : i32
      %c0_166 = arith.constant 0 : index
      %231 = arith.index_cast %230 : i32 to index
      %c0_167 = arith.constant 0 : index
      %c0_168 = arith.constant 0 : index
      %232 = vector.load %arg1[%c0_166, %231, %c0_167, %c0_168] : memref<1x28x28x1xf32, #tpu.memory_space<vmem>>, vector<1x1x24x1xf32>
      %233 = vector.shape_cast %232 : vector<1x1x24x1xf32> to vector<24x1xf32>
      %c15 = arith.constant 15 : index
      %c0_169 = arith.constant 0 : index
      %c0_170 = arith.constant 0 : index
      %234 = vector.load %arg2[%c15, %c0_169, %c0_170] : memref<25x1x32xf32, #tpu.memory_space<vmem>>, vector<1x1x32xf32>
      %235 = vector.shape_cast %234 : vector<1x1x32xf32> to vector<1x32xf32>
      %236 = vector.broadcast %233 : vector<24x1xf32> to vector<24x32xf32>
      %237 = vector.broadcast %235 : vector<1x32xf32> to vector<24x32xf32>
      %238 = arith.mulf %236, %237 : vector<24x32xf32>
      %239 = arith.addf %229, %238 : vector<24x32xf32>
      %c3_i32_171 = arith.constant 3 : i32
      %240 = arith.addi %arg23, %c3_i32_171 : i32
      %c0_172 = arith.constant 0 : index
      %241 = arith.index_cast %240 : i32 to index
      %c1_173 = arith.constant 1 : index
      %c0_174 = arith.constant 0 : index
      %242 = vector.load %arg1[%c0_172, %241, %c1_173, %c0_174] : memref<1x28x28x1xf32, #tpu.memory_space<vmem>>, vector<1x1x24x1xf32>
      %243 = vector.shape_cast %242 : vector<1x1x24x1xf32> to vector<24x1xf32>
      %c16 = arith.constant 16 : index
      %c0_175 = arith.constant 0 : index
      %c0_176 = arith.constant 0 : index
      %244 = vector.load %arg2[%c16, %c0_175, %c0_176] : memref<25x1x32xf32, #tpu.memory_space<vmem>>, vector<1x1x32xf32>
      %245 = vector.shape_cast %244 : vector<1x1x32xf32> to vector<1x32xf32>
      %246 = vector.broadcast %243 : vector<24x1xf32> to vector<24x32xf32>
      %247 = vector.broadcast %245 : vector<1x32xf32> to vector<24x32xf32>
      %248 = arith.mulf %246, %247 : vector<24x32xf32>
      %249 = arith.addf %239, %248 : vector<24x32xf32>
      %c3_i32_177 = arith.constant 3 : i32
      %250 = arith.addi %arg23, %c3_i32_177 : i32
      %c0_178 = arith.constant 0 : index
      %251 = arith.index_cast %250 : i32 to index
      %c2_179 = arith.constant 2 : index
      %c0_180 = arith.constant 0 : index
      %252 = vector.load %arg1[%c0_178, %251, %c2_179, %c0_180] : memref<1x28x28x1xf32, #tpu.memory_space<vmem>>, vector<1x1x24x1xf32>
      %253 = vector.shape_cast %252 : vector<1x1x24x1xf32> to vector<24x1xf32>
      %c17 = arith.constant 17 : index
      %c0_181 = arith.constant 0 : index
      %c0_182 = arith.constant 0 : index
      %254 = vector.load %arg2[%c17, %c0_181, %c0_182] : memref<25x1x32xf32, #tpu.memory_space<vmem>>, vector<1x1x32xf32>
      %255 = vector.shape_cast %254 : vector<1x1x32xf32> to vector<1x32xf32>
      %256 = vector.broadcast %253 : vector<24x1xf32> to vector<24x32xf32>
      %257 = vector.broadcast %255 : vector<1x32xf32> to vector<24x32xf32>
      %258 = arith.mulf %256, %257 : vector<24x32xf32>
      %259 = arith.addf %249, %258 : vector<24x32xf32>
      %c3_i32_183 = arith.constant 3 : i32
      %260 = arith.addi %arg23, %c3_i32_183 : i32
      %c0_184 = arith.constant 0 : index
      %261 = arith.index_cast %260 : i32 to index
      %c3_185 = arith.constant 3 : index
      %c0_186 = arith.constant 0 : index
      %262 = vector.load %arg1[%c0_184, %261, %c3_185, %c0_186] : memref<1x28x28x1xf32, #tpu.memory_space<vmem>>, vector<1x1x24x1xf32>
      %263 = vector.shape_cast %262 : vector<1x1x24x1xf32> to vector<24x1xf32>
      %c18 = arith.constant 18 : index
      %c0_187 = arith.constant 0 : index
      %c0_188 = arith.constant 0 : index
      %264 = vector.load %arg2[%c18, %c0_187, %c0_188] : memref<25x1x32xf32, #tpu.memory_space<vmem>>, vector<1x1x32xf32>
      %265 = vector.shape_cast %264 : vector<1x1x32xf32> to vector<1x32xf32>
      %266 = vector.broadcast %263 : vector<24x1xf32> to vector<24x32xf32>
      %267 = vector.broadcast %265 : vector<1x32xf32> to vector<24x32xf32>
      %268 = arith.mulf %266, %267 : vector<24x32xf32>
      %269 = arith.addf %259, %268 : vector<24x32xf32>
      %c3_i32_189 = arith.constant 3 : i32
      %270 = arith.addi %arg23, %c3_i32_189 : i32
      %c0_190 = arith.constant 0 : index
      %271 = arith.index_cast %270 : i32 to index
      %c4_191 = arith.constant 4 : index
      %c0_192 = arith.constant 0 : index
      %272 = vector.load %arg1[%c0_190, %271, %c4_191, %c0_192] : memref<1x28x28x1xf32, #tpu.memory_space<vmem>>, vector<1x1x24x1xf32>
      %273 = vector.shape_cast %272 : vector<1x1x24x1xf32> to vector<24x1xf32>
      %c19 = arith.constant 19 : index
      %c0_193 = arith.constant 0 : index
      %c0_194 = arith.constant 0 : index
      %274 = vector.load %arg2[%c19, %c0_193, %c0_194] : memref<25x1x32xf32, #tpu.memory_space<vmem>>, vector<1x1x32xf32>
      %275 = vector.shape_cast %274 : vector<1x1x32xf32> to vector<1x32xf32>
      %276 = vector.broadcast %273 : vector<24x1xf32> to vector<24x32xf32>
      %277 = vector.broadcast %275 : vector<1x32xf32> to vector<24x32xf32>
      %278 = arith.mulf %276, %277 : vector<24x32xf32>
      %279 = arith.addf %269, %278 : vector<24x32xf32>
      %c4_i32_195 = arith.constant 4 : i32
      %280 = arith.addi %arg23, %c4_i32_195 : i32
      %c0_196 = arith.constant 0 : index
      %281 = arith.index_cast %280 : i32 to index
      %c0_197 = arith.constant 0 : index
      %c0_198 = arith.constant 0 : index
      %282 = vector.load %arg1[%c0_196, %281, %c0_197, %c0_198] : memref<1x28x28x1xf32, #tpu.memory_space<vmem>>, vector<1x1x24x1xf32>
      %283 = vector.shape_cast %282 : vector<1x1x24x1xf32> to vector<24x1xf32>
      %c20 = arith.constant 20 : index
      %c0_199 = arith.constant 0 : index
      %c0_200 = arith.constant 0 : index
      %284 = vector.load %arg2[%c20, %c0_199, %c0_200] : memref<25x1x32xf32, #tpu.memory_space<vmem>>, vector<1x1x32xf32>
      %285 = vector.shape_cast %284 : vector<1x1x32xf32> to vector<1x32xf32>
      %286 = vector.broadcast %283 : vector<24x1xf32> to vector<24x32xf32>
      %287 = vector.broadcast %285 : vector<1x32xf32> to vector<24x32xf32>
      %288 = arith.mulf %286, %287 : vector<24x32xf32>
      %289 = arith.addf %279, %288 : vector<24x32xf32>
      %c4_i32_201 = arith.constant 4 : i32
      %290 = arith.addi %arg23, %c4_i32_201 : i32
      %c0_202 = arith.constant 0 : index
      %291 = arith.index_cast %290 : i32 to index
      %c1_203 = arith.constant 1 : index
      %c0_204 = arith.constant 0 : index
      %292 = vector.load %arg1[%c0_202, %291, %c1_203, %c0_204] : memref<1x28x28x1xf32, #tpu.memory_space<vmem>>, vector<1x1x24x1xf32>
      %293 = vector.shape_cast %292 : vector<1x1x24x1xf32> to vector<24x1xf32>
      %c21 = arith.constant 21 : index
      %c0_205 = arith.constant 0 : index
      %c0_206 = arith.constant 0 : index
      %294 = vector.load %arg2[%c21, %c0_205, %c0_206] : memref<25x1x32xf32, #tpu.memory_space<vmem>>, vector<1x1x32xf32>
      %295 = vector.shape_cast %294 : vector<1x1x32xf32> to vector<1x32xf32>
      %296 = vector.broadcast %293 : vector<24x1xf32> to vector<24x32xf32>
      %297 = vector.broadcast %295 : vector<1x32xf32> to vector<24x32xf32>
      %298 = arith.mulf %296, %297 : vector<24x32xf32>
      %299 = arith.addf %289, %298 : vector<24x32xf32>
      %c4_i32_207 = arith.constant 4 : i32
      %300 = arith.addi %arg23, %c4_i32_207 : i32
      %c0_208 = arith.constant 0 : index
      %301 = arith.index_cast %300 : i32 to index
      %c2_209 = arith.constant 2 : index
      %c0_210 = arith.constant 0 : index
      %302 = vector.load %arg1[%c0_208, %301, %c2_209, %c0_210] : memref<1x28x28x1xf32, #tpu.memory_space<vmem>>, vector<1x1x24x1xf32>
      %303 = vector.shape_cast %302 : vector<1x1x24x1xf32> to vector<24x1xf32>
      %c22 = arith.constant 22 : index
      %c0_211 = arith.constant 0 : index
      %c0_212 = arith.constant 0 : index
      %304 = vector.load %arg2[%c22, %c0_211, %c0_212] : memref<25x1x32xf32, #tpu.memory_space<vmem>>, vector<1x1x32xf32>
      %305 = vector.shape_cast %304 : vector<1x1x32xf32> to vector<1x32xf32>
      %306 = vector.broadcast %303 : vector<24x1xf32> to vector<24x32xf32>
      %307 = vector.broadcast %305 : vector<1x32xf32> to vector<24x32xf32>
      %308 = arith.mulf %306, %307 : vector<24x32xf32>
      %309 = arith.addf %299, %308 : vector<24x32xf32>
      %c4_i32_213 = arith.constant 4 : i32
      %310 = arith.addi %arg23, %c4_i32_213 : i32
      %c0_214 = arith.constant 0 : index
      %311 = arith.index_cast %310 : i32 to index
      %c3_215 = arith.constant 3 : index
      %c0_216 = arith.constant 0 : index
      %312 = vector.load %arg1[%c0_214, %311, %c3_215, %c0_216] : memref<1x28x28x1xf32, #tpu.memory_space<vmem>>, vector<1x1x24x1xf32>
      %313 = vector.shape_cast %312 : vector<1x1x24x1xf32> to vector<24x1xf32>
      %c23 = arith.constant 23 : index
      %c0_217 = arith.constant 0 : index
      %c0_218 = arith.constant 0 : index
      %314 = vector.load %arg2[%c23, %c0_217, %c0_218] : memref<25x1x32xf32, #tpu.memory_space<vmem>>, vector<1x1x32xf32>
      %315 = vector.shape_cast %314 : vector<1x1x32xf32> to vector<1x32xf32>
      %316 = vector.broadcast %313 : vector<24x1xf32> to vector<24x32xf32>
      %317 = vector.broadcast %315 : vector<1x32xf32> to vector<24x32xf32>
      %318 = arith.mulf %316, %317 : vector<24x32xf32>
      %319 = arith.addf %309, %318 : vector<24x32xf32>
      %c4_i32_219 = arith.constant 4 : i32
      %320 = arith.addi %arg23, %c4_i32_219 : i32
      %c0_220 = arith.constant 0 : index
      %321 = arith.index_cast %320 : i32 to index
      %c4_221 = arith.constant 4 : index
      %c0_222 = arith.constant 0 : index
      %322 = vector.load %arg1[%c0_220, %321, %c4_221, %c0_222] : memref<1x28x28x1xf32, #tpu.memory_space<vmem>>, vector<1x1x24x1xf32>
      %323 = vector.shape_cast %322 : vector<1x1x24x1xf32> to vector<24x1xf32>
      %c24 = arith.constant 24 : index
      %c0_223 = arith.constant 0 : index
      %c0_224 = arith.constant 0 : index
      %324 = vector.load %arg2[%c24, %c0_223, %c0_224] : memref<25x1x32xf32, #tpu.memory_space<vmem>>, vector<1x1x32xf32>
      %325 = vector.shape_cast %324 : vector<1x1x32xf32> to vector<1x32xf32>
      %326 = vector.broadcast %323 : vector<24x1xf32> to vector<24x32xf32>
      %327 = vector.broadcast %325 : vector<1x32xf32> to vector<24x32xf32>
      %328 = arith.mulf %326, %327 : vector<24x32xf32>
      %329 = arith.addf %319, %328 : vector<24x32xf32>
      %330 = vector.broadcast %0 : vector<1x32xf32> to vector<24x32xf32>
      %331 = arith.mulf %329, %330 : vector<24x32xf32>
      %332 = vector.broadcast %1 : vector<1x32xf32> to vector<24x32xf32>
      %333 = arith.addf %331, %332 : vector<24x32xf32>
      %cst_225 = arith.constant 0.000000e+00 : f32
      %334 = vector.broadcast %cst_225 : f32 to vector<24x32xf32>
      %335 = arith.maximumf %333, %334 : vector<24x32xf32>
      %c0_i32_226 = arith.constant 0 : i32
      %336 = arith.addi %c0_i32_226, %arg23 : i32
      %337 = arith.index_cast %336 : i32 to index
      %c0_227 = arith.constant 0 : index
      %c0_228 = arith.constant 0 : index
      %338 = vector.load %arg17[%337, %c0_227, %c0_228] : memref<24x24x32xf32, #tpu.memory_space<vmem>>, vector<1x24x32xf32>
      %339 = vector.shape_cast %338 : vector<1x24x32xf32> to vector<24x32xf32>
      %340 = vector.shape_cast %335 : vector<24x32xf32> to vector<1x24x32xf32>
      tpu.vector_store %arg17[%337, %c0_227, %c0_228], %340 {strides = array<i32>} : memref<24x24x32xf32, #tpu.memory_space<vmem>>, vector<1x24x32xf32>,
    }
    %c24_i32_3 = arith.constant 24 : i32
    %c0_4 = arith.constant 0 : index
    %c0_5 = arith.constant 0 : index
    %3 = vector.load %arg6[%c0_4, %c0_5] : memref<1x32xf32, #tpu.memory_space<vmem>>, vector<1x32xf32>
    %c0_6 = arith.constant 0 : index
    %c0_7 = arith.constant 0 : index
    %4 = vector.load %arg7[%c0_6, %c0_7] : memref<1x32xf32, #tpu.memory_space<vmem>>, vector<1x32xf32>
    %c0_i32_8 = arith.constant 0 : i32
    %c20_i32 = arith.constant 20 : i32
    %5 = arith.addi %c0_i32_8, %c20_i32 : i32
    %c1_i32_9 = arith.constant 1 : i32
    scf.for %arg23 = %c0_i32_8 to %5 step %c1_i32_9  : i32 {
      %cst_71 = arith.constant 0.000000e+00 : f32
      %79 = vector.broadcast %cst_71 : f32 to vector<20x32xf32>
      %c0_i32_72 = arith.constant 0 : i32
      %80 = arith.addi %arg23, %c0_i32_72 : i32
      %81 = arith.index_cast %80 : i32 to index
      %c0_73 = arith.constant 0 : index
      %c0_74 = arith.constant 0 : index
      %82 = vector.load %arg17[%81, %c0_73, %c0_74] : memref<24x24x32xf32, #tpu.memory_space<vmem>>, vector<1x20x32xf32>
      %83 = vector.shape_cast %82 : vector<1x20x32xf32> to vector<20x32xf32>
      %c0_75 = arith.constant 0 : index
      %c0_76 = arith.constant 0 : index
      %c0_77 = arith.constant 0 : index
      %84 = vector.load %arg5[%c0_75, %c0_76, %c0_77] : memref<25x32x32xf32, #tpu.memory_space<vmem>>, vector<1x32x32xf32>
      %85 = vector.shape_cast %84 : vector<1x32x32xf32> to vector<32x32xf32>
      %cst_78 = arith.constant dense<0.000000e+00> : vector<20x32xf32>
      %86 = tpu.matmul %83, %85, %cst_78 {dimension_numbers = #tpu.dot_dimension_numbers<[1], [0], [0], [1], [0, 0, 1, 1], [], []>} : vector<20x32xf32>, vector<32x32xf32>, vector<20x32xf32> -> vector<20x32xf32>
      %87 = arith.addf %79, %86 : vector<20x32xf32>
      %c0_i32_79 = arith.constant 0 : i32
      %88 = arith.addi %arg23, %c0_i32_79 : i32
      %89 = arith.index_cast %88 : i32 to index
      %c1_80 = arith.constant 1 : index
      %c0_81 = arith.constant 0 : index
      %90 = vector.load %arg17[%89, %c1_80, %c0_81] : memref<24x24x32xf32, #tpu.memory_space<vmem>>, vector<1x20x32xf32>
      %91 = vector.shape_cast %90 : vector<1x20x32xf32> to vector<20x32xf32>
      %c1_82 = arith.constant 1 : index
      %c0_83 = arith.constant 0 : index
      %c0_84 = arith.constant 0 : index
      %92 = vector.load %arg5[%c1_82, %c0_83, %c0_84] : memref<25x32x32xf32, #tpu.memory_space<vmem>>, vector<1x32x32xf32>
      %93 = vector.shape_cast %92 : vector<1x32x32xf32> to vector<32x32xf32>
      %cst_85 = arith.constant dense<0.000000e+00> : vector<20x32xf32>
      %94 = tpu.matmul %91, %93, %cst_85 {dimension_numbers = #tpu.dot_dimension_numbers<[1], [0], [0], [1], [0, 0, 1, 1], [], []>} : vector<20x32xf32>, vector<32x32xf32>, vector<20x32xf32> -> vector<20x32xf32>
      %95 = arith.addf %87, %94 : vector<20x32xf32>
      %c0_i32_86 = arith.constant 0 : i32
      %96 = arith.addi %arg23, %c0_i32_86 : i32
      %97 = arith.index_cast %96 : i32 to index
      %c2_87 = arith.constant 2 : index
      %c0_88 = arith.constant 0 : index
      %98 = vector.load %arg17[%97, %c2_87, %c0_88] : memref<24x24x32xf32, #tpu.memory_space<vmem>>, vector<1x20x32xf32>
      %99 = vector.shape_cast %98 : vector<1x20x32xf32> to vector<20x32xf32>
      %c2_89 = arith.constant 2 : index
      %c0_90 = arith.constant 0 : index
      %c0_91 = arith.constant 0 : index
      %100 = vector.load %arg5[%c2_89, %c0_90, %c0_91] : memref<25x32x32xf32, #tpu.memory_space<vmem>>, vector<1x32x32xf32>
      %101 = vector.shape_cast %100 : vector<1x32x32xf32> to vector<32x32xf32>
      %cst_92 = arith.constant dense<0.000000e+00> : vector<20x32xf32>
      %102 = tpu.matmul %99, %101, %cst_92 {dimension_numbers = #tpu.dot_dimension_numbers<[1], [0], [0], [1], [0, 0, 1, 1], [], []>} : vector<20x32xf32>, vector<32x32xf32>, vector<20x32xf32> -> vector<20x32xf32>
      %103 = arith.addf %95, %102 : vector<20x32xf32>
      %c0_i32_93 = arith.constant 0 : i32
      %104 = arith.addi %arg23, %c0_i32_93 : i32
      %105 = arith.index_cast %104 : i32 to index
      %c3_94 = arith.constant 3 : index
      %c0_95 = arith.constant 0 : index
      %106 = vector.load %arg17[%105, %c3_94, %c0_95] : memref<24x24x32xf32, #tpu.memory_space<vmem>>, vector<1x20x32xf32>
      %107 = vector.shape_cast %106 : vector<1x20x32xf32> to vector<20x32xf32>
      %c3_96 = arith.constant 3 : index
      %c0_97 = arith.constant 0 : index
      %c0_98 = arith.constant 0 : index
      %108 = vector.load %arg5[%c3_96, %c0_97, %c0_98] : memref<25x32x32xf32, #tpu.memory_space<vmem>>, vector<1x32x32xf32>
      %109 = vector.shape_cast %108 : vector<1x32x32xf32> to vector<32x32xf32>
      %cst_99 = arith.constant dense<0.000000e+00> : vector<20x32xf32>
      %110 = tpu.matmul %107, %109, %cst_99 {dimension_numbers = #tpu.dot_dimension_numbers<[1], [0], [0], [1], [0, 0, 1, 1], [], []>} : vector<20x32xf32>, vector<32x32xf32>, vector<20x32xf32> -> vector<20x32xf32>
      %111 = arith.addf %103, %110 : vector<20x32xf32>
      %c0_i32_100 = arith.constant 0 : i32
      %112 = arith.addi %arg23, %c0_i32_100 : i32
      %113 = arith.index_cast %112 : i32 to index
      %c4 = arith.constant 4 : index
      %c0_101 = arith.constant 0 : index
      %114 = vector.load %arg17[%113, %c4, %c0_101] : memref<24x24x32xf32, #tpu.memory_space<vmem>>, vector<1x20x32xf32>
      %115 = vector.shape_cast %114 : vector<1x20x32xf32> to vector<20x32xf32>
      %c4_102 = arith.constant 4 : index
      %c0_103 = arith.constant 0 : index
      %c0_104 = arith.constant 0 : index
      %116 = vector.load %arg5[%c4_102, %c0_103, %c0_104] : memref<25x32x32xf32, #tpu.memory_space<vmem>>, vector<1x32x32xf32>
      %117 = vector.shape_cast %116 : vector<1x32x32xf32> to vector<32x32xf32>
      %cst_105 = arith.constant dense<0.000000e+00> : vector<20x32xf32>
      %118 = tpu.matmul %115, %117, %cst_105 {dimension_numbers = #tpu.dot_dimension_numbers<[1], [0], [0], [1], [0, 0, 1, 1], [], []>} : vector<20x32xf32>, vector<32x32xf32>, vector<20x32xf32> -> vector<20x32xf32>
      %119 = arith.addf %111, %118 : vector<20x32xf32>
      %c1_i32_106 = arith.constant 1 : i32
      %120 = arith.addi %arg23, %c1_i32_106 : i32
      %121 = arith.index_cast %120 : i32 to index
      %c0_107 = arith.constant 0 : index
      %c0_108 = arith.constant 0 : index
      %122 = vector.load %arg17[%121, %c0_107, %c0_108] : memref<24x24x32xf32, #tpu.memory_space<vmem>>, vector<1x20x32xf32>
      %123 = vector.shape_cast %122 : vector<1x20x32xf32> to vector<20x32xf32>
      %c5 = arith.constant 5 : index
      %c0_109 = arith.constant 0 : index
      %c0_110 = arith.constant 0 : index
      %124 = vector.load %arg5[%c5, %c0_109, %c0_110] : memref<25x32x32xf32, #tpu.memory_space<vmem>>, vector<1x32x32xf32>
      %125 = vector.shape_cast %124 : vector<1x32x32xf32> to vector<32x32xf32>
      %cst_111 = arith.constant dense<0.000000e+00> : vector<20x32xf32>
      %126 = tpu.matmul %123, %125, %cst_111 {dimension_numbers = #tpu.dot_dimension_numbers<[1], [0], [0], [1], [0, 0, 1, 1], [], []>} : vector<20x32xf32>, vector<32x32xf32>, vector<20x32xf32> -> vector<20x32xf32>
      %127 = arith.addf %119, %126 : vector<20x32xf32>
      %c1_i32_112 = arith.constant 1 : i32
      %128 = arith.addi %arg23, %c1_i32_112 : i32
      %129 = arith.index_cast %128 : i32 to index
      %c1_113 = arith.constant 1 : index
      %c0_114 = arith.constant 0 : index
      %130 = vector.load %arg17[%129, %c1_113, %c0_114] : memref<24x24x32xf32, #tpu.memory_space<vmem>>, vector<1x20x32xf32>
      %131 = vector.shape_cast %130 : vector<1x20x32xf32> to vector<20x32xf32>
      %c6 = arith.constant 6 : index
      %c0_115 = arith.constant 0 : index
      %c0_116 = arith.constant 0 : index
      %132 = vector.load %arg5[%c6, %c0_115, %c0_116] : memref<25x32x32xf32, #tpu.memory_space<vmem>>, vector<1x32x32xf32>
      %133 = vector.shape_cast %132 : vector<1x32x32xf32> to vector<32x32xf32>
      %cst_117 = arith.constant dense<0.000000e+00> : vector<20x32xf32>
      %134 = tpu.matmul %131, %133, %cst_117 {dimension_numbers = #tpu.dot_dimension_numbers<[1], [0], [0], [1], [0, 0, 1, 1], [], []>} : vector<20x32xf32>, vector<32x32xf32>, vector<20x32xf32> -> vector<20x32xf32>
      %135 = arith.addf %127, %134 : vector<20x32xf32>
      %c1_i32_118 = arith.constant 1 : i32
      %136 = arith.addi %arg23, %c1_i32_118 : i32
      %137 = arith.index_cast %136 : i32 to index
      %c2_119 = arith.constant 2 : index
      %c0_120 = arith.constant 0 : index
      %138 = vector.load %arg17[%137, %c2_119, %c0_120] : memref<24x24x32xf32, #tpu.memory_space<vmem>>, vector<1x20x32xf32>
      %139 = vector.shape_cast %138 : vector<1x20x32xf32> to vector<20x32xf32>
      %c7 = arith.constant 7 : index
      %c0_121 = arith.constant 0 : index
      %c0_122 = arith.constant 0 : index
      %140 = vector.load %arg5[%c7, %c0_121, %c0_122] : memref<25x32x32xf32, #tpu.memory_space<vmem>>, vector<1x32x32xf32>
      %141 = vector.shape_cast %140 : vector<1x32x32xf32> to vector<32x32xf32>
      %cst_123 = arith.constant dense<0.000000e+00> : vector<20x32xf32>
      %142 = tpu.matmul %139, %141, %cst_123 {dimension_numbers = #tpu.dot_dimension_numbers<[1], [0], [0], [1], [0, 0, 1, 1], [], []>} : vector<20x32xf32>, vector<32x32xf32>, vector<20x32xf32> -> vector<20x32xf32>
      %143 = arith.addf %135, %142 : vector<20x32xf32>
      %c1_i32_124 = arith.constant 1 : i32
      %144 = arith.addi %arg23, %c1_i32_124 : i32
      %145 = arith.index_cast %144 : i32 to index
      %c3_125 = arith.constant 3 : index
      %c0_126 = arith.constant 0 : index
      %146 = vector.load %arg17[%145, %c3_125, %c0_126] : memref<24x24x32xf32, #tpu.memory_space<vmem>>, vector<1x20x32xf32>
      %147 = vector.shape_cast %146 : vector<1x20x32xf32> to vector<20x32xf32>
      %c8 = arith.constant 8 : index
      %c0_127 = arith.constant 0 : index
      %c0_128 = arith.constant 0 : index
      %148 = vector.load %arg5[%c8, %c0_127, %c0_128] : memref<25x32x32xf32, #tpu.memory_space<vmem>>, vector<1x32x32xf32>
      %149 = vector.shape_cast %148 : vector<1x32x32xf32> to vector<32x32xf32>
      %cst_129 = arith.constant dense<0.000000e+00> : vector<20x32xf32>
      %150 = tpu.matmul %147, %149, %cst_129 {dimension_numbers = #tpu.dot_dimension_numbers<[1], [0], [0], [1], [0, 0, 1, 1], [], []>} : vector<20x32xf32>, vector<32x32xf32>, vector<20x32xf32> -> vector<20x32xf32>
      %151 = arith.addf %143, %150 : vector<20x32xf32>
      %c1_i32_130 = arith.constant 1 : i32
      %152 = arith.addi %arg23, %c1_i32_130 : i32
      %153 = arith.index_cast %152 : i32 to index
      %c4_131 = arith.constant 4 : index
      %c0_132 = arith.constant 0 : index
      %154 = vector.load %arg17[%153, %c4_131, %c0_132] : memref<24x24x32xf32, #tpu.memory_space<vmem>>, vector<1x20x32xf32>
      %155 = vector.shape_cast %154 : vector<1x20x32xf32> to vector<20x32xf32>
      %c9 = arith.constant 9 : index
      %c0_133 = arith.constant 0 : index
      %c0_134 = arith.constant 0 : index
      %156 = vector.load %arg5[%c9, %c0_133, %c0_134] : memref<25x32x32xf32, #tpu.memory_space<vmem>>, vector<1x32x32xf32>
      %157 = vector.shape_cast %156 : vector<1x32x32xf32> to vector<32x32xf32>
      %cst_135 = arith.constant dense<0.000000e+00> : vector<20x32xf32>
      %158 = tpu.matmul %155, %157, %cst_135 {dimension_numbers = #tpu.dot_dimension_numbers<[1], [0], [0], [1], [0, 0, 1, 1], [], []>} : vector<20x32xf32>, vector<32x32xf32>, vector<20x32xf32> -> vector<20x32xf32>
      %159 = arith.addf %151, %158 : vector<20x32xf32>
      %c2_i32_136 = arith.constant 2 : i32
      %160 = arith.addi %arg23, %c2_i32_136 : i32
      %161 = arith.index_cast %160 : i32 to index
      %c0_137 = arith.constant 0 : index
      %c0_138 = arith.constant 0 : index
      %162 = vector.load %arg17[%161, %c0_137, %c0_138] : memref<24x24x32xf32, #tpu.memory_space<vmem>>, vector<1x20x32xf32>
      %163 = vector.shape_cast %162 : vector<1x20x32xf32> to vector<20x32xf32>
      %c10 = arith.constant 10 : index
      %c0_139 = arith.constant 0 : index
      %c0_140 = arith.constant 0 : index
      %164 = vector.load %arg5[%c10, %c0_139, %c0_140] : memref<25x32x32xf32, #tpu.memory_space<vmem>>, vector<1x32x32xf32>
      %165 = vector.shape_cast %164 : vector<1x32x32xf32> to vector<32x32xf32>
      %cst_141 = arith.constant dense<0.000000e+00> : vector<20x32xf32>
      %166 = tpu.matmul %163, %165, %cst_141 {dimension_numbers = #tpu.dot_dimension_numbers<[1], [0], [0], [1], [0, 0, 1, 1], [], []>} : vector<20x32xf32>, vector<32x32xf32>, vector<20x32xf32> -> vector<20x32xf32>
      %167 = arith.addf %159, %166 : vector<20x32xf32>
      %c2_i32_142 = arith.constant 2 : i32
      %168 = arith.addi %arg23, %c2_i32_142 : i32
      %169 = arith.index_cast %168 : i32 to index
      %c1_143 = arith.constant 1 : index
      %c0_144 = arith.constant 0 : index
      %170 = vector.load %arg17[%169, %c1_143, %c0_144] : memref<24x24x32xf32, #tpu.memory_space<vmem>>, vector<1x20x32xf32>
      %171 = vector.shape_cast %170 : vector<1x20x32xf32> to vector<20x32xf32>
      %c11 = arith.constant 11 : index
      %c0_145 = arith.constant 0 : index
      %c0_146 = arith.constant 0 : index
      %172 = vector.load %arg5[%c11, %c0_145, %c0_146] : memref<25x32x32xf32, #tpu.memory_space<vmem>>, vector<1x32x32xf32>
      %173 = vector.shape_cast %172 : vector<1x32x32xf32> to vector<32x32xf32>
      %cst_147 = arith.constant dense<0.000000e+00> : vector<20x32xf32>
      %174 = tpu.matmul %171, %173, %cst_147 {dimension_numbers = #tpu.dot_dimension_numbers<[1], [0], [0], [1], [0, 0, 1, 1], [], []>} : vector<20x32xf32>, vector<32x32xf32>, vector<20x32xf32> -> vector<20x32xf32>
      %175 = arith.addf %167, %174 : vector<20x32xf32>
      %c2_i32_148 = arith.constant 2 : i32
      %176 = arith.addi %arg23, %c2_i32_148 : i32
      %177 = arith.index_cast %176 : i32 to index
      %c2_149 = arith.constant 2 : index
      %c0_150 = arith.constant 0 : index
      %178 = vector.load %arg17[%177, %c2_149, %c0_150] : memref<24x24x32xf32, #tpu.memory_space<vmem>>, vector<1x20x32xf32>
      %179 = vector.shape_cast %178 : vector<1x20x32xf32> to vector<20x32xf32>
      %c12 = arith.constant 12 : index
      %c0_151 = arith.constant 0 : index
      %c0_152 = arith.constant 0 : index
      %180 = vector.load %arg5[%c12, %c0_151, %c0_152] : memref<25x32x32xf32, #tpu.memory_space<vmem>>, vector<1x32x32xf32>
      %181 = vector.shape_cast %180 : vector<1x32x32xf32> to vector<32x32xf32>
      %cst_153 = arith.constant dense<0.000000e+00> : vector<20x32xf32>
      %182 = tpu.matmul %179, %181, %cst_153 {dimension_numbers = #tpu.dot_dimension_numbers<[1], [0], [0], [1], [0, 0, 1, 1], [], []>} : vector<20x32xf32>, vector<32x32xf32>, vector<20x32xf32> -> vector<20x32xf32>
      %183 = arith.addf %175, %182 : vector<20x32xf32>
      %c2_i32_154 = arith.constant 2 : i32
      %184 = arith.addi %arg23, %c2_i32_154 : i32
      %185 = arith.index_cast %184 : i32 to index
      %c3_155 = arith.constant 3 : index
      %c0_156 = arith.constant 0 : index
      %186 = vector.load %arg17[%185, %c3_155, %c0_156] : memref<24x24x32xf32, #tpu.memory_space<vmem>>, vector<1x20x32xf32>
      %187 = vector.shape_cast %186 : vector<1x20x32xf32> to vector<20x32xf32>
      %c13 = arith.constant 13 : index
      %c0_157 = arith.constant 0 : index
      %c0_158 = arith.constant 0 : index
      %188 = vector.load %arg5[%c13, %c0_157, %c0_158] : memref<25x32x32xf32, #tpu.memory_space<vmem>>, vector<1x32x32xf32>
      %189 = vector.shape_cast %188 : vector<1x32x32xf32> to vector<32x32xf32>
      %cst_159 = arith.constant dense<0.000000e+00> : vector<20x32xf32>
      %190 = tpu.matmul %187, %189, %cst_159 {dimension_numbers = #tpu.dot_dimension_numbers<[1], [0], [0], [1], [0, 0, 1, 1], [], []>} : vector<20x32xf32>, vector<32x32xf32>, vector<20x32xf32> -> vector<20x32xf32>
      %191 = arith.addf %183, %190 : vector<20x32xf32>
      %c2_i32_160 = arith.constant 2 : i32
      %192 = arith.addi %arg23, %c2_i32_160 : i32
      %193 = arith.index_cast %192 : i32 to index
      %c4_161 = arith.constant 4 : index
      %c0_162 = arith.constant 0 : index
      %194 = vector.load %arg17[%193, %c4_161, %c0_162] : memref<24x24x32xf32, #tpu.memory_space<vmem>>, vector<1x20x32xf32>
      %195 = vector.shape_cast %194 : vector<1x20x32xf32> to vector<20x32xf32>
      %c14 = arith.constant 14 : index
      %c0_163 = arith.constant 0 : index
      %c0_164 = arith.constant 0 : index
      %196 = vector.load %arg5[%c14, %c0_163, %c0_164] : memref<25x32x32xf32, #tpu.memory_space<vmem>>, vector<1x32x32xf32>
      %197 = vector.shape_cast %196 : vector<1x32x32xf32> to vector<32x32xf32>
      %cst_165 = arith.constant dense<0.000000e+00> : vector<20x32xf32>
      %198 = tpu.matmul %195, %197, %cst_165 {dimension_numbers = #tpu.dot_dimension_numbers<[1], [0], [0], [1], [0, 0, 1, 1], [], []>} : vector<20x32xf32>, vector<32x32xf32>, vector<20x32xf32> -> vector<20x32xf32>
      %199 = arith.addf %191, %198 : vector<20x32xf32>
      %c3_i32 = arith.constant 3 : i32
      %200 = arith.addi %arg23, %c3_i32 : i32
      %201 = arith.index_cast %200 : i32 to index
      %c0_166 = arith.constant 0 : index
      %c0_167 = arith.constant 0 : index
      %202 = vector.load %arg17[%201, %c0_166, %c0_167] : memref<24x24x32xf32, #tpu.memory_space<vmem>>, vector<1x20x32xf32>
      %203 = vector.shape_cast %202 : vector<1x20x32xf32> to vector<20x32xf32>
      %c15 = arith.constant 15 : index
      %c0_168 = arith.constant 0 : index
      %c0_169 = arith.constant 0 : index
      %204 = vector.load %arg5[%c15, %c0_168, %c0_169] : memref<25x32x32xf32, #tpu.memory_space<vmem>>, vector<1x32x32xf32>
      %205 = vector.shape_cast %204 : vector<1x32x32xf32> to vector<32x32xf32>
      %cst_170 = arith.constant dense<0.000000e+00> : vector<20x32xf32>
      %206 = tpu.matmul %203, %205, %cst_170 {dimension_numbers = #tpu.dot_dimension_numbers<[1], [0], [0], [1], [0, 0, 1, 1], [], []>} : vector<20x32xf32>, vector<32x32xf32>, vector<20x32xf32> -> vector<20x32xf32>
      %207 = arith.addf %199, %206 : vector<20x32xf32>
      %c3_i32_171 = arith.constant 3 : i32
      %208 = arith.addi %arg23, %c3_i32_171 : i32
      %209 = arith.index_cast %208 : i32 to index
      %c1_172 = arith.constant 1 : index
      %c0_173 = arith.constant 0 : index
      %210 = vector.load %arg17[%209, %c1_172, %c0_173] : memref<24x24x32xf32, #tpu.memory_space<vmem>>, vector<1x20x32xf32>
      %211 = vector.shape_cast %210 : vector<1x20x32xf32> to vector<20x32xf32>
      %c16 = arith.constant 16 : index
      %c0_174 = arith.constant 0 : index
      %c0_175 = arith.constant 0 : index
      %212 = vector.load %arg5[%c16, %c0_174, %c0_175] : memref<25x32x32xf32, #tpu.memory_space<vmem>>, vector<1x32x32xf32>
      %213 = vector.shape_cast %212 : vector<1x32x32xf32> to vector<32x32xf32>
      %cst_176 = arith.constant dense<0.000000e+00> : vector<20x32xf32>
      %214 = tpu.matmul %211, %213, %cst_176 {dimension_numbers = #tpu.dot_dimension_numbers<[1], [0], [0], [1], [0, 0, 1, 1], [], []>} : vector<20x32xf32>, vector<32x32xf32>, vector<20x32xf32> -> vector<20x32xf32>
      %215 = arith.addf %207, %214 : vector<20x32xf32>
      %c3_i32_177 = arith.constant 3 : i32
      %216 = arith.addi %arg23, %c3_i32_177 : i32
      %217 = arith.index_cast %216 : i32 to index
      %c2_178 = arith.constant 2 : index
      %c0_179 = arith.constant 0 : index
      %218 = vector.load %arg17[%217, %c2_178, %c0_179] : memref<24x24x32xf32, #tpu.memory_space<vmem>>, vector<1x20x32xf32>
      %219 = vector.shape_cast %218 : vector<1x20x32xf32> to vector<20x32xf32>
      %c17 = arith.constant 17 : index
      %c0_180 = arith.constant 0 : index
      %c0_181 = arith.constant 0 : index
      %220 = vector.load %arg5[%c17, %c0_180, %c0_181] : memref<25x32x32xf32, #tpu.memory_space<vmem>>, vector<1x32x32xf32>
      %221 = vector.shape_cast %220 : vector<1x32x32xf32> to vector<32x32xf32>
      %cst_182 = arith.constant dense<0.000000e+00> : vector<20x32xf32>
      %222 = tpu.matmul %219, %221, %cst_182 {dimension_numbers = #tpu.dot_dimension_numbers<[1], [0], [0], [1], [0, 0, 1, 1], [], []>} : vector<20x32xf32>, vector<32x32xf32>, vector<20x32xf32> -> vector<20x32xf32>
      %223 = arith.addf %215, %222 : vector<20x32xf32>
      %c3_i32_183 = arith.constant 3 : i32
      %224 = arith.addi %arg23, %c3_i32_183 : i32
      %225 = arith.index_cast %224 : i32 to index
      %c3_184 = arith.constant 3 : index
      %c0_185 = arith.constant 0 : index
      %226 = vector.load %arg17[%225, %c3_184, %c0_185] : memref<24x24x32xf32, #tpu.memory_space<vmem>>, vector<1x20x32xf32>
      %227 = vector.shape_cast %226 : vector<1x20x32xf32> to vector<20x32xf32>
      %c18 = arith.constant 18 : index
      %c0_186 = arith.constant 0 : index
      %c0_187 = arith.constant 0 : index
      %228 = vector.load %arg5[%c18, %c0_186, %c0_187] : memref<25x32x32xf32, #tpu.memory_space<vmem>>, vector<1x32x32xf32>
      %229 = vector.shape_cast %228 : vector<1x32x32xf32> to vector<32x32xf32>
      %cst_188 = arith.constant dense<0.000000e+00> : vector<20x32xf32>
      %230 = tpu.matmul %227, %229, %cst_188 {dimension_numbers = #tpu.dot_dimension_numbers<[1], [0], [0], [1], [0, 0, 1, 1], [], []>} : vector<20x32xf32>, vector<32x32xf32>, vector<20x32xf32> -> vector<20x32xf32>
      %231 = arith.addf %223, %230 : vector<20x32xf32>
      %c3_i32_189 = arith.constant 3 : i32
      %232 = arith.addi %arg23, %c3_i32_189 : i32
      %233 = arith.index_cast %232 : i32 to index
      %c4_190 = arith.constant 4 : index
      %c0_191 = arith.constant 0 : index
      %234 = vector.load %arg17[%233, %c4_190, %c0_191] : memref<24x24x32xf32, #tpu.memory_space<vmem>>, vector<1x20x32xf32>
      %235 = vector.shape_cast %234 : vector<1x20x32xf32> to vector<20x32xf32>
      %c19 = arith.constant 19 : index
      %c0_192 = arith.constant 0 : index
      %c0_193 = arith.constant 0 : index
      %236 = vector.load %arg5[%c19, %c0_192, %c0_193] : memref<25x32x32xf32, #tpu.memory_space<vmem>>, vector<1x32x32xf32>
      %237 = vector.shape_cast %236 : vector<1x32x32xf32> to vector<32x32xf32>
      %cst_194 = arith.constant dense<0.000000e+00> : vector<20x32xf32>
      %238 = tpu.matmul %235, %237, %cst_194 {dimension_numbers = #tpu.dot_dimension_numbers<[1], [0], [0], [1], [0, 0, 1, 1], [], []>} : vector<20x32xf32>, vector<32x32xf32>, vector<20x32xf32> -> vector<20x32xf32>
      %239 = arith.addf %231, %238 : vector<20x32xf32>
      %c4_i32_195 = arith.constant 4 : i32
      %240 = arith.addi %arg23, %c4_i32_195 : i32
      %241 = arith.index_cast %240 : i32 to index
      %c0_196 = arith.constant 0 : index
      %c0_197 = arith.constant 0 : index
      %242 = vector.load %arg17[%241, %c0_196, %c0_197] : memref<24x24x32xf32, #tpu.memory_space<vmem>>, vector<1x20x32xf32>
      %243 = vector.shape_cast %242 : vector<1x20x32xf32> to vector<20x32xf32>
      %c20 = arith.constant 20 : index
      %c0_198 = arith.constant 0 : index
      %c0_199 = arith.constant 0 : index
      %244 = vector.load %arg5[%c20, %c0_198, %c0_199] : memref<25x32x32xf32, #tpu.memory_space<vmem>>, vector<1x32x32xf32>
      %245 = vector.shape_cast %244 : vector<1x32x32xf32> to vector<32x32xf32>
      %cst_200 = arith.constant dense<0.000000e+00> : vector<20x32xf32>
      %246 = tpu.matmul %243, %245, %cst_200 {dimension_numbers = #tpu.dot_dimension_numbers<[1], [0], [0], [1], [0, 0, 1, 1], [], []>} : vector<20x32xf32>, vector<32x32xf32>, vector<20x32xf32> -> vector<20x32xf32>
      %247 = arith.addf %239, %246 : vector<20x32xf32>
      %c4_i32_201 = arith.constant 4 : i32
      %248 = arith.addi %arg23, %c4_i32_201 : i32
      %249 = arith.index_cast %248 : i32 to index
      %c1_202 = arith.constant 1 : index
      %c0_203 = arith.constant 0 : index
      %250 = vector.load %arg17[%249, %c1_202, %c0_203] : memref<24x24x32xf32, #tpu.memory_space<vmem>>, vector<1x20x32xf32>
      %251 = vector.shape_cast %250 : vector<1x20x32xf32> to vector<20x32xf32>
      %c21 = arith.constant 21 : index
      %c0_204 = arith.constant 0 : index
      %c0_205 = arith.constant 0 : index
      %252 = vector.load %arg5[%c21, %c0_204, %c0_205] : memref<25x32x32xf32, #tpu.memory_space<vmem>>, vector<1x32x32xf32>
      %253 = vector.shape_cast %252 : vector<1x32x32xf32> to vector<32x32xf32>
      %cst_206 = arith.constant dense<0.000000e+00> : vector<20x32xf32>
      %254 = tpu.matmul %251, %253, %cst_206 {dimension_numbers = #tpu.dot_dimension_numbers<[1], [0], [0], [1], [0, 0, 1, 1], [], []>} : vector<20x32xf32>, vector<32x32xf32>, vector<20x32xf32> -> vector<20x32xf32>
      %255 = arith.addf %247, %254 : vector<20x32xf32>
      %c4_i32_207 = arith.constant 4 : i32
      %256 = arith.addi %arg23, %c4_i32_207 : i32
      %257 = arith.index_cast %256 : i32 to index
      %c2_208 = arith.constant 2 : index
      %c0_209 = arith.constant 0 : index
      %258 = vector.load %arg17[%257, %c2_208, %c0_209] : memref<24x24x32xf32, #tpu.memory_space<vmem>>, vector<1x20x32xf32>
      %259 = vector.shape_cast %258 : vector<1x20x32xf32> to vector<20x32xf32>
      %c22 = arith.constant 22 : index
      %c0_210 = arith.constant 0 : index
      %c0_211 = arith.constant 0 : index
      %260 = vector.load %arg5[%c22, %c0_210, %c0_211] : memref<25x32x32xf32, #tpu.memory_space<vmem>>, vector<1x32x32xf32>
      %261 = vector.shape_cast %260 : vector<1x32x32xf32> to vector<32x32xf32>
      %cst_212 = arith.constant dense<0.000000e+00> : vector<20x32xf32>
      %262 = tpu.matmul %259, %261, %cst_212 {dimension_numbers = #tpu.dot_dimension_numbers<[1], [0], [0], [1], [0, 0, 1, 1], [], []>} : vector<20x32xf32>, vector<32x32xf32>, vector<20x32xf32> -> vector<20x32xf32>
      %263 = arith.addf %255, %262 : vector<20x32xf32>
      %c4_i32_213 = arith.constant 4 : i32
      %264 = arith.addi %arg23, %c4_i32_213 : i32
      %265 = arith.index_cast %264 : i32 to index
      %c3_214 = arith.constant 3 : index
      %c0_215 = arith.constant 0 : index
      %266 = vector.load %arg17[%265, %c3_214, %c0_215] : memref<24x24x32xf32, #tpu.memory_space<vmem>>, vector<1x20x32xf32>
      %267 = vector.shape_cast %266 : vector<1x20x32xf32> to vector<20x32xf32>
      %c23 = arith.constant 23 : index
      %c0_216 = arith.constant 0 : index
      %c0_217 = arith.constant 0 : index
      %268 = vector.load %arg5[%c23, %c0_216, %c0_217] : memref<25x32x32xf32, #tpu.memory_space<vmem>>, vector<1x32x32xf32>
      %269 = vector.shape_cast %268 : vector<1x32x32xf32> to vector<32x32xf32>
      %cst_218 = arith.constant dense<0.000000e+00> : vector<20x32xf32>
      %270 = tpu.matmul %267, %269, %cst_218 {dimension_numbers = #tpu.dot_dimension_numbers<[1], [0], [0], [1], [0, 0, 1, 1], [], []>} : vector<20x32xf32>, vector<32x32xf32>, vector<20x32xf32> -> vector<20x32xf32>
      %271 = arith.addf %263, %270 : vector<20x32xf32>
      %c4_i32_219 = arith.constant 4 : i32
      %272 = arith.addi %arg23, %c4_i32_219 : i32
      %273 = arith.index_cast %272 : i32 to index
      %c4_220 = arith.constant 4 : index
      %c0_221 = arith.constant 0 : index
      %274 = vector.load %arg17[%273, %c4_220, %c0_221] : memref<24x24x32xf32, #tpu.memory_space<vmem>>, vector<1x20x32xf32>
      %275 = vector.shape_cast %274 : vector<1x20x32xf32> to vector<20x32xf32>
      %c24 = arith.constant 24 : index
      %c0_222 = arith.constant 0 : index
      %c0_223 = arith.constant 0 : index
      %276 = vector.load %arg5[%c24, %c0_222, %c0_223] : memref<25x32x32xf32, #tpu.memory_space<vmem>>, vector<1x32x32xf32>
      %277 = vector.shape_cast %276 : vector<1x32x32xf32> to vector<32x32xf32>
      %cst_224 = arith.constant dense<0.000000e+00> : vector<20x32xf32>
      %278 = tpu.matmul %275, %277, %cst_224 {dimension_numbers = #tpu.dot_dimension_numbers<[1], [0], [0], [1], [0, 0, 1, 1], [], []>} : vector<20x32xf32>, vector<32x32xf32>, vector<20x32xf32> -> vector<20x32xf32>
      %279 = arith.addf %271, %278 : vector<20x32xf32>
      %280 = vector.broadcast %3 : vector<1x32xf32> to vector<20x32xf32>
      %281 = arith.mulf %279, %280 : vector<20x32xf32>
      %282 = vector.broadcast %4 : vector<1x32xf32> to vector<20x32xf32>
      %283 = arith.addf %281, %282 : vector<20x32xf32>
      %cst_225 = arith.constant 0.000000e+00 : f32
      %284 = vector.broadcast %cst_225 : f32 to vector<20x32xf32>
      %285 = arith.maximumf %283, %284 : vector<20x32xf32>
      %c0_i32_226 = arith.constant 0 : i32
      %286 = arith.addi %c0_i32_226, %arg23 : i32
      %287 = arith.index_cast %286 : i32 to index
      %c0_227 = arith.constant 0 : index
      %c0_228 = arith.constant 0 : index
      %288 = vector.load %arg18[%287, %c0_227, %c0_228] : memref<20x20x32xf32, #tpu.memory_space<vmem>>, vector<1x20x32xf32>
      %289 = vector.shape_cast %288 : vector<1x20x32xf32> to vector<20x32xf32>
      %290 = vector.shape_cast %285 : vector<20x32xf32> to vector<1x20x32xf32>
      tpu.vector_store %arg18[%287, %c0_227, %c0_228], %290 {strides = array<i32>} : memref<20x20x32xf32, #tpu.memory_space<vmem>>, vector<1x20x32xf32>,
    }
    %c20_i32_10 = arith.constant 20 : i32
    %6 = tpu.iota {dimensions = array<i32: 0>} : vector<10x20xi32>
    %7 = tpu.iota {dimensions = array<i32: 1>} : vector<10x20xi32>
    %c2_i32 = arith.constant 2 : i32
    %8 = vector.broadcast %c2_i32 : i32 to vector<10x20xi32>
    %9 = arith.muli %8, %6 : vector<10x20xi32>
    %10 = arith.cmpi eq, %7, %9 : vector<10x20xi32>
    %11 = arith.extui %10 : vector<10x20xi1> to vector<10x20xi32>
    %12 = arith.sitofp %11 : vector<10x20xi32> to vector<10x20xf32>
    %c2_i32_11 = arith.constant 2 : i32
    %13 = vector.broadcast %c2_i32_11 : i32 to vector<10x20xi32>
    %14 = arith.muli %13, %6 : vector<10x20xi32>
    %c1_i32_12 = arith.constant 1 : i32
    %15 = vector.broadcast %c1_i32_12 : i32 to vector<10x20xi32>
    %16 = arith.addi %14, %15 : vector<10x20xi32>
    %17 = arith.cmpi eq, %7, %16 : vector<10x20xi32>
    %18 = arith.extui %17 : vector<10x20xi1> to vector<10x20xi32>
    %19 = arith.sitofp %18 : vector<10x20xi32> to vector<10x20xf32>
    %c0_i32_13 = arith.constant 0 : i32
    %c10_i32 = arith.constant 10 : i32
    %20 = arith.addi %c0_i32_13, %c10_i32 : i32
    %c1_i32_14 = arith.constant 1 : i32
    scf.for %arg23 = %c0_i32_13 to %20 step %c1_i32_14  : i32 {
      %c2_i32_71 = arith.constant 2 : i32
      %79 = arith.muli %c2_i32_71, %arg23 : i32
      %80 = arith.index_cast %79 : i32 to index
      %c0_72 = arith.constant 0 : index
      %c0_73 = arith.constant 0 : index
      %81 = vector.load %arg18[%80, %c0_72, %c0_73] : memref<20x20x32xf32, #tpu.memory_space<vmem>>, vector<1x20x32xf32>
      %82 = vector.shape_cast %81 : vector<1x20x32xf32> to vector<20x32xf32>
      %c2_i32_74 = arith.constant 2 : i32
      %83 = arith.muli %c2_i32_74, %arg23 : i32
      %c1_i32_75 = arith.constant 1 : i32
      %84 = arith.addi %83, %c1_i32_75 : i32
      %85 = arith.index_cast %84 : i32 to index
      %c0_76 = arith.constant 0 : index
      %c0_77 = arith.constant 0 : index
      %86 = vector.load %arg18[%85, %c0_76, %c0_77] : memref<20x20x32xf32, #tpu.memory_space<vmem>>, vector<1x20x32xf32>
      %87 = vector.shape_cast %86 : vector<1x20x32xf32> to vector<20x32xf32>
      %88 = arith.maximumf %82, %87 : vector<20x32xf32>
      %cst_78 = arith.constant dense<0.000000e+00> : vector<10x32xf32>
      %89 = tpu.matmul %12, %88, %cst_78 {dimension_numbers = #tpu.dot_dimension_numbers<[1], [0], [0], [1], [0, 0, 1, 1], [], []>} : vector<10x20xf32>, vector<20x32xf32>, vector<10x32xf32> -> vector<10x32xf32>
      %cst_79 = arith.constant dense<0.000000e+00> : vector<10x32xf32>
      %90 = tpu.matmul %19, %88, %cst_79 {dimension_numbers = #tpu.dot_dimension_numbers<[1], [0], [0], [1], [0, 0, 1, 1], [], []>} : vector<10x20xf32>, vector<20x32xf32>, vector<10x32xf32> -> vector<10x32xf32>
      %91 = arith.maximumf %89, %90 : vector<10x32xf32>
      %92 = arith.index_cast %arg23 : i32 to index
      %c0_80 = arith.constant 0 : index
      %c0_81 = arith.constant 0 : index
      %93 = vector.load %arg19[%92, %c0_80, %c0_81] : memref<10x10x32xf32, #tpu.memory_space<vmem>>, vector<1x10x32xf32>
      %94 = vector.shape_cast %93 : vector<1x10x32xf32> to vector<10x32xf32>
      %95 = vector.shape_cast %91 : vector<10x32xf32> to vector<1x10x32xf32>
      tpu.vector_store %arg19[%92, %c0_80, %c0_81], %95 {strides = array<i32>} : memref<10x10x32xf32, #tpu.memory_space<vmem>>, vector<1x10x32xf32>,
    }
    %c10_i32_15 = arith.constant 10 : i32
    %cst = arith.constant 0.000000e+00 : f32
    %21 = vector.broadcast %cst : f32 to vector<10x10x64xf32>
    %c0_16 = arith.constant 0 : index
    %c0_17 = arith.constant 0 : index
    %c0_18 = arith.constant 0 : index
    %22 = vector.load %arg20[%c0_16, %c0_17, %c0_18] : memref<10x10x64xf32, #tpu.memory_space<vmem>>, vector<10x10x64xf32>
    tpu.vector_store %arg20[%c0_16, %c0_17, %c0_18], %21 {strides = array<i32>} : memref<10x10x64xf32, #tpu.memory_space<vmem>>, vector<10x10x64xf32>,
    %c0_19 = arith.constant 0 : index
    %c0_20 = arith.constant 0 : index
    %23 = vector.load %arg9[%c0_19, %c0_20] : memref<1x64xf32, #tpu.memory_space<vmem>>, vector<1x64xf32>
    %c0_21 = arith.constant 0 : index
    %c0_22 = arith.constant 0 : index
    %24 = vector.load %arg10[%c0_21, %c0_22] : memref<1x64xf32, #tpu.memory_space<vmem>>, vector<1x64xf32>
    %c0_i32_23 = arith.constant 0 : i32
    %c8_i32 = arith.constant 8 : i32
    %25 = arith.addi %c0_i32_23, %c8_i32 : i32
    %c1_i32_24 = arith.constant 1 : i32
    scf.for %arg23 = %c0_i32_23 to %25 step %c1_i32_24  : i32 {
      %cst_71 = arith.constant 0.000000e+00 : f32
      %79 = vector.broadcast %cst_71 : f32 to vector<8x64xf32>
      %c0_i32_72 = arith.constant 0 : i32
      %80 = arith.addi %arg23, %c0_i32_72 : i32
      %81 = arith.index_cast %80 : i32 to index
      %c0_73 = arith.constant 0 : index
      %c0_74 = arith.constant 0 : index
      %82 = vector.load %arg19[%81, %c0_73, %c0_74] : memref<10x10x32xf32, #tpu.memory_space<vmem>>, vector<1x8x32xf32>
      %83 = vector.shape_cast %82 : vector<1x8x32xf32> to vector<8x32xf32>
      %c0_75 = arith.constant 0 : index
      %c0_76 = arith.constant 0 : index
      %c0_77 = arith.constant 0 : index
      %84 = vector.load %arg8[%c0_75, %c0_76, %c0_77] : memref<9x32x64xf32, #tpu.memory_space<vmem>>, vector<1x32x64xf32>
      %85 = vector.shape_cast %84 : vector<1x32x64xf32> to vector<32x64xf32>
      %cst_78 = arith.constant dense<0.000000e+00> : vector<8x64xf32>
      %86 = tpu.matmul %83, %85, %cst_78 {dimension_numbers = #tpu.dot_dimension_numbers<[1], [0], [0], [1], [0, 0, 1, 1], [], []>} : vector<8x32xf32>, vector<32x64xf32>, vector<8x64xf32> -> vector<8x64xf32>
      %87 = arith.addf %79, %86 : vector<8x64xf32>
      %c0_i32_79 = arith.constant 0 : i32
      %88 = arith.addi %arg23, %c0_i32_79 : i32
      %89 = arith.index_cast %88 : i32 to index
      %c1_80 = arith.constant 1 : index
      %c0_81 = arith.constant 0 : index
      %90 = vector.load %arg19[%89, %c1_80, %c0_81] : memref<10x10x32xf32, #tpu.memory_space<vmem>>, vector<1x8x32xf32>
      %91 = vector.shape_cast %90 : vector<1x8x32xf32> to vector<8x32xf32>
      %c1_82 = arith.constant 1 : index
      %c0_83 = arith.constant 0 : index
      %c0_84 = arith.constant 0 : index
      %92 = vector.load %arg8[%c1_82, %c0_83, %c0_84] : memref<9x32x64xf32, #tpu.memory_space<vmem>>, vector<1x32x64xf32>
      %93 = vector.shape_cast %92 : vector<1x32x64xf32> to vector<32x64xf32>
      %cst_85 = arith.constant dense<0.000000e+00> : vector<8x64xf32>
      %94 = tpu.matmul %91, %93, %cst_85 {dimension_numbers = #tpu.dot_dimension_numbers<[1], [0], [0], [1], [0, 0, 1, 1], [], []>} : vector<8x32xf32>, vector<32x64xf32>, vector<8x64xf32> -> vector<8x64xf32>
      %95 = arith.addf %87, %94 : vector<8x64xf32>
      %c0_i32_86 = arith.constant 0 : i32
      %96 = arith.addi %arg23, %c0_i32_86 : i32
      %97 = arith.index_cast %96 : i32 to index
      %c2_87 = arith.constant 2 : index
      %c0_88 = arith.constant 0 : index
      %98 = vector.load %arg19[%97, %c2_87, %c0_88] : memref<10x10x32xf32, #tpu.memory_space<vmem>>, vector<1x8x32xf32>
      %99 = vector.shape_cast %98 : vector<1x8x32xf32> to vector<8x32xf32>
      %c2_89 = arith.constant 2 : index
      %c0_90 = arith.constant 0 : index
      %c0_91 = arith.constant 0 : index
      %100 = vector.load %arg8[%c2_89, %c0_90, %c0_91] : memref<9x32x64xf32, #tpu.memory_space<vmem>>, vector<1x32x64xf32>
      %101 = vector.shape_cast %100 : vector<1x32x64xf32> to vector<32x64xf32>
      %cst_92 = arith.constant dense<0.000000e+00> : vector<8x64xf32>
      %102 = tpu.matmul %99, %101, %cst_92 {dimension_numbers = #tpu.dot_dimension_numbers<[1], [0], [0], [1], [0, 0, 1, 1], [], []>} : vector<8x32xf32>, vector<32x64xf32>, vector<8x64xf32> -> vector<8x64xf32>
      %103 = arith.addf %95, %102 : vector<8x64xf32>
      %c1_i32_93 = arith.constant 1 : i32
      %104 = arith.addi %arg23, %c1_i32_93 : i32
      %105 = arith.index_cast %104 : i32 to index
      %c0_94 = arith.constant 0 : index
      %c0_95 = arith.constant 0 : index
      %106 = vector.load %arg19[%105, %c0_94, %c0_95] : memref<10x10x32xf32, #tpu.memory_space<vmem>>, vector<1x8x32xf32>
      %107 = vector.shape_cast %106 : vector<1x8x32xf32> to vector<8x32xf32>
      %c3_96 = arith.constant 3 : index
      %c0_97 = arith.constant 0 : index
      %c0_98 = arith.constant 0 : index
      %108 = vector.load %arg8[%c3_96, %c0_97, %c0_98] : memref<9x32x64xf32, #tpu.memory_space<vmem>>, vector<1x32x64xf32>
      %109 = vector.shape_cast %108 : vector<1x32x64xf32> to vector<32x64xf32>
      %cst_99 = arith.constant dense<0.000000e+00> : vector<8x64xf32>
      %110 = tpu.matmul %107, %109, %cst_99 {dimension_numbers = #tpu.dot_dimension_numbers<[1], [0], [0], [1], [0, 0, 1, 1], [], []>} : vector<8x32xf32>, vector<32x64xf32>, vector<8x64xf32> -> vector<8x64xf32>
      %111 = arith.addf %103, %110 : vector<8x64xf32>
      %c1_i32_100 = arith.constant 1 : i32
      %112 = arith.addi %arg23, %c1_i32_100 : i32
      %113 = arith.index_cast %112 : i32 to index
      %c1_101 = arith.constant 1 : index
      %c0_102 = arith.constant 0 : index
      %114 = vector.load %arg19[%113, %c1_101, %c0_102] : memref<10x10x32xf32, #tpu.memory_space<vmem>>, vector<1x8x32xf32>
      %115 = vector.shape_cast %114 : vector<1x8x32xf32> to vector<8x32xf32>
      %c4 = arith.constant 4 : index
      %c0_103 = arith.constant 0 : index
      %c0_104 = arith.constant 0 : index
      %116 = vector.load %arg8[%c4, %c0_103, %c0_104] : memref<9x32x64xf32, #tpu.memory_space<vmem>>, vector<1x32x64xf32>
      %117 = vector.shape_cast %116 : vector<1x32x64xf32> to vector<32x64xf32>
      %cst_105 = arith.constant dense<0.000000e+00> : vector<8x64xf32>
      %118 = tpu.matmul %115, %117, %cst_105 {dimension_numbers = #tpu.dot_dimension_numbers<[1], [0], [0], [1], [0, 0, 1, 1], [], []>} : vector<8x32xf32>, vector<32x64xf32>, vector<8x64xf32> -> vector<8x64xf32>
      %119 = arith.addf %111, %118 : vector<8x64xf32>
      %c1_i32_106 = arith.constant 1 : i32
      %120 = arith.addi %arg23, %c1_i32_106 : i32
      %121 = arith.index_cast %120 : i32 to index
      %c2_107 = arith.constant 2 : index
      %c0_108 = arith.constant 0 : index
      %122 = vector.load %arg19[%121, %c2_107, %c0_108] : memref<10x10x32xf32, #tpu.memory_space<vmem>>, vector<1x8x32xf32>
      %123 = vector.shape_cast %122 : vector<1x8x32xf32> to vector<8x32xf32>
      %c5 = arith.constant 5 : index
      %c0_109 = arith.constant 0 : index
      %c0_110 = arith.constant 0 : index
      %124 = vector.load %arg8[%c5, %c0_109, %c0_110] : memref<9x32x64xf32, #tpu.memory_space<vmem>>, vector<1x32x64xf32>
      %125 = vector.shape_cast %124 : vector<1x32x64xf32> to vector<32x64xf32>
      %cst_111 = arith.constant dense<0.000000e+00> : vector<8x64xf32>
      %126 = tpu.matmul %123, %125, %cst_111 {dimension_numbers = #tpu.dot_dimension_numbers<[1], [0], [0], [1], [0, 0, 1, 1], [], []>} : vector<8x32xf32>, vector<32x64xf32>, vector<8x64xf32> -> vector<8x64xf32>
      %127 = arith.addf %119, %126 : vector<8x64xf32>
      %c2_i32_112 = arith.constant 2 : i32
      %128 = arith.addi %arg23, %c2_i32_112 : i32
      %129 = arith.index_cast %128 : i32 to index
      %c0_113 = arith.constant 0 : index
      %c0_114 = arith.constant 0 : index
      %130 = vector.load %arg19[%129, %c0_113, %c0_114] : memref<10x10x32xf32, #tpu.memory_space<vmem>>, vector<1x8x32xf32>
      %131 = vector.shape_cast %130 : vector<1x8x32xf32> to vector<8x32xf32>
      %c6 = arith.constant 6 : index
      %c0_115 = arith.constant 0 : index
      %c0_116 = arith.constant 0 : index
      %132 = vector.load %arg8[%c6, %c0_115, %c0_116] : memref<9x32x64xf32, #tpu.memory_space<vmem>>, vector<1x32x64xf32>
      %133 = vector.shape_cast %132 : vector<1x32x64xf32> to vector<32x64xf32>
      %cst_117 = arith.constant dense<0.000000e+00> : vector<8x64xf32>
      %134 = tpu.matmul %131, %133, %cst_117 {dimension_numbers = #tpu.dot_dimension_numbers<[1], [0], [0], [1], [0, 0, 1, 1], [], []>} : vector<8x32xf32>, vector<32x64xf32>, vector<8x64xf32> -> vector<8x64xf32>
      %135 = arith.addf %127, %134 : vector<8x64xf32>
      %c2_i32_118 = arith.constant 2 : i32
      %136 = arith.addi %arg23, %c2_i32_118 : i32
      %137 = arith.index_cast %136 : i32 to index
      %c1_119 = arith.constant 1 : index
      %c0_120 = arith.constant 0 : index
      %138 = vector.load %arg19[%137, %c1_119, %c0_120] : memref<10x10x32xf32, #tpu.memory_space<vmem>>, vector<1x8x32xf32>
      %139 = vector.shape_cast %138 : vector<1x8x32xf32> to vector<8x32xf32>
      %c7 = arith.constant 7 : index
      %c0_121 = arith.constant 0 : index
      %c0_122 = arith.constant 0 : index
      %140 = vector.load %arg8[%c7, %c0_121, %c0_122] : memref<9x32x64xf32, #tpu.memory_space<vmem>>, vector<1x32x64xf32>
      %141 = vector.shape_cast %140 : vector<1x32x64xf32> to vector<32x64xf32>
      %cst_123 = arith.constant dense<0.000000e+00> : vector<8x64xf32>
      %142 = tpu.matmul %139, %141, %cst_123 {dimension_numbers = #tpu.dot_dimension_numbers<[1], [0], [0], [1], [0, 0, 1, 1], [], []>} : vector<8x32xf32>, vector<32x64xf32>, vector<8x64xf32> -> vector<8x64xf32>
      %143 = arith.addf %135, %142 : vector<8x64xf32>
      %c2_i32_124 = arith.constant 2 : i32
      %144 = arith.addi %arg23, %c2_i32_124 : i32
      %145 = arith.index_cast %144 : i32 to index
      %c2_125 = arith.constant 2 : index
      %c0_126 = arith.constant 0 : index
      %146 = vector.load %arg19[%145, %c2_125, %c0_126] : memref<10x10x32xf32, #tpu.memory_space<vmem>>, vector<1x8x32xf32>
      %147 = vector.shape_cast %146 : vector<1x8x32xf32> to vector<8x32xf32>
      %c8 = arith.constant 8 : index
      %c0_127 = arith.constant 0 : index
      %c0_128 = arith.constant 0 : index
      %148 = vector.load %arg8[%c8, %c0_127, %c0_128] : memref<9x32x64xf32, #tpu.memory_space<vmem>>, vector<1x32x64xf32>
      %149 = vector.shape_cast %148 : vector<1x32x64xf32> to vector<32x64xf32>
      %cst_129 = arith.constant dense<0.000000e+00> : vector<8x64xf32>
      %150 = tpu.matmul %147, %149, %cst_129 {dimension_numbers = #tpu.dot_dimension_numbers<[1], [0], [0], [1], [0, 0, 1, 1], [], []>} : vector<8x32xf32>, vector<32x64xf32>, vector<8x64xf32> -> vector<8x64xf32>
      %151 = arith.addf %143, %150 : vector<8x64xf32>
      %152 = vector.broadcast %23 : vector<1x64xf32> to vector<8x64xf32>
      %153 = arith.mulf %151, %152 : vector<8x64xf32>
      %154 = vector.broadcast %24 : vector<1x64xf32> to vector<8x64xf32>
      %155 = arith.addf %153, %154 : vector<8x64xf32>
      %cst_130 = arith.constant 0.000000e+00 : f32
      %156 = vector.broadcast %cst_130 : f32 to vector<8x64xf32>
      %157 = arith.maximumf %155, %156 : vector<8x64xf32>
      %c1_i32_131 = arith.constant 1 : i32
      %158 = arith.addi %c1_i32_131, %arg23 : i32
      %159 = arith.index_cast %158 : i32 to index
      %c1_132 = arith.constant 1 : index
      %c0_133 = arith.constant 0 : index
      %160 = vector.load %arg20[%159, %c1_132, %c0_133] : memref<10x10x64xf32, #tpu.memory_space<vmem>>, vector<1x8x64xf32>
      %161 = vector.shape_cast %160 : vector<1x8x64xf32> to vector<8x64xf32>
      %162 = vector.shape_cast %157 : vector<8x64xf32> to vector<1x8x64xf32>
      tpu.vector_store %arg20[%159, %c1_132, %c0_133], %162 {strides = array<i32>} : memref<10x10x64xf32, #tpu.memory_space<vmem>>, vector<1x8x64xf32>,
    }
    %c8_i32_25 = arith.constant 8 : i32
    %26 = tpu.iota {dimensions = array<i32: 0>} : vector<4x8xi32>
    %27 = tpu.iota {dimensions = array<i32: 1>} : vector<4x8xi32>
    %c2_i32_26 = arith.constant 2 : i32
    %28 = vector.broadcast %c2_i32_26 : i32 to vector<4x8xi32>
    %29 = arith.muli %28, %26 : vector<4x8xi32>
    %30 = arith.cmpi eq, %27, %29 : vector<4x8xi32>
    %31 = arith.extui %30 : vector<4x8xi1> to vector<4x8xi32>
    %32 = arith.sitofp %31 : vector<4x8xi32> to vector<4x8xf32>
    %c0_27 = arith.constant 0 : index
    %c0_28 = arith.constant 0 : index
    %33 = vector.load %arg12[%c0_27, %c0_28] : memref<1x64xf32, #tpu.memory_space<vmem>>, vector<1x64xf32>
    %c0_29 = arith.constant 0 : index
    %c0_30 = arith.constant 0 : index
    %34 = vector.load %arg13[%c0_29, %c0_30] : memref<1x64xf32, #tpu.memory_space<vmem>>, vector<1x64xf32>
    %c0_i32_31 = arith.constant 0 : i32
    %c4_i32 = arith.constant 4 : i32
    %35 = arith.addi %c0_i32_31, %c4_i32 : i32
    %c1_i32_32 = arith.constant 1 : i32
    scf.for %arg23 = %c0_i32_31 to %35 step %c1_i32_32  : i32 {
      %cst_71 = arith.constant 0.000000e+00 : f32
      %79 = vector.broadcast %cst_71 : f32 to vector<8x64xf32>
      %c2_i32_72 = arith.constant 2 : i32
      %80 = arith.muli %c2_i32_72, %arg23 : i32
      %c0_i32_73 = arith.constant 0 : i32
      %81 = arith.addi %80, %c0_i32_73 : i32
      %82 = arith.index_cast %81 : i32 to index
      %c0_74 = arith.constant 0 : index
      %c0_75 = arith.constant 0 : index
      %83 = vector.load %arg20[%82, %c0_74, %c0_75] : memref<10x10x64xf32, #tpu.memory_space<vmem>>, vector<1x8x64xf32>
      %84 = vector.shape_cast %83 : vector<1x8x64xf32> to vector<8x64xf32>
      %c0_76 = arith.constant 0 : index
      %c0_77 = arith.constant 0 : index
      %c0_78 = arith.constant 0 : index
      %85 = vector.load %arg11[%c0_76, %c0_77, %c0_78] : memref<9x64x64xf32, #tpu.memory_space<vmem>>, vector<1x64x64xf32>
      %86 = vector.shape_cast %85 : vector<1x64x64xf32> to vector<64x64xf32>
      %cst_79 = arith.constant dense<0.000000e+00> : vector<8x64xf32>
      %87 = tpu.matmul %84, %86, %cst_79 {dimension_numbers = #tpu.dot_dimension_numbers<[1], [0], [0], [1], [0, 0, 1, 1], [], []>} : vector<8x64xf32>, vector<64x64xf32>, vector<8x64xf32> -> vector<8x64xf32>
      %88 = arith.addf %79, %87 : vector<8x64xf32>
      %c2_i32_80 = arith.constant 2 : i32
      %89 = arith.muli %c2_i32_80, %arg23 : i32
      %c0_i32_81 = arith.constant 0 : i32
      %90 = arith.addi %89, %c0_i32_81 : i32
      %91 = arith.index_cast %90 : i32 to index
      %c1_82 = arith.constant 1 : index
      %c0_83 = arith.constant 0 : index
      %92 = vector.load %arg20[%91, %c1_82, %c0_83] : memref<10x10x64xf32, #tpu.memory_space<vmem>>, vector<1x8x64xf32>
      %93 = vector.shape_cast %92 : vector<1x8x64xf32> to vector<8x64xf32>
      %c1_84 = arith.constant 1 : index
      %c0_85 = arith.constant 0 : index
      %c0_86 = arith.constant 0 : index
      %94 = vector.load %arg11[%c1_84, %c0_85, %c0_86] : memref<9x64x64xf32, #tpu.memory_space<vmem>>, vector<1x64x64xf32>
      %95 = vector.shape_cast %94 : vector<1x64x64xf32> to vector<64x64xf32>
      %cst_87 = arith.constant dense<0.000000e+00> : vector<8x64xf32>
      %96 = tpu.matmul %93, %95, %cst_87 {dimension_numbers = #tpu.dot_dimension_numbers<[1], [0], [0], [1], [0, 0, 1, 1], [], []>} : vector<8x64xf32>, vector<64x64xf32>, vector<8x64xf32> -> vector<8x64xf32>
      %97 = arith.addf %88, %96 : vector<8x64xf32>
      %c2_i32_88 = arith.constant 2 : i32
      %98 = arith.muli %c2_i32_88, %arg23 : i32
      %c0_i32_89 = arith.constant 0 : i32
      %99 = arith.addi %98, %c0_i32_89 : i32
      %100 = arith.index_cast %99 : i32 to index
      %c2_90 = arith.constant 2 : index
      %c0_91 = arith.constant 0 : index
      %101 = vector.load %arg20[%100, %c2_90, %c0_91] : memref<10x10x64xf32, #tpu.memory_space<vmem>>, vector<1x8x64xf32>
      %102 = vector.shape_cast %101 : vector<1x8x64xf32> to vector<8x64xf32>
      %c2_92 = arith.constant 2 : index
      %c0_93 = arith.constant 0 : index
      %c0_94 = arith.constant 0 : index
      %103 = vector.load %arg11[%c2_92, %c0_93, %c0_94] : memref<9x64x64xf32, #tpu.memory_space<vmem>>, vector<1x64x64xf32>
      %104 = vector.shape_cast %103 : vector<1x64x64xf32> to vector<64x64xf32>
      %cst_95 = arith.constant dense<0.000000e+00> : vector<8x64xf32>
      %105 = tpu.matmul %102, %104, %cst_95 {dimension_numbers = #tpu.dot_dimension_numbers<[1], [0], [0], [1], [0, 0, 1, 1], [], []>} : vector<8x64xf32>, vector<64x64xf32>, vector<8x64xf32> -> vector<8x64xf32>
      %106 = arith.addf %97, %105 : vector<8x64xf32>
      %c2_i32_96 = arith.constant 2 : i32
      %107 = arith.muli %c2_i32_96, %arg23 : i32
      %c1_i32_97 = arith.constant 1 : i32
      %108 = arith.addi %107, %c1_i32_97 : i32
      %109 = arith.index_cast %108 : i32 to index
      %c0_98 = arith.constant 0 : index
      %c0_99 = arith.constant 0 : index
      %110 = vector.load %arg20[%109, %c0_98, %c0_99] : memref<10x10x64xf32, #tpu.memory_space<vmem>>, vector<1x8x64xf32>
      %111 = vector.shape_cast %110 : vector<1x8x64xf32> to vector<8x64xf32>
      %c3_100 = arith.constant 3 : index
      %c0_101 = arith.constant 0 : index
      %c0_102 = arith.constant 0 : index
      %112 = vector.load %arg11[%c3_100, %c0_101, %c0_102] : memref<9x64x64xf32, #tpu.memory_space<vmem>>, vector<1x64x64xf32>
      %113 = vector.shape_cast %112 : vector<1x64x64xf32> to vector<64x64xf32>
      %cst_103 = arith.constant dense<0.000000e+00> : vector<8x64xf32>
      %114 = tpu.matmul %111, %113, %cst_103 {dimension_numbers = #tpu.dot_dimension_numbers<[1], [0], [0], [1], [0, 0, 1, 1], [], []>} : vector<8x64xf32>, vector<64x64xf32>, vector<8x64xf32> -> vector<8x64xf32>
      %115 = arith.addf %106, %114 : vector<8x64xf32>
      %c2_i32_104 = arith.constant 2 : i32
      %116 = arith.muli %c2_i32_104, %arg23 : i32
      %c1_i32_105 = arith.constant 1 : i32
      %117 = arith.addi %116, %c1_i32_105 : i32
      %118 = arith.index_cast %117 : i32 to index
      %c1_106 = arith.constant 1 : index
      %c0_107 = arith.constant 0 : index
      %119 = vector.load %arg20[%118, %c1_106, %c0_107] : memref<10x10x64xf32, #tpu.memory_space<vmem>>, vector<1x8x64xf32>
      %120 = vector.shape_cast %119 : vector<1x8x64xf32> to vector<8x64xf32>
      %c4 = arith.constant 4 : index
      %c0_108 = arith.constant 0 : index
      %c0_109 = arith.constant 0 : index
      %121 = vector.load %arg11[%c4, %c0_108, %c0_109] : memref<9x64x64xf32, #tpu.memory_space<vmem>>, vector<1x64x64xf32>
      %122 = vector.shape_cast %121 : vector<1x64x64xf32> to vector<64x64xf32>
      %cst_110 = arith.constant dense<0.000000e+00> : vector<8x64xf32>
      %123 = tpu.matmul %120, %122, %cst_110 {dimension_numbers = #tpu.dot_dimension_numbers<[1], [0], [0], [1], [0, 0, 1, 1], [], []>} : vector<8x64xf32>, vector<64x64xf32>, vector<8x64xf32> -> vector<8x64xf32>
      %124 = arith.addf %115, %123 : vector<8x64xf32>
      %c2_i32_111 = arith.constant 2 : i32
      %125 = arith.muli %c2_i32_111, %arg23 : i32
      %c1_i32_112 = arith.constant 1 : i32
      %126 = arith.addi %125, %c1_i32_112 : i32
      %127 = arith.index_cast %126 : i32 to index
      %c2_113 = arith.constant 2 : index
      %c0_114 = arith.constant 0 : index
      %128 = vector.load %arg20[%127, %c2_113, %c0_114] : memref<10x10x64xf32, #tpu.memory_space<vmem>>, vector<1x8x64xf32>
      %129 = vector.shape_cast %128 : vector<1x8x64xf32> to vector<8x64xf32>
      %c5 = arith.constant 5 : index
      %c0_115 = arith.constant 0 : index
      %c0_116 = arith.constant 0 : index
      %130 = vector.load %arg11[%c5, %c0_115, %c0_116] : memref<9x64x64xf32, #tpu.memory_space<vmem>>, vector<1x64x64xf32>
      %131 = vector.shape_cast %130 : vector<1x64x64xf32> to vector<64x64xf32>
      %cst_117 = arith.constant dense<0.000000e+00> : vector<8x64xf32>
      %132 = tpu.matmul %129, %131, %cst_117 {dimension_numbers = #tpu.dot_dimension_numbers<[1], [0], [0], [1], [0, 0, 1, 1], [], []>} : vector<8x64xf32>, vector<64x64xf32>, vector<8x64xf32> -> vector<8x64xf32>
      %133 = arith.addf %124, %132 : vector<8x64xf32>
      %c2_i32_118 = arith.constant 2 : i32
      %134 = arith.muli %c2_i32_118, %arg23 : i32
      %c2_i32_119 = arith.constant 2 : i32
      %135 = arith.addi %134, %c2_i32_119 : i32
      %136 = arith.index_cast %135 : i32 to index
      %c0_120 = arith.constant 0 : index
      %c0_121 = arith.constant 0 : index
      %137 = vector.load %arg20[%136, %c0_120, %c0_121] : memref<10x10x64xf32, #tpu.memory_space<vmem>>, vector<1x8x64xf32>
      %138 = vector.shape_cast %137 : vector<1x8x64xf32> to vector<8x64xf32>
      %c6 = arith.constant 6 : index
      %c0_122 = arith.constant 0 : index
      %c0_123 = arith.constant 0 : index
      %139 = vector.load %arg11[%c6, %c0_122, %c0_123] : memref<9x64x64xf32, #tpu.memory_space<vmem>>, vector<1x64x64xf32>
      %140 = vector.shape_cast %139 : vector<1x64x64xf32> to vector<64x64xf32>
      %cst_124 = arith.constant dense<0.000000e+00> : vector<8x64xf32>
      %141 = tpu.matmul %138, %140, %cst_124 {dimension_numbers = #tpu.dot_dimension_numbers<[1], [0], [0], [1], [0, 0, 1, 1], [], []>} : vector<8x64xf32>, vector<64x64xf32>, vector<8x64xf32> -> vector<8x64xf32>
      %142 = arith.addf %133, %141 : vector<8x64xf32>
      %c2_i32_125 = arith.constant 2 : i32
      %143 = arith.muli %c2_i32_125, %arg23 : i32
      %c2_i32_126 = arith.constant 2 : i32
      %144 = arith.addi %143, %c2_i32_126 : i32
      %145 = arith.index_cast %144 : i32 to index
      %c1_127 = arith.constant 1 : index
      %c0_128 = arith.constant 0 : index
      %146 = vector.load %arg20[%145, %c1_127, %c0_128] : memref<10x10x64xf32, #tpu.memory_space<vmem>>, vector<1x8x64xf32>
      %147 = vector.shape_cast %146 : vector<1x8x64xf32> to vector<8x64xf32>
      %c7 = arith.constant 7 : index
      %c0_129 = arith.constant 0 : index
      %c0_130 = arith.constant 0 : index
      %148 = vector.load %arg11[%c7, %c0_129, %c0_130] : memref<9x64x64xf32, #tpu.memory_space<vmem>>, vector<1x64x64xf32>
      %149 = vector.shape_cast %148 : vector<1x64x64xf32> to vector<64x64xf32>
      %cst_131 = arith.constant dense<0.000000e+00> : vector<8x64xf32>
      %150 = tpu.matmul %147, %149, %cst_131 {dimension_numbers = #tpu.dot_dimension_numbers<[1], [0], [0], [1], [0, 0, 1, 1], [], []>} : vector<8x64xf32>, vector<64x64xf32>, vector<8x64xf32> -> vector<8x64xf32>
      %151 = arith.addf %142, %150 : vector<8x64xf32>
      %c2_i32_132 = arith.constant 2 : i32
      %152 = arith.muli %c2_i32_132, %arg23 : i32
      %c2_i32_133 = arith.constant 2 : i32
      %153 = arith.addi %152, %c2_i32_133 : i32
      %154 = arith.index_cast %153 : i32 to index
      %c2_134 = arith.constant 2 : index
      %c0_135 = arith.constant 0 : index
      %155 = vector.load %arg20[%154, %c2_134, %c0_135] : memref<10x10x64xf32, #tpu.memory_space<vmem>>, vector<1x8x64xf32>
      %156 = vector.shape_cast %155 : vector<1x8x64xf32> to vector<8x64xf32>
      %c8 = arith.constant 8 : index
      %c0_136 = arith.constant 0 : index
      %c0_137 = arith.constant 0 : index
      %157 = vector.load %arg11[%c8, %c0_136, %c0_137] : memref<9x64x64xf32, #tpu.memory_space<vmem>>, vector<1x64x64xf32>
      %158 = vector.shape_cast %157 : vector<1x64x64xf32> to vector<64x64xf32>
      %cst_138 = arith.constant dense<0.000000e+00> : vector<8x64xf32>
      %159 = tpu.matmul %156, %158, %cst_138 {dimension_numbers = #tpu.dot_dimension_numbers<[1], [0], [0], [1], [0, 0, 1, 1], [], []>} : vector<8x64xf32>, vector<64x64xf32>, vector<8x64xf32> -> vector<8x64xf32>
      %160 = arith.addf %151, %159 : vector<8x64xf32>
      %cst_139 = arith.constant dense<0.000000e+00> : vector<4x64xf32>
      %161 = tpu.matmul %32, %160, %cst_139 {dimension_numbers = #tpu.dot_dimension_numbers<[1], [0], [0], [1], [0, 0, 1, 1], [], []>} : vector<4x8xf32>, vector<8x64xf32>, vector<4x64xf32> -> vector<4x64xf32>
      %162 = vector.broadcast %33 : vector<1x64xf32> to vector<4x64xf32>
      %163 = arith.mulf %161, %162 : vector<4x64xf32>
      %164 = vector.broadcast %34 : vector<1x64xf32> to vector<4x64xf32>
      %165 = arith.addf %163, %164 : vector<4x64xf32>
      %cst_140 = arith.constant 0.000000e+00 : f32
      %166 = vector.broadcast %cst_140 : f32 to vector<4x64xf32>
      %167 = arith.maximumf %165, %166 : vector<4x64xf32>
      %168 = arith.index_cast %arg23 : i32 to index
      %c0_141 = arith.constant 0 : index
      %c0_142 = arith.constant 0 : index
      %169 = vector.load %arg21[%168, %c0_141, %c0_142] : memref<4x4x64xf32, #tpu.memory_space<vmem>>, vector<1x4x64xf32>
      %170 = vector.shape_cast %169 : vector<1x4x64xf32> to vector<4x64xf32>
      %171 = vector.shape_cast %167 : vector<4x64xf32> to vector<1x4x64xf32>
      tpu.vector_store %arg21[%168, %c0_141, %c0_142], %171 {strides = array<i32>} : memref<4x4x64xf32, #tpu.memory_space<vmem>>, vector<1x4x64xf32>,
    }
    %c4_i32_33 = arith.constant 4 : i32
    %36 = tpu.iota {dimensions = array<i32: 0>} : vector<2x4xi32>
    %37 = tpu.iota {dimensions = array<i32: 1>} : vector<2x4xi32>
    %c2_i32_34 = arith.constant 2 : i32
    %38 = vector.broadcast %c2_i32_34 : i32 to vector<2x4xi32>
    %39 = arith.muli %38, %36 : vector<2x4xi32>
    %40 = arith.cmpi eq, %37, %39 : vector<2x4xi32>
    %41 = arith.extui %40 : vector<2x4xi1> to vector<2x4xi32>
    %42 = arith.sitofp %41 : vector<2x4xi32> to vector<2x4xf32>
    %c2_i32_35 = arith.constant 2 : i32
    %43 = vector.broadcast %c2_i32_35 : i32 to vector<2x4xi32>
    %44 = arith.muli %43, %36 : vector<2x4xi32>
    %c1_i32_36 = arith.constant 1 : i32
    %45 = vector.broadcast %c1_i32_36 : i32 to vector<2x4xi32>
    %46 = arith.addi %44, %45 : vector<2x4xi32>
    %47 = arith.cmpi eq, %37, %46 : vector<2x4xi32>
    %48 = arith.extui %47 : vector<2x4xi1> to vector<2x4xi32>
    %49 = arith.sitofp %48 : vector<2x4xi32> to vector<2x4xf32>
    %c0_i32_37 = arith.constant 0 : i32
    %c2_i32_38 = arith.constant 2 : i32
    %50 = arith.addi %c0_i32_37, %c2_i32_38 : i32
    %c1_i32_39 = arith.constant 1 : i32
    scf.for %arg23 = %c0_i32_37 to %50 step %c1_i32_39  : i32 {
      %c2_i32_71 = arith.constant 2 : i32
      %79 = arith.muli %c2_i32_71, %arg23 : i32
      %80 = arith.index_cast %79 : i32 to index
      %c0_72 = arith.constant 0 : index
      %c0_73 = arith.constant 0 : index
      %81 = vector.load %arg21[%80, %c0_72, %c0_73] : memref<4x4x64xf32, #tpu.memory_space<vmem>>, vector<1x4x64xf32>
      %82 = vector.shape_cast %81 : vector<1x4x64xf32> to vector<4x64xf32>
      %c2_i32_74 = arith.constant 2 : i32
      %83 = arith.muli %c2_i32_74, %arg23 : i32
      %c1_i32_75 = arith.constant 1 : i32
      %84 = arith.addi %83, %c1_i32_75 : i32
      %85 = arith.index_cast %84 : i32 to index
      %c0_76 = arith.constant 0 : index
      %c0_77 = arith.constant 0 : index
      %86 = vector.load %arg21[%85, %c0_76, %c0_77] : memref<4x4x64xf32, #tpu.memory_space<vmem>>, vector<1x4x64xf32>
      %87 = vector.shape_cast %86 : vector<1x4x64xf32> to vector<4x64xf32>
      %88 = arith.maximumf %82, %87 : vector<4x64xf32>
      %cst_78 = arith.constant dense<0.000000e+00> : vector<2x64xf32>
      %89 = tpu.matmul %42, %88, %cst_78 {dimension_numbers = #tpu.dot_dimension_numbers<[1], [0], [0], [1], [0, 0, 1, 1], [], []>} : vector<2x4xf32>, vector<4x64xf32>, vector<2x64xf32> -> vector<2x64xf32>
      %cst_79 = arith.constant dense<0.000000e+00> : vector<2x64xf32>
      %90 = tpu.matmul %49, %88, %cst_79 {dimension_numbers = #tpu.dot_dimension_numbers<[1], [0], [0], [1], [0, 0, 1, 1], [], []>} : vector<2x4xf32>, vector<4x64xf32>, vector<2x64xf32> -> vector<2x64xf32>
      %91 = arith.maximumf %89, %90 : vector<2x64xf32>
      %92 = arith.index_cast %arg23 : i32 to index
      %c0_80 = arith.constant 0 : index
      %c0_81 = arith.constant 0 : index
      %93 = vector.load %arg22[%92, %c0_80, %c0_81] : memref<2x2x64xf32, #tpu.memory_space<vmem>>, vector<1x2x64xf32>
      %94 = vector.shape_cast %93 : vector<1x2x64xf32> to vector<2x64xf32>
      %95 = vector.shape_cast %91 : vector<2x64xf32> to vector<1x2x64xf32>
      tpu.vector_store %arg22[%92, %c0_80, %c0_81], %95 {strides = array<i32>} : memref<2x2x64xf32, #tpu.memory_space<vmem>>, vector<1x2x64xf32>,
    }
    %c2_i32_40 = arith.constant 2 : i32
    %c0_41 = arith.constant 0 : index
    %c0_42 = arith.constant 0 : index
    %51 = vector.load %arg15[%c0_41, %c0_42] : memref<1x10xf32, #tpu.memory_space<vmem>>, vector<1x10xf32>
    %c0_43 = arith.constant 0 : index
    %c0_44 = arith.constant 0 : index
    %c0_45 = arith.constant 0 : index
    %52 = vector.load %arg22[%c0_43, %c0_44, %c0_45] : memref<2x2x64xf32, #tpu.memory_space<vmem>>, vector<1x1x64xf32>
    %53 = vector.shape_cast %52 : vector<1x1x64xf32> to vector<1x64xf32>
    %c0_46 = arith.constant 0 : index
    %c0_47 = arith.constant 0 : index
    %c0_48 = arith.constant 0 : index
    %54 = vector.load %arg14[%c0_46, %c0_47, %c0_48] : memref<4x64x10xf32, #tpu.memory_space<vmem>>, vector<1x64x10xf32>
    %55 = vector.shape_cast %54 : vector<1x64x10xf32> to vector<64x10xf32>
    %cst_49 = arith.constant dense<0.000000e+00> : vector<1x10xf32>
    %56 = tpu.matmul %53, %55, %cst_49 {dimension_numbers = #tpu.dot_dimension_numbers<[1], [0], [0], [1], [0, 0, 1, 1], [], []>} : vector<1x64xf32>, vector<64x10xf32>, vector<1x10xf32> -> vector<1x10xf32>
    %57 = arith.addf %51, %56 : vector<1x10xf32>
    %c0_50 = arith.constant 0 : index
    %c1 = arith.constant 1 : index
    %c0_51 = arith.constant 0 : index
    %58 = vector.load %arg22[%c0_50, %c1, %c0_51] : memref<2x2x64xf32, #tpu.memory_space<vmem>>, vector<1x1x64xf32>
    %59 = vector.shape_cast %58 : vector<1x1x64xf32> to vector<1x64xf32>
    %c1_52 = arith.constant 1 : index
    %c0_53 = arith.constant 0 : index
    %c0_54 = arith.constant 0 : index
    %60 = vector.load %arg14[%c1_52, %c0_53, %c0_54] : memref<4x64x10xf32, #tpu.memory_space<vmem>>, vector<1x64x10xf32>
    %61 = vector.shape_cast %60 : vector<1x64x10xf32> to vector<64x10xf32>
    %cst_55 = arith.constant dense<0.000000e+00> : vector<1x10xf32>
    %62 = tpu.matmul %59, %61, %cst_55 {dimension_numbers = #tpu.dot_dimension_numbers<[1], [0], [0], [1], [0, 0, 1, 1], [], []>} : vector<1x64xf32>, vector<64x10xf32>, vector<1x10xf32> -> vector<1x10xf32>
    %63 = arith.addf %57, %62 : vector<1x10xf32>
    %c1_56 = arith.constant 1 : index
    %c0_57 = arith.constant 0 : index
    %c0_58 = arith.constant 0 : index
    %64 = vector.load %arg22[%c1_56, %c0_57, %c0_58] : memref<2x2x64xf32, #tpu.memory_space<vmem>>, vector<1x1x64xf32>
    %65 = vector.shape_cast %64 : vector<1x1x64xf32> to vector<1x64xf32>
    %c2 = arith.constant 2 : index
    %c0_59 = arith.constant 0 : index
    %c0_60 = arith.constant 0 : index
    %66 = vector.load %arg14[%c2, %c0_59, %c0_60] : memref<4x64x10xf32, #tpu.memory_space<vmem>>, vector<1x64x10xf32>
    %67 = vector.shape_cast %66 : vector<1x64x10xf32> to vector<64x10xf32>
    %cst_61 = arith.constant dense<0.000000e+00> : vector<1x10xf32>
    %68 = tpu.matmul %65, %67, %cst_61 {dimension_numbers = #tpu.dot_dimension_numbers<[1], [0], [0], [1], [0, 0, 1, 1], [], []>} : vector<1x64xf32>, vector<64x10xf32>, vector<1x10xf32> -> vector<1x10xf32>
    %69 = arith.addf %63, %68 : vector<1x10xf32>
    %c1_62 = arith.constant 1 : index
    %c1_63 = arith.constant 1 : index
    %c0_64 = arith.constant 0 : index
    %70 = vector.load %arg22[%c1_62, %c1_63, %c0_64] : memref<2x2x64xf32, #tpu.memory_space<vmem>>, vector<1x1x64xf32>
    %71 = vector.shape_cast %70 : vector<1x1x64xf32> to vector<1x64xf32>
    %c3 = arith.constant 3 : index
    %c0_65 = arith.constant 0 : index
    %c0_66 = arith.constant 0 : index
    %72 = vector.load %arg14[%c3, %c0_65, %c0_66] : memref<4x64x10xf32, #tpu.memory_space<vmem>>, vector<1x64x10xf32>
    %73 = vector.shape_cast %72 : vector<1x64x10xf32> to vector<64x10xf32>
    %cst_67 = arith.constant dense<0.000000e+00> : vector<1x10xf32>
    %74 = tpu.matmul %71, %73, %cst_67 {dimension_numbers = #tpu.dot_dimension_numbers<[1], [0], [0], [1], [0, 0, 1, 1], [], []>} : vector<1x64xf32>, vector<64x10xf32>, vector<1x10xf32> -> vector<1x10xf32>
    %75 = arith.addf %69, %74 : vector<1x10xf32>
    %c0_68 = arith.constant 0 : index
    %c0_69 = arith.constant 0 : index
    %c0_70 = arith.constant 0 : index
    %76 = vector.load %arg16[%c0_68, %c0_69, %c0_70] : memref<1x1x10xf32, #tpu.memory_space<vmem>>, vector<1x1x10xf32>
    %77 = vector.shape_cast %76 : vector<1x1x10xf32> to vector<1x10xf32>
    %78 = vector.shape_cast %75 : vector<1x10xf32> to vector<1x1x10xf32>
    tpu.vector_store %arg16[%c0_68, %c0_69, %c0_70], %78 {strides = array<i32>} : memref<1x1x10xf32, #tpu.memory_space<vmem>>, vector<1x1x10xf32>,
    return
  }
  func.func @transform_0(%arg0: i32) -> (i32, i32, i32, i32) {
    %c0_i32 = arith.constant 0 : i32
    %c0_i32_0 = arith.constant 0 : i32
    %c0_i32_1 = arith.constant 0 : i32
    %c0_i32_2 = arith.constant 0 : i32
    return %arg0, %c0_i32, %c0_i32_0, %c0_i32_1 : i32, i32, i32, i32
  }
  func.func @transform_1(%arg0: i32) -> (i32, i32, i32) {
    %c0_i32 = arith.constant 0 : i32
    %c0_i32_0 = arith.constant 0 : i32
    %c0_i32_1 = arith.constant 0 : i32
    %c0_i32_2 = arith.constant 0 : i32
    return %c0_i32, %c0_i32_0, %c0_i32_1 : i32, i32, i32
  }
  func.func @transform_2(%arg0: i32) -> (i32, i32) {
    %c0_i32 = arith.constant 0 : i32
    %c0_i32_0 = arith.constant 0 : i32
    %c0_i32_1 = arith.constant 0 : i32
    return %c0_i32, %c0_i32_0 : i32, i32
  }
  func.func @transform_3(%arg0: i32) -> (i32, i32) {
    %c0_i32 = arith.constant 0 : i32
    %c0_i32_0 = arith.constant 0 : i32
    %c0_i32_1 = arith.constant 0 : i32
    return %c0_i32, %c0_i32_0 : i32, i32
  }
  func.func @transform_4(%arg0: i32) -> (i32, i32, i32) {
    %c0_i32 = arith.constant 0 : i32
    %c0_i32_0 = arith.constant 0 : i32
    %c0_i32_1 = arith.constant 0 : i32
    %c0_i32_2 = arith.constant 0 : i32
    return %c0_i32, %c0_i32_0, %c0_i32_1 : i32, i32, i32
  }
  func.func @transform_5(%arg0: i32) -> (i32, i32) {
    %c0_i32 = arith.constant 0 : i32
    %c0_i32_0 = arith.constant 0 : i32
    %c0_i32_1 = arith.constant 0 : i32
    return %c0_i32, %c0_i32_0 : i32, i32
  }
  func.func @transform_6(%arg0: i32) -> (i32, i32) {
    %c0_i32 = arith.constant 0 : i32
    %c0_i32_0 = arith.constant 0 : i32
    %c0_i32_1 = arith.constant 0 : i32
    return %c0_i32, %c0_i32_0 : i32, i32
  }
  func.func @transform_7(%arg0: i32) -> (i32, i32, i32) {
    %c0_i32 = arith.constant 0 : i32
    %c0_i32_0 = arith.constant 0 : i32
    %c0_i32_1 = arith.constant 0 : i32
    %c0_i32_2 = arith.constant 0 : i32
    return %c0_i32, %c0_i32_0, %c0_i32_1 : i32, i32, i32
  }
  func.func @transform_8(%arg0: i32) -> (i32, i32) {
    %c0_i32 = arith.constant 0 : i32
    %c0_i32_0 = arith.constant 0 : i32
    %c0_i32_1 = arith.constant 0 : i32
    return %c0_i32, %c0_i32_0 : i32, i32
  }
  func.func @transform_9(%arg0: i32) -> (i32, i32) {
    %c0_i32 = arith.constant 0 : i32
    %c0_i32_0 = arith.constant 0 : i32
    %c0_i32_1 = arith.constant 0 : i32
    return %c0_i32, %c0_i32_0 : i32, i32
  }
  func.func @transform_10(%arg0: i32) -> (i32, i32, i32) {
    %c0_i32 = arith.constant 0 : i32
    %c0_i32_0 = arith.constant 0 : i32
    %c0_i32_1 = arith.constant 0 : i32
    %c0_i32_2 = arith.constant 0 : i32
    return %c0_i32, %c0_i32_0, %c0_i32_1 : i32, i32, i32
  }
  func.func @transform_11(%arg0: i32) -> (i32, i32) {
    %c0_i32 = arith.constant 0 : i32
    %c0_i32_0 = arith.constant 0 : i32
    %c0_i32_1 = arith.constant 0 : i32
    return %c0_i32, %c0_i32_0 : i32, i32
  }
  func.func @transform_12(%arg0: i32) -> (i32, i32) {
    %c0_i32 = arith.constant 0 : i32
    %c0_i32_0 = arith.constant 0 : i32
    %c0_i32_1 = arith.constant 0 : i32
    return %c0_i32, %c0_i32_0 : i32, i32
  }
  func.func @transform_13(%arg0: i32) -> (i32, i32, i32) {
    %c0_i32 = arith.constant 0 : i32
    %c0_i32_0 = arith.constant 0 : i32
    %c0_i32_1 = arith.constant 0 : i32
    %c0_i32_2 = arith.constant 0 : i32
    return %c0_i32, %c0_i32_0, %c0_i32_1 : i32, i32, i32
  }
  func.func @transform_14(%arg0: i32) -> (i32, i32) {
    %c0_i32 = arith.constant 0 : i32
    %c0_i32_0 = arith.constant 0 : i32
    %c0_i32_1 = arith.constant 0 : i32
    return %c0_i32, %c0_i32_0 : i32, i32
  }
  func.func @transform_15(%arg0: i32) -> (i32, i32, i32) {
    %c0_i32 = arith.constant 0 : i32
    %c0_i32_0 = arith.constant 0 : i32
    %c0_i32_1 = arith.constant 0 : i32
    return %arg0, %c0_i32, %c0_i32_0 : i32, i32, i32
  }
}

</mosaic_0001>

<llo_original>
// kernel: cnn_forward.1
$region0: #{cnn_forward.1}
  #allocation0 [shape = 'u32[]', space=smem, size = 0x4, offset = 0x4, fixed_abs, tag = 'smem constant byte address 0x4 - core index']
  #allocation1 [shape = 'u32[144,128]{1,0:T(1,128)}', space=vmem, size = 0x12000, scoped, tag = 'internal scratch']
  #allocation2 [shape = 'f32[24,24,32]{2,1,0:T(8,128)}', space=vmem, size = 0x48000, scoped, tag = 'scratch operand']
  #allocation3 [shape = 'f32[20,20,32]{2,1,0:T(8,128)}', space=vmem, size = 0x3c000, scoped, tag = 'scratch operand']
  #allocation4 [shape = 'f32[10,10,32]{2,1,0:T(8,128)}', space=vmem, size = 0x14000, scoped, tag = 'scratch operand']
  #allocation5 [shape = 'f32[10,10,64]{2,1,0:T(8,128)}', space=vmem, size = 0x14000, scoped, tag = 'scratch operand']
  #allocation6 [shape = 'f32[4,4,64]{2,1,0:T(4,128)}', space=vmem, size = 0x2000, scoped, tag = 'scratch operand']
  #allocation7 [shape = 'f32[2,2,64]{2,1,0:T(2,128)}', space=vmem, size = 0x800, scoped, tag = 'scratch operand']
  %s0 = inlined_call_operand.vmem [shape: f32[2,28,28,1], index: 0, kind: input, shape index: {}]
  %s1 = inlined_call_operand.vmem [shape: f32[25,1,32], index: 1, kind: input, shape index: {}]
  %s2 = inlined_call_operand.vmem [shape: f32[1,32], index: 2, kind: input, shape index: {}]
  %s3 = inlined_call_operand.vmem [shape: f32[1,32], index: 3, kind: input, shape index: {}]
  %s4 = inlined_call_operand.vmem [shape: f32[25,32,32], index: 4, kind: input, shape index: {}]
  %s5 = inlined_call_operand.vmem [shape: f32[1,32], index: 5, kind: input, shape index: {}]
  %s6 = inlined_call_operand.vmem [shape: f32[1,32], index: 6, kind: input, shape index: {}]
  %s7 = inlined_call_operand.vmem [shape: f32[9,32,64], index: 7, kind: input, shape index: {}]
  %s8 = inlined_call_operand.vmem [shape: f32[1,64], index: 8, kind: input, shape index: {}]
  %s9 = inlined_call_operand.vmem [shape: f32[1,64], index: 9, kind: input, shape index: {}]
  %s10 = inlined_call_operand.vmem [shape: f32[9,64,64], index: 10, kind: input, shape index: {}]
  %s11 = inlined_call_operand.vmem [shape: f32[1,64], index: 11, kind: input, shape index: {}]
  %s12 = inlined_call_operand.vmem [shape: f32[1,64], index: 12, kind: input, shape index: {}]
  %s13 = inlined_call_operand.vmem [shape: f32[4,64,10], index: 13, kind: input, shape index: {}]
  %s14 = inlined_call_operand.vmem [shape: f32[1,10], index: 14, kind: input, shape index: {}]
  %s15 = inlined_call_operand.hbm [shape: f32[2,1,10], index: 15, kind: output, shape index: {}]
  %s16 = sld [smem:[#allocation0]]
  $region135: #{cnn_forward.1} parent=0
    _
  %s18 = ssub.s32 1, %s16
  %s19 = scalar_select 0, %s18, %s16
  $region1: #{cnn_forward.1} parent=0
    #allocation8 [shape = 'u8[1024]{0}', space=vmem, size = 0x400, scoped, tag = 'output window, operand 0']
    #allocation9 [shape = 's32[2]{0}', space=sflag, size = 0x8, scoped, tag = 'scoped memory for cnn_forward.1']
    %20 = vsyncpa [#allocation9], 0
    %s21 = scalar_lea.sflag [#allocation9], 1
    %22 = vsyncpa %s21, 0
    loop: start=0, step=1, limit=4
    $region2: #{cnn_forward.1} parent=1 // loop_pre_header
      _
    $region3: #{cnn_forward.1} parent=1 // loop_header
      %s24 = sphi 0, %s28
      %p25 = scmp.ge.s32.totalorder %s24, 4
      %s34 = sphi 0, %s36
      %s37 = sphi 0, %s34
      %s38 = sphi 0, %s37
      %s54 = sphi 0, %s38
      %s58 = sphi 0, %s58
      %s60 = sphi 0, %s58
      %s61 = sphi 0, %s60
      %s75 = sphi 0, %s61
      %s79 = sphi 0, %s79
      %s81 = sphi 0, %s79
      %s82 = sphi 0, %s81
      %s96 = sphi 0, %s82
      %s100 = sphi 0, %s100
      %s102 = sphi 0, %s100
      %s103 = sphi 0, %s102
      %s117 = sphi 0, %s103
      %s121 = sphi 0, %s121
      %s123 = sphi 0, %s121
      %s124 = sphi 0, %s123
      %s138 = sphi 0, %s124
      %s142 = sphi 0, %s142
      %s144 = sphi 0, %s142
      %s145 = sphi 0, %s144
      %s159 = sphi 0, %s145
      %s163 = sphi 0, %s163
      %s165 = sphi 0, %s163
      %s166 = sphi 0, %s165
      %s180 = sphi 0, %s166
      %s184 = sphi 0, %s184
      %s186 = sphi 0, %s184
      %s187 = sphi 0, %s186
      %s201 = sphi 0, %s187
      %s205 = sphi 0, %s205
      %s207 = sphi 0, %s205
      %s208 = sphi 0, %s207
      %s222 = sphi 0, %s208
      %s226 = sphi 0, %s226
      %s228 = sphi 0, %s226
      %s229 = sphi 0, %s228
      %s243 = sphi 0, %s229
      %s247 = sphi 0, %s247
      %s249 = sphi 0, %s247
      %s250 = sphi 0, %s249
      %s264 = sphi 0, %s250
      %s268 = sphi 0, %s268
      %s270 = sphi 0, %s268
      %s271 = sphi 0, %s270
      %s285 = sphi 0, %s271
      %s289 = sphi 0, %s289
      %s291 = sphi 0, %s289
      %s292 = sphi 0, %s291
      %s306 = sphi 0, %s292
      %s310 = sphi 0, %s310
      %s312 = sphi 0, %s310
      %s313 = sphi 0, %s312
      %s327 = sphi 0, %s313
      %s331 = sphi 0, %s331
      %s333 = sphi 0, %s331
      %s334 = sphi 0, %s333
      %s348 = sphi 0, %s334
      %s354 = sphi 0, %s356
      %s357 = sphi 0, %s354
      %s358 = sphi 0, %s357
      %s374 = sphi 0, %s358
    $region4: #{cnn_forward.1} parent=1 // loop_header_branch
      %27 = sbr.rel (%p25) target = $region8
    $region5: #{cnn_forward.1} parent=1 // loop_body
      %s29 = ssub.s32 %s24, 1
      %s30 = ssub.s32 %s24, 2
      %s31 = sadd.s32 %s24, 1
      %s32 = ssub.s32 %s24, %s31
      %p33 = scmp.eq.s32.totalorder %s32, 0
      %s35 = sadd.s32 %s34, 1
      %s36 = scalar_select %p33, %s34, %s35
      %p39 = pneg %p33
      %p40 = scmp.eq.s32.totalorder %s24, 1
      %p41 = por %p39, %p40
      %p42 = scmp.ne.s32.totalorder %s34, %s37
      %p43 = scmp.eq.s32.totalorder %s24, 0
      %p44 = por %p42, %p43
      %p45 = scmp.ne.s32.totalorder %s34, %s37
      %p46 = scmp.eq.s32.totalorder %s29, 1
      %p47 = por %p45, %p46
      %p48 = scmp.ne.s32.totalorder %s37, %s38
      %p49 = scmp.eq.s32.totalorder %s29, 0
      %p50 = por %p48, %p49
      %p51 = scmp.ne.s32.totalorder %s37, %s38
      %p52 = scmp.eq.s32.totalorder %s30, 1
      %p53 = por %p51, %p52
      %p55 = scmp.ne.s32.totalorder %s38, %s54
      %p56 = scmp.eq.s32.totalorder %s30, 0
      %p57 = por %p55, %p56
      %s59 = sadd.s32 %s58, 1
      %p62 = scmp.eq.s32.totalorder %s24, 1
      %p63 = scmp.ne.s32.totalorder %s58, %s60
      %p64 = scmp.eq.s32.totalorder %s24, 0
      %p65 = por %p63, %p64
      %p66 = scmp.ne.s32.totalorder %s58, %s60
      %p67 = scmp.eq.s32.totalorder %s29, 1
      %p68 = por %p66, %p67
      %p69 = scmp.ne.s32.totalorder %s60, %s61
      %p70 = scmp.eq.s32.totalorder %s29, 0
      %p71 = por %p69, %p70
      %p72 = scmp.ne.s32.totalorder %s60, %s61
      %p73 = scmp.eq.s32.totalorder %s30, 1
      %p74 = por %p72, %p73
      %p76 = scmp.ne.s32.totalorder %s61, %s75
      %p77 = scmp.eq.s32.totalorder %s30, 0
      %p78 = por %p76, %p77
      %s80 = sadd.s32 %s79, 1
      %p83 = scmp.eq.s32.totalorder %s24, 1
      %p84 = scmp.ne.s32.totalorder %s79, %s81
      %p85 = scmp.eq.s32.totalorder %s24, 0
      %p86 = por %p84, %p85
      %p87 = scmp.ne.s32.totalorder %s79, %s81
      %p88 = scmp.eq.s32.totalorder %s29, 1
      %p89 = por %p87, %p88
      %p90 = scmp.ne.s32.totalorder %s81, %s82
      %p91 = scmp.eq.s32.totalorder %s29, 0
      %p92 = por %p90, %p91
      %p93 = scmp.ne.s32.totalorder %s81, %s82
      %p94 = scmp.eq.s32.totalorder %s30, 1
      %p95 = por %p93, %p94
      %p97 = scmp.ne.s32.totalorder %s82, %s96
      %p98 = scmp.eq.s32.totalorder %s30, 0
      %p99 = por %p97, %p98
      %s101 = sadd.s32 %s100, 1
      %p104 = scmp.eq.s32.totalorder %s24, 1
      %p105 = scmp.ne.s32.totalorder %s100, %s102
      %p106 = scmp.eq.s32.totalorder %s24, 0
      %p107 = por %p105, %p106
      %p108 = scmp.ne.s32.totalorder %s100, %s102
      %p109 = scmp.eq.s32.totalorder %s29, 1
      %p110 = por %p108, %p109
      %p111 = scmp.ne.s32.totalorder %s102, %s103
      %p112 = scmp.eq.s32.totalorder %s29, 0
      %p113 = por %p111, %p112
      %p114 = scmp.ne.s32.totalorder %s102, %s103
      %p115 = scmp.eq.s32.totalorder %s30, 1
      %p116 = por %p114, %p115
      %p118 = scmp.ne.s32.totalorder %s103, %s117
      %p119 = scmp.eq.s32.totalorder %s30, 0
      %p120 = por %p118, %p119
      %s122 = sadd.s32 %s121, 1
      %p125 = scmp.eq.s32.totalorder %s24, 1
      %p126 = scmp.ne.s32.totalorder %s121, %s123
      %p127 = scmp.eq.s32.totalorder %s24, 0
      %p128 = por %p126, %p127
      %p129 = scmp.ne.s32.totalorder %s121, %s123
      %p130 = scmp.eq.s32.totalorder %s29, 1
      %p131 = por %p129, %p130
      %p132 = scmp.ne.s32.totalorder %s123, %s124
      %p133 = scmp.eq.s32.totalorder %s29, 0
      %p134 = por %p132, %p133
      %p135 = scmp.ne.s32.totalorder %s123, %s124
      %p136 = scmp.eq.s32.totalorder %s30, 1
      %p137 = por %p135, %p136
      %p139 = scmp.ne.s32.totalorder %s124, %s138
      %p140 = scmp.eq.s32.totalorder %s30, 0
      %p141 = por %p139, %p140
      %s143 = sadd.s32 %s142, 1
      %p146 = scmp.eq.s32.totalorder %s24, 1
      %p147 = scmp.ne.s32.totalorder %s142, %s144
      %p148 = scmp.eq.s32.totalorder %s24, 0
      %p149 = por %p147, %p148
      %p150 = scmp.ne.s32.totalorder %s142, %s144
      %p151 = scmp.eq.s32.totalorder %s29, 1
      %p152 = por %p150, %p151
      %p153 = scmp.ne.s32.totalorder %s144, %s145
      %p154 = scmp.eq.s32.totalorder %s29, 0
      %p155 = por %p153, %p154
      %p156 = scmp.ne.s32.totalorder %s144, %s145
      %p157 = scmp.eq.s32.totalorder %s30, 1
      %p158 = por %p156, %p157
      %p160 = scmp.ne.s32.totalorder %s145, %s159
      %p161 = scmp.eq.s32.totalorder %s30, 0
      %p162 = por %p160, %p161
      %s164 = sadd.s32 %s163, 1
      %p167 = scmp.eq.s32.totalorder %s24, 1
      %p168 = scmp.ne.s32.totalorder %s163, %s165
      %p169 = scmp.eq.s32.totalorder %s24, 0
      %p170 = por %p168, %p169
      %p171 = scmp.ne.s32.totalorder %s163, %s165
      %p172 = scmp.eq.s32.totalorder %s29, 1
      %p173 = por %p171, %p172
      %p174 = scmp.ne.s32.totalorder %s165, %s166
      %p175 = scmp.eq.s32.totalorder %s29, 0
      %p176 = por %p174, %p175
      %p177 = scmp.ne.s32.totalorder %s165, %s166
      %p178 = scmp.eq.s32.totalorder %s30, 1
      %p179 = por %p177, %p178
      %p181 = scmp.ne.s32.totalorder %s166, %s180
      %p182 = scmp.eq.s32.totalorder %s30, 0
      %p183 = por %p181, %p182
      %s185 = sadd.s32 %s184, 1
      %p188 = scmp.eq.s32.totalorder %s24, 1
      %p189 = scmp.ne.s32.totalorder %s184, %s186
      %p190 = scmp.eq.s32.totalorder %s24, 0
      %p191 = por %p189, %p190
      %p192 = scmp.ne.s32.totalorder %s184, %s186
      %p193 = scmp.eq.s32.totalorder %s29, 1
      %p194 = por %p192, %p193
      %p195 = scmp.ne.s32.totalorder %s186, %s187
      %p196 = scmp.eq.s32.totalorder %s29, 0
      %p197 = por %p195, %p196
      %p198 = scmp.ne.s32.totalorder %s186, %s187
      %p199 = scmp.eq.s32.totalorder %s30, 1
      %p200 = por %p198, %p199
      %p202 = scmp.ne.s32.totalorder %s187, %s201
      %p203 = scmp.eq.s32.totalorder %s30, 0
      %p204 = por %p202, %p203
      %s206 = sadd.s32 %s205, 1
      %p209 = scmp.eq.s32.totalorder %s24, 1
      %p210 = scmp.ne.s32.totalorder %s205, %s207
      %p211 = scmp.eq.s32.totalorder %s24, 0
      %p212 = por %p210, %p211
      %p213 = scmp.ne.s32.totalorder %s205, %s207
      %p214 = scmp.eq.s32.totalorder %s29, 1
      %p215 = por %p213, %p214
      %p216 = scmp.ne.s32.totalorder %s207, %s208
      %p217 = scmp.eq.s32.totalorder %s29, 0
      %p218 = por %p216, %p217
      %p219 = scmp.ne.s32.totalorder %s207, %s208
      %p220 = scmp.eq.s32.totalorder %s30, 1
      %p221 = por %p219, %p220
      %p223 = scmp.ne.s32.totalorder %s208, %s222
      %p224 = scmp.eq.s32.totalorder %s30, 0
      %p225 = por %p223, %p224
      %s227 = sadd.s32 %s226, 1
      %p230 = scmp.eq.s32.totalorder %s24, 1
      %p231 = scmp.ne.s32.totalorder %s226, %s228
      %p232 = scmp.eq.s32.totalorder %s24, 0
      %p233 = por %p231, %p232
      %p234 = scmp.ne.s32.totalorder %s226, %s228
      %p235 = scmp.eq.s32.totalorder %s29, 1
      %p236 = por %p234, %p235
      %p237 = scmp.ne.s32.totalorder %s228, %s229
      %p238 = scmp.eq.s32.totalorder %s29, 0
      %p239 = por %p237, %p238
      %p240 = scmp.ne.s32.totalorder %s228, %s229
      %p241 = scmp.eq.s32.totalorder %s30, 1
      %p242 = por %p240, %p241
      %p244 = scmp.ne.s32.totalorder %s229, %s243
      %p245 = scmp.eq.s32.totalorder %s30, 0
      %p246 = por %p244, %p245
      %s248 = sadd.s32 %s247, 1
      %p251 = scmp.eq.s32.totalorder %s24, 1
      %p252 = scmp.ne.s32.totalorder %s247, %s249
      %p253 = scmp.eq.s32.totalorder %s24, 0
      %p254 = por %p252, %p253
      %p255 = scmp.ne.s32.totalorder %s247, %s249
      %p256 = scmp.eq.s32.totalorder %s29, 1
      %p257 = por %p255, %p256
      %p258 = scmp.ne.s32.totalorder %s249, %s250
      %p259 = scmp.eq.s32.totalorder %s29, 0
      %p260 = por %p258, %p259
      %p261 = scmp.ne.s32.totalorder %s249, %s250
      %p262 = scmp.eq.s32.totalorder %s30, 1
      %p263 = por %p261, %p262
      %p265 = scmp.ne.s32.totalorder %s250, %s264
      %p266 = scmp.eq.s32.totalorder %s30, 0
      %p267 = por %p265, %p266
      %s269 = sadd.s32 %s268, 1
      %p272 = scmp.eq.s32.totalorder %s24, 1
      %p273 = scmp.ne.s32.totalorder %s268, %s270
      %p274 = scmp.eq.s32.totalorder %s24, 0
      %p275 = por %p273, %p274
      %p276 = scmp.ne.s32.totalorder %s268, %s270
      %p277 = scmp.eq.s32.totalorder %s29, 1
      %p278 = por %p276, %p277
      %p279 = scmp.ne.s32.totalorder %s270, %s271
      %p280 = scmp.eq.s32.totalorder %s29, 0
      %p281 = por %p279, %p280
      %p282 = scmp.ne.s32.totalorder %s270, %s271
      %p283 = scmp.eq.s32.totalorder %s30, 1
      %p284 = por %p282, %p283
      %p286 = scmp.ne.s32.totalorder %s271, %s285
      %p287 = scmp.eq.s32.totalorder %s30, 0
      %p288 = por %p286, %p287
      %s290 = sadd.s32 %s289, 1
      %p293 = scmp.eq.s32.totalorder %s24, 1
      %p294 = scmp.ne.s32.totalorder %s289, %s291
      %p295 = scmp.eq.s32.totalorder %s24, 0
      %p296 = por %p294, %p295
      %p297 = scmp.ne.s32.totalorder %s289, %s291
      %p298 = scmp.eq.s32.totalorder %s29, 1
      %p299 = por %p297, %p298
      %p300 = scmp.ne.s32.totalorder %s291, %s292
      %p301 = scmp.eq.s32.totalorder %s29, 0
      %p302 = por %p300, %p301
      %p303 = scmp.ne.s32.totalorder %s291, %s292
      %p304 = scmp.eq.s32.totalorder %s30, 1
      %p305 = por %p303, %p304
      %p307 = scmp.ne.s32.totalorder %s292, %s306
      %p308 = scmp.eq.s32.totalorder %s30, 0
      %p309 = por %p307, %p308
      %s311 = sadd.s32 %s310, 1
      %p314 = scmp.eq.s32.totalorder %s24, 1
      %p315 = scmp.ne.s32.totalorder %s310, %s312
      %p316 = scmp.eq.s32.totalorder %s24, 0
      %p317 = por %p315, %p316
      %p318 = scmp.ne.s32.totalorder %s310, %s312
      %p319 = scmp.eq.s32.totalorder %s29, 1
      %p320 = por %p318, %p319
      %p321 = scmp.ne.s32.totalorder %s312, %s313
      %p322 = scmp.eq.s32.totalorder %s29, 0
      %p323 = por %p321, %p322
      %p324 = scmp.ne.s32.totalorder %s312, %s313
      %p325 = scmp.eq.s32.totalorder %s30, 1
      %p326 = por %p324, %p325
      %p328 = scmp.ne.s32.totalorder %s313, %s327
      %p329 = scmp.eq.s32.totalorder %s30, 0
      %p330 = por %p328, %p329
      %s332 = sadd.s32 %s331, 1
      %p335 = scmp.eq.s32.totalorder %s24, 1
      %p336 = scmp.ne.s32.totalorder %s331, %s333
      %p337 = scmp.eq.s32.totalorder %s24, 0
      %p338 = por %p336, %p337
      %p339 = scmp.ne.s32.totalorder %s331, %s333
      %p340 = scmp.eq.s32.totalorder %s29, 1
      %p341 = por %p339, %p340
      %p342 = scmp.ne.s32.totalorder %s333, %s334
      %p343 = scmp.eq.s32.totalorder %s29, 0
      %p344 = por %p342, %p343
      %p345 = scmp.ne.s32.totalorder %s333, %s334
      %p346 = scmp.eq.s32.totalorder %s30, 1
      %p347 = por %p345, %p346
      %p349 = scmp.ne.s32.totalorder %s334, %s348
      %p350 = scmp.eq.s32.totalorder %s30, 0
      %p351 = por %p349, %p350
      %s352 = ssub.s32 %s24, %s31
      %p353 = scmp.eq.s32.totalorder %s352, 0
      %s355 = sadd.s32 %s354, 1
      %s356 = scalar_select %p353, %s354, %s355
      %p359 = pneg %p353
      %p360 = scmp.eq.s32.totalorder %s24, 1
      %p361 = por %p359, %p360
      %p362 = scmp.ne.s32.totalorder %s354, %s357
      %p363 = scmp.eq.s32.totalorder %s24, 0
      %p364 = por %p362, %p363
      %p365 = scmp.ne.s32.totalorder %s354, %s357
      %p366 = scmp.eq.s32.totalorder %s29, 1
      %p367 = por %p365, %p366
      %p368 = scmp.ne.s32.totalorder %s357, %s358
      %p369 = scmp.eq.s32.totalorder %s29, 0
      %p370 = por %p368, %p369
      %p371 = scmp.ne.s32.totalorder %s357, %s358
      %p372 = scmp.eq.s32.totalorder %s30, 1
      %p373 = por %p371, %p372
      %p375 = scmp.ne.s32.totalorder %s358, %s374
      %p376 = scmp.eq.s32.totalorder %s30, 0
      %p377 = por %p375, %p376
      %p378 = scmp.le.s32.totalorder 1, %s24
      %p379 = scmp.lt.s32.totalorder %s24, 3
      %p380 = pnand %p378, %p379
      %p381 = pneg %p380
      // Predicated region
      $region9: #{cnn_forward.1} parent=5 // pred_check
        _
      $region10: #{cnn_forward.1} parent=5 // pred_check_branch
        %383 = sbr.rel (%p380) target = $region12
      $region11: #{cnn_forward.1} parent=5 // pred_region
        %s384 = ssub.s32 %s24, 1
        // Predicated region
        $region13: #{cnn_forward.1} parent=11 // pred_check
          %p385 = pneg %p71
        $region14: #{cnn_forward.1} parent=11 // pred_check_branch
          %387 = sbr.rel (%p385) target = $region16
        $region15: #{cnn_forward.1} parent=11 // pred_region
          _
        $region16: #{cnn_forward.1} parent=11 // pred_fallthru
          _
        // Predicated region
        $region17: #{cnn_forward.1} parent=11 // pred_check
          %p388 = pneg %p92
        $region18: #{cnn_forward.1} parent=11 // pred_check_branch
          %390 = sbr.rel (%p388) target = $region20
        $region19: #{cnn_forward.1} parent=11 // pred_region
          _
        $region20: #{cnn_forward.1} parent=11 // pred_fallthru
          _
        // Predicated region
        $region21: #{cnn_forward.1} parent=11 // pred_check
          %p391 = pneg %p113
        $region22: #{cnn_forward.1} parent=11 // pred_check_branch
          %393 = sbr.rel (%p391) target = $region24
        $region23: #{cnn_forward.1} parent=11 // pred_region
          _
        $region24: #{cnn_forward.1} parent=11 // pred_fallthru
          _
        // Predicated region
        $region25: #{cnn_forward.1} parent=11 // pred_check
          %p394 = pneg %p134
        $region26: #{cnn_forward.1} parent=11 // pred_check_branch
          %396 = sbr.rel (%p394) target = $region28
        $region27: #{cnn_forward.1} parent=11 // pred_region
          _
        $region28: #{cnn_forward.1} parent=11 // pred_fallthru
          _
        // Predicated region
        $region29: #{cnn_forward.1} parent=11 // pred_check
          %p397 = pneg %p155
        $region30: #{cnn_forward.1} parent=11 // pred_check_branch
          %399 = sbr.rel (%p397) target = $region32
        $region31: #{cnn_forward.1} parent=11 // pred_region
          _
        $region32: #{cnn_forward.1} parent=11 // pred_fallthru
          _
        // Predicated region
        $region33: #{cnn_forward.1} parent=11 // pred_check
          %p400 = pneg %p176
        $region34: #{cnn_forward.1} parent=11 // pred_check_branch
          %402 = sbr.rel (%p400) target = $region36
        $region35: #{cnn_forward.1} parent=11 // pred_region
          _
        $region36: #{cnn_forward.1} parent=11 // pred_fallthru
          _
        // Predicated region
        $region37: #{cnn_forward.1} parent=11 // pred_check
          %p403 = pneg %p197
        $region38: #{cnn_forward.1} parent=11 // pred_check_branch
          %405 = sbr.rel (%p403) target = $region40
        $region39: #{cnn_forward.1} parent=11 // pred_region
          _
        $region40: #{cnn_forward.1} parent=11 // pred_fallthru
          _
        // Predicated region
        $region41: #{cnn_forward.1} parent=11 // pred_check
          %p406 = pneg %p218
        $region42: #{cnn_forward.1} parent=11 // pred_check_branch
          %408 = sbr.rel (%p406) target = $region44
        $region43: #{cnn_forward.1} parent=11 // pred_region
          _
        $region44: #{cnn_forward.1} parent=11 // pred_fallthru
          _
        // Predicated region
        $region45: #{cnn_forward.1} parent=11 // pred_check
          %p409 = pneg %p239
        $region46: #{cnn_forward.1} parent=11 // pred_check_branch
          %411 = sbr.rel (%p409) target = $region48
        $region47: #{cnn_forward.1} parent=11 // pred_region
          _
        $region48: #{cnn_forward.1} parent=11 // pred_fallthru
          _
        // Predicated region
        $region49: #{cnn_forward.1} parent=11 // pred_check
          %p412 = pneg %p260
        $region50: #{cnn_forward.1} parent=11 // pred_check_branch
          %414 = sbr.rel (%p412) target = $region52
        $region51: #{cnn_forward.1} parent=11 // pred_region
          _
        $region52: #{cnn_forward.1} parent=11 // pred_fallthru
          _
        // Predicated region
        $region53: #{cnn_forward.1} parent=11 // pred_check
          %p415 = pneg %p281
        $region54: #{cnn_forward.1} parent=11 // pred_check_branch
          %417 = sbr.rel (%p415) target = $region56
        $region55: #{cnn_forward.1} parent=11 // pred_region
          _
        $region56: #{cnn_forward.1} parent=11 // pred_fallthru
          _
        // Predicated region
        $region57: #{cnn_forward.1} parent=11 // pred_check
          %p418 = pneg %p302
        $region58: #{cnn_forward.1} parent=11 // pred_check_branch
          %420 = sbr.rel (%p418) target = $region60
        $region59: #{cnn_forward.1} parent=11 // pred_region
          _
        $region60: #{cnn_forward.1} parent=11 // pred_fallthru
          _
        // Predicated region
        $region61: #{cnn_forward.1} parent=11 // pred_check
          %p421 = pneg %p323
        $region62: #{cnn_forward.1} parent=11 // pred_check_branch
          %423 = sbr.rel (%p421) target = $region64
        $region63: #{cnn_forward.1} parent=11 // pred_region
          _
        $region64: #{cnn_forward.1} parent=11 // pred_fallthru
          _
        // Predicated region
        $region65: #{cnn_forward.1} parent=11 // pred_check
          %p424 = pneg %p344
        $region66: #{cnn_forward.1} parent=11 // pred_check_branch
          %426 = sbr.rel (%p424) target = $region68
        $region67: #{cnn_forward.1} parent=11 // pred_region
          _
        $region68: #{cnn_forward.1} parent=11 // pred_fallthru
          _
      $region12: #{cnn_forward.1} parent=5 // pred_fallthru
        _
      %p427 = scmp.lt.s32.totalorder %s24, 2
      // Predicated region
      $region69: #{cnn_forward.1} parent=5 // pred_check
        %p428 = pneg %p427
      $region70: #{cnn_forward.1} parent=5 // pred_check_branch
        %430 = sbr.rel (%p428) target = $region72
      $region71: #{cnn_forward.1} parent=5 // pred_region
        // Predicated region
        $region73: #{cnn_forward.1} parent=71 // pred_check
          %p431 = pneg %p44
        $region74: #{cnn_forward.1} parent=71 // pred_check_branch
          %433 = sbr.rel (%p431) target = $region76
        $region75: #{cnn_forward.1} parent=71 // pred_region
          %p434 = scmp.lt.s32.totalorder %s24, 1
          %s435 = scalar_select %p434, %s24, 1
          %s436 = smul.addr %s435, 112
          %s437 = smul.addr %s436, 8
          %s438 = scalar_lea.vmem %s0, %s437
        $region76: #{cnn_forward.1} parent=71 // pred_fallthru
          _
      $region72: #{cnn_forward.1} parent=5 // pred_fallthru
        _
      %p439 = scmp.le.s32.totalorder 1, %s24
      %p440 = scmp.lt.s32.totalorder %s24, 3
      %p441 = pnand %p439, %p440
      %p442 = pneg %p441
      // Predicated region
      $region77: #{cnn_forward.1} parent=5 // pred_check
        _
      $region78: #{cnn_forward.1} parent=5 // pred_check_branch
        %444 = sbr.rel (%p441) target = $region80
      $region79: #{cnn_forward.1} parent=5 // pred_region
        %s445 = ssub.s32 %s24, 1
        %p446 = scmp.lt.s32.totalorder %s29, 1
        %s447 = scalar_select %p446, %s29, 1
        %s448 = smul.addr %s447, 112
        %s449 = smul.addr %s448, 8
        %s450 = scalar_lea.vmem %s0, %s449
        %p451 = pneg %p50
        %p452 = pneg %p47
        %p453 = pneg %p71
        %p454 = pneg %p68
        %p455 = pneg %p92
        %p456 = pneg %p89
        %p457 = pneg %p113
        %p458 = pneg %p110
        %p459 = pneg %p134
        %p460 = pneg %p131
        %p461 = pneg %p155
        %p462 = pneg %p152
        %p463 = pneg %p176
        %p464 = pneg %p173
        %p465 = pneg %p197
        %p466 = pneg %p194
        %p467 = pneg %p218
        %p468 = pneg %p215
        %p469 = pneg %p239
        %p470 = pneg %p236
        %p471 = pneg %p260
        %p472 = pneg %p257
        %p473 = pneg %p281
        %p474 = pneg %p278
        %p475 = pneg %p302
        %p476 = pneg %p299
        %p477 = pneg %p323
        %p478 = pneg %p320
        %p479 = pneg %p344
        %p480 = pneg %p341
        %p481 = pneg %p370
        %p482 = pneg %p367
        %s483 = sand.u32 %s357, 1
        %s484 = scalar_lea.sflag [#allocation9], %s483
        %s485 = sand.u32 %s357, 1
        %s486 = scalar_lea.vmem [#allocation8], %s485
        %p487 = scmp.lt.s32.totalorder %s29, 1
        %s488 = scalar_select %p487, %s29, 1
        %s489 = smul.addr %s488, 112
        %s490 = smul.addr %s489, 8
        %s491 = scalar_lea.vmem %s0, %s490
        %v492 = vld [vmem:[%s2] sm:$0x1]
        %v493 = vld [vmem:[%s3] sm:$0x1]
        loop: start=0, step=1, limit=24
        $region81: #{cnn_forward.1} parent=79 // loop_pre_header
          _
        $region82: #{cnn_forward.1} parent=79 // loop_header
          %s495 = sphi 0, %s499
          %p496 = scmp.ge.s32.totalorder %s495, 24
        $region83: #{cnn_forward.1} parent=79 // loop_header_branch
          %498 = sbr.rel (%p496) target = $region87
        $region84: #{cnn_forward.1} parent=79 // loop_body
          %s500 = smul.u32 %s495, 32
          %s501 = scalar_lea.vmem %s491, %s500
          %v502 = vld [vmem:[%s501] sm:$0xff]
          %v503 = vld [vmem:[%s501 + $0x8] sm:$0xff]
          %v504 = vld [vmem:[%s501 + $0x10] sm:$0xff]
          %v505 = vld [vmem:[%s1] sm:$0x1]
          %507 = vset.pattern.permute.xlu0 0
          %508 = vperm.xlu0 %507, %v502
          %v509 = vpop.permute.xlu0 %508
          %512 = vset.pattern.permute.xlu0 0
          %513 = vperm.xlu0 %512, %v503
          %v514 = vpop.permute.xlu0 %513
          %517 = vset.pattern.permute.xlu0 0
          %518 = vperm.xlu0 %517, %v504
          %v519 = vpop.permute.xlu0 %518
          %v522 = vlaneseq
          %v523 = vshrl.u32 %v522, 7
          %v524 = vsub.s32 0, %v523
          %v525 = vrot.slane %v505, %v524
          %v527 = vmul.f32 %v509, %v525
          %v528 = vmul.f32 %v514, %v525
          %v529 = vmul.f32 %v519, %v525
          %v530 = vadd.f32 %v527, 0.0
          %v531 = vadd.f32 %v528, 0.0
          %v532 = vadd.f32 %v529, 0.0
          %v533 = vld [vmem:[%s501 + $0x1] sm:$0xff]
          %v534 = vld [vmem:[%s501 + $0x9] sm:$0xff]
          %v535 = vld [vmem:[%s501 + $0x11] sm:$0xff]
          %s536 = scalar_lea.vmem %s1, 1
          %v537 = vld [vmem:[%s536] sm:$0x1]
          %539 = vset.pattern.permute.xlu0 0
          %540 = vperm.xlu0 %539, %v533
          %v541 = vpop.permute.xlu0 %540
          %544 = vset.pattern.permute.xlu0 0
          %545 = vperm.xlu0 %544, %v534
          %v546 = vpop.permute.xlu0 %545
          %549 = vset.pattern.permute.xlu0 0
          %550 = vperm.xlu0 %549, %v535
          %v551 = vpop.permute.xlu0 %550
          %v554 = vlaneseq
          %v555 = vshrl.u32 %v554, 7
          %v556 = vsub.s32 0, %v555
          %v557 = vrot.slane %v537, %v556
          %v559 = vmul.f32 %v541, %v557
          %v560 = vmul.f32 %v546, %v557
          %v561 = vmul.f32 %v551, %v557
          %v562 = vadd.f32 %v530, %v559
          %v563 = vadd.f32 %v531, %v560
          %v564 = vadd.f32 %v532, %v561
          %v565 = vld [vmem:[%s501 + $0x2] sm:$0xff]
          %v566 = vld [vmem:[%s501 + $0xa] sm:$0xff]
          %v567 = vld [vmem:[%s501 + $0x12] sm:$0xff]
          %s568 = scalar_lea.vmem %s1, 2
          %v569 = vld [vmem:[%s568] sm:$0x1]
          %571 = vset.pattern.permute.xlu0 0
          %572 = vperm.xlu0 %571, %v565
          %v573 = vpop.permute.xlu0 %572
          %576 = vset.pattern.permute.xlu0 0
          %577 = vperm.xlu0 %576, %v566
          %v578 = vpop.permute.xlu0 %577
          %581 = vset.pattern.permute.xlu0 0
          %582 = vperm.xlu0 %581, %v567
          %v583 = vpop.permute.xlu0 %582
          %v586 = vlaneseq
          %v587 = vshrl.u32 %v586, 7
          %v588 = vsub.s32 0, %v587
          %v589 = vrot.slane %v569, %v588
          %v591 = vmul.f32 %v573, %v589
          %v592 = vmul.f32 %v578, %v589
          %v593 = vmul.f32 %v583, %v589
          %v594 = vadd.f32 %v562, %v591
          %v595 = vadd.f32 %v563, %v592
          %v596 = vadd.f32 %v564, %v593
          %v597 = vld [vmem:[%s501 + $0x3] sm:$0xff]
          %v598 = vld [vmem:[%s501 + $0xb] sm:$0xff]
          %v599 = vld [vmem:[%s501 + $0x13] sm:$0xff]
          %s600 = scalar_lea.vmem %s1, 3
          %v601 = vld [vmem:[%s600] sm:$0x1]
          %603 = vset.pattern.permute.xlu0 0
          %604 = vperm.xlu0 %603, %v597
          %v605 = vpop.permute.xlu0 %604
          %608 = vset.pattern.permute.xlu0 0
          %609 = vperm.xlu0 %608, %v598
          %v610 = vpop.permute.xlu0 %609
          %613 = vset.pattern.permute.xlu0 0
          %614 = vperm.xlu0 %613, %v599
          %v615 = vpop.permute.xlu0 %614
          %v618 = vlaneseq
          %v619 = vshrl.u32 %v618, 7
          %v620 = vsub.s32 0, %v619
          %v621 = vrot.slane %v601, %v620
          %v623 = vmul.f32 %v605, %v621
          %v624 = vmul.f32 %v610, %v621
          %v625 = vmul.f32 %v615, %v621
          %v626 = vadd.f32 %v594, %v623
          %v627 = vadd.f32 %v595, %v624
          %v628 = vadd.f32 %v596, %v625
          %v629 = vld [vmem:[%s501 + $0x4] sm:$0xff]
          %v630 = vld [vmem:[%s501 + $0xc] sm:$0xff]
          %v631 = vld [vmem:[%s501 + $0x14] sm:$0xff]
          %s632 = scalar_lea.vmem %s1, 4
          %v633 = vld [vmem:[%s632] sm:$0x1]
          %635 = vset.pattern.permute.xlu0 0
          %636 = vperm.xlu0 %635, %v629
          %v637 = vpop.permute.xlu0 %636
          %640 = vset.pattern.permute.xlu0 0
          %641 = vperm.xlu0 %640, %v630
          %v642 = vpop.permute.xlu0 %641
          %645 = vset.pattern.permute.xlu0 0
          %646 = vperm.xlu0 %645, %v631
          %v647 = vpop.permute.xlu0 %646
          %v650 = vlaneseq
          %v651 = vshrl.u32 %v650, 7
          %v652 = vsub.s32 0, %v651
          %v653 = vrot.slane %v633, %v652
          %v655 = vmul.f32 %v637, %v653
          %v656 = vmul.f32 %v642, %v653
          %v657 = vmul.f32 %v647, %v653
          %v658 = vadd.f32 %v626, %v655
          %v659 = vadd.f32 %v627, %v656
          %v660 = vadd.f32 %v628, %v657
          %s661 = sadd.s32 %s495, 1
          %s662 = smul.u32 %s661, 32
          %s663 = scalar_lea.vmem %s491, %s662
          %v664 = vld [vmem:[%s663] sm:$0xff]
          %v665 = vld [vmem:[%s663 + $0x8] sm:$0xff]
          %v666 = vld [vmem:[%s663 + $0x10] sm:$0xff]
          %s667 = scalar_lea.vmem %s1, 5
          %v668 = vld [vmem:[%s667] sm:$0x1]
          %670 = vset.pattern.permute.xlu0 0
          %671 = vperm.xlu0 %670, %v664
          %v672 = vpop.permute.xlu0 %671
          %675 = vset.pattern.permute.xlu0 0
          %676 = vperm.xlu0 %675, %v665
          %v677 = vpop.permute.xlu0 %676
          %680 = vset.pattern.permute.xlu0 0
          %681 = vperm.xlu0 %680, %v666
          %v682 = vpop.permute.xlu0 %681
          %v685 = vlaneseq
          %v686 = vshrl.u32 %v685, 7
          %v687 = vsub.s32 0, %v686
          %v688 = vrot.slane %v668, %v687
          %v690 = vmul.f32 %v672, %v688
          %v691 = vmul.f32 %v677, %v688
          %v692 = vmul.f32 %v682, %v688
          %v693 = vadd.f32 %v658, %v690
          %v694 = vadd.f32 %v659, %v691
          %v695 = vadd.f32 %v660, %v692
          %v696 = vld [vmem:[%s663 + $0x1] sm:$0xff]
          %v697 = vld [vmem:[%s663 + $0x9] sm:$0xff]
          %v698 = vld [vmem:[%s663 + $0x11] sm:$0xff]
          %s699 = scalar_lea.vmem %s1, 6
          %v700 = vld [vmem:[%s699] sm:$0x1]
          %702 = vset.pattern.permute.xlu0 0
          %703 = vperm.xlu0 %702, %v696
          %v704 = vpop.permute.xlu0 %703
          %707 = vset.pattern.permute.xlu0 0
          %708 = vperm.xlu0 %707, %v697
          %v709 = vpop.permute.xlu0 %708
          %712 = vset.pattern.permute.xlu0 0
          %713 = vperm.xlu0 %712, %v698
          %v714 = vpop.permute.xlu0 %713
          %v717 = vlaneseq
          %v718 = vshrl.u32 %v717, 7
          %v719 = vsub.s32 0, %v718
          %v720 = vrot.slane %v700, %v719
          %v722 = vmul.f32 %v704, %v720
          %v723 = vmul.f32 %v709, %v720
          %v724 = vmul.f32 %v714, %v720
          %v725 = vadd.f32 %v693, %v722
          %v726 = vadd.f32 %v694, %v723
          %v727 = vadd.f32 %v695, %v724
          %v728 = vld [vmem:[%s663 + $0x2] sm:$0xff]
          %v729 = vld [vmem:[%s663 + $0xa] sm:$0xff]
          %v730 = vld [vmem:[%s663 + $0x12] sm:$0xff]
          %s731 = scalar_lea.vmem %s1, 7
          %v732 = vld [vmem:[%s731] sm:$0x1]
          %734 = vset.pattern.permute.xlu0 0
          %735 = vperm.xlu0 %734, %v728
          %v736 = vpop.permute.xlu0 %735
          %739 = vset.pattern.permute.xlu0 0
          %740 = vperm.xlu0 %739, %v729
          %v741 = vpop.permute.xlu0 %740
          %744 = vset.pattern.permute.xlu0 0
          %745 = vperm.xlu0 %744, %v730
          %v746 = vpop.permute.xlu0 %745
          %v749 = vlaneseq
          %v750 = vshrl.u32 %v749, 7
          %v751 = vsub.s32 0, %v750
          %v752 = vrot.slane %v732, %v751
          %v754 = vmul.f32 %v736, %v752
          %v755 = vmul.f32 %v741, %v752
          %v756 = vmul.f32 %v746, %v752
          %v757 = vadd.f32 %v725, %v754
          %v758 = vadd.f32 %v726, %v755
          %v759 = vadd.f32 %v727, %v756
          %v760 = vld [vmem:[%s663 + $0x3] sm:$0xff]
          %v761 = vld [vmem:[%s663 + $0xb] sm:$0xff]
          %v762 = vld [vmem:[%s663 + $0x13] sm:$0xff]
          %s763 = scalar_lea.vmem %s1, 8
          %v764 = vld [vmem:[%s763] sm:$0x1]
          %766 = vset.pattern.permute.xlu0 0
          %767 = vperm.xlu0 %766, %v760
          %v768 = vpop.permute.xlu0 %767
          %771 = vset.pattern.permute.xlu0 0
          %772 = vperm.xlu0 %771, %v761
          %v773 = vpop.permute.xlu0 %772
          %776 = vset.pattern.permute.xlu0 0
          %777 = vperm.xlu0 %776, %v762
          %v778 = vpop.permute.xlu0 %777
          %v781 = vlaneseq
          %v782 = vshrl.u32 %v781, 7
          %v783 = vsub.s32 0, %v782
          %v784 = vrot.slane %v764, %v783
          %v786 = vmul.f32 %v768, %v784
          %v787 = vmul.f32 %v773, %v784
          %v788 = vmul.f32 %v778, %v784
          %v789 = vadd.f32 %v757, %v786
          %v790 = vadd.f32 %v758, %v787
          %v791 = vadd.f32 %v759, %v788
          %v792 = vld [vmem:[%s663 + $0x4] sm:$0xff]
          %v793 = vld [vmem:[%s663 + $0xc] sm:$0xff]
          %v794 = vld [vmem:[%s663 + $0x14] sm:$0xff]
          %s795 = scalar_lea.vmem %s1, 9
          %v796 = vld [vmem:[%s795] sm:$0x1]
          %798 = vset.pattern.permute.xlu0 0
          %799 = vperm.xlu0 %798, %v792
          %v800 = vpop.permute.xlu0 %799
          %803 = vset.pattern.permute.xlu0 0
          %804 = vperm.xlu0 %803, %v793
          %v805 = vpop.permute.xlu0 %804
          %808 = vset.pattern.permute.xlu0 0
          %809 = vperm.xlu0 %808, %v794
          %v810 = vpop.permute.xlu0 %809
          %v813 = vlaneseq
          %v814 = vshrl.u32 %v813, 7
          %v815 = vsub.s32 0, %v814
          %v816 = vrot.slane %v796, %v815
          %v818 = vmul.f32 %v800, %v816
          %v819 = vmul.f32 %v805, %v816
          %v820 = vmul.f32 %v810, %v816
          %v821 = vadd.f32 %v789, %v818
          %v822 = vadd.f32 %v790, %v819
          %v823 = vadd.f32 %v791, %v820
          %s824 = sadd.s32 %s495, 2
          %s825 = smul.u32 %s824, 32
          %s826 = scalar_lea.vmem %s491, %s825
          %v827 = vld [vmem:[%s826] sm:$0xff]
          %v828 = vld [vmem:[%s826 + $0x8] sm:$0xff]
          %v829 = vld [vmem:[%s826 + $0x10] sm:$0xff]
          %s830 = scalar_lea.vmem %s1, 10
          %v831 = vld [vmem:[%s830] sm:$0x1]
          %833 = vset.pattern.permute.xlu0 0
          %834 = vperm.xlu0 %833, %v827
          %v835 = vpop.permute.xlu0 %834
          %838 = vset.pattern.permute.xlu0 0
          %839 = vperm.xlu0 %838, %v828
          %v840 = vpop.permute.xlu0 %839
          %843 = vset.pattern.permute.xlu0 0
          %844 = vperm.xlu0 %843, %v829
          %v845 = vpop.permute.xlu0 %844
          %v848 = vlaneseq
          %v849 = vshrl.u32 %v848, 7
          %v850 = vsub.s32 0, %v849
          %v851 = vrot.slane %v831, %v850
          %v853 = vmul.f32 %v835, %v851
          %v854 = vmul.f32 %v840, %v851
          %v855 = vmul.f32 %v845, %v851
          %v856 = vadd.f32 %v821, %v853
          %v857 = vadd.f32 %v822, %v854
          %v858 = vadd.f32 %v823, %v855
          %v859 = vld [vmem:[%s826 + $0x1] sm:$0xff]
          %v860 = vld [vmem:[%s826 + $0x9] sm:$0xff]
          %v861 = vld [vmem:[%s826 + $0x11] sm:$0xff]
          %s862 = scalar_lea.vmem %s1, 11
          %v863 = vld [vmem:[%s862] sm:$0x1]
          %865 = vset.pattern.permute.xlu0 0
          %866 = vperm.xlu0 %865, %v859
          %v867 = vpop.permute.xlu0 %866
          %870 = vset.pattern.permute.xlu0 0
          %871 = vperm.xlu0 %870, %v860
          %v872 = vpop.permute.xlu0 %871
          %875 = vset.pattern.permute.xlu0 0
          %876 = vperm.xlu0 %875, %v861
          %v877 = vpop.permute.xlu0 %876
          %v880 = vlaneseq
          %v881 = vshrl.u32 %v880, 7
          %v882 = vsub.s32 0, %v881
          %v883 = vrot.slane %v863, %v882
          %v885 = vmul.f32 %v867, %v883
          %v886 = vmul.f32 %v872, %v883
          %v887 = vmul.f32 %v877, %v883
          %v888 = vadd.f32 %v856, %v885
          %v889 = vadd.f32 %v857, %v886
          %v890 = vadd.f32 %v858, %v887
          %v891 = vld [vmem:[%s826 + $0x2] sm:$0xff]
          %v892 = vld [vmem:[%s826 + $0xa] sm:$0xff]
          %v893 = vld [vmem:[%s826 + $0x12] sm:$0xff]
          %s894 = scalar_lea.vmem %s1, 12
          %v895 = vld [vmem:[%s894] sm:$0x1]
          %897 = vset.pattern.permute.xlu0 0
          %898 = vperm.xlu0 %897, %v891
          %v899 = vpop.permute.xlu0 %898
          %902 = vset.pattern.permute.xlu0 0
          %903 = vperm.xlu0 %902, %v892
          %v904 = vpop.permute.xlu0 %903
          %907 = vset.pattern.permute.xlu0 0
          %908 = vperm.xlu0 %907, %v893
          %v909 = vpop.permute.xlu0 %908
          %v912 = vlaneseq
          %v913 = vshrl.u32 %v912, 7
          %v914 = vsub.s32 0, %v913
          %v915 = vrot.slane %v895, %v914
          %v917 = vmul.f32 %v899, %v915
          %v918 = vmul.f32 %v904, %v915
          %v919 = vmul.f32 %v909, %v915
          %v920 = vadd.f32 %v888, %v917
          %v921 = vadd.f32 %v889, %v918
          %v922 = vadd.f32 %v890, %v919
          %v923 = vld [vmem:[%s826 + $0x3] sm:$0xff]
          %v924 = vld [vmem:[%s826 + $0xb] sm:$0xff]
          %v925 = vld [vmem:[%s826 + $0x13] sm:$0xff]
          %s926 = scalar_lea.vmem %s1, 13
          %v927 = vld [vmem:[%s926] sm:$0x1]
          %929 = vset.pattern.permute.xlu0 0
          %930 = vperm.xlu0 %929, %v923
          %v931 = vpop.permute.xlu0 %930
          %934 = vset.pattern.permute.xlu0 0
          %935 = vperm.xlu0 %934, %v924
          %v936 = vpop.permute.xlu0 %935
          %939 = vset.pattern.permute.xlu0 0
          %940 = vperm.xlu0 %939, %v925
          %v941 = vpop.permute.xlu0 %940
          %v944 = vlaneseq
          %v945 = vshrl.u32 %v944, 7
          %v946 = vsub.s32 0, %v945
          %v947 = vrot.slane %v927, %v946
          %v949 = vmul.f32 %v931, %v947
          %v950 = vmul.f32 %v936, %v947
          %v951 = vmul.f32 %v941, %v947
          %v952 = vadd.f32 %v920, %v949
          %v953 = vadd.f32 %v921, %v950
          %v954 = vadd.f32 %v922, %v951
          %v955 = vld [vmem:[%s826 + $0x4] sm:$0xff]
          %v956 = vld [vmem:[%s826 + $0xc] sm:$0xff]
          %v957 = vld [vmem:[%s826 + $0x14] sm:$0xff]
          %s958 = scalar_lea.vmem %s1, 14
          %v959 = vld [vmem:[%s958] sm:$0x1]
          %961 = vset.pattern.permute.xlu0 0
          %962 = vperm.xlu0 %961, %v955
          %v963 = vpop.permute.xlu0 %962
          %966 = vset.pattern.permute.xlu0 0
          %967 = vperm.xlu0 %966, %v956
          %v968 = vpop.permute.xlu0 %967
          %971 = vset.pattern.permute.xlu0 0
          %972 = vperm.xlu0 %971, %v957
          %v973 = vpop.permute.xlu0 %972
          %v976 = vlaneseq
          %v977 = vshrl.u32 %v976, 7
          %v978 = vsub.s32 0, %v977
          %v979 = vrot.slane %v959, %v978
          %v981 = vmul.f32 %v963, %v979
          %v982 = vmul.f32 %v968, %v979
          %v983 = vmul.f32 %v973, %v979
          %v984 = vadd.f32 %v952, %v981
          %v985 = vadd.f32 %v953, %v982
          %v986 = vadd.f32 %v954, %v983
          %s987 = sadd.s32 %s495, 3
          %s988 = smul.u32 %s987, 32
          %s989 = scalar_lea.vmem %s491, %s988
          %v990 = vld [vmem:[%s989] sm:$0xff]
          %v991 = vld [vmem:[%s989 + $0x8] sm:$0xff]
          %v992 = vld [vmem:[%s989 + $0x10] sm:$0xff]
          %s993 = scalar_lea.vmem %s1, 15
          %v994 = vld [vmem:[%s993] sm:$0x1]
          %996 = vset.pattern.permute.xlu0 0
          %997 = vperm.xlu0 %996, %v990
          %v998 = vpop.permute.xlu0 %997
          %1001 = vset.pattern.permute.xlu0 0
          %1002 = vperm.xlu0 %1001, %v991
          %v1003 = vpop.permute.xlu0 %1002
          %1006 = vset.pattern.permute.xlu0 0
          %1007 = vperm.xlu0 %1006, %v992
          %v1008 = vpop.permute.xlu0 %1007
          %v1011 = vlaneseq
          %v1012 = vshrl.u32 %v1011, 7
          %v1013 = vsub.s32 0, %v1012
          %v1014 = vrot.slane %v994, %v1013
          %v1016 = vmul.f32 %v998, %v1014
          %v1017 = vmul.f32 %v1003, %v1014
          %v1018 = vmul.f32 %v1008, %v1014
          %v1019 = vadd.f32 %v984, %v1016
          %v1020 = vadd.f32 %v985, %v1017
          %v1021 = vadd.f32 %v986, %v1018
          %v1022 = vld [vmem:[%s989 + $0x1] sm:$0xff]
          %v1023 = vld [vmem:[%s989 + $0x9] sm:$0xff]
          %v1024 = vld [vmem:[%s989 + $0x11] sm:$0xff]
          %s1025 = scalar_lea.vmem %s1, 16
          %v1026 = vld [vmem:[%s1025] sm:$0x1]
          %1028 = vset.pattern.permute.xlu0 0
          %1029 = vperm.xlu0 %1028, %v1022
          %v1030 = vpop.permute.xlu0 %1029
          %1033 = vset.pattern.permute.xlu0 0
          %1034 = vperm.xlu0 %1033, %v1023
          %v1035 = vpop.permute.xlu0 %1034
          %1038 = vset.pattern.permute.xlu0 0
          %1039 = vperm.xlu0 %1038, %v1024
          %v1040 = vpop.permute.xlu0 %1039
          %v1043 = vlaneseq
          %v1044 = vshrl.u32 %v1043, 7
          %v1045 = vsub.s32 0, %v1044
          %v1046 = vrot.slane %v1026, %v1045
          %v1048 = vmul.f32 %v1030, %v1046
          %v1049 = vmul.f32 %v1035, %v1046
          %v1050 = vmul.f32 %v1040, %v1046
          %v1051 = vadd.f32 %v1019, %v1048
          %v1052 = vadd.f32 %v1020, %v1049
          %v1053 = vadd.f32 %v1021, %v1050
          %v1054 = vld [vmem:[%s989 + $0x2] sm:$0xff]
          %v1055 = vld [vmem:[%s989 + $0xa] sm:$0xff]
          %v1056 = vld [vmem:[%s989 + $0x12] sm:$0xff]
          %s1057 = scalar_lea.vmem %s1, 17
          %v1058 = vld [vmem:[%s1057] sm:$0x1]
          %1060 = vset.pattern.permute.xlu0 0
          %1061 = vperm.xlu0 %1060, %v1054
          %v1062 = vpop.permute.xlu0 %1061
          %1065 = vset.pattern.permute.xlu0 0
          %1066 = vperm.xlu0 %1065, %v1055
          %v1067 = vpop.permute.xlu0 %1066
          %1070 = vset.pattern.permute.xlu0 0
          %1071 = vperm.xlu0 %1070, %v1056
          %v1072 = vpop.permute.xlu0 %1071
          %v1075 = vlaneseq
          %v1076 = vshrl.u32 %v1075, 7
          %v1077 = vsub.s32 0, %v1076
          %v1078 = vrot.slane %v1058, %v1077
          %v1080 = vmul.f32 %v1062, %v1078
          %v1081 = vmul.f32 %v1067, %v1078
          %v1082 = vmul.f32 %v1072, %v1078
          %v1083 = vadd.f32 %v1051, %v1080
          %v1084 = vadd.f32 %v1052, %v1081
          %v1085 = vadd.f32 %v1053, %v1082
          %v1086 = vld [vmem:[%s989 + $0x3] sm:$0xff]
          %v1087 = vld [vmem:[%s989 + $0xb] sm:$0xff]
          %v1088 = vld [vmem:[%s989 + $0x13] sm:$0xff]
          %s1089 = scalar_lea.vmem %s1, 18
          %v1090 = vld [vmem:[%s1089] sm:$0x1]
          %1092 = vset.pattern.permute.xlu0 0
          %1093 = vperm.xlu0 %1092, %v1086
          %v1094 = vpop.permute.xlu0 %1093
          %1097 = vset.pattern.permute.xlu0 0
          %1098 = vperm.xlu0 %1097, %v1087
          %v1099 = vpop.permute.xlu0 %1098
          %1102 = vset.pattern.permute.xlu0 0
          %1103 = vperm.xlu0 %1102, %v1088
          %v1104 = vpop.permute.xlu0 %1103
          %v1107 = vlaneseq
          %v1108 = vshrl.u32 %v1107, 7
          %v1109 = vsub.s32 0, %v1108
          %v1110 = vrot.slane %v1090, %v1109
          %v1112 = vmul.f32 %v1094, %v1110
          %v1113 = vmul.f32 %v1099, %v1110
          %v1114 = vmul.f32 %v1104, %v1110
          %v1115 = vadd.f32 %v1083, %v1112
          %v1116 = vadd.f32 %v1084, %v1113
          %v1117 = vadd.f32 %v1085, %v1114
          %v1118 = vld [vmem:[%s989 + $0x4] sm:$0xff]
          %v1119 = vld [vmem:[%s989 + $0xc] sm:$0xff]
          %v1120 = vld [vmem:[%s989 + $0x14] sm:$0xff]
          %s1121 = scalar_lea.vmem %s1, 19
          %v1122 = vld [vmem:[%s1121] sm:$0x1]
          %1124 = vset.pattern.permute.xlu0 0
          %1125 = vperm.xlu0 %1124, %v1118
          %v1126 = vpop.permute.xlu0 %1125
          %1129 = vset.pattern.permute.xlu0 0
          %1130 = vperm.xlu0 %1129, %v1119
          %v1131 = vpop.permute.xlu0 %1130
          %1134 = vset.pattern.permute.xlu0 0
          %1135 = vperm.xlu0 %1134, %v1120
          %v1136 = vpop.permute.xlu0 %1135
          %v1139 = vlaneseq
          %v1140 = vshrl.u32 %v1139, 7
          %v1141 = vsub.s32 0, %v1140
          %v1142 = vrot.slane %v1122, %v1141
          %v1144 = vmul.f32 %v1126, %v1142
          %v1145 = vmul.f32 %v1131, %v1142
          %v1146 = vmul.f32 %v1136, %v1142
          %v1147 = vadd.f32 %v1115, %v1144
          %v1148 = vadd.f32 %v1116, %v1145
          %v1149 = vadd.f32 %v1117, %v1146
          %s1150 = sadd.s32 %s495, 4
          %s1151 = smul.u32 %s1150, 32
          %s1152 = scalar_lea.vmem %s491, %s1151
          %v1153 = vld [vmem:[%s1152] sm:$0xff]
          %v1154 = vld [vmem:[%s1152 + $0x8] sm:$0xff]
          %v1155 = vld [vmem:[%s1152 + $0x10] sm:$0xff]
          %s1156 = scalar_lea.vmem %s1, 20
          %v1157 = vld [vmem:[%s1156] sm:$0x1]
          %1159 = vset.pattern.permute.xlu0 0
          %1160 = vperm.xlu0 %1159, %v1153
          %v1161 = vpop.permute.xlu0 %1160
          %1164 = vset.pattern.permute.xlu0 0
          %1165 = vperm.xlu0 %1164, %v1154
          %v1166 = vpop.permute.xlu0 %1165
          %1169 = vset.pattern.permute.xlu0 0
          %1170 = vperm.xlu0 %1169, %v1155
          %v1171 = vpop.permute.xlu0 %1170
          %v1174 = vlaneseq
          %v1175 = vshrl.u32 %v1174, 7
          %v1176 = vsub.s32 0, %v1175
          %v1177 = vrot.slane %v1157, %v1176
          %v1179 = vmul.f32 %v1161, %v1177
          %v1180 = vmul.f32 %v1166, %v1177
          %v1181 = vmul.f32 %v1171, %v1177
          %v1182 = vadd.f32 %v1147, %v1179
          %v1183 = vadd.f32 %v1148, %v1180
          %v1184 = vadd.f32 %v1149, %v1181
          %v1185 = vld [vmem:[%s1152 + $0x1] sm:$0xff]
          %v1186 = vld [vmem:[%s1152 + $0x9] sm:$0xff]
          %v1187 = vld [vmem:[%s1152 + $0x11] sm:$0xff]
          %s1188 = scalar_lea.vmem %s1, 21
          %v1189 = vld [vmem:[%s1188] sm:$0x1]
          %1191 = vset.pattern.permute.xlu0 0
          %1192 = vperm.xlu0 %1191, %v1185
          %v1193 = vpop.permute.xlu0 %1192
          %1196 = vset.pattern.permute.xlu0 0
          %1197 = vperm.xlu0 %1196, %v1186
          %v1198 = vpop.permute.xlu0 %1197
          %1201 = vset.pattern.permute.xlu0 0
          %1202 = vperm.xlu0 %1201, %v1187
          %v1203 = vpop.permute.xlu0 %1202
          %v1206 = vlaneseq
          %v1207 = vshrl.u32 %v1206, 7
          %v1208 = vsub.s32 0, %v1207
          %v1209 = vrot.slane %v1189, %v1208
          %v1211 = vmul.f32 %v1193, %v1209
          %v1212 = vmul.f32 %v1198, %v1209
          %v1213 = vmul.f32 %v1203, %v1209
          %v1214 = vadd.f32 %v1182, %v1211
          %v1215 = vadd.f32 %v1183, %v1212
          %v1216 = vadd.f32 %v1184, %v1213
          %v1217 = vld [vmem:[%s1152 + $0x2] sm:$0xff]
          %v1218 = vld [vmem:[%s1152 + $0xa] sm:$0xff]
          %v1219 = vld [vmem:[%s1152 + $0x12] sm:$0xff]
          %s1220 = scalar_lea.vmem %s1, 22
          %v1221 = vld [vmem:[%s1220] sm:$0x1]
          %1223 = vset.pattern.permute.xlu0 0
          %1224 = vperm.xlu0 %1223, %v1217
          %v1225 = vpop.permute.xlu0 %1224
          %1228 = vset.pattern.permute.xlu0 0
          %1229 = vperm.xlu0 %1228, %v1218
          %v1230 = vpop.permute.xlu0 %1229
          %1233 = vset.pattern.permute.xlu0 0
          %1234 = vperm.xlu0 %1233, %v1219
          %v1235 = vpop.permute.xlu0 %1234
          %v1238 = vlaneseq
          %v1239 = vshrl.u32 %v1238, 7
          %v1240 = vsub.s32 0, %v1239
          %v1241 = vrot.slane %v1221, %v1240
          %v1243 = vmul.f32 %v1225, %v1241
          %v1244 = vmul.f32 %v1230, %v1241
          %v1245 = vmul.f32 %v1235, %v1241
          %v1246 = vadd.f32 %v1214, %v1243
          %v1247 = vadd.f32 %v1215, %v1244
          %v1248 = vadd.f32 %v1216, %v1245
          %v1249 = vld [vmem:[%s1152 + $0x3] sm:$0xff]
          %v1250 = vld [vmem:[%s1152 + $0xb] sm:$0xff]
          %v1251 = vld [vmem:[%s1152 + $0x13] sm:$0xff]
          %s1252 = scalar_lea.vmem %s1, 23
          %v1253 = vld [vmem:[%s1252] sm:$0x1]
          %1255 = vset.pattern.permute.xlu0 0
          %1256 = vperm.xlu0 %1255, %v1249
          %v1257 = vpop.permute.xlu0 %1256
          %1260 = vset.pattern.permute.xlu0 0
          %1261 = vperm.xlu0 %1260, %v1250
          %v1262 = vpop.permute.xlu0 %1261
          %1265 = vset.pattern.permute.xlu0 0
          %1266 = vperm.xlu0 %1265, %v1251
          %v1267 = vpop.permute.xlu0 %1266
          %v1270 = vlaneseq
          %v1271 = vshrl.u32 %v1270, 7
          %v1272 = vsub.s32 0, %v1271
          %v1273 = vrot.slane %v1253, %v1272
          %v1275 = vmul.f32 %v1257, %v1273
          %v1276 = vmul.f32 %v1262, %v1273
          %v1277 = vmul.f32 %v1267, %v1273
          %v1278 = vadd.f32 %v1246, %v1275
          %v1279 = vadd.f32 %v1247, %v1276
          %v1280 = vadd.f32 %v1248, %v1277
          %v1281 = vld [vmem:[%s1152 + $0x4] sm:$0xff]
          %v1282 = vld [vmem:[%s1152 + $0xc] sm:$0xff]
          %v1283 = vld [vmem:[%s1152 + $0x14] sm:$0xff]
          %s1284 = scalar_lea.vmem %s1, 24
          %v1285 = vld [vmem:[%s1284] sm:$0x1]
          %1287 = vset.pattern.permute.xlu0 0
          %1288 = vperm.xlu0 %1287, %v1281
          %v1289 = vpop.permute.xlu0 %1288
          %1292 = vset.pattern.permute.xlu0 0
          %1293 = vperm.xlu0 %1292, %v1282
          %v1294 = vpop.permute.xlu0 %1293
          %1297 = vset.pattern.permute.xlu0 0
          %1298 = vperm.xlu0 %1297, %v1283
          %v1299 = vpop.permute.xlu0 %1298
          %v1302 = vlaneseq
          %v1303 = vshrl.u32 %v1302, 7
          %v1304 = vsub.s32 0, %v1303
          %v1305 = vrot.slane %v1285, %v1304
          %v1307 = vmul.f32 %v1289, %v1305
          %v1308 = vmul.f32 %v1294, %v1305
          %v1309 = vmul.f32 %v1299, %v1305
          %v1310 = vadd.f32 %v1278, %v1307
          %v1311 = vadd.f32 %v1279, %v1308
          %v1312 = vadd.f32 %v1280, %v1309
          %v1314 = vlaneseq
          %v1315 = vshrl.u32 %v1314, 7
          %v1316 = vsub.s32 0, %v1315
          %v1317 = vrot.slane %v492, %v1316
          %v1319 = vmul.f32 %v1310, %v1317
          %v1320 = vmul.f32 %v1311, %v1317
          %v1321 = vmul.f32 %v1312, %v1317
          %v1323 = vlaneseq
          %v1324 = vshrl.u32 %v1323, 7
          %v1325 = vsub.s32 0, %v1324
          %v1326 = vrot.slane %v493, %v1325
          %v1328 = vadd.f32 %v1319, %v1326
          %v1329 = vadd.f32 %v1320, %v1326
          %v1330 = vadd.f32 %v1321, %v1326
          %v1331 = vmax.f32 %v1328, 0.0
          %v1332 = vmax.f32 %v1329, 0.0
          %v1333 = vmax.f32 %v1330, 0.0
          %s1334 = smul.u32 %s495, 24
          %s1335 = scalar_lea.vmem [#allocation2], %s1334
          %vm1336 = vcmask 261120
          %1337 = vst.msk [vmem:[%s1335] sm:$0xff] %vm1336, %v1331
          %1338 = vst.msk [vmem:[%s1335 + $0x8] sm:$0xff] %vm1336, %v1332
          %1339 = vst.msk [vmem:[%s1335 + $0x10] sm:$0xff] %vm1336, %v1333
        $region85: #{cnn_forward.1} parent=79 // loop_footer
          %s499 = sadd.s32 1, %s495
        $region86: #{cnn_forward.1} parent=79 // loop_footer_branch
          %494 = sbr.rel target = $region82
        $region87: #{cnn_forward.1} parent=79 // loop_exit
          _
        %v1340 = vld [vmem:[%s5] sm:$0x1]
        %v1341 = vld [vmem:[%s6] sm:$0x1]
        loop: start=0, step=1, limit=20
        $region88: #{cnn_forward.1} parent=79 // loop_pre_header
          _
        $region89: #{cnn_forward.1} parent=79 // loop_header
          %s1343 = sphi 0, %s1347
          %p1344 = scmp.ge.s32.totalorder %s1343, 20
        $region90: #{cnn_forward.1} parent=79 // loop_header_branch
          %1346 = sbr.rel (%p1344) target = $region94
        $region91: #{cnn_forward.1} parent=79 // loop_body
          %s1348 = smul.u32 %s1343, 24
          %s1349 = scalar_lea.vmem [#allocation2], %s1348
          %v1350 = vld [vmem:[%s1349] sm:$0xff]
          %v1351 = vld [vmem:[%s1349 + $0x8] sm:$0xff]
          %v1352 = vld [vmem:[%s1349 + $0x10] sm:$0xf]
          %v1353 = vld [vmem:[%s4] sm:$0xff]
          %v1354 = vld [vmem:[%s4 + $0x8] sm:$0xff]
          %v1355 = vld [vmem:[%s4 + $0x10] sm:$0xff]
          %v1356 = vld [vmem:[%s4 + $0x18] sm:$0xff]
          %v1357 = vld [vmem:[%s1349 + $0x1] sm:$0xff]
          %v1358 = vld [vmem:[%s1349 + $0x9] sm:$0xff]
          %v1359 = vld [vmem:[%s1349 + $0x11] sm:$0xf]
          %s1360 = scalar_lea.vmem %s4, 32
          %v1361 = vld [vmem:[%s1360] sm:$0xff]
          %v1362 = vld [vmem:[%s1360 + $0x8] sm:$0xff]
          %v1363 = vld [vmem:[%s1360 + $0x10] sm:$0xff]
          %v1364 = vld [vmem:[%s1360 + $0x18] sm:$0xff]
          %vm1365 = vcmask 261120
          %v1367 = vsel %vm1365, %v1357, 0
          %v1370 = vsel %vm1365, %v1358, 0
          %v1373 = vsel %vm1365, %v1359, 0
          %1375 = vmatprep.subr.mxu0 0.0
          %1376 = vmatpush1.msra.mxu0 %v1361
          %1377 = vmatprep.subr.mxu0 0.0
          %1378 = vmatpush1.msra.mxu0 %v1362
          %1379 = vmatprep.subr.mxu0 0.0
          %1380 = vmatpush1.msra.mxu0 %v1363
          %1381 = vmatprep.subr.mxu0 0.0
          %1382 = vmatpush1.msra.mxu0 %v1364
          %1383 = vmatprep.subr.mxu0 0.0
          %1384 = vmatpush1.msra.mxu0 0.0
          %1385 = vmatprep.subr.mxu0 0.0
          %1386 = vmatpush1.msra.mxu0 0.0
          %1387 = vmatprep.subr.mxu0 0.0
          %1388 = vmatpush1.msra.mxu0 0.0
          %1389 = vmatprep.subr.mxu0 0.0
          %1390 = vmatpush1.msra.mxu0 0.0
          %1391 = vmatprep.subr.mxu0 0.0
          %1392 = vmatpush1.msra.mxu0 0.0
          %1393 = vmatprep.subr.mxu0 0.0
          %1394 = vmatpush1.msra.mxu0 0.0
          %1395 = vmatprep.subr.mxu0 0.0
          %1396 = vmatpush1.msra.mxu0 0.0
          %1397 = vmatprep.subr.mxu0 0.0
          %1398 = vmatpush1.msra.mxu0 0.0
          %1399 = vmatprep.subr.mxu0 0.0
          %1400 = vmatpush1.msra.mxu0 0.0
          %1401 = vmatprep.subr.mxu0 0.0
          %1402 = vmatpush1.msra.mxu0 0.0
          %1403 = vmatprep.subr.mxu0 0.0
          %1404 = vmatpush1.msra.mxu0 0.0
          %1405 = vmatprep.subr.mxu0 0.0
          %1406 = vmatpush1.msra.mxu0 0.0
          %1407 = vmatprep.subr.mxu0 0.0
          %1408 = vmatpush1.msra.mxu0 0.0
          %1409 = vmatprep.subr.mxu0 0.0
          %1410 = vmatpush1.msra.mxu0 0.0
          %1411 = vmatprep.subr.mxu0 0.0
          %1412 = vmatpush1.msra.mxu0 0.0
          %1413 = vmatprep.subr.mxu0 0.0
          %1414 = vmatpush1.msra.mxu0 0.0
          %1415 = vmatprep.subr.mxu0 0.0
          %1416 = vmatpush1.msra.mxu0 0.0
          %1417 = vmatprep.subr.mxu0 0.0
          %1418 = vmatpush1.msra.mxu0 0.0
          %1419 = vmatprep.subr.mxu0 0.0
          %1420 = vmatpush1.msra.mxu0 0.0
          %1421 = vmatprep.subr.mxu0 0.0
          %1422 = vmatpush1.msra.mxu0 0.0
          %1423 = vmatprep.subr.mxu0 0.0
          %1424 = vmatpush1.msra.mxu0 0.0
          %1425 = vmatprep.subr.mxu0 0.0
          %1426 = vmatpush1.msra.mxu0 0.0
          %1427 = vmatprep.subr.mxu0 0.0
          %1428 = vmatpush1.msra.mxu0 0.0
          %1429 = vmatprep.subr.mxu0 0.0
          %1430 = vmatpush1.msra.mxu0 0.0
          %1431 = vmatprep.subr.mxu0 0.0
          %1432 = vmatpush1.msra.mxu0 0.0
          %1433 = vmatprep.subr.mxu0 0.0
          %1434 = vmatpush1.msra.mxu0 0.0
          %1435 = vmatprep.subr.mxu0 0.0
          %1436 = vmatpush1.msra.mxu0 0.0
          %1437 = vmatprep.subr.mxu0 0.0
          %1438 = vmatpush1.msra.mxu0 0.0
          %1439 = vmatprep.mubr.f32.mxu0 0.0
          %1440 = vmatmul.mubr.f32.gmra.mrb[0].mxu0 %v1367
          %v1441 = vpop.f32.mrb[0].mxu0
          %v1442 = vadd.f32 0.0, %v1441
          %v1443 = vpop.f32.mrb[0].mxu0
          %1444 = vmatprep.mubr.f32.mxu0 0.0
          %1445 = vmatmul.mubr.f32.gmra.mrb[0].mxu0 %v1370
          %v1446 = vpop.f32.mrb[0].mxu0
          %v1447 = vadd.f32 0.0, %v1446
          %v1448 = vpop.f32.mrb[0].mxu0
          %1449 = vmatprep.mubr.f32.mxu0 0.0
          %1450 = vmatmul.mubr.f32.gmra.mrb[0].mxu0 %v1373
          %v1451 = vpop.f32.mrb[0].mxu0
          %v1452 = vadd.f32 0.0, %v1451
          %v1453 = vpop.f32.mrb[0].mxu0
          %1454 = vdwg.mxu0
          %v1456 = vsel %vm1365, %v1350, 0
          %v1459 = vsel %vm1365, %v1351, 0
          %v1462 = vsel %vm1365, %v1352, 0
          %1464 = vmatprep.subr.mxu0 0.0
          %1465 = vmatpush1.msra.mxu0 %v1353
          %1466 = vmatprep.subr.mxu0 0.0
          %1467 = vmatpush1.msra.mxu0 %v1354
          %1468 = vmatprep.subr.mxu0 0.0
          %1469 = vmatpush1.msra.mxu0 %v1355
          %1470 = vmatprep.subr.mxu0 0.0
          %1471 = vmatpush1.msra.mxu0 %v1356
          %1472 = vmatprep.subr.mxu0 0.0
          %1473 = vmatpush1.msra.mxu0 0.0
          %1474 = vmatprep.subr.mxu0 0.0
          %1475 = vmatpush1.msra.mxu0 0.0
          %1476 = vmatprep.subr.mxu0 0.0
          %1477 = vmatpush1.msra.mxu0 0.0
          %1478 = vmatprep.subr.mxu0 0.0
          %1479 = vmatpush1.msra.mxu0 0.0
          %1480 = vmatprep.subr.mxu0 0.0
          %1481 = vmatpush1.msra.mxu0 0.0
          %1482 = vmatprep.subr.mxu0 0.0
          %1483 = vmatpush1.msra.mxu0 0.0
          %1484 = vmatprep.subr.mxu0 0.0
          %1485 = vmatpush1.msra.mxu0 0.0
          %1486 = vmatprep.subr.mxu0 0.0
          %1487 = vmatpush1.msra.mxu0 0.0
          %1488 = vmatprep.subr.mxu0 0.0
          %1489 = vmatpush1.msra.mxu0 0.0
          %1490 = vmatprep.subr.mxu0 0.0
          %1491 = vmatpush1.msra.mxu0 0.0
          %1492 = vmatprep.subr.mxu0 0.0
          %1493 = vmatpush1.msra.mxu0 0.0
          %1494 = vmatprep.subr.mxu0 0.0
          %1495 = vmatpush1.msra.mxu0 0.0
          %1496 = vmatprep.subr.mxu0 0.0
          %1497 = vmatpush1.msra.mxu0 0.0
          %1498 = vmatprep.subr.mxu0 0.0
          %1499 = vmatpush1.msra.mxu0 0.0
          %1500 = vmatprep.subr.mxu0 0.0
          %1501 = vmatpush1.msra.mxu0 0.0
          %1502 = vmatprep.subr.mxu0 0.0
          %1503 = vmatpush1.msra.mxu0 0.0
          %1504 = vmatprep.subr.mxu0 0.0
          %1505 = vmatpush1.msra.mxu0 0.0
          %1506 = vmatprep.subr.mxu0 0.0
          %1507 = vmatpush1.msra.mxu0 0.0
          %1508 = vmatprep.subr.mxu0 0.0
          %1509 = vmatpush1.msra.mxu0 0.0
          %1510 = vmatprep.subr.mxu0 0.0
          %1511 = vmatpush1.msra.mxu0 0.0
          %1512 = vmatprep.subr.mxu0 0.0
          %1513 = vmatpush1.msra.mxu0 0.0
          %1514 = vmatprep.subr.mxu0 0.0
          %1515 = vmatpush1.msra.mxu0 0.0
          %1516 = vmatprep.subr.mxu0 0.0
          %1517 = vmatpush1.msra.mxu0 0.0
          %1518 = vmatprep.subr.mxu0 0.0
          %1519 = vmatpush1.msra.mxu0 0.0
          %1520 = vmatprep.subr.mxu0 0.0
          %1521 = vmatpush1.msra.mxu0 0.0
          %1522 = vmatprep.subr.mxu0 0.0
          %1523 = vmatpush1.msra.mxu0 0.0
          %1524 = vmatprep.subr.mxu0 0.0
          %1525 = vmatpush1.msra.mxu0 0.0
          %1526 = vmatprep.subr.mxu0 0.0
          %1527 = vmatpush1.msra.mxu0 0.0
          %1528 = vmatprep.mubr.f32.mxu0 0.0
          %1529 = vmatmul.mubr.f32.gmra.mrb[0].mxu0 %v1456
          %v1530 = vpop.f32.mrb[0].mxu0
          %v1531 = vadd.f32 %v1442, %v1530
          %v1532 = vpop.f32.mrb[0].mxu0
          %1533 = vmatprep.mubr.f32.mxu0 0.0
          %1534 = vmatmul.mubr.f32.gmra.mrb[0].mxu0 %v1459
          %v1535 = vpop.f32.mrb[0].mxu0
          %v1536 = vadd.f32 %v1447, %v1535
          %v1537 = vpop.f32.mrb[0].mxu0
          %1538 = vmatprep.mubr.f32.mxu0 0.0
          %1539 = vmatmul.mubr.f32.gmra.mrb[0].mxu0 %v1462
          %v1540 = vpop.f32.mrb[0].mxu0
          %v1541 = vadd.f32 %v1452, %v1540
          %v1542 = vpop.f32.mrb[0].mxu0
          %1543 = vdwg.mxu0
          %v1544 = vld [vmem:[%s1349 + $0x2] sm:$0xff]
          %v1545 = vld [vmem:[%s1349 + $0xa] sm:$0xff]
          %v1546 = vld [vmem:[%s1349 + $0x12] sm:$0xf]
          %s1547 = scalar_lea.vmem %s4, 64
          %v1548 = vld [vmem:[%s1547] sm:$0xff]
          %v1549 = vld [vmem:[%s1547 + $0x8] sm:$0xff]
          %v1550 = vld [vmem:[%s1547 + $0x10] sm:$0xff]
          %v1551 = vld [vmem:[%s1547 + $0x18] sm:$0xff]
          %v1553 = vsel %vm1365, %v1544, 0
          %v1556 = vsel %vm1365, %v1545, 0
          %v1559 = vsel %vm1365, %v1546, 0
          %1561 = vmatprep.subr.mxu0 0.0
          %1562 = vmatpush1.msra.mxu0 %v1548
          %1563 = vmatprep.subr.mxu0 0.0
          %1564 = vmatpush1.msra.mxu0 %v1549
          %1565 = vmatprep.subr.mxu0 0.0
          %1566 = vmatpush1.msra.mxu0 %v1550
          %1567 = vmatprep.subr.mxu0 0.0
          %1568 = vmatpush1.msra.mxu0 %v1551
          %1569 = vmatprep.subr.mxu0 0.0
          %1570 = vmatpush1.msra.mxu0 0.0
          %1571 = vmatprep.subr.mxu0 0.0
          %1572 = vmatpush1.msra.mxu0 0.0
          %1573 = vmatprep.subr.mxu0 0.0
          %1574 = vmatpush1.msra.mxu0 0.0
          %1575 = vmatprep.subr.mxu0 0.0
          %1576 = vmatpush1.msra.mxu0 0.0
          %1577 = vmatprep.subr.mxu0 0.0
          %1578 = vmatpush1.msra.mxu0 0.0
          %1579 = vmatprep.subr.mxu0 0.0
          %1580 = vmatpush1.msra.mxu0 0.0
          %1581 = vmatprep.subr.mxu0 0.0
          %1582 = vmatpush1.msra.mxu0 0.0
          %1583 = vmatprep.subr.mxu0 0.0
          %1584 = vmatpush1.msra.mxu0 0.0
          %1585 = vmatprep.subr.mxu0 0.0
          %1586 = vmatpush1.msra.mxu0 0.0
          %1587 = vmatprep.subr.mxu0 0.0
          %1588 = vmatpush1.msra.mxu0 0.0
          %1589 = vmatprep.subr.mxu0 0.0
          %1590 = vmatpush1.msra.mxu0 0.0
          %1591 = vmatprep.subr.mxu0 0.0
          %1592 = vmatpush1.msra.mxu0 0.0
          %1593 = vmatprep.subr.mxu0 0.0
          %1594 = vmatpush1.msra.mxu0 0.0
          %1595 = vmatprep.subr.mxu0 0.0
          %1596 = vmatpush1.msra.mxu0 0.0
          %1597 = vmatprep.subr.mxu0 0.0
          %1598 = vmatpush1.msra.mxu0 0.0
          %1599 = vmatprep.subr.mxu0 0.0
          %1600 = vmatpush1.msra.mxu0 0.0
          %1601 = vmatprep.subr.mxu0 0.0
          %1602 = vmatpush1.msra.mxu0 0.0
          %1603 = vmatprep.subr.mxu0 0.0
          %1604 = vmatpush1.msra.mxu0 0.0
          %1605 = vmatprep.subr.mxu0 0.0
          %1606 = vmatpush1.msra.mxu0 0.0
          %1607 = vmatprep.subr.mxu0 0.0
          %1608 = vmatpush1.msra.mxu0 0.0
          %1609 = vmatprep.subr.mxu0 0.0
          %1610 = vmatpush1.msra.mxu0 0.0
          %1611 = vmatprep.subr.mxu0 0.0
          %1612 = vmatpush1.msra.mxu0 0.0
          %1613 = vmatprep.subr.mxu0 0.0
          %1614 = vmatpush1.msra.mxu0 0.0
          %1615 = vmatprep.subr.mxu0 0.0
          %1616 = vmatpush1.msra.mxu0 0.0
          %1617 = vmatprep.subr.mxu0 0.0
          %1618 = vmatpush1.msra.mxu0 0.0
          %1619 = vmatprep.subr.mxu0 0.0
          %1620 = vmatpush1.msra.mxu0 0.0
          %1621 = vmatprep.subr.mxu0 0.0
          %1622 = vmatpush1.msra.mxu0 0.0
          %1623 = vmatprep.subr.mxu0 0.0
          %1624 = vmatpush1.msra.mxu0 0.0
          %1625 = vmatprep.mubr.f32.mxu0 0.0
          %1626 = vmatmul.mubr.f32.gmra.mrb[0].mxu0 %v1553
          %v1627 = vpop.f32.mrb[0].mxu0
          %v1628 = vadd.f32 0.0, %v1627
          %v1629 = vpop.f32.mrb[0].mxu0
          %1630 = vmatprep.mubr.f32.mxu0 0.0
          %1631 = vmatmul.mubr.f32.gmra.mrb[0].mxu0 %v1556
          %v1632 = vpop.f32.mrb[0].mxu0
          %v1633 = vadd.f32 0.0, %v1632
          %v1634 = vpop.f32.mrb[0].mxu0
          %1635 = vmatprep.mubr.f32.mxu0 0.0
          %1636 = vmatmul.mubr.f32.gmra.mrb[0].mxu0 %v1559
          %v1637 = vpop.f32.mrb[0].mxu0
          %v1638 = vadd.f32 0.0, %v1637
          %v1639 = vpop.f32.mrb[0].mxu0
          %1640 = vdwg.mxu0
          %v1641 = vadd.f32 %v1531, %v1628
          %v1642 = vadd.f32 %v1536, %v1633
          %v1643 = vadd.f32 %v1541, %v1638
          %v1644 = vld [vmem:[%s1349 + $0x3] sm:$0xff]
          %v1645 = vld [vmem:[%s1349 + $0xb] sm:$0xff]
          %v1646 = vld [vmem:[%s1349 + $0x13] sm:$0xf]
          %s1647 = scalar_lea.vmem %s4, 96
          %v1648 = vld [vmem:[%s1647] sm:$0xff]
          %v1649 = vld [vmem:[%s1647 + $0x8] sm:$0xff]
          %v1650 = vld [vmem:[%s1647 + $0x10] sm:$0xff]
          %v1651 = vld [vmem:[%s1647 + $0x18] sm:$0xff]
          %v1653 = vsel %vm1365, %v1644, 0
          %v1656 = vsel %vm1365, %v1645, 0
          %v1659 = vsel %vm1365, %v1646, 0
          %1661 = vmatprep.subr.mxu0 0.0
          %1662 = vmatpush1.msra.mxu0 %v1648
          %1663 = vmatprep.subr.mxu0 0.0
          %1664 = vmatpush1.msra.mxu0 %v1649
          %1665 = vmatprep.subr.mxu0 0.0
          %1666 = vmatpush1.msra.mxu0 %v1650
          %1667 = vmatprep.subr.mxu0 0.0
          %1668 = vmatpush1.msra.mxu0 %v1651
          %1669 = vmatprep.subr.mxu0 0.0
          %1670 = vmatpush1.msra.mxu0 0.0
          %1671 = vmatprep.subr.mxu0 0.0
          %1672 = vmatpush1.msra.mxu0 0.0
          %1673 = vmatprep.subr.mxu0 0.0
          %1674 = vmatpush1.msra.mxu0 0.0
          %1675 = vmatprep.subr.mxu0 0.0
          %1676 = vmatpush1.msra.mxu0 0.0
          %1677 = vmatprep.subr.mxu0 0.0
          %1678 = vmatpush1.msra.mxu0 0.0
          %1679 = vmatprep.subr.mxu0 0.0
          %1680 = vmatpush1.msra.mxu0 0.0
          %1681 = vmatprep.subr.mxu0 0.0
          %1682 = vmatpush1.msra.mxu0 0.0
          %1683 = vmatprep.subr.mxu0 0.0
          %1684 = vmatpush1.msra.mxu0 0.0
          %1685 = vmatprep.subr.mxu0 0.0
          %1686 = vmatpush1.msra.mxu0 0.0
          %1687 = vmatprep.subr.mxu0 0.0
          %1688 = vmatpush1.msra.mxu0 0.0
          %1689 = vmatprep.subr.mxu0 0.0
          %1690 = vmatpush1.msra.mxu0 0.0
          %1691 = vmatprep.subr.mxu0 0.0
          %1692 = vmatpush1.msra.mxu0 0.0
          %1693 = vmatprep.subr.mxu0 0.0
          %1694 = vmatpush1.msra.mxu0 0.0
          %1695 = vmatprep.subr.mxu0 0.0
          %1696 = vmatpush1.msra.mxu0 0.0
          %1697 = vmatprep.subr.mxu0 0.0
          %1698 = vmatpush1.msra.mxu0 0.0
          %1699 = vmatprep.subr.mxu0 0.0
          %1700 = vmatpush1.msra.mxu0 0.0
          %1701 = vmatprep.subr.mxu0 0.0
          %1702 = vmatpush1.msra.mxu0 0.0
          %1703 = vmatprep.subr.mxu0 0.0
          %1704 = vmatpush1.msra.mxu0 0.0
          %1705 = vmatprep.subr.mxu0 0.0
          %1706 = vmatpush1.msra.mxu0 0.0
          %1707 = vmatprep.subr.mxu0 0.0
          %1708 = vmatpush1.msra.mxu0 0.0
          %1709 = vmatprep.subr.mxu0 0.0
          %1710 = vmatpush1.msra.mxu0 0.0
          %1711 = vmatprep.subr.mxu0 0.0
          %1712 = vmatpush1.msra.mxu0 0.0
          %1713 = vmatprep.subr.mxu0 0.0
          %1714 = vmatpush1.msra.mxu0 0.0
          %1715 = vmatprep.subr.mxu0 0.0
          %1716 = vmatpush1.msra.mxu0 0.0
          %1717 = vmatprep.subr.mxu0 0.0
          %1718 = vmatpush1.msra.mxu0 0.0
          %1719 = vmatprep.subr.mxu0 0.0
          %1720 = vmatpush1.msra.mxu0 0.0
          %1721 = vmatprep.subr.mxu0 0.0
          %1722 = vmatpush1.msra.mxu0 0.0
          %1723 = vmatprep.subr.mxu0 0.0
          %1724 = vmatpush1.msra.mxu0 0.0
          %1725 = vmatprep.mubr.f32.mxu0 0.0
          %1726 = vmatmul.mubr.f32.gmra.mrb[0].mxu0 %v1653
          %v1727 = vpop.f32.mrb[0].mxu0
          %v1728 = vadd.f32 0.0, %v1727
          %v1729 = vpop.f32.mrb[0].mxu0
          %1730 = vmatprep.mubr.f32.mxu0 0.0
          %1731 = vmatmul.mubr.f32.gmra.mrb[0].mxu0 %v1656
          %v1732 = vpop.f32.mrb[0].mxu0
          %v1733 = vadd.f32 0.0, %v1732
          %v1734 = vpop.f32.mrb[0].mxu0
          %1735 = vmatprep.mubr.f32.mxu0 0.0
          %1736 = vmatmul.mubr.f32.gmra.mrb[0].mxu0 %v1659
          %v1737 = vpop.f32.mrb[0].mxu0
          %v1738 = vadd.f32 0.0, %v1737
          %v1739 = vpop.f32.mrb[0].mxu0
          %1740 = vdwg.mxu0
          %v1741 = vadd.f32 %v1641, %v1728
          %v1742 = vadd.f32 %v1642, %v1733
          %v1743 = vadd.f32 %v1643, %v1738
          %v1744 = vld [vmem:[%s1349 + $0x4] sm:$0xff]
          %v1745 = vld [vmem:[%s1349 + $0xc] sm:$0xff]
          %v1746 = vld [vmem:[%s1349 + $0x14] sm:$0xf]
          %s1747 = scalar_lea.vmem %s4, 128
          %v1748 = vld [vmem:[%s1747] sm:$0xff]
          %v1749 = vld [vmem:[%s1747 + $0x8] sm:$0xff]
          %v1750 = vld [vmem:[%s1747 + $0x10] sm:$0xff]
          %v1751 = vld [vmem:[%s1747 + $0x18] sm:$0xff]
          %v1753 = vsel %vm1365, %v1744, 0
          %v1756 = vsel %vm1365, %v1745, 0
          %v1759 = vsel %vm1365, %v1746, 0
          %1761 = vmatprep.subr.mxu0 0.0
          %1762 = vmatpush1.msra.mxu0 %v1748
          %1763 = vmatprep.subr.mxu0 0.0
          %1764 = vmatpush1.msra.mxu0 %v1749
          %1765 = vmatprep.subr.mxu0 0.0
          %1766 = vmatpush1.msra.mxu0 %v1750
          %1767 = vmatprep.subr.mxu0 0.0
          %1768 = vmatpush1.msra.mxu0 %v1751
          %1769 = vmatprep.subr.mxu0 0.0
          %1770 = vmatpush1.msra.mxu0 0.0
          %1771 = vmatprep.subr.mxu0 0.0
          %1772 = vmatpush1.msra.mxu0 0.0
          %1773 = vmatprep.subr.mxu0 0.0
          %1774 = vmatpush1.msra.mxu0 0.0
          %1775 = vmatprep.subr.mxu0 0.0
          %1776 = vmatpush1.msra.mxu0 0.0
          %1777 = vmatprep.subr.mxu0 0.0
          %1778 = vmatpush1.msra.mxu0 0.0
          %1779 = vmatprep.subr.mxu0 0.0
          %1780 = vmatpush1.msra.mxu0 0.0
          %1781 = vmatprep.subr.mxu0 0.0
          %1782 = vmatpush1.msra.mxu0 0.0
          %1783 = vmatprep.subr.mxu0 0.0
          %1784 = vmatpush1.msra.mxu0 0.0
          %1785 = vmatprep.subr.mxu0 0.0
          %1786 = vmatpush1.msra.mxu0 0.0
          %1787 = vmatprep.subr.mxu0 0.0
          %1788 = vmatpush1.msra.mxu0 0.0
          %1789 = vmatprep.subr.mxu0 0.0
          %1790 = vmatpush1.msra.mxu0 0.0
          %1791 = vmatprep.subr.mxu0 0.0
          %1792 = vmatpush1.msra.mxu0 0.0
          %1793 = vmatprep.subr.mxu0 0.0
          %1794 = vmatpush1.msra.mxu0 0.0
          %1795 = vmatprep.subr.mxu0 0.0
          %1796 = vmatpush1.msra.mxu0 0.0
          %1797 = vmatprep.subr.mxu0 0.0
          %1798 = vmatpush1.msra.mxu0 0.0
          %1799 = vmatprep.subr.mxu0 0.0
          %1800 = vmatpush1.msra.mxu0 0.0
          %1801 = vmatprep.subr.mxu0 0.0
          %1802 = vmatpush1.msra.mxu0 0.0
          %1803 = vmatprep.subr.mxu0 0.0
          %1804 = vmatpush1.msra.mxu0 0.0
          %1805 = vmatprep.subr.mxu0 0.0
          %1806 = vmatpush1.msra.mxu0 0.0
          %1807 = vmatprep.subr.mxu0 0.0
          %1808 = vmatpush1.msra.mxu0 0.0
          %1809 = vmatprep.subr.mxu0 0.0
          %1810 = vmatpush1.msra.mxu0 0.0
          %1811 = vmatprep.subr.mxu0 0.0
          %1812 = vmatpush1.msra.mxu0 0.0
          %1813 = vmatprep.subr.mxu0 0.0
          %1814 = vmatpush1.msra.mxu0 0.0
          %1815 = vmatprep.subr.mxu0 0.0
          %1816 = vmatpush1.msra.mxu0 0.0
          %1817 = vmatprep.subr.mxu0 0.0
          %1818 = vmatpush1.msra.mxu0 0.0
          %1819 = vmatprep.subr.mxu0 0.0
          %1820 = vmatpush1.msra.mxu0 0.0
          %1821 = vmatprep.subr.mxu0 0.0
          %1822 = vmatpush1.msra.mxu0 0.0
          %1823 = vmatprep.subr.mxu0 0.0
          %1824 = vmatpush1.msra.mxu0 0.0
          %1825 = vmatprep.mubr.f32.mxu0 0.0
          %1826 = vmatmul.mubr.f32.gmra.mrb[0].mxu0 %v1753
          %v1827 = vpop.f32.mrb[0].mxu0
          %v1828 = vadd.f32 0.0, %v1827
          %v1829 = vpop.f32.mrb[0].mxu0
          %1830 = vmatprep.mubr.f32.mxu0 0.0
          %1831 = vmatmul.mubr.f32.gmra.mrb[0].mxu0 %v1756
          %v1832 = vpop.f32.mrb[0].mxu0
          %v1833 = vadd.f32 0.0, %v1832
          %v1834 = vpop.f32.mrb[0].mxu0
          %1835 = vmatprep.mubr.f32.mxu0 0.0
          %1836 = vmatmul.mubr.f32.gmra.mrb[0].mxu0 %v1759
          %v1837 = vpop.f32.mrb[0].mxu0
          %v1838 = vadd.f32 0.0, %v1837
          %v1839 = vpop.f32.mrb[0].mxu0
          %1840 = vdwg.mxu0
          %v1841 = vadd.f32 %v1741, %v1828
          %v1842 = vadd.f32 %v1742, %v1833
          %v1843 = vadd.f32 %v1743, %v1838
          %s1844 = sadd.s32 %s1343, 1
          %s1845 = smul.u32 %s1844, 24
          %s1846 = scalar_lea.vmem [#allocation2], %s1845
          %v1847 = vld [vmem:[%s1846] sm:$0xff]
          %v1848 = vld [vmem:[%s1846 + $0x8] sm:$0xff]
          %v1849 = vld [vmem:[%s1846 + $0x10] sm:$0xf]
          %s1850 = scalar_lea.vmem %s4, 160
          %v1851 = vld [vmem:[%s1850] sm:$0xff]
          %v1852 = vld [vmem:[%s1850 + $0x8] sm:$0xff]
          %v1853 = vld [vmem:[%s1850 + $0x10] sm:$0xff]
          %v1854 = vld [vmem:[%s1850 + $0x18] sm:$0xff]
          %v1856 = vsel %vm1365, %v1847, 0
          %v1859 = vsel %vm1365, %v1848, 0
          %v1862 = vsel %vm1365, %v1849, 0
          %1864 = vmatprep.subr.mxu0 0.0
          %1865 = vmatpush1.msra.mxu0 %v1851
          %1866 = vmatprep.subr.mxu0 0.0
          %1867 = vmatpush1.msra.mxu0 %v1852
          %1868 = vmatprep.subr.mxu0 0.0
          %1869 = vmatpush1.msra.mxu0 %v1853
          %1870 = vmatprep.subr.mxu0 0.0
          %1871 = vmatpush1.msra.mxu0 %v1854
          %1872 = vmatprep.subr.mxu0 0.0
          %1873 = vmatpush1.msra.mxu0 0.0
          %1874 = vmatprep.subr.mxu0 0.0
          %1875 = vmatpush1.msra.mxu0 0.0
          %1876 = vmatprep.subr.mxu0 0.0
          %1877 = vmatpush1.msra.mxu0 0.0
          %1878 = vmatprep.subr.mxu0 0.0
          %1879 = vmatpush1.msra.mxu0 0.0
          %1880 = vmatprep.subr.mxu0 0.0
          %1881 = vmatpush1.msra.mxu0 0.0
          %1882 = vmatprep.subr.mxu0 0.0
          %1883 = vmatpush1.msra.mxu0 0.0
          %1884 = vmatprep.subr.mxu0 0.0
          %1885 = vmatpush1.msra.mxu0 0.0
          %1886 = vmatprep.subr.mxu0 0.0
          %1887 = vmatpush1.msra.mxu0 0.0
          %1888 = vmatprep.subr.mxu0 0.0
          %1889 = vmatpush1.msra.mxu0 0.0
          %1890 = vmatprep.subr.mxu0 0.0
          %1891 = vmatpush1.msra.mxu0 0.0
          %1892 = vmatprep.subr.mxu0 0.0
          %1893 = vmatpush1.msra.mxu0 0.0
          %1894 = vmatprep.subr.mxu0 0.0
          %1895 = vmatpush1.msra.mxu0 0.0
          %1896 = vmatprep.subr.mxu0 0.0
          %1897 = vmatpush1.msra.mxu0 0.0
          %1898 = vmatprep.subr.mxu0 0.0
          %1899 = vmatpush1.msra.mxu0 0.0
          %1900 = vmatprep.subr.mxu0 0.0
          %1901 = vmatpush1.msra.mxu0 0.0
          %1902 = vmatprep.subr.mxu0 0.0
          %1903 = vmatpush1.msra.mxu0 0.0
          %1904 = vmatprep.subr.mxu0 0.0
          %1905 = vmatpush1.msra.mxu0 0.0
          %1906 = vmatprep.subr.mxu0 0.0
          %1907 = vmatpush1.msra.mxu0 0.0
          %1908 = vmatprep.subr.mxu0 0.0
          %1909 = vmatpush1.msra.mxu0 0.0
          %1910 = vmatprep.subr.mxu0 0.0
          %1911 = vmatpush1.msra.mxu0 0.0
          %1912 = vmatprep.subr.mxu0 0.0
          %1913 = vmatpush1.msra.mxu0 0.0
          %1914 = vmatprep.subr.mxu0 0.0
          %1915 = vmatpush1.msra.mxu0 0.0
          %1916 = vmatprep.subr.mxu0 0.0
          %1917 = vmatpush1.msra.mxu0 0.0
          %1918 = vmatprep.subr.mxu0 0.0
          %1919 = vmatpush1.msra.mxu0 0.0
          %1920 = vmatprep.subr.mxu0 0.0
          %1921 = vmatpush1.msra.mxu0 0.0
          %1922 = vmatprep.subr.mxu0 0.0
          %1923 = vmatpush1.msra.mxu0 0.0
          %1924 = vmatprep.subr.mxu0 0.0
          %1925 = vmatpush1.msra.mxu0 0.0
          %1926 = vmatprep.subr.mxu0 0.0
          %1927 = vmatpush1.msra.mxu0 0.0
          %1928 = vmatprep.mubr.f32.mxu0 0.0
          %1929 = vmatmul.mubr.f32.gmra.mrb[0].mxu0 %v1856
          %v1930 = vpop.f32.mrb[0].mxu0
          %v1931 = vadd.f32 0.0, %v1930
          %v1932 = vpop.f32.mrb[0].mxu0
          %1933 = vmatprep.mubr.f32.mxu0 0.0
          %1934 = vmatmul.mubr.f32.gmra.mrb[0].mxu0 %v1859
          %v1935 = vpop.f32.mrb[0].mxu0
          %v1936 = vadd.f32 0.0, %v1935
          %v1937 = vpop.f32.mrb[0].mxu0
          %1938 = vmatprep.mubr.f32.mxu0 0.0
          %1939 = vmatmul.mubr.f32.gmra.mrb[0].mxu0 %v1862
          %v1940 = vpop.f32.mrb[0].mxu0
          %v1941 = vadd.f32 0.0, %v1940
          %v1942 = vpop.f32.mrb[0].mxu0
          %1943 = vdwg.mxu0
          %v1944 = vadd.f32 %v1841, %v1931
          %v1945 = vadd.f32 %v1842, %v1936
          %v1946 = vadd.f32 %v1843, %v1941
          %v1947 = vld [vmem:[%s1846 + $0x1] sm:$0xff]
          %v1948 = vld [vmem:[%s1846 + $0x9] sm:$0xff]
          %v1949 = vld [vmem:[%s1846 + $0x11] sm:$0xf]
          %s1950 = scalar_lea.vmem %s4, 192
          %v1951 = vld [vmem:[%s1950] sm:$0xff]
          %v1952 = vld [vmem:[%s1950 + $0x8] sm:$0xff]
          %v1953 = vld [vmem:[%s1950 + $0x10] sm:$0xff]
          %v1954 = vld [vmem:[%s1950 + $0x18] sm:$0xff]
          %v1956 = vsel %vm1365, %v1947, 0
          %v1959 = vsel %vm1365, %v1948, 0
          %v1962 = vsel %vm1365, %v1949, 0
          %1964 = vmatprep.subr.mxu0 0.0
          %1965 = vmatpush1.msra.mxu0 %v1951
          %1966 = vmatprep.subr.mxu0 0.0
          %1967 = vmatpush1.msra.mxu0 %v1952
          %1968 = vmatprep.subr.mxu0 0.0
          %1969 = vmatpush1.msra.mxu0 %v1953
          %1970 = vmatprep.subr.mxu0 0.0
          %1971 = vmatpush1.msra.mxu0 %v1954
          %1972 = vmatprep.subr.mxu0 0.0
          %1973 = vmatpush1.msra.mxu0 0.0
          %1974 = vmatprep.subr.mxu0 0.0
          %1975 = vmatpush1.msra.mxu0 0.0
          %1976 = vmatprep.subr.mxu0 0.0
          %1977 = vmatpush1.msra.mxu0 0.0
          %1978 = vmatprep.subr.mxu0 0.0
          %1979 = vmatpush1.msra.mxu0 0.0
          %1980 = vmatprep.subr.mxu0 0.0
          %1981 = vmatpush1.msra.mxu0 0.0
          %1982 = vmatprep.subr.mxu0 0.0
          %1983 = vmatpush1.msra.mxu0 0.0
          %1984 = vmatprep.subr.mxu0 0.0
          %1985 = vmatpush1.msra.mxu0 0.0
          %1986 = vmatprep.subr.mxu0 0.0
          %1987 = vmatpush1.msra.mxu0 0.0
          %1988 = vmatprep.subr.mxu0 0.0
          %1989 = vmatpush1.msra.mxu0 0.0
          %1990 = vmatprep.subr.mxu0 0.0
          %1991 = vmatpush1.msra.mxu0 0.0
          %1992 = vmatprep.subr.mxu0 0.0
          %1993 = vmatpush1.msra.mxu0 0.0
          %1994 = vmatprep.subr.mxu0 0.0
          %1995 = vmatpush1.msra.mxu0 0.0
          %1996 = vmatprep.subr.mxu0 0.0
          %1997 = vmatpush1.msra.mxu0 0.0
          %1998 = vmatprep.subr.mxu0 0.0
          %1999 = vmatpush1.msra.mxu0 0.0
          %2000 = vmatprep.subr.mxu0 0.0
          %2001 = vmatpush1.msra.mxu0 0.0
          %2002 = vmatprep.subr.mxu0 0.0
          %2003 = vmatpush1.msra.mxu0 0.0
          %2004 = vmatprep.subr.mxu0 0.0
          %2005 = vmatpush1.msra.mxu0 0.0
          %2006 = vmatprep.subr.mxu0 0.0
          %2007 = vmatpush1.msra.mxu0 0.0
          %2008 = vmatprep.subr.mxu0 0.0
          %2009 = vmatpush1.msra.mxu0 0.0
          %2010 = vmatprep.subr.mxu0 0.0
          %2011 = vmatpush1.msra.mxu0 0.0
          %2012 = vmatprep.subr.mxu0 0.0
          %2013 = vmatpush1.msra.mxu0 0.0
          %2014 = vmatprep.subr.mxu0 0.0
          %2015 = vmatpush1.msra.mxu0 0.0
          %2016 = vmatprep.subr.mxu0 0.0
          %2017 = vmatpush1.msra.mxu0 0.0
          %2018 = vmatprep.subr.mxu0 0.0
          %2019 = vmatpush1.msra.mxu0 0.0
          %2020 = vmatprep.subr.mxu0 0.0
          %2021 = vmatpush1.msra.mxu0 0.0
          %2022 = vmatprep.subr.mxu0 0.0
          %2023 = vmatpush1.msra.mxu0 0.0
          %2024 = vmatprep.subr.mxu0 0.0
          %2025 = vmatpush1.msra.mxu0 0.0
          %2026 = vmatprep.subr.mxu0 0.0
          %2027 = vmatpush1.msra.mxu0 0.0
          %2028 = vmatprep.mubr.f32.mxu0 0.0
          %2029 = vmatmul.mubr.f32.gmra.mrb[0].mxu0 %v1956
          %v2030 = vpop.f32.mrb[0].mxu0
          %v2031 = vadd.f32 0.0, %v2030
          %v2032 = vpop.f32.mrb[0].mxu0
          %2033 = vmatprep.mubr.f32.mxu0 0.0
          %2034 = vmatmul.mubr.f32.gmra.mrb[0].mxu0 %v1959
          %v2035 = vpop.f32.mrb[0].mxu0
          %v2036 = vadd.f32 0.0, %v2035
          %v2037 = vpop.f32.mrb[0].mxu0
          %2038 = vmatprep.mubr.f32.mxu0 0.0
          %2039 = vmatmul.mubr.f32.gmra.mrb[0].mxu0 %v1962
          %v2040 = vpop.f32.mrb[0].mxu0
          %v2041 = vadd.f32 0.0, %v2040
          %v2042 = vpop.f32.mrb[0].mxu0
          %2043 = vdwg.mxu0
          %v2044 = vadd.f32 %v1944, %v2031
          %v2045 = vadd.f32 %v1945, %v2036
          %v2046 = vadd.f32 %v1946, %v2041
          %v2047 = vld [vmem:[%s1846 + $0x2] sm:$0xff]
          %v2048 = vld [vmem:[%s1846 + $0xa] sm:$0xff]
          %v2049 = vld [vmem:[%s1846 + $0x12] sm:$0xf]
          %s2050 = scalar_lea.vmem %s4, 224
          %v2051 = vld [vmem:[%s2050] sm:$0xff]
          %v2052 = vld [vmem:[%s2050 + $0x8] sm:$0xff]
          %v2053 = vld [vmem:[%s2050 + $0x10] sm:$0xff]
          %v2054 = vld [vmem:[%s2050 + $0x18] sm:$0xff]
          %v2056 = vsel %vm1365, %v2047, 0
          %v2059 = vsel %vm1365, %v2048, 0
          %v2062 = vsel %vm1365, %v2049, 0
          %2064 = vmatprep.subr.mxu0 0.0
          %2065 = vmatpush1.msra.mxu0 %v2051
          %2066 = vmatprep.subr.mxu0 0.0
          %2067 = vmatpush1.msra.mxu0 %v2052
          %2068 = vmatprep.subr.mxu0 0.0
          %2069 = vmatpush1.msra.mxu0 %v2053
          %2070 = vmatprep.subr.mxu0 0.0
          %2071 = vmatpush1.msra.mxu0 %v2054
          %2072 = vmatprep.subr.mxu0 0.0
          %2073 = vmatpush1.msra.mxu0 0.0
          %2074 = vmatprep.subr.mxu0 0.0
          %2075 = vmatpush1.msra.mxu0 0.0
          %2076 = vmatprep.subr.mxu0 0.0
          %2077 = vmatpush1.msra.mxu0 0.0
          %2078 = vmatprep.subr.mxu0 0.0
          %2079 = vmatpush1.msra.mxu0 0.0
          %2080 = vmatprep.subr.mxu0 0.0
          %2081 = vmatpush1.msra.mxu0 0.0
          %2082 = vmatprep.subr.mxu0 0.0
          %2083 = vmatpush1.msra.mxu0 0.0
          %2084 = vmatprep.subr.mxu0 0.0
          %2085 = vmatpush1.msra.mxu0 0.0
          %2086 = vmatprep.subr.mxu0 0.0
          %2087 = vmatpush1.msra.mxu0 0.0
          %2088 = vmatprep.subr.mxu0 0.0
          %2089 = vmatpush1.msra.mxu0 0.0
          %2090 = vmatprep.subr.mxu0 0.0
          %2091 = vmatpush1.msra.mxu0 0.0
          %2092 = vmatprep.subr.mxu0 0.0
          %2093 = vmatpush1.msra.mxu0 0.0
          %2094 = vmatprep.subr.mxu0 0.0
          %2095 = vmatpush1.msra.mxu0 0.0
          %2096 = vmatprep.subr.mxu0 0.0
          %2097 = vmatpush1.msra.mxu0 0.0
          %2098 = vmatprep.subr.mxu0 0.0
          %2099 = vmatpush1.msra.mxu0 0.0
          %2100 = vmatprep.subr.mxu0 0.0
          %2101 = vmatpush1.msra.mxu0 0.0
          %2102 = vmatprep.subr.mxu0 0.0
          %2103 = vmatpush1.msra.mxu0 0.0
          %2104 = vmatprep.subr.mxu0 0.0
          %2105 = vmatpush1.msra.mxu0 0.0
          %2106 = vmatprep.subr.mxu0 0.0
          %2107 = vmatpush1.msra.mxu0 0.0
          %2108 = vmatprep.subr.mxu0 0.0
          %2109 = vmatpush1.msra.mxu0 0.0
          %2110 = vmatprep.subr.mxu0 0.0
          %2111 = vmatpush1.msra.mxu0 0.0
          %2112 = vmatprep.subr.mxu0 0.0
          %2113 = vmatpush1.msra.mxu0 0.0
          %2114 = vmatprep.subr.mxu0 0.0
          %2115 = vmatpush1.msra.mxu0 0.0
          %2116 = vmatprep.subr.mxu0 0.0
          %2117 = vmatpush1.msra.mxu0 0.0
          %2118 = vmatprep.subr.mxu0 0.0
          %2119 = vmatpush1.msra.mxu0 0.0
          %2120 = vmatprep.subr.mxu0 0.0
          %2121 = vmatpush1.msra.mxu0 0.0
          %2122 = vmatprep.subr.mxu0 0.0
          %2123 = vmatpush1.msra.mxu0 0.0
          %2124 = vmatprep.subr.mxu0 0.0
          %2125 = vmatpush1.msra.mxu0 0.0
          %2126 = vmatprep.subr.mxu0 0.0
          %2127 = vmatpush1.msra.mxu0 0.0
          %2128 = vmatprep.mubr.f32.mxu0 0.0
          %2129 = vmatmul.mubr.f32.gmra.mrb[0].mxu0 %v2056
          %v2130 = vpop.f32.mrb[0].mxu0
          %v2131 = vadd.f32 0.0, %v2130
          %v2132 = vpop.f32.mrb[0].mxu0
          %2133 = vmatprep.mubr.f32.mxu0 0.0
          %2134 = vmatmul.mubr.f32.gmra.mrb[0].mxu0 %v2059
          %v2135 = vpop.f32.mrb[0].mxu0
          %v2136 = vadd.f32 0.0, %v2135
          %v2137 = vpop.f32.mrb[0].mxu0
          %2138 = vmatprep.mubr.f32.mxu0 0.0
          %2139 = vmatmul.mubr.f32.gmra.mrb[0].mxu0 %v2062
          %v2140 = vpop.f32.mrb[0].mxu0
          %v2141 = vadd.f32 0.0, %v2140
          %v2142 = vpop.f32.mrb[0].mxu0
          %2143 = vdwg.mxu0
          %v2144 = vadd.f32 %v2044, %v2131
          %v2145 = vadd.f32 %v2045, %v2136
          %v2146 = vadd.f32 %v2046, %v2141
          %v2147 = vld [vmem:[%s1846 + $0x3] sm:$0xff]
          %v2148 = vld [vmem:[%s1846 + $0xb] sm:$0xff]
          %v2149 = vld [vmem:[%s1846 + $0x13] sm:$0xf]
          %s2150 = scalar_lea.vmem %s4, 256
          %v2151 = vld [vmem:[%s2150] sm:$0xff]
          %v2152 = vld [vmem:[%s2150 + $0x8] sm:$0xff]
          %v2153 = vld [vmem:[%s2150 + $0x10] sm:$0xff]
          %v2154 = vld [vmem:[%s2150 + $0x18] sm:$0xff]
          %v2156 = vsel %vm1365, %v2147, 0
          %v2159 = vsel %vm1365, %v2148, 0
          %v2162 = vsel %vm1365, %v2149, 0
          %2164 = vmatprep.subr.mxu0 0.0
          %2165 = vmatpush1.msra.mxu0 %v2151
          %2166 = vmatprep.subr.mxu0 0.0
          %2167 = vmatpush1.msra.mxu0 %v2152
          %2168 = vmatprep.subr.mxu0 0.0
          %2169 = vmatpush1.msra.mxu0 %v2153
          %2170 = vmatprep.subr.mxu0 0.0
          %2171 = vmatpush1.msra.mxu0 %v2154
          %2172 = vmatprep.subr.mxu0 0.0
          %2173 = vmatpush1.msra.mxu0 0.0
          %2174 = vmatprep.subr.mxu0 0.0
          %2175 = vmatpush1.msra.mxu0 0.0
          %2176 = vmatprep.subr.mxu0 0.0
          %2177 = vmatpush1.msra.mxu0 0.0
          %2178 = vmatprep.subr.mxu0 0.0
          %2179 = vmatpush1.msra.mxu0 0.0
          %2180 = vmatprep.subr.mxu0 0.0
          %2181 = vmatpush1.msra.mxu0 0.0
          %2182 = vmatprep.subr.mxu0 0.0
          %2183 = vmatpush1.msra.mxu0 0.0
          %2184 = vmatprep.subr.mxu0 0.0
          %2185 = vmatpush1.msra.mxu0 0.0
          %2186 = vmatprep.subr.mxu0 0.0
          %2187 = vmatpush1.msra.mxu0 0.0
          %2188 = vmatprep.subr.mxu0 0.0
          %2189 = vmatpush1.msra.mxu0 0.0
          %2190 = vmatprep.subr.mxu0 0.0
          %2191 = vmatpush1.msra.mxu0 0.0
          %2192 = vmatprep.subr.mxu0 0.0
          %2193 = vmatpush1.msra.mxu0 0.0
          %2194 = vmatprep.subr.mxu0 0.0
          %2195 = vmatpush1.msra.mxu0 0.0
          %2196 = vmatprep.subr.mxu0 0.0
          %2197 = vmatpush1.msra.mxu0 0.0
          %2198 = vmatprep.subr.mxu0 0.0
          %2199 = vmatpush1.msra.mxu0 0.0
          %2200 = vmatprep.subr.mxu0 0.0
          %2201 = vmatpush1.msra.mxu0 0.0
          %2202 = vmatprep.subr.mxu0 0.0
          %2203 = vmatpush1.msra.mxu0 0.0
          %2204 = vmatprep.subr.mxu0 0.0
          %2205 = vmatpush1.msra.mxu0 0.0
          %2206 = vmatprep.subr.mxu0 0.0
          %2207 = vmatpush1.msra.mxu0 0.0
          %2208 = vmatprep.subr.mxu0 0.0
          %2209 = vmatpush1.msra.mxu0 0.0
          %2210 = vmatprep.subr.mxu0 0.0
          %2211 = vmatpush1.msra.mxu0 0.0
          %2212 = vmatprep.subr.mxu0 0.0
          %2213 = vmatpush1.msra.mxu0 0.0
          %2214 = vmatprep.subr.mxu0 0.0
          %2215 = vmatpush1.msra.mxu0 0.0
          %2216 = vmatprep.subr.mxu0 0.0
          %2217 = vmatpush1.msra.mxu0 0.0
          %2218 = vmatprep.subr.mxu0 0.0
          %2219 = vmatpush1.msra.mxu0 0.0
          %2220 = vmatprep.subr.mxu0 0.0
          %2221 = vmatpush1.msra.mxu0 0.0
          %2222 = vmatprep.subr.mxu0 0.0
          %2223 = vmatpush1.msra.mxu0 0.0
          %2224 = vmatprep.subr.mxu0 0.0
          %2225 = vmatpush1.msra.mxu0 0.0
          %2226 = vmatprep.subr.mxu0 0.0
          %2227 = vmatpush1.msra.mxu0 0.0
          %2228 = vmatprep.mubr.f32.mxu0 0.0
          %2229 = vmatmul.mubr.f32.gmra.mrb[0].mxu0 %v2156
          %v2230 = vpop.f32.mrb[0].mxu0
          %v2231 = vadd.f32 0.0, %v2230
          %v2232 = vpop.f32.mrb[0].mxu0
          %2233 = vmatprep.mubr.f32.mxu0 0.0
          %2234 = vmatmul.mubr.f32.gmra.mrb[0].mxu0 %v2159
          %v2235 = vpop.f32.mrb[0].mxu0
          %v2236 = vadd.f32 0.0, %v2235
          %v2237 = vpop.f32.mrb[0].mxu0
          %2238 = vmatprep.mubr.f32.mxu0 0.0
          %2239 = vmatmul.mubr.f32.gmra.mrb[0].mxu0 %v2162
          %v2240 = vpop.f32.mrb[0].mxu0
          %v2241 = vadd.f32 0.0, %v2240
          %v2242 = vpop.f32.mrb[0].mxu0
          %2243 = vdwg.mxu0
          %v2244 = vadd.f32 %v2144, %v2231
          %v2245 = vadd.f32 %v2145, %v2236
          %v2246 = vadd.f32 %v2146, %v2241
          %v2247 = vld [vmem:[%s1846 + $0x4] sm:$0xff]
          %v2248 = vld [vmem:[%s1846 + $0xc] sm:$0xff]
          %v2249 = vld [vmem:[%s1846 + $0x14] sm:$0xf]
          %s2250 = scalar_lea.vmem %s4, 288
          %v2251 = vld [vmem:[%s2250] sm:$0xff]
          %v2252 = vld [vmem:[%s2250 + $0x8] sm:$0xff]
          %v2253 = vld [vmem:[%s2250 + $0x10] sm:$0xff]
          %v2254 = vld [vmem:[%s2250 + $0x18] sm:$0xff]
          %v2256 = vsel %vm1365, %v2247, 0
          %v2259 = vsel %vm1365, %v2248, 0
          %v2262 = vsel %vm1365, %v2249, 0
          %2264 = vmatprep.subr.mxu0 0.0
          %2265 = vmatpush1.msra.mxu0 %v2251
          %2266 = vmatprep.subr.mxu0 0.0
          %2267 = vmatpush1.msra.mxu0 %v2252
          %2268 = vmatprep.subr.mxu0 0.0
          %2269 = vmatpush1.msra.mxu0 %v2253
          %2270 = vmatprep.subr.mxu0 0.0
          %2271 = vmatpush1.msra.mxu0 %v2254
          %2272 = vmatprep.subr.mxu0 0.0
          %2273 = vmatpush1.msra.mxu0 0.0
          %2274 = vmatprep.subr.mxu0 0.0
          %2275 = vmatpush1.msra.mxu0 0.0
          %2276 = vmatprep.subr.mxu0 0.0
          %2277 = vmatpush1.msra.mxu0 0.0
          %2278 = vmatprep.subr.mxu0 0.0
          %2279 = vmatpush1.msra.mxu0 0.0
          %2280 = vmatprep.subr.mxu0 0.0
          %2281 = vmatpush1.msra.mxu0 0.0
          %2282 = vmatprep.subr.mxu0 0.0
          %2283 = vmatpush1.msra.mxu0 0.0
          %2284 = vmatprep.subr.mxu0 0.0
          %2285 = vmatpush1.msra.mxu0 0.0
          %2286 = vmatprep.subr.mxu0 0.0
          %2287 = vmatpush1.msra.mxu0 0.0
          %2288 = vmatprep.subr.mxu0 0.0
          %2289 = vmatpush1.msra.mxu0 0.0
          %2290 = vmatprep.subr.mxu0 0.0
          %2291 = vmatpush1.msra.mxu0 0.0
          %2292 = vmatprep.subr.mxu0 0.0
          %2293 = vmatpush1.msra.mxu0 0.0
          %2294 = vmatprep.subr.mxu0 0.0
          %2295 = vmatpush1.msra.mxu0 0.0
          %2296 = vmatprep.subr.mxu0 0.0
          %2297 = vmatpush1.msra.mxu0 0.0
          %2298 = vmatprep.subr.mxu0 0.0
          %2299 = vmatpush1.msra.mxu0 0.0
          %2300 = vmatprep.subr.mxu0 0.0
          %2301 = vmatpush1.msra.mxu0 0.0
          %2302 = vmatprep.subr.mxu0 0.0
          %2303 = vmatpush1.msra.mxu0 0.0
          %2304 = vmatprep.subr.mxu0 0.0
          %2305 = vmatpush1.msra.mxu0 0.0
          %2306 = vmatprep.subr.mxu0 0.0
          %2307 = vmatpush1.msra.mxu0 0.0
          %2308 = vmatprep.subr.mxu0 0.0
          %2309 = vmatpush1.msra.mxu0 0.0
          %2310 = vmatprep.subr.mxu0 0.0
          %2311 = vmatpush1.msra.mxu0 0.0
          %2312 = vmatprep.subr.mxu0 0.0
          %2313 = vmatpush1.msra.mxu0 0.0
          %2314 = vmatprep.subr.mxu0 0.0
          %2315 = vmatpush1.msra.mxu0 0.0
          %2316 = vmatprep.subr.mxu0 0.0
          %2317 = vmatpush1.msra.mxu0 0.0
          %2318 = vmatprep.subr.mxu0 0.0
          %2319 = vmatpush1.msra.mxu0 0.0
          %2320 = vmatprep.subr.mxu0 0.0
          %2321 = vmatpush1.msra.mxu0 0.0
          %2322 = vmatprep.subr.mxu0 0.0
          %2323 = vmatpush1.msra.mxu0 0.0
          %2324 = vmatprep.subr.mxu0 0.0
          %2325 = vmatpush1.msra.mxu0 0.0
          %2326 = vmatprep.subr.mxu0 0.0
          %2327 = vmatpush1.msra.mxu0 0.0
          %2328 = vmatprep.mubr.f32.mxu0 0.0
          %2329 = vmatmul.mubr.f32.gmra.mrb[0].mxu0 %v2256
          %v2330 = vpop.f32.mrb[0].mxu0
          %v2331 = vadd.f32 0.0, %v2330
          %v2332 = vpop.f32.mrb[0].mxu0
          %2333 = vmatprep.mubr.f32.mxu0 0.0
          %2334 = vmatmul.mubr.f32.gmra.mrb[0].mxu0 %v2259
          %v2335 = vpop.f32.mrb[0].mxu0
          %v2336 = vadd.f32 0.0, %v2335
          %v2337 = vpop.f32.mrb[0].mxu0
          %2338 = vmatprep.mubr.f32.mxu0 0.0
          %2339 = vmatmul.mubr.f32.gmra.mrb[0].mxu0 %v2262
          %v2340 = vpop.f32.mrb[0].mxu0
          %v2341 = vadd.f32 0.0, %v2340
          %v2342 = vpop.f32.mrb[0].mxu0
          %2343 = vdwg.mxu0
          %v2344 = vadd.f32 %v2244, %v2331
          %v2345 = vadd.f32 %v2245, %v2336
          %v2346 = vadd.f32 %v2246, %v2341
          %s2347 = sadd.s32 %s1343, 2
          %s2348 = smul.u32 %s2347, 24
          %s2349 = scalar_lea.vmem [#allocation2], %s2348
          %v2350 = vld [vmem:[%s2349] sm:$0xff]
          %v2351 = vld [vmem:[%s2349 + $0x8] sm:$0xff]
          %v2352 = vld [vmem:[%s2349 + $0x10] sm:$0xf]
          %s2353 = scalar_lea.vmem %s4, 320
          %v2354 = vld [vmem:[%s2353] sm:$0xff]
          %v2355 = vld [vmem:[%s2353 + $0x8] sm:$0xff]
          %v2356 = vld [vmem:[%s2353 + $0x10] sm:$0xff]
          %v2357 = vld [vmem:[%s2353 + $0x18] sm:$0xff]
          %v2359 = vsel %vm1365, %v2350, 0
          %v2362 = vsel %vm1365, %v2351, 0
          %v2365 = vsel %vm1365, %v2352, 0
          %2367 = vmatprep.subr.mxu0 0.0
          %2368 = vmatpush1.msra.mxu0 %v2354
          %2369 = vmatprep.subr.mxu0 0.0
          %2370 = vmatpush1.msra.mxu0 %v2355
          %2371 = vmatprep.subr.mxu0 0.0
          %2372 = vmatpush1.msra.mxu0 %v2356
          %2373 = vmatprep.subr.mxu0 0.0
          %2374 = vmatpush1.msra.mxu0 %v2357
          %2375 = vmatprep.subr.mxu0 0.0
          %2376 = vmatpush1.msra.mxu0 0.0
          %2377 = vmatprep.subr.mxu0 0.0
          %2378 = vmatpush1.msra.mxu0 0.0
          %2379 = vmatprep.subr.mxu0 0.0
          %2380 = vmatpush1.msra.mxu0 0.0
          %2381 = vmatprep.subr.mxu0 0.0
          %2382 = vmatpush1.msra.mxu0 0.0
          %2383 = vmatprep.subr.mxu0 0.0
          %2384 = vmatpush1.msra.mxu0 0.0
          %2385 = vmatprep.subr.mxu0 0.0
          %2386 = vmatpush1.msra.mxu0 0.0
          %2387 = vmatprep.subr.mxu0 0.0
          %2388 = vmatpush1.msra.mxu0 0.0
          %2389 = vmatprep.subr.mxu0 0.0
          %2390 = vmatpush1.msra.mxu0 0.0
          %2391 = vmatprep.subr.mxu0 0.0
          %2392 = vmatpush1.msra.mxu0 0.0
          %2393 = vmatprep.subr.mxu0 0.0
          %2394 = vmatpush1.msra.mxu0 0.0
          %2395 = vmatprep.subr.mxu0 0.0
          %2396 = vmatpush1.msra.mxu0 0.0
          %2397 = vmatprep.subr.mxu0 0.0
          %2398 = vmatpush1.msra.mxu0 0.0
          %2399 = vmatprep.subr.mxu0 0.0
          %2400 = vmatpush1.msra.mxu0 0.0
          %2401 = vmatprep.subr.mxu0 0.0
          %2402 = vmatpush1.msra.mxu0 0.0
          %2403 = vmatprep.subr.mxu0 0.0
          %2404 = vmatpush1.msra.mxu0 0.0
          %2405 = vmatprep.subr.mxu0 0.0
          %2406 = vmatpush1.msra.mxu0 0.0
          %2407 = vmatprep.subr.mxu0 0.0
          %2408 = vmatpush1.msra.mxu0 0.0
          %2409 = vmatprep.subr.mxu0 0.0
          %2410 = vmatpush1.msra.mxu0 0.0
          %2411 = vmatprep.subr.mxu0 0.0
          %2412 = vmatpush1.msra.mxu0 0.0
          %2413 = vmatprep.subr.mxu0 0.0
          %2414 = vmatpush1.msra.mxu0 0.0
          %2415 = vmatprep.subr.mxu0 0.0
          %2416 = vmatpush1.msra.mxu0 0.0
          %2417 = vmatprep.subr.mxu0 0.0
          %2418 = vmatpush1.msra.mxu0 0.0
          %2419 = vmatprep.subr.mxu0 0.0
          %2420 = vmatpush1.msra.mxu0 0.0
          %2421 = vmatprep.subr.mxu0 0.0
          %2422 = vmatpush1.msra.mxu0 0.0
          %2423 = vmatprep.subr.mxu0 0.0
          %2424 = vmatpush1.msra.mxu0 0.0
          %2425 = vmatprep.subr.mxu0 0.0
          %2426 = vmatpush1.msra.mxu0 0.0
          %2427 = vmatprep.subr.mxu0 0.0
          %2428 = vmatpush1.msra.mxu0 0.0
          %2429 = vmatprep.subr.mxu0 0.0
          %2430 = vmatpush1.msra.mxu0 0.0
          %2431 = vmatprep.mubr.f32.mxu0 0.0
          %2432 = vmatmul.mubr.f32.gmra.mrb[0].mxu0 %v2359
          %v2433 = vpop.f32.mrb[0].mxu0
          %v2434 = vadd.f32 0.0, %v2433
          %v2435 = vpop.f32.mrb[0].mxu0
          %2436 = vmatprep.mubr.f32.mxu0 0.0
          %2437 = vmatmul.mubr.f32.gmra.mrb[0].mxu0 %v2362
          %v2438 = vpop.f32.mrb[0].mxu0
          %v2439 = vadd.f32 0.0, %v2438
          %v2440 = vpop.f32.mrb[0].mxu0
          %2441 = vmatprep.mubr.f32.mxu0 0.0
          %2442 = vmatmul.mubr.f32.gmra.mrb[0].mxu0 %v2365
          %v2443 = vpop.f32.mrb[0].mxu0
          %v2444 = vadd.f32 0.0, %v2443
          %v2445 = vpop.f32.mrb[0].mxu0
          %2446 = vdwg.mxu0
          %v2447 = vadd.f32 %v2344, %v2434
          %v2448 = vadd.f32 %v2345, %v2439
          %v2449 = vadd.f32 %v2346, %v2444
          %v2450 = vld [vmem:[%s2349 + $0x1] sm:$0xff]
          %v2451 = vld [vmem:[%s2349 + $0x9] sm:$0xff]
          %v2452 = vld [vmem:[%s2349 + $0x11] sm:$0xf]
          %s2453 = scalar_lea.vmem %s4, 352
          %v2454 = vld [vmem:[%s2453] sm:$0xff]
          %v2455 = vld [vmem:[%s2453 + $0x8] sm:$0xff]
          %v2456 = vld [vmem:[%s2453 + $0x10] sm:$0xff]
          %v2457 = vld [vmem:[%s2453 + $0x18] sm:$0xff]
          %v2459 = vsel %vm1365, %v2450, 0
          %v2462 = vsel %vm1365, %v2451, 0
          %v2465 = vsel %vm1365, %v2452, 0
          %2467 = vmatprep.subr.mxu0 0.0
          %2468 = vmatpush1.msra.mxu0 %v2454
          %2469 = vmatprep.subr.mxu0 0.0
          %2470 = vmatpush1.msra.mxu0 %v2455
          %2471 = vmatprep.subr.mxu0 0.0
          %2472 = vmatpush1.msra.mxu0 %v2456
          %2473 = vmatprep.subr.mxu0 0.0
          %2474 = vmatpush1.msra.mxu0 %v2457
          %2475 = vmatprep.subr.mxu0 0.0
          %2476 = vmatpush1.msra.mxu0 0.0
          %2477 = vmatprep.subr.mxu0 0.0
          %2478 = vmatpush1.msra.mxu0 0.0
          %2479 = vmatprep.subr.mxu0 0.0
          %2480 = vmatpush1.msra.mxu0 0.0
          %2481 = vmatprep.subr.mxu0 0.0
          %2482 = vmatpush1.msra.mxu0 0.0
          %2483 = vmatprep.subr.mxu0 0.0
          %2484 = vmatpush1.msra.mxu0 0.0
          %2485 = vmatprep.subr.mxu0 0.0
          %2486 = vmatpush1.msra.mxu0 0.0
          %2487 = vmatprep.subr.mxu0 0.0
          %2488 = vmatpush1.msra.mxu0 0.0
          %2489 = vmatprep.subr.mxu0 0.0
          %2490 = vmatpush1.msra.mxu0 0.0
          %2491 = vmatprep.subr.mxu0 0.0
          %2492 = vmatpush1.msra.mxu0 0.0
          %2493 = vmatprep.subr.mxu0 0.0
          %2494 = vmatpush1.msra.mxu0 0.0
          %2495 = vmatprep.subr.mxu0 0.0
          %2496 = vmatpush1.msra.mxu0 0.0
          %2497 = vmatprep.subr.mxu0 0.0
          %2498 = vmatpush1.msra.mxu0 0.0
          %2499 = vmatprep.subr.mxu0 0.0
          %2500 = vmatpush1.msra.mxu0 0.0
          %2501 = vmatprep.subr.mxu0 0.0
          %2502 = vmatpush1.msra.mxu0 0.0
          %2503 = vmatprep.subr.mxu0 0.0
          %2504 = vmatpush1.msra.mxu0 0.0
          %2505 = vmatprep.subr.mxu0 0.0
          %2506 = vmatpush1.msra.mxu0 0.0
          %2507 = vmatprep.subr.mxu0 0.0
          %2508 = vmatpush1.msra.mxu0 0.0
          %2509 = vmatprep.subr.mxu0 0.0
          %2510 = vmatpush1.msra.mxu0 0.0
          %2511 = vmatprep.subr.mxu0 0.0
          %2512 = vmatpush1.msra.mxu0 0.0
          %2513 = vmatprep.subr.mxu0 0.0
          %2514 = vmatpush1.msra.mxu0 0.0
          %2515 = vmatprep.subr.mxu0 0.0
          %2516 = vmatpush1.msra.mxu0 0.0
          %2517 = vmatprep.subr.mxu0 0.0
          %2518 = vmatpush1.msra.mxu0 0.0
          %2519 = vmatprep.subr.mxu0 0.0
          %2520 = vmatpush1.msra.mxu0 0.0
          %2521 = vmatprep.subr.mxu0 0.0
          %2522 = vmatpush1.msra.mxu0 0.0
          %2523 = vmatprep.subr.mxu0 0.0
          %2524 = vmatpush1.msra.mxu0 0.0
          %2525 = vmatprep.subr.mxu0 0.0
          %2526 = vmatpush1.msra.mxu0 0.0
          %2527 = vmatprep.subr.mxu0 0.0
          %2528 = vmatpush1.msra.mxu0 0.0
          %2529 = vmatprep.subr.mxu0 0.0
          %2530 = vmatpush1.msra.mxu0 0.0
          %2531 = vmatprep.mubr.f32.mxu0 0.0
          %2532 = vmatmul.mubr.f32.gmra.mrb[0].mxu0 %v2459
          %v2533 = vpop.f32.mrb[0].mxu0
          %v2534 = vadd.f32 0.0, %v2533
          %v2535 = vpop.f32.mrb[0].mxu0
          %2536 = vmatprep.mubr.f32.mxu0 0.0
          %2537 = vmatmul.mubr.f32.gmra.mrb[0].mxu0 %v2462
          %v2538 = vpop.f32.mrb[0].mxu0
          %v2539 = vadd.f32 0.0, %v2538
          %v2540 = vpop.f32.mrb[0].mxu0
          %2541 = vmatprep.mubr.f32.mxu0 0.0
          %2542 = vmatmul.mubr.f32.gmra.mrb[0].mxu0 %v2465
          %v2543 = vpop.f32.mrb[0].mxu0
          %v2544 = vadd.f32 0.0, %v2543
          %v2545 = vpop.f32.mrb[0].mxu0
          %2546 = vdwg.mxu0
          %v2547 = vadd.f32 %v2447, %v2534
          %v2548 = vadd.f32 %v2448, %v2539
          %v2549 = vadd.f32 %v2449, %v2544
          %v2550 = vld [vmem:[%s2349 + $0x2] sm:$0xff]
          %v2551 = vld [vmem:[%s2349 + $0xa] sm:$0xff]
          %v2552 = vld [vmem:[%s2349 + $0x12] sm:$0xf]
          %s2553 = scalar_lea.vmem %s4, 384
          %v2554 = vld [vmem:[%s2553] sm:$0xff]
          %v2555 = vld [vmem:[%s2553 + $0x8] sm:$0xff]
          %v2556 = vld [vmem:[%s2553 + $0x10] sm:$0xff]
          %v2557 = vld [vmem:[%s2553 + $0x18] sm:$0xff]
          %v2559 = vsel %vm1365, %v2550, 0
          %v2562 = vsel %vm1365, %v2551, 0
          %v2565 = vsel %vm1365, %v2552, 0
          %2567 = vmatprep.subr.mxu0 0.0
          %2568 = vmatpush1.msra.mxu0 %v2554
          %2569 = vmatprep.subr.mxu0 0.0
          %2570 = vmatpush1.msra.mxu0 %v2555
          %2571 = vmatprep.subr.mxu0 0.0
          %2572 = vmatpush1.msra.mxu0 %v2556
          %2573 = vmatprep.subr.mxu0 0.0
          %2574 = vmatpush1.msra.mxu0 %v2557
          %2575 = vmatprep.subr.mxu0 0.0
          %2576 = vmatpush1.msra.mxu0 0.0
          %2577 = vmatprep.subr.mxu0 0.0
          %2578 = vmatpush1.msra.mxu0 0.0
          %2579 = vmatprep.subr.mxu0 0.0
          %2580 = vmatpush1.msra.mxu0 0.0
          %2581 = vmatprep.subr.mxu0 0.0
          %2582 = vmatpush1.msra.mxu0 0.0
          %2583 = vmatprep.subr.mxu0 0.0
          %2584 = vmatpush1.msra.mxu0 0.0
          %2585 = vmatprep.subr.mxu0 0.0
          %2586 = vmatpush1.msra.mxu0 0.0
          %2587 = vmatprep.subr.mxu0 0.0
          %2588 = vmatpush1.msra.mxu0 0.0
          %2589 = vmatprep.subr.mxu0 0.0
          %2590 = vmatpush1.msra.mxu0 0.0
          %2591 = vmatprep.subr.mxu0 0.0
          %2592 = vmatpush1.msra.mxu0 0.0
          %2593 = vmatprep.subr.mxu0 0.0
          %2594 = vmatpush1.msra.mxu0 0.0
          %2595 = vmatprep.subr.mxu0 0.0
          %2596 = vmatpush1.msra.mxu0 0.0
          %2597 = vmatprep.subr.mxu0 0.0
          %2598 = vmatpush1.msra.mxu0 0.0
          %2599 = vmatprep.subr.mxu0 0.0
          %2600 = vmatpush1.msra.mxu0 0.0
          %2601 = vmatprep.subr.mxu0 0.0
          %2602 = vmatpush1.msra.mxu0 0.0
          %2603 = vmatprep.subr.mxu0 0.0
          %2604 = vmatpush1.msra.mxu0 0.0
          %2605 = vmatprep.subr.mxu0 0.0
          %2606 = vmatpush1.msra.mxu0 0.0
          %2607 = vmatprep.subr.mxu0 0.0
          %2608 = vmatpush1.msra.mxu0 0.0
          %2609 = vmatprep.subr.mxu0 0.0
          %2610 = vmatpush1.msra.mxu0 0.0
          %2611 = vmatprep.subr.mxu0 0.0
          %2612 = vmatpush1.msra.mxu0 0.0
          %2613 = vmatprep.subr.mxu0 0.0
          %2614 = vmatpush1.msra.mxu0 0.0
          %2615 = vmatprep.subr.mxu0 0.0
          %2616 = vmatpush1.msra.mxu0 0.0
          %2617 = vmatprep.subr.mxu0 0.0
          %2618 = vmatpush1.msra.mxu0 0.0
          %2619 = vmatprep.subr.mxu0 0.0
          %2620 = vmatpush1.msra.mxu0 0.0
          %2621 = vmatprep.subr.mxu0 0.0
          %2622 = vmatpush1.msra.mxu0 0.0
          %2623 = vmatprep.subr.mxu0 0.0
          %2624 = vmatpush1.msra.mxu0 0.0
          %2625 = vmatprep.subr.mxu0 0.0
          %2626 = vmatpush1.msra.mxu0 0.0
          %2627 = vmatprep.subr.mxu0 0.0
          %2628 = vmatpush1.msra.mxu0 0.0
          %2629 = vmatprep.subr.mxu0 0.0
          %2630 = vmatpush1.msra.mxu0 0.0
          %2631 = vmatprep.mubr.f32.mxu0 0.0
          %2632 = vmatmul.mubr.f32.gmra.mrb[0].mxu0 %v2559
          %v2633 = vpop.f32.mrb[0].mxu0
          %v2634 = vadd.f32 0.0, %v2633
          %v2635 = vpop.f32.mrb[0].mxu0
          %2636 = vmatprep.mubr.f32.mxu0 0.0
          %2637 = vmatmul.mubr.f32.gmra.mrb[0].mxu0 %v2562
          %v2638 = vpop.f32.mrb[0].mxu0
          %v2639 = vadd.f32 0.0, %v2638
          %v2640 = vpop.f32.mrb[0].mxu0
          %2641 = vmatprep.mubr.f32.mxu0 0.0
          %2642 = vmatmul.mubr.f32.gmra.mrb[0].mxu0 %v2565
          %v2643 = vpop.f32.mrb[0].mxu0
          %v2644 = vadd.f32 0.0, %v2643
          %v2645 = vpop.f32.mrb[0].mxu0
          %2646 = vdwg.mxu0
          %v2647 = vadd.f32 %v2547, %v2634
          %v2648 = vadd.f32 %v2548, %v2639
          %v2649 = vadd.f32 %v2549, %v2644
          %v2650 = vld [vmem:[%s2349 + $0x3] sm:$0xff]
          %v2651 = vld [vmem:[%s2349 + $0xb] sm:$0xff]
          %v2652 = vld [vmem:[%s2349 + $0x13] sm:$0xf]
          %s2653 = scalar_lea.vmem %s4, 416
          %v2654 = vld [vmem:[%s2653] sm:$0xff]
          %v2655 = vld [vmem:[%s2653 + $0x8] sm:$0xff]
          %v2656 = vld [vmem:[%s2653 + $0x10] sm:$0xff]
          %v2657 = vld [vmem:[%s2653 + $0x18] sm:$0xff]
          %v2659 = vsel %vm1365, %v2650, 0
          %v2662 = vsel %vm1365, %v2651, 0
          %v2665 = vsel %vm1365, %v2652, 0
          %2667 = vmatprep.subr.mxu0 0.0
          %2668 = vmatpush1.msra.mxu0 %v2654
          %2669 = vmatprep.subr.mxu0 0.0
          %2670 = vmatpush1.msra.mxu0 %v2655
          %2671 = vmatprep.subr.mxu0 0.0
          %2672 = vmatpush1.msra.mxu0 %v2656
          %2673 = vmatprep.subr.mxu0 0.0
          %2674 = vmatpush1.msra.mxu0 %v2657
          %2675 = vmatprep.subr.mxu0 0.0
          %2676 = vmatpush1.msra.mxu0 0.0
          %2677 = vmatprep.subr.mxu0 0.0
          %2678 = vmatpush1.msra.mxu0 0.0
          %2679 = vmatprep.subr.mxu0 0.0
          %2680 = vmatpush1.msra.mxu0 0.0
          %2681 = vmatprep.subr.mxu0 0.0
          %2682 = vmatpush1.msra.mxu0 0.0
          %2683 = vmatprep.subr.mxu0 0.0
          %2684 = vmatpush1.msra.mxu0 0.0
          %2685 = vmatprep.subr.mxu0 0.0
          %2686 = vmatpush1.msra.mxu0 0.0
          %2687 = vmatprep.subr.mxu0 0.0
          %2688 = vmatpush1.msra.mxu0 0.0
          %2689 = vmatprep.subr.mxu0 0.0
          %2690 = vmatpush1.msra.mxu0 0.0
          %2691 = vmatprep.subr.mxu0 0.0
          %2692 = vmatpush1.msra.mxu0 0.0
          %2693 = vmatprep.subr.mxu0 0.0
          %2694 = vmatpush1.msra.mxu0 0.0
          %2695 = vmatprep.subr.mxu0 0.0
          %2696 = vmatpush1.msra.mxu0 0.0
          %2697 = vmatprep.subr.mxu0 0.0
          %2698 = vmatpush1.msra.mxu0 0.0
          %2699 = vmatprep.subr.mxu0 0.0
          %2700 = vmatpush1.msra.mxu0 0.0
          %2701 = vmatprep.subr.mxu0 0.0
          %2702 = vmatpush1.msra.mxu0 0.0
          %2703 = vmatprep.subr.mxu0 0.0
          %2704 = vmatpush1.msra.mxu0 0.0
          %2705 = vmatprep.subr.mxu0 0.0
          %2706 = vmatpush1.msra.mxu0 0.0
          %2707 = vmatprep.subr.mxu0 0.0
          %2708 = vmatpush1.msra.mxu0 0.0
          %2709 = vmatprep.subr.mxu0 0.0
          %2710 = vmatpush1.msra.mxu0 0.0
          %2711 = vmatprep.subr.mxu0 0.0
          %2712 = vmatpush1.msra.mxu0 0.0
          %2713 = vmatprep.subr.mxu0 0.0
          %2714 = vmatpush1.msra.mxu0 0.0
          %2715 = vmatprep.subr.mxu0 0.0
          %2716 = vmatpush1.msra.mxu0 0.0
          %2717 = vmatprep.subr.mxu0 0.0
          %2718 = vmatpush1.msra.mxu0 0.0
          %2719 = vmatprep.subr.mxu0 0.0
          %2720 = vmatpush1.msra.mxu0 0.0
          %2721 = vmatprep.subr.mxu0 0.0
          %2722 = vmatpush1.msra.mxu0 0.0
          %2723 = vmatprep.subr.mxu0 0.0
          %2724 = vmatpush1.msra.mxu0 0.0
          %2725 = vmatprep.subr.mxu0 0.0
          %2726 = vmatpush1.msra.mxu0 0.0
          %2727 = vmatprep.subr.mxu0 0.0
          %2728 = vmatpush1.msra.mxu0 0.0
          %2729 = vmatprep.subr.mxu0 0.0
          %2730 = vmatpush1.msra.mxu0 0.0
          %2731 = vmatprep.mubr.f32.mxu0 0.0
          %2732 = vmatmul.mubr.f32.gmra.mrb[0].mxu0 %v2659
          %v2733 = vpop.f32.mrb[0].mxu0
          %v2734 = vadd.f32 0.0, %v2733
          %v2735 = vpop.f32.mrb[0].mxu0
          %2736 = vmatprep.mubr.f32.mxu0 0.0
          %2737 = vmatmul.mubr.f32.gmra.mrb[0].mxu0 %v2662
          %v2738 = vpop.f32.mrb[0].mxu0
          %v2739 = vadd.f32 0.0, %v2738
          %v2740 = vpop.f32.mrb[0].mxu0
          %2741 = vmatprep.mubr.f32.mxu0 0.0
          %2742 = vmatmul.mubr.f32.gmra.mrb[0].mxu0 %v2665
          %v2743 = vpop.f32.mrb[0].mxu0
          %v2744 = vadd.f32 0.0, %v2743
          %v2745 = vpop.f32.mrb[0].mxu0
          %2746 = vdwg.mxu0
          %v2747 = vadd.f32 %v2647, %v2734
          %v2748 = vadd.f32 %v2648, %v2739
          %v2749 = vadd.f32 %v2649, %v2744
          %v2750 = vld [vmem:[%s2349 + $0x4] sm:$0xff]
          %v2751 = vld [vmem:[%s2349 + $0xc] sm:$0xff]
          %v2752 = vld [vmem:[%s2349 + $0x14] sm:$0xf]
          %s2753 = scalar_lea.vmem %s4, 448
          %v2754 = vld [vmem:[%s2753] sm:$0xff]
          %v2755 = vld [vmem:[%s2753 + $0x8] sm:$0xff]
          %v2756 = vld [vmem:[%s2753 + $0x10] sm:$0xff]
          %v2757 = vld [vmem:[%s2753 + $0x18] sm:$0xff]
          %v2759 = vsel %vm1365, %v2750, 0
          %v2762 = vsel %vm1365, %v2751, 0
          %v2765 = vsel %vm1365, %v2752, 0
          %2767 = vmatprep.subr.mxu0 0.0
          %2768 = vmatpush1.msra.mxu0 %v2754
          %2769 = vmatprep.subr.mxu0 0.0
          %2770 = vmatpush1.msra.mxu0 %v2755
          %2771 = vmatprep.subr.mxu0 0.0
          %2772 = vmatpush1.msra.mxu0 %v2756
          %2773 = vmatprep.subr.mxu0 0.0
          %2774 = vmatpush1.msra.mxu0 %v2757
          %2775 = vmatprep.subr.mxu0 0.0
          %2776 = vmatpush1.msra.mxu0 0.0
          %2777 = vmatprep.subr.mxu0 0.0
          %2778 = vmatpush1.msra.mxu0 0.0
          %2779 = vmatprep.subr.mxu0 0.0
          %2780 = vmatpush1.msra.mxu0 0.0
          %2781 = vmatprep.subr.mxu0 0.0
          %2782 = vmatpush1.msra.mxu0 0.0
          %2783 = vmatprep.subr.mxu0 0.0
          %2784 = vmatpush1.msra.mxu0 0.0
          %2785 = vmatprep.subr.mxu0 0.0
          %2786 = vmatpush1.msra.mxu0 0.0
          %2787 = vmatprep.subr.mxu0 0.0
          %2788 = vmatpush1.msra.mxu0 0.0
          %2789 = vmatprep.subr.mxu0 0.0
          %2790 = vmatpush1.msra.mxu0 0.0
          %2791 = vmatprep.subr.mxu0 0.0
          %2792 = vmatpush1.msra.mxu0 0.0
          %2793 = vmatprep.subr.mxu0 0.0
          %2794 = vmatpush1.msra.mxu0 0.0
          %2795 = vmatprep.subr.mxu0 0.0
          %2796 = vmatpush1.msra.mxu0 0.0
          %2797 = vmatprep.subr.mxu0 0.0
          %2798 = vmatpush1.msra.mxu0 0.0
          %2799 = vmatprep.subr.mxu0 0.0
          %2800 = vmatpush1.msra.mxu0 0.0
          %2801 = vmatprep.subr.mxu0 0.0
          %2802 = vmatpush1.msra.mxu0 0.0
          %2803 = vmatprep.subr.mxu0 0.0
          %2804 = vmatpush1.msra.mxu0 0.0
          %2805 = vmatprep.subr.mxu0 0.0
          %2806 = vmatpush1.msra.mxu0 0.0
          %2807 = vmatprep.subr.mxu0 0.0
          %2808 = vmatpush1.msra.mxu0 0.0
          %2809 = vmatprep.subr.mxu0 0.0
          %2810 = vmatpush1.msra.mxu0 0.0
          %2811 = vmatprep.subr.mxu0 0.0
          %2812 = vmatpush1.msra.mxu0 0.0
          %2813 = vmatprep.subr.mxu0 0.0
          %2814 = vmatpush1.msra.mxu0 0.0
          %2815 = vmatprep.subr.mxu0 0.0
          %2816 = vmatpush1.msra.mxu0 0.0
          %2817 = vmatprep.subr.mxu0 0.0
          %2818 = vmatpush1.msra.mxu0 0.0
          %2819 = vmatprep.subr.mxu0 0.0
          %2820 = vmatpush1.msra.mxu0 0.0
          %2821 = vmatprep.subr.mxu0 0.0
          %2822 = vmatpush1.msra.mxu0 0.0
          %2823 = vmatprep.subr.mxu0 0.0
          %2824 = vmatpush1.msra.mxu0 0.0
          %2825 = vmatprep.subr.mxu0 0.0
          %2826 = vmatpush1.msra.mxu0 0.0
          %2827 = vmatprep.subr.mxu0 0.0
          %2828 = vmatpush1.msra.mxu0 0.0
          %2829 = vmatprep.subr.mxu0 0.0
          %2830 = vmatpush1.msra.mxu0 0.0
          %2831 = vmatprep.mubr.f32.mxu0 0.0
          %2832 = vmatmul.mubr.f32.gmra.mrb[0].mxu0 %v2759
          %v2833 = vpop.f32.mrb[0].mxu0
          %v2834 = vadd.f32 0.0, %v2833
          %v2835 = vpop.f32.mrb[0].mxu0
          %2836 = vmatprep.mubr.f32.mxu0 0.0
          %2837 = vmatmul.mubr.f32.gmra.mrb[0].mxu0 %v2762
          %v2838 = vpop.f32.mrb[0].mxu0
          %v2839 = vadd.f32 0.0, %v2838
          %v2840 = vpop.f32.mrb[0].mxu0
          %2841 = vmatprep.mubr.f32.mxu0 0.0
          %2842 = vmatmul.mubr.f32.gmra.mrb[0].mxu0 %v2765
          %v2843 = vpop.f32.mrb[0].mxu0
          %v2844 = vadd.f32 0.0, %v2843
          %v2845 = vpop.f32.mrb[0].mxu0
          %2846 = vdwg.mxu0
          %v2847 = vadd.f32 %v2747, %v2834
          %v2848 = vadd.f32 %v2748, %v2839
          %v2849 = vadd.f32 %v2749, %v2844
          %s2850 = sadd.s32 %s1343, 3
          %s2851 = smul.u32 %s2850, 24
          %s2852 = scalar_lea.vmem [#allocation2], %s2851
          %v2853 = vld [vmem:[%s2852] sm:$0xff]
          %v2854 = vld [vmem:[%s2852 + $0x8] sm:$0xff]
          %v2855 = vld [vmem:[%s2852 + $0x10] sm:$0xf]
          %s2856 = scalar_lea.vmem %s4, 480
          %v2857 = vld [vmem:[%s2856] sm:$0xff]
          %v2858 = vld [vmem:[%s2856 + $0x8] sm:$0xff]
          %v2859 = vld [vmem:[%s2856 + $0x10] sm:$0xff]
          %v2860 = vld [vmem:[%s2856 + $0x18] sm:$0xff]
          %v2862 = vsel %vm1365, %v2853, 0
          %v2865 = vsel %vm1365, %v2854, 0
          %v2868 = vsel %vm1365, %v2855, 0
          %2870 = vmatprep.subr.mxu0 0.0
          %2871 = vmatpush1.msra.mxu0 %v2857
          %2872 = vmatprep.subr.mxu0 0.0
          %2873 = vmatpush1.msra.mxu0 %v2858
          %2874 = vmatprep.subr.mxu0 0.0
          %2875 = vmatpush1.msra.mxu0 %v2859
          %2876 = vmatprep.subr.mxu0 0.0
          %2877 = vmatpush1.msra.mxu0 %v2860
          %2878 = vmatprep.subr.mxu0 0.0
          %2879 = vmatpush1.msra.mxu0 0.0
          %2880 = vmatprep.subr.mxu0 0.0
          %2881 = vmatpush1.msra.mxu0 0.0
          %2882 = vmatprep.subr.mxu0 0.0
          %2883 = vmatpush1.msra.mxu0 0.0
          %2884 = vmatprep.subr.mxu0 0.0
          %2885 = vmatpush1.msra.mxu0 0.0
          %2886 = vmatprep.subr.mxu0 0.0
          %2887 = vmatpush1.msra.mxu0 0.0
          %2888 = vmatprep.subr.mxu0 0.0
          %2889 = vmatpush1.msra.mxu0 0.0
          %2890 = vmatprep.subr.mxu0 0.0
          %2891 = vmatpush1.msra.mxu0 0.0
          %2892 = vmatprep.subr.mxu0 0.0
          %2893 = vmatpush1.msra.mxu0 0.0
          %2894 = vmatprep.subr.mxu0 0.0
          %2895 = vmatpush1.msra.mxu0 0.0
          %2896 = vmatprep.subr.mxu0 0.0
          %2897 = vmatpush1.msra.mxu0 0.0
          %2898 = vmatprep.subr.mxu0 0.0
          %2899 = vmatpush1.msra.mxu0 0.0
          %2900 = vmatprep.subr.mxu0 0.0
          %2901 = vmatpush1.msra.mxu0 0.0
          %2902 = vmatprep.subr.mxu0 0.0
          %2903 = vmatpush1.msra.mxu0 0.0
          %2904 = vmatprep.subr.mxu0 0.0
          %2905 = vmatpush1.msra.mxu0 0.0
          %2906 = vmatprep.subr.mxu0 0.0
          %2907 = vmatpush1.msra.mxu0 0.0
          %2908 = vmatprep.subr.mxu0 0.0
          %2909 = vmatpush1.msra.mxu0 0.0
          %2910 = vmatprep.subr.mxu0 0.0
          %2911 = vmatpush1.msra.mxu0 0.0
          %2912 = vmatprep.subr.mxu0 0.0
          %2913 = vmatpush1.msra.mxu0 0.0
          %2914 = vmatprep.subr.mxu0 0.0
          %2915 = vmatpush1.msra.mxu0 0.0
          %2916 = vmatprep.subr.mxu0 0.0
          %2917 = vmatpush1.msra.mxu0 0.0
          %2918 = vmatprep.subr.mxu0 0.0
          %2919 = vmatpush1.msra.mxu0 0.0
          %2920 = vmatprep.subr.mxu0 0.0
          %2921 = vmatpush1.msra.mxu0 0.0
          %2922 = vmatprep.subr.mxu0 0.0
          %2923 = vmatpush1.msra.mxu0 0.0
          %2924 = vmatprep.subr.mxu0 0.0
          %2925 = vmatpush1.msra.mxu0 0.0
          %2926 = vmatprep.subr.mxu0 0.0
          %2927 = vmatpush1.msra.mxu0 0.0
          %2928 = vmatprep.subr.mxu0 0.0
          %2929 = vmatpush1.msra.mxu0 0.0
          %2930 = vmatprep.subr.mxu0 0.0
          %2931 = vmatpush1.msra.mxu0 0.0
          %2932 = vmatprep.subr.mxu0 0.0
          %2933 = vmatpush1.msra.mxu0 0.0
          %2934 = vmatprep.mubr.f32.mxu0 0.0
          %2935 = vmatmul.mubr.f32.gmra.mrb[0].mxu0 %v2862
          %v2936 = vpop.f32.mrb[0].mxu0
          %v2937 = vadd.f32 0.0, %v2936
          %v2938 = vpop.f32.mrb[0].mxu0
          %2939 = vmatprep.mubr.f32.mxu0 0.0
          %2940 = vmatmul.mubr.f32.gmra.mrb[0].mxu0 %v2865
          %v2941 = vpop.f32.mrb[0].mxu0
          %v2942 = vadd.f32 0.0, %v2941
          %v2943 = vpop.f32.mrb[0].mxu0
          %2944 = vmatprep.mubr.f32.mxu0 0.0
          %2945 = vmatmul.mubr.f32.gmra.mrb[0].mxu0 %v2868
          %v2946 = vpop.f32.mrb[0].mxu0
          %v2947 = vadd.f32 0.0, %v2946
          %v2948 = vpop.f32.mrb[0].mxu0
          %2949 = vdwg.mxu0
          %v2950 = vadd.f32 %v2847, %v2937
          %v2951 = vadd.f32 %v2848, %v2942
          %v2952 = vadd.f32 %v2849, %v2947
          %v2953 = vld [vmem:[%s2852 + $0x1] sm:$0xff]
          %v2954 = vld [vmem:[%s2852 + $0x9] sm:$0xff]
          %v2955 = vld [vmem:[%s2852 + $0x11] sm:$0xf]
          %s2956 = scalar_lea.vmem %s4, 512
          %v2957 = vld [vmem:[%s2956] sm:$0xff]
          %v2958 = vld [vmem:[%s2956 + $0x8] sm:$0xff]
          %v2959 = vld [vmem:[%s2956 + $0x10] sm:$0xff]
          %v2960 = vld [vmem:[%s2956 + $0x18] sm:$0xff]
          %v2962 = vsel %vm1365, %v2953, 0
          %v2965 = vsel %vm1365, %v2954, 0
          %v2968 = vsel %vm1365, %v2955, 0
          %2970 = vmatprep.subr.mxu0 0.0
          %2971 = vmatpush1.msra.mxu0 %v2957
          %2972 = vmatprep.subr.mxu0 0.0
          %2973 = vmatpush1.msra.mxu0 %v2958
          %2974 = vmatprep.subr.mxu0 0.0
          %2975 = vmatpush1.msra.mxu0 %v2959
          %2976 = vmatprep.subr.mxu0 0.0
          %2977 = vmatpush1.msra.mxu0 %v2960
          %2978 = vmatprep.subr.mxu0 0.0
          %2979 = vmatpush1.msra.mxu0 0.0
          %2980 = vmatprep.subr.mxu0 0.0
          %2981 = vmatpush1.msra.mxu0 0.0
          %2982 = vmatprep.subr.mxu0 0.0
          %2983 = vmatpush1.msra.mxu0 0.0
          %2984 = vmatprep.subr.mxu0 0.0
          %2985 = vmatpush1.msra.mxu0 0.0
          %2986 = vmatprep.subr.mxu0 0.0
          %2987 = vmatpush1.msra.mxu0 0.0
          %2988 = vmatprep.subr.mxu0 0.0
          %2989 = vmatpush1.msra.mxu0 0.0
          %2990 = vmatprep.subr.mxu0 0.0
          %2991 = vmatpush1.msra.mxu0 0.0
          %2992 = vmatprep.subr.mxu0 0.0
          %2993 = vmatpush1.msra.mxu0 0.0
          %2994 = vmatprep.subr.mxu0 0.0
          %2995 = vmatpush1.msra.mxu0 0.0
          %2996 = vmatprep.subr.mxu0 0.0
          %2997 = vmatpush1.msra.mxu0 0.0
          %2998 = vmatprep.subr.mxu0 0.0
          %2999 = vmatpush1.msra.mxu0 0.0
          %3000 = vmatprep.subr.mxu0 0.0
          %3001 = vmatpush1.msra.mxu0 0.0
          %3002 = vmatprep.subr.mxu0 0.0
          %3003 = vmatpush1.msra.mxu0 0.0
          %3004 = vmatprep.subr.mxu0 0.0
          %3005 = vmatpush1.msra.mxu0 0.0
          %3006 = vmatprep.subr.mxu0 0.0
          %3007 = vmatpush1.msra.mxu0 0.0
          %3008 = vmatprep.subr.mxu0 0.0
          %3009 = vmatpush1.msra.mxu0 0.0
          %3010 = vmatprep.subr.mxu0 0.0
          %3011 = vmatpush1.msra.mxu0 0.0
          %3012 = vmatprep.subr.mxu0 0.0
          %3013 = vmatpush1.msra.mxu0 0.0
          %3014 = vmatprep.subr.mxu0 0.0
          %3015 = vmatpush1.msra.mxu0 0.0
          %3016 = vmatprep.subr.mxu0 0.0
          %3017 = vmatpush1.msra.mxu0 0.0
          %3018 = vmatprep.subr.mxu0 0.0
          %3019 = vmatpush1.msra.mxu0 0.0
          %3020 = vmatprep.subr.mxu0 0.0
          %3021 = vmatpush1.msra.mxu0 0.0
          %3022 = vmatprep.subr.mxu0 0.0
          %3023 = vmatpush1.msra.mxu0 0.0
          %3024 = vmatprep.subr.mxu0 0.0
          %3025 = vmatpush1.msra.mxu0 0.0
          %3026 = vmatprep.subr.mxu0 0.0
          %3027 = vmatpush1.msra.mxu0 0.0
          %3028 = vmatprep.subr.mxu0 0.0
          %3029 = vmatpush1.msra.mxu0 0.0
          %3030 = vmatprep.subr.mxu0 0.0
          %3031 = vmatpush1.msra.mxu0 0.0
          %3032 = vmatprep.subr.mxu0 0.0
          %3033 = vmatpush1.msra.mxu0 0.0
          %3034 = vmatprep.mubr.f32.mxu0 0.0
          %3035 = vmatmul.mubr.f32.gmra.mrb[0].mxu0 %v2962
          %v3036 = vpop.f32.mrb[0].mxu0
          %v3037 = vadd.f32 0.0, %v3036
          %v3038 = vpop.f32.mrb[0].mxu0
          %3039 = vmatprep.mubr.f32.mxu0 0.0
          %3040 = vmatmul.mubr.f32.gmra.mrb[0].mxu0 %v2965
          %v3041 = vpop.f32.mrb[0].mxu0
          %v3042 = vadd.f32 0.0, %v3041
          %v3043 = vpop.f32.mrb[0].mxu0
          %3044 = vmatprep.mubr.f32.mxu0 0.0
          %3045 = vmatmul.mubr.f32.gmra.mrb[0].mxu0 %v2968
          %v3046 = vpop.f32.mrb[0].mxu0
          %v3047 = vadd.f32 0.0, %v3046
          %v3048 = vpop.f32.mrb[0].mxu0
          %3049 = vdwg.mxu0
          %v3050 = vadd.f32 %v2950, %v3037
          %v3051 = vadd.f32 %v2951, %v3042
          %v3052 = vadd.f32 %v2952, %v3047
          %v3053 = vld [vmem:[%s2852 + $0x2] sm:$0xff]
          %v3054 = vld [vmem:[%s2852 + $0xa] sm:$0xff]
          %v3055 = vld [vmem:[%s2852 + $0x12] sm:$0xf]
          %s3056 = scalar_lea.vmem %s4, 544
          %v3057 = vld [vmem:[%s3056] sm:$0xff]
          %v3058 = vld [vmem:[%s3056 + $0x8] sm:$0xff]
          %v3059 = vld [vmem:[%s3056 + $0x10] sm:$0xff]
          %v3060 = vld [vmem:[%s3056 + $0x18] sm:$0xff]
          %v3062 = vsel %vm1365, %v3053, 0
          %v3065 = vsel %vm1365, %v3054, 0
          %v3068 = vsel %vm1365, %v3055, 0
          %3070 = vmatprep.subr.mxu0 0.0
          %3071 = vmatpush1.msra.mxu0 %v3057
          %3072 = vmatprep.subr.mxu0 0.0
          %3073 = vmatpush1.msra.mxu0 %v3058
          %3074 = vmatprep.subr.mxu0 0.0
          %3075 = vmatpush1.msra.mxu0 %v3059
          %3076 = vmatprep.subr.mxu0 0.0
          %3077 = vmatpush1.msra.mxu0 %v3060
          %3078 = vmatprep.subr.mxu0 0.0
          %3079 = vmatpush1.msra.mxu0 0.0
          %3080 = vmatprep.subr.mxu0 0.0
          %3081 = vmatpush1.msra.mxu0 0.0
          %3082 = vmatprep.subr.mxu0 0.0
          %3083 = vmatpush1.msra.mxu0 0.0
          %3084 = vmatprep.subr.mxu0 0.0
          %3085 = vmatpush1.msra.mxu0 0.0
          %3086 = vmatprep.subr.mxu0 0.0
          %3087 = vmatpush1.msra.mxu0 0.0
          %3088 = vmatprep.subr.mxu0 0.0
          %3089 = vmatpush1.msra.mxu0 0.0
          %3090 = vmatprep.subr.mxu0 0.0
          %3091 = vmatpush1.msra.mxu0 0.0
          %3092 = vmatprep.subr.mxu0 0.0
          %3093 = vmatpush1.msra.mxu0 0.0
          %3094 = vmatprep.subr.mxu0 0.0
          %3095 = vmatpush1.msra.mxu0 0.0
          %3096 = vmatprep.subr.mxu0 0.0
          %3097 = vmatpush1.msra.mxu0 0.0
          %3098 = vmatprep.subr.mxu0 0.0
          %3099 = vmatpush1.msra.mxu0 0.0
          %3100 = vmatprep.subr.mxu0 0.0
          %3101 = vmatpush1.msra.mxu0 0.0
          %3102 = vmatprep.subr.mxu0 0.0
          %3103 = vmatpush1.msra.mxu0 0.0
          %3104 = vmatprep.subr.mxu0 0.0
          %3105 = vmatpush1.msra.mxu0 0.0
          %3106 = vmatprep.subr.mxu0 0.0
          %3107 = vmatpush1.msra.mxu0 0.0
          %3108 = vmatprep.subr.mxu0 0.0
          %3109 = vmatpush1.msra.mxu0 0.0
          %3110 = vmatprep.subr.mxu0 0.0
          %3111 = vmatpush1.msra.mxu0 0.0
          %3112 = vmatprep.subr.mxu0 0.0
          %3113 = vmatpush1.msra.mxu0 0.0
          %3114 = vmatprep.subr.mxu0 0.0
          %3115 = vmatpush1.msra.mxu0 0.0
          %3116 = vmatprep.subr.mxu0 0.0
          %3117 = vmatpush1.msra.mxu0 0.0
          %3118 = vmatprep.subr.mxu0 0.0
          %3119 = vmatpush1.msra.mxu0 0.0
          %3120 = vmatprep.subr.mxu0 0.0
          %3121 = vmatpush1.msra.mxu0 0.0
          %3122 = vmatprep.subr.mxu0 0.0
          %3123 = vmatpush1.msra.mxu0 0.0
          %3124 = vmatprep.subr.mxu0 0.0
          %3125 = vmatpush1.msra.mxu0 0.0
          %3126 = vmatprep.subr.mxu0 0.0
          %3127 = vmatpush1.msra.mxu0 0.0
          %3128 = vmatprep.subr.mxu0 0.0
          %3129 = vmatpush1.msra.mxu0 0.0
          %3130 = vmatprep.subr.mxu0 0.0
          %3131 = vmatpush1.msra.mxu0 0.0
          %3132 = vmatprep.subr.mxu0 0.0
          %3133 = vmatpush1.msra.mxu0 0.0
          %3134 = vmatprep.mubr.f32.mxu0 0.0
          %3135 = vmatmul.mubr.f32.gmra.mrb[0].mxu0 %v3062
          %v3136 = vpop.f32.mrb[0].mxu0
          %v3137 = vadd.f32 0.0, %v3136
          %v3138 = vpop.f32.mrb[0].mxu0
          %3139 = vmatprep.mubr.f32.mxu0 0.0
          %3140 = vmatmul.mubr.f32.gmra.mrb[0].mxu0 %v3065
          %v3141 = vpop.f32.mrb[0].mxu0
          %v3142 = vadd.f32 0.0, %v3141
          %v3143 = vpop.f32.mrb[0].mxu0
          %3144 = vmatprep.mubr.f32.mxu0 0.0
          %3145 = vmatmul.mubr.f32.gmra.mrb[0].mxu0 %v3068
          %v3146 = vpop.f32.mrb[0].mxu0
          %v3147 = vadd.f32 0.0, %v3146
          %v3148 = vpop.f32.mrb[0].mxu0
          %3149 = vdwg.mxu0
          %v3150 = vadd.f32 %v3050, %v3137
          %v3151 = vadd.f32 %v3051, %v3142
          %v3152 = vadd.f32 %v3052, %v3147
          %v3153 = vld [vmem:[%s2852 + $0x3] sm:$0xff]
          %v3154 = vld [vmem:[%s2852 + $0xb] sm:$0xff]
          %v3155 = vld [vmem:[%s2852 + $0x13] sm:$0xf]
          %s3156 = scalar_lea.vmem %s4, 576
          %v3157 = vld [vmem:[%s3156] sm:$0xff]
          %v3158 = vld [vmem:[%s3156 + $0x8] sm:$0xff]
          %v3159 = vld [vmem:[%s3156 + $0x10] sm:$0xff]
          %v3160 = vld [vmem:[%s3156 + $0x18] sm:$0xff]
          %v3162 = vsel %vm1365, %v3153, 0
          %v3165 = vsel %vm1365, %v3154, 0
          %v3168 = vsel %vm1365, %v3155, 0
          %3170 = vmatprep.subr.mxu0 0.0
          %3171 = vmatpush1.msra.mxu0 %v3157
          %3172 = vmatprep.subr.mxu0 0.0
          %3173 = vmatpush1.msra.mxu0 %v3158
          %3174 = vmatprep.subr.mxu0 0.0
          %3175 = vmatpush1.msra.mxu0 %v3159
          %3176 = vmatprep.subr.mxu0 0.0
          %3177 = vmatpush1.msra.mxu0 %v3160
          %3178 = vmatprep.subr.mxu0 0.0
          %3179 = vmatpush1.msra.mxu0 0.0
          %3180 = vmatprep.subr.mxu0 0.0
          %3181 = vmatpush1.msra.mxu0 0.0
          %3182 = vmatprep.subr.mxu0 0.0
          %3183 = vmatpush1.msra.mxu0 0.0
          %3184 = vmatprep.subr.mxu0 0.0
          %3185 = vmatpush1.msra.mxu0 0.0
          %3186 = vmatprep.subr.mxu0 0.0
          %3187 = vmatpush1.msra.mxu0 0.0
          %3188 = vmatprep.subr.mxu0 0.0
          %3189 = vmatpush1.msra.mxu0 0.0
          %3190 = vmatprep.subr.mxu0 0.0
          %3191 = vmatpush1.msra.mxu0 0.0
          %3192 = vmatprep.subr.mxu0 0.0
          %3193 = vmatpush1.msra.mxu0 0.0
          %3194 = vmatprep.subr.mxu0 0.0
          %3195 = vmatpush1.msra.mxu0 0.0
          %3196 = vmatprep.subr.mxu0 0.0
          %3197 = vmatpush1.msra.mxu0 0.0
          %3198 = vmatprep.subr.mxu0 0.0
          %3199 = vmatpush1.msra.mxu0 0.0
          %3200 = vmatprep.subr.mxu0 0.0
          %3201 = vmatpush1.msra.mxu0 0.0
          %3202 = vmatprep.subr.mxu0 0.0
          %3203 = vmatpush1.msra.mxu0 0.0
          %3204 = vmatprep.subr.mxu0 0.0
          %3205 = vmatpush1.msra.mxu0 0.0
          %3206 = vmatprep.subr.mxu0 0.0
          %3207 = vmatpush1.msra.mxu0 0.0
          %3208 = vmatprep.subr.mxu0 0.0
          %3209 = vmatpush1.msra.mxu0 0.0
          %3210 = vmatprep.subr.mxu0 0.0
          %3211 = vmatpush1.msra.mxu0 0.0
          %3212 = vmatprep.subr.mxu0 0.0
          %3213 = vmatpush1.msra.mxu0 0.0
          %3214 = vmatprep.subr.mxu0 0.0
          %3215 = vmatpush1.msra.mxu0 0.0
          %3216 = vmatprep.subr.mxu0 0.0
          %3217 = vmatpush1.msra.mxu0 0.0
          %3218 = vmatprep.subr.mxu0 0.0
          %3219 = vmatpush1.msra.mxu0 0.0
          %3220 = vmatprep.subr.mxu0 0.0
          %3221 = vmatpush1.msra.mxu0 0.0
          %3222 = vmatprep.subr.mxu0 0.0
          %3223 = vmatpush1.msra.mxu0 0.0
          %3224 = vmatprep.subr.mxu0 0.0
          %3225 = vmatpush1.msra.mxu0 0.0
          %3226 = vmatprep.subr.mxu0 0.0
          %3227 = vmatpush1.msra.mxu0 0.0
          %3228 = vmatprep.subr.mxu0 0.0
          %3229 = vmatpush1.msra.mxu0 0.0
          %3230 = vmatprep.subr.mxu0 0.0
          %3231 = vmatpush1.msra.mxu0 0.0
          %3232 = vmatprep.subr.mxu0 0.0
          %3233 = vmatpush1.msra.mxu0 0.0
          %3234 = vmatprep.mubr.f32.mxu0 0.0
          %3235 = vmatmul.mubr.f32.gmra.mrb[0].mxu0 %v3162
          %v3236 = vpop.f32.mrb[0].mxu0
          %v3237 = vadd.f32 0.0, %v3236
          %v3238 = vpop.f32.mrb[0].mxu0
          %3239 = vmatprep.mubr.f32.mxu0 0.0
          %3240 = vmatmul.mubr.f32.gmra.mrb[0].mxu0 %v3165
          %v3241 = vpop.f32.mrb[0].mxu0
          %v3242 = vadd.f32 0.0, %v3241
          %v3243 = vpop.f32.mrb[0].mxu0
          %3244 = vmatprep.mubr.f32.mxu0 0.0
          %3245 = vmatmul.mubr.f32.gmra.mrb[0].mxu0 %v3168
          %v3246 = vpop.f32.mrb[0].mxu0
          %v3247 = vadd.f32 0.0, %v3246
          %v3248 = vpop.f32.mrb[0].mxu0
          %3249 = vdwg.mxu0
          %v3250 = vadd.f32 %v3150, %v3237
          %v3251 = vadd.f32 %v3151, %v3242
          %v3252 = vadd.f32 %v3152, %v3247
          %v3253 = vld [vmem:[%s2852 + $0x4] sm:$0xff]
          %v3254 = vld [vmem:[%s2852 + $0xc] sm:$0xff]
          %v3255 = vld [vmem:[%s2852 + $0x14] sm:$0xf]
          %s3256 = scalar_lea.vmem %s4, 608
          %v3257 = vld [vmem:[%s3256] sm:$0xff]
          %v3258 = vld [vmem:[%s3256 + $0x8] sm:$0xff]
          %v3259 = vld [vmem:[%s3256 + $0x10] sm:$0xff]
          %v3260 = vld [vmem:[%s3256 + $0x18] sm:$0xff]
          %v3262 = vsel %vm1365, %v3253, 0
          %v3265 = vsel %vm1365, %v3254, 0
          %v3268 = vsel %vm1365, %v3255, 0
          %3270 = vmatprep.subr.mxu0 0.0
          %3271 = vmatpush1.msra.mxu0 %v3257
          %3272 = vmatprep.subr.mxu0 0.0
          %3273 = vmatpush1.msra.mxu0 %v3258
          %3274 = vmatprep.subr.mxu0 0.0
          %3275 = vmatpush1.msra.mxu0 %v3259
          %3276 = vmatprep.subr.mxu0 0.0
          %3277 = vmatpush1.msra.mxu0 %v3260
          %3278 = vmatprep.subr.mxu0 0.0
          %3279 = vmatpush1.msra.mxu0 0.0
          %3280 = vmatprep.subr.mxu0 0.0
          %3281 = vmatpush1.msra.mxu0 0.0
          %3282 = vmatprep.subr.mxu0 0.0
          %3283 = vmatpush1.msra.mxu0 0.0
          %3284 = vmatprep.subr.mxu0 0.0
          %3285 = vmatpush1.msra.mxu0 0.0
          %3286 = vmatprep.subr.mxu0 0.0
          %3287 = vmatpush1.msra.mxu0 0.0
          %3288 = vmatprep.subr.mxu0 0.0
          %3289 = vmatpush1.msra.mxu0 0.0
          %3290 = vmatprep.subr.mxu0 0.0
          %3291 = vmatpush1.msra.mxu0 0.0
          %3292 = vmatprep.subr.mxu0 0.0
          %3293 = vmatpush1.msra.mxu0 0.0
          %3294 = vmatprep.subr.mxu0 0.0
          %3295 = vmatpush1.msra.mxu0 0.0
          %3296 = vmatprep.subr.mxu0 0.0
          %3297 = vmatpush1.msra.mxu0 0.0
          %3298 = vmatprep.subr.mxu0 0.0
          %3299 = vmatpush1.msra.mxu0 0.0
          %3300 = vmatprep.subr.mxu0 0.0
          %3301 = vmatpush1.msra.mxu0 0.0
          %3302 = vmatprep.subr.mxu0 0.0
          %3303 = vmatpush1.msra.mxu0 0.0
          %3304 = vmatprep.subr.mxu0 0.0
          %3305 = vmatpush1.msra.mxu0 0.0
          %3306 = vmatprep.subr.mxu0 0.0
          %3307 = vmatpush1.msra.mxu0 0.0
          %3308 = vmatprep.subr.mxu0 0.0
          %3309 = vmatpush1.msra.mxu0 0.0
          %3310 = vmatprep.subr.mxu0 0.0
          %3311 = vmatpush1.msra.mxu0 0.0
          %3312 = vmatprep.subr.mxu0 0.0
          %3313 = vmatpush1.msra.mxu0 0.0
          %3314 = vmatprep.subr.mxu0 0.0
          %3315 = vmatpush1.msra.mxu0 0.0
          %3316 = vmatprep.subr.mxu0 0.0
          %3317 = vmatpush1.msra.mxu0 0.0
          %3318 = vmatprep.subr.mxu0 0.0
          %3319 = vmatpush1.msra.mxu0 0.0
          %3320 = vmatprep.subr.mxu0 0.0
          %3321 = vmatpush1.msra.mxu0 0.0
          %3322 = vmatprep.subr.mxu0 0.0
          %3323 = vmatpush1.msra.mxu0 0.0
          %3324 = vmatprep.subr.mxu0 0.0
          %3325 = vmatpush1.msra.mxu0 0.0
          %3326 = vmatprep.subr.mxu0 0.0
          %3327 = vmatpush1.msra.mxu0 0.0
          %3328 = vmatprep.subr.mxu0 0.0
          %3329 = vmatpush1.msra.mxu0 0.0
          %3330 = vmatprep.subr.mxu0 0.0
          %3331 = vmatpush1.msra.mxu0 0.0
          %3332 = vmatprep.subr.mxu0 0.0
          %3333 = vmatpush1.msra.mxu0 0.0
          %3334 = vmatprep.mubr.f32.mxu0 0.0
          %3335 = vmatmul.mubr.f32.gmra.mrb[0].mxu0 %v3262
          %v3336 = vpop.f32.mrb[0].mxu0
          %v3337 = vadd.f32 0.0, %v3336
          %v3338 = vpop.f32.mrb[0].mxu0
          %3339 = vmatprep.mubr.f32.mxu0 0.0
          %3340 = vmatmul.mubr.f32.gmra.mrb[0].mxu0 %v3265
          %v3341 = vpop.f32.mrb[0].mxu0
          %v3342 = vadd.f32 0.0, %v3341
          %v3343 = vpop.f32.mrb[0].mxu0
          %3344 = vmatprep.mubr.f32.mxu0 0.0
          %3345 = vmatmul.mubr.f32.gmra.mrb[0].mxu0 %v3268
          %v3346 = vpop.f32.mrb[0].mxu0
          %v3347 = vadd.f32 0.0, %v3346
          %v3348 = vpop.f32.mrb[0].mxu0
          %3349 = vdwg.mxu0
          %v3350 = vadd.f32 %v3250, %v3337
          %v3351 = vadd.f32 %v3251, %v3342
          %v3352 = vadd.f32 %v3252, %v3347
          %s3353 = sadd.s32 %s1343, 4
          %s3354 = smul.u32 %s3353, 24
          %s3355 = scalar_lea.vmem [#allocation2], %s3354
          %v3356 = vld [vmem:[%s3355] sm:$0xff]
          %v3357 = vld [vmem:[%s3355 + $0x8] sm:$0xff]
          %v3358 = vld [vmem:[%s3355 + $0x10] sm:$0xf]
          %s3359 = scalar_lea.vmem %s4, 640
          %v3360 = vld [vmem:[%s3359] sm:$0xff]
          %v3361 = vld [vmem:[%s3359 + $0x8] sm:$0xff]
          %v3362 = vld [vmem:[%s3359 + $0x10] sm:$0xff]
          %v3363 = vld [vmem:[%s3359 + $0x18] sm:$0xff]
          %v3365 = vsel %vm1365, %v3356, 0
          %v3368 = vsel %vm1365, %v3357, 0
          %v3371 = vsel %vm1365, %v3358, 0
          %3373 = vmatprep.subr.mxu0 0.0
          %3374 = vmatpush1.msra.mxu0 %v3360
          %3375 = vmatprep.subr.mxu0 0.0
          %3376 = vmatpush1.msra.mxu0 %v3361
          %3377 = vmatprep.subr.mxu0 0.0
          %3378 = vmatpush1.msra.mxu0 %v3362
          %3379 = vmatprep.subr.mxu0 0.0
          %3380 = vmatpush1.msra.mxu0 %v3363
          %3381 = vmatprep.subr.mxu0 0.0
          %3382 = vmatpush1.msra.mxu0 0.0
          %3383 = vmatprep.subr.mxu0 0.0
          %3384 = vmatpush1.msra.mxu0 0.0
          %3385 = vmatprep.subr.mxu0 0.0
          %3386 = vmatpush1.msra.mxu0 0.0
          %3387 = vmatprep.subr.mxu0 0.0
          %3388 = vmatpush1.msra.mxu0 0.0
          %3389 = vmatprep.subr.mxu0 0.0
          %3390 = vmatpush1.msra.mxu0 0.0
          %3391 = vmatprep.subr.mxu0 0.0
          %3392 = vmatpush1.msra.mxu0 0.0
          %3393 = vmatprep.subr.mxu0 0.0
          %3394 = vmatpush1.msra.mxu0 0.0
          %3395 = vmatprep.subr.mxu0 0.0
          %3396 = vmatpush1.msra.mxu0 0.0
          %3397 = vmatprep.subr.mxu0 0.0
          %3398 = vmatpush1.msra.mxu0 0.0
          %3399 = vmatprep.subr.mxu0 0.0
          %3400 = vmatpush1.msra.mxu0 0.0
          %3401 = vmatprep.subr.mxu0 0.0
          %3402 = vmatpush1.msra.mxu0 0.0
          %3403 = vmatprep.subr.mxu0 0.0
          %3404 = vmatpush1.msra.mxu0 0.0
          %3405 = vmatprep.subr.mxu0 0.0
          %3406 = vmatpush1.msra.mxu0 0.0
          %3407 = vmatprep.subr.mxu0 0.0
          %3408 = vmatpush1.msra.mxu0 0.0
          %3409 = vmatprep.subr.mxu0 0.0
          %3410 = vmatpush1.msra.mxu0 0.0
          %3411 = vmatprep.subr.mxu0 0.0
          %3412 = vmatpush1.msra.mxu0 0.0
          %3413 = vmatprep.subr.mxu0 0.0
          %3414 = vmatpush1.msra.mxu0 0.0
          %3415 = vmatprep.subr.mxu0 0.0
          %3416 = vmatpush1.msra.mxu0 0.0
          %3417 = vmatprep.subr.mxu0 0.0
          %3418 = vmatpush1.msra.mxu0 0.0
          %3419 = vmatprep.subr.mxu0 0.0
          %3420 = vmatpush1.msra.mxu0 0.0
          %3421 = vmatprep.subr.mxu0 0.0
          %3422 = vmatpush1.msra.mxu0 0.0
          %3423 = vmatprep.subr.mxu0 0.0
          %3424 = vmatpush1.msra.mxu0 0.0
          %3425 = vmatprep.subr.mxu0 0.0
          %3426 = vmatpush1.msra.mxu0 0.0
          %3427 = vmatprep.subr.mxu0 0.0
          %3428 = vmatpush1.msra.mxu0 0.0
          %3429 = vmatprep.subr.mxu0 0.0
          %3430 = vmatpush1.msra.mxu0 0.0
          %3431 = vmatprep.subr.mxu0 0.0
          %3432 = vmatpush1.msra.mxu0 0.0
          %3433 = vmatprep.subr.mxu0 0.0
          %3434 = vmatpush1.msra.mxu0 0.0
          %3435 = vmatprep.subr.mxu0 0.0
          %3436 = vmatpush1.msra.mxu0 0.0
          %3437 = vmatprep.mubr.f32.mxu0 0.0
          %3438 = vmatmul.mubr.f32.gmra.mrb[0].mxu0 %v3365
          %v3439 = vpop.f32.mrb[0].mxu0
          %v3440 = vadd.f32 0.0, %v3439
          %v3441 = vpop.f32.mrb[0].mxu0
          %3442 = vmatprep.mubr.f32.mxu0 0.0
          %3443 = vmatmul.mubr.f32.gmra.mrb[0].mxu0 %v3368
          %v3444 = vpop.f32.mrb[0].mxu0
          %v3445 = vadd.f32 0.0, %v3444
          %v3446 = vpop.f32.mrb[0].mxu0
          %3447 = vmatprep.mubr.f32.mxu0 0.0
          %3448 = vmatmul.mubr.f32.gmra.mrb[0].mxu0 %v3371
          %v3449 = vpop.f32.mrb[0].mxu0
          %v3450 = vadd.f32 0.0, %v3449
          %v3451 = vpop.f32.mrb[0].mxu0
          %3452 = vdwg.mxu0
          %v3453 = vadd.f32 %v3350, %v3440
          %v3454 = vadd.f32 %v3351, %v3445
          %v3455 = vadd.f32 %v3352, %v3450
          %v3456 = vld [vmem:[%s3355 + $0x1] sm:$0xff]
          %v3457 = vld [vmem:[%s3355 + $0x9] sm:$0xff]
          %v3458 = vld [vmem:[%s3355 + $0x11] sm:$0xf]
          %s3459 = scalar_lea.vmem %s4, 672
          %v3460 = vld [vmem:[%s3459] sm:$0xff]
          %v3461 = vld [vmem:[%s3459 + $0x8] sm:$0xff]
          %v3462 = vld [vmem:[%s3459 + $0x10] sm:$0xff]
          %v3463 = vld [vmem:[%s3459 + $0x18] sm:$0xff]
          %v3465 = vsel %vm1365, %v3456, 0
          %v3468 = vsel %vm1365, %v3457, 0
          %v3471 = vsel %vm1365, %v3458, 0
          %3473 = vmatprep.subr.mxu0 0.0
          %3474 = vmatpush1.msra.mxu0 %v3460
          %3475 = vmatprep.subr.mxu0 0.0
          %3476 = vmatpush1.msra.mxu0 %v3461
          %3477 = vmatprep.subr.mxu0 0.0
          %3478 = vmatpush1.msra.mxu0 %v3462
          %3479 = vmatprep.subr.mxu0 0.0
          %3480 = vmatpush1.msra.mxu0 %v3463
          %3481 = vmatprep.subr.mxu0 0.0
          %3482 = vmatpush1.msra.mxu0 0.0
          %3483 = vmatprep.subr.mxu0 0.0
          %3484 = vmatpush1.msra.mxu0 0.0
          %3485 = vmatprep.subr.mxu0 0.0
          %3486 = vmatpush1.msra.mxu0 0.0
          %3487 = vmatprep.subr.mxu0 0.0
          %3488 = vmatpush1.msra.mxu0 0.0
          %3489 = vmatprep.subr.mxu0 0.0
          %3490 = vmatpush1.msra.mxu0 0.0
          %3491 = vmatprep.subr.mxu0 0.0
          %3492 = vmatpush1.msra.mxu0 0.0
          %3493 = vmatprep.subr.mxu0 0.0
          %3494 = vmatpush1.msra.mxu0 0.0
          %3495 = vmatprep.subr.mxu0 0.0
          %3496 = vmatpush1.msra.mxu0 0.0
          %3497 = vmatprep.subr.mxu0 0.0
          %3498 = vmatpush1.msra.mxu0 0.0
          %3499 = vmatprep.subr.mxu0 0.0
          %3500 = vmatpush1.msra.mxu0 0.0
          %3501 = vmatprep.subr.mxu0 0.0
          %3502 = vmatpush1.msra.mxu0 0.0
          %3503 = vmatprep.subr.mxu0 0.0
          %3504 = vmatpush1.msra.mxu0 0.0
          %3505 = vmatprep.subr.mxu0 0.0
          %3506 = vmatpush1.msra.mxu0 0.0
          %3507 = vmatprep.subr.mxu0 0.0
          %3508 = vmatpush1.msra.mxu0 0.0
          %3509 = vmatprep.subr.mxu0 0.0
          %3510 = vmatpush1.msra.mxu0 0.0
          %3511 = vmatprep.subr.mxu0 0.0
          %3512 = vmatpush1.msra.mxu0 0.0
          %3513 = vmatprep.subr.mxu0 0.0
          %3514 = vmatpush1.msra.mxu0 0.0
          %3515 = vmatprep.subr.mxu0 0.0
          %3516 = vmatpush1.msra.mxu0 0.0
          %3517 = vmatprep.subr.mxu0 0.0
          %3518 = vmatpush1.msra.mxu0 0.0
          %3519 = vmatprep.subr.mxu0 0.0
          %3520 = vmatpush1.msra.mxu0 0.0
          %3521 = vmatprep.subr.mxu0 0.0
          %3522 = vmatpush1.msra.mxu0 0.0
          %3523 = vmatprep.subr.mxu0 0.0
          %3524 = vmatpush1.msra.mxu0 0.0
          %3525 = vmatprep.subr.mxu0 0.0
          %3526 = vmatpush1.msra.mxu0 0.0
          %3527 = vmatprep.subr.mxu0 0.0
          %3528 = vmatpush1.msra.mxu0 0.0
          %3529 = vmatprep.subr.mxu0 0.0
          %3530 = vmatpush1.msra.mxu0 0.0
          %3531 = vmatprep.subr.mxu0 0.0
          %3532 = vmatpush1.msra.mxu0 0.0
          %3533 = vmatprep.subr.mxu0 0.0
          %3534 = vmatpush1.msra.mxu0 0.0
          %3535 = vmatprep.subr.mxu0 0.0
          %3536 = vmatpush1.msra.mxu0 0.0
          %3537 = vmatprep.mubr.f32.mxu0 0.0
          %3538 = vmatmul.mubr.f32.gmra.mrb[0].mxu0 %v3465
          %v3539 = vpop.f32.mrb[0].mxu0
          %v3540 = vadd.f32 0.0, %v3539
          %v3541 = vpop.f32.mrb[0].mxu0
          %3542 = vmatprep.mubr.f32.mxu0 0.0
          %3543 = vmatmul.mubr.f32.gmra.mrb[0].mxu0 %v3468
          %v3544 = vpop.f32.mrb[0].mxu0
          %v3545 = vadd.f32 0.0, %v3544
          %v3546 = vpop.f32.mrb[0].mxu0
          %3547 = vmatprep.mubr.f32.mxu0 0.0
          %3548 = vmatmul.mubr.f32.gmra.mrb[0].mxu0 %v3471
          %v3549 = vpop.f32.mrb[0].mxu0
          %v3550 = vadd.f32 0.0, %v3549
          %v3551 = vpop.f32.mrb[0].mxu0
          %3552 = vdwg.mxu0
          %v3553 = vadd.f32 %v3453, %v3540
          %v3554 = vadd.f32 %v3454, %v3545
          %v3555 = vadd.f32 %v3455, %v3550
          %v3556 = vld [vmem:[%s3355 + $0x2] sm:$0xff]
          %v3557 = vld [vmem:[%s3355 + $0xa] sm:$0xff]
          %v3558 = vld [vmem:[%s3355 + $0x12] sm:$0xf]
          %s3559 = scalar_lea.vmem %s4, 704
          %v3560 = vld [vmem:[%s3559] sm:$0xff]
          %v3561 = vld [vmem:[%s3559 + $0x8] sm:$0xff]
          %v3562 = vld [vmem:[%s3559 + $0x10] sm:$0xff]
          %v3563 = vld [vmem:[%s3559 + $0x18] sm:$0xff]
          %v3565 = vsel %vm1365, %v3556, 0
          %v3568 = vsel %vm1365, %v3557, 0
          %v3571 = vsel %vm1365, %v3558, 0
          %3573 = vmatprep.subr.mxu0 0.0
          %3574 = vmatpush1.msra.mxu0 %v3560
          %3575 = vmatprep.subr.mxu0 0.0
          %3576 = vmatpush1.msra.mxu0 %v3561
          %3577 = vmatprep.subr.mxu0 0.0
          %3578 = vmatpush1.msra.mxu0 %v3562
          %3579 = vmatprep.subr.mxu0 0.0
          %3580 = vmatpush1.msra.mxu0 %v3563
          %3581 = vmatprep.subr.mxu0 0.0
          %3582 = vmatpush1.msra.mxu0 0.0
          %3583 = vmatprep.subr.mxu0 0.0
          %3584 = vmatpush1.msra.mxu0 0.0
          %3585 = vmatprep.subr.mxu0 0.0
          %3586 = vmatpush1.msra.mxu0 0.0
          %3587 = vmatprep.subr.mxu0 0.0
          %3588 = vmatpush1.msra.mxu0 0.0
          %3589 = vmatprep.subr.mxu0 0.0
          %3590 = vmatpush1.msra.mxu0 0.0
          %3591 = vmatprep.subr.mxu0 0.0
          %3592 = vmatpush1.msra.mxu0 0.0
          %3593 = vmatprep.subr.mxu0 0.0
          %3594 = vmatpush1.msra.mxu0 0.0
          %3595 = vmatprep.subr.mxu0 0.0
          %3596 = vmatpush1.msra.mxu0 0.0
          %3597 = vmatprep.subr.mxu0 0.0
          %3598 = vmatpush1.msra.mxu0 0.0
          %3599 = vmatprep.subr.mxu0 0.0
          %3600 = vmatpush1.msra.mxu0 0.0
          %3601 = vmatprep.subr.mxu0 0.0
          %3602 = vmatpush1.msra.mxu0 0.0
          %3603 = vmatprep.subr.mxu0 0.0
          %3604 = vmatpush1.msra.mxu0 0.0
          %3605 = vmatprep.subr.mxu0 0.0
          %3606 = vmatpush1.msra.mxu0 0.0
          %3607 = vmatprep.subr.mxu0 0.0
          %3608 = vmatpush1.msra.mxu0 0.0
          %3609 = vmatprep.subr.mxu0 0.0
          %3610 = vmatpush1.msra.mxu0 0.0
          %3611 = vmatprep.subr.mxu0 0.0
          %3612 = vmatpush1.msra.mxu0 0.0
          %3613 = vmatprep.subr.mxu0 0.0
          %3614 = vmatpush1.msra.mxu0 0.0
          %3615 = vmatprep.subr.mxu0 0.0
          %3616 = vmatpush1.msra.mxu0 0.0
          %3617 = vmatprep.subr.mxu0 0.0
          %3618 = vmatpush1.msra.mxu0 0.0
          %3619 = vmatprep.subr.mxu0 0.0
          %3620 = vmatpush1.msra.mxu0 0.0
          %3621 = vmatprep.subr.mxu0 0.0
          %3622 = vmatpush1.msra.mxu0 0.0
          %3623 = vmatprep.subr.mxu0 0.0
          %3624 = vmatpush1.msra.mxu0 0.0
          %3625 = vmatprep.subr.mxu0 0.0
          %3626 = vmatpush1.msra.mxu0 0.0
          %3627 = vmatprep.subr.mxu0 0.0
          %3628 = vmatpush1.msra.mxu0 0.0
          %3629 = vmatprep.subr.mxu0 0.0
          %3630 = vmatpush1.msra.mxu0 0.0
          %3631 = vmatprep.subr.mxu0 0.0
          %3632 = vmatpush1.msra.mxu0 0.0
          %3633 = vmatprep.subr.mxu0 0.0
          %3634 = vmatpush1.msra.mxu0 0.0
          %3635 = vmatprep.subr.mxu0 0.0
          %3636 = vmatpush1.msra.mxu0 0.0
          %3637 = vmatprep.mubr.f32.mxu0 0.0
          %3638 = vmatmul.mubr.f32.gmra.mrb[0].mxu0 %v3565
          %v3639 = vpop.f32.mrb[0].mxu0
          %v3640 = vadd.f32 0.0, %v3639
          %v3641 = vpop.f32.mrb[0].mxu0
          %3642 = vmatprep.mubr.f32.mxu0 0.0
          %3643 = vmatmul.mubr.f32.gmra.mrb[0].mxu0 %v3568
          %v3644 = vpop.f32.mrb[0].mxu0
          %v3645 = vadd.f32 0.0, %v3644
          %v3646 = vpop.f32.mrb[0].mxu0
          %3647 = vmatprep.mubr.f32.mxu0 0.0
          %3648 = vmatmul.mubr.f32.gmra.mrb[0].mxu0 %v3571
          %v3649 = vpop.f32.mrb[0].mxu0
          %v3650 = vadd.f32 0.0, %v3649
          %v3651 = vpop.f32.mrb[0].mxu0
          %3652 = vdwg.mxu0
          %v3653 = vadd.f32 %v3553, %v3640
          %v3654 = vadd.f32 %v3554, %v3645
          %v3655 = vadd.f32 %v3555, %v3650
          %v3656 = vld [vmem:[%s3355 + $0x3] sm:$0xff]
          %v3657 = vld [vmem:[%s3355 + $0xb] sm:$0xff]
          %v3658 = vld [vmem:[%s3355 + $0x13] sm:$0xf]
          %s3659 = scalar_lea.vmem %s4, 736
          %v3660 = vld [vmem:[%s3659] sm:$0xff]
          %v3661 = vld [vmem:[%s3659 + $0x8] sm:$0xff]
          %v3662 = vld [vmem:[%s3659 + $0x10] sm:$0xff]
          %v3663 = vld [vmem:[%s3659 + $0x18] sm:$0xff]
          %v3665 = vsel %vm1365, %v3656, 0
          %v3668 = vsel %vm1365, %v3657, 0
          %v3671 = vsel %vm1365, %v3658, 0
          %3673 = vmatprep.subr.mxu0 0.0
          %3674 = vmatpush1.msra.mxu0 %v3660
          %3675 = vmatprep.subr.mxu0 0.0
          %3676 = vmatpush1.msra.mxu0 %v3661
          %3677 = vmatprep.subr.mxu0 0.0
          %3678 = vmatpush1.msra.mxu0 %v3662
          %3679 = vmatprep.subr.mxu0 0.0
          %3680 = vmatpush1.msra.mxu0 %v3663
          %3681 = vmatprep.subr.mxu0 0.0
          %3682 = vmatpush1.msra.mxu0 0.0
          %3683 = vmatprep.subr.mxu0 0.0
          %3684 = vmatpush1.msra.mxu0 0.0
          %3685 = vmatprep.subr.mxu0 0.0
          %3686 = vmatpush1.msra.mxu0 0.0
          %3687 = vmatprep.subr.mxu0 0.0
          %3688 = vmatpush1.msra.mxu0 0.0
          %3689 = vmatprep.subr.mxu0 0.0
          %3690 = vmatpush1.msra.mxu0 0.0
          %3691 = vmatprep.subr.mxu0 0.0
          %3692 = vmatpush1.msra.mxu0 0.0
          %3693 = vmatprep.subr.mxu0 0.0
          %3694 = vmatpush1.msra.mxu0 0.0
          %3695 = vmatprep.subr.mxu0 0.0
          %3696 = vmatpush1.msra.mxu0 0.0
          %3697 = vmatprep.subr.mxu0 0.0
          %3698 = vmatpush1.msra.mxu0 0.0
          %3699 = vmatprep.subr.mxu0 0.0
          %3700 = vmatpush1.msra.mxu0 0.0
          %3701 = vmatprep.subr.mxu0 0.0
          %3702 = vmatpush1.msra.mxu0 0.0
          %3703 = vmatprep.subr.mxu0 0.0
          %3704 = vmatpush1.msra.mxu0 0.0
          %3705 = vmatprep.subr.mxu0 0.0
          %3706 = vmatpush1.msra.mxu0 0.0
          %3707 = vmatprep.subr.mxu0 0.0
          %3708 = vmatpush1.msra.mxu0 0.0
          %3709 = vmatprep.subr.mxu0 0.0
          %3710 = vmatpush1.msra.mxu0 0.0
          %3711 = vmatprep.subr.mxu0 0.0
          %3712 = vmatpush1.msra.mxu0 0.0
          %3713 = vmatprep.subr.mxu0 0.0
          %3714 = vmatpush1.msra.mxu0 0.0
          %3715 = vmatprep.subr.mxu0 0.0
          %3716 = vmatpush1.msra.mxu0 0.0
          %3717 = vmatprep.subr.mxu0 0.0
          %3718 = vmatpush1.msra.mxu0 0.0
          %3719 = vmatprep.subr.mxu0 0.0
          %3720 = vmatpush1.msra.mxu0 0.0
          %3721 = vmatprep.subr.mxu0 0.0
          %3722 = vmatpush1.msra.mxu0 0.0
          %3723 = vmatprep.subr.mxu0 0.0
          %3724 = vmatpush1.msra.mxu0 0.0
          %3725 = vmatprep.subr.mxu0 0.0
          %3726 = vmatpush1.msra.mxu0 0.0
          %3727 = vmatprep.subr.mxu0 0.0
          %3728 = vmatpush1.msra.mxu0 0.0
          %3729 = vmatprep.subr.mxu0 0.0
          %3730 = vmatpush1.msra.mxu0 0.0
          %3731 = vmatprep.subr.mxu0 0.0
          %3732 = vmatpush1.msra.mxu0 0.0
          %3733 = vmatprep.subr.mxu0 0.0
          %3734 = vmatpush1.msra.mxu0 0.0
          %3735 = vmatprep.subr.mxu0 0.0
          %3736 = vmatpush1.msra.mxu0 0.0
          %3737 = vmatprep.mubr.f32.mxu0 0.0
          %3738 = vmatmul.mubr.f32.gmra.mrb[0].mxu0 %v3665
          %v3739 = vpop.f32.mrb[0].mxu0
          %v3740 = vadd.f32 0.0, %v3739
          %v3741 = vpop.f32.mrb[0].mxu0
          %3742 = vmatprep.mubr.f32.mxu0 0.0
          %3743 = vmatmul.mubr.f32.gmra.mrb[0].mxu0 %v3668
          %v3744 = vpop.f32.mrb[0].mxu0
          %v3745 = vadd.f32 0.0, %v3744
          %v3746 = vpop.f32.mrb[0].mxu0
          %3747 = vmatprep.mubr.f32.mxu0 0.0
          %3748 = vmatmul.mubr.f32.gmra.mrb[0].mxu0 %v3671
          %v3749 = vpop.f32.mrb[0].mxu0
          %v3750 = vadd.f32 0.0, %v3749
          %v3751 = vpop.f32.mrb[0].mxu0
          %3752 = vdwg.mxu0
          %v3753 = vadd.f32 %v3653, %v3740
          %v3754 = vadd.f32 %v3654, %v3745
          %v3755 = vadd.f32 %v3655, %v3750
          %v3756 = vld [vmem:[%s3355 + $0x4] sm:$0xff]
          %v3757 = vld [vmem:[%s3355 + $0xc] sm:$0xff]
          %v3758 = vld [vmem:[%s3355 + $0x14] sm:$0xf]
          %s3759 = scalar_lea.vmem %s4, 768
          %v3760 = vld [vmem:[%s3759] sm:$0xff]
          %v3761 = vld [vmem:[%s3759 + $0x8] sm:$0xff]
          %v3762 = vld [vmem:[%s3759 + $0x10] sm:$0xff]
          %v3763 = vld [vmem:[%s3759 + $0x18] sm:$0xff]
          %v3765 = vsel %vm1365, %v3756, 0
          %v3768 = vsel %vm1365, %v3757, 0
          %v3771 = vsel %vm1365, %v3758, 0
          %3773 = vmatprep.subr.mxu0 0.0
          %3774 = vmatpush1.msra.mxu0 %v3760
          %3775 = vmatprep.subr.mxu0 0.0
          %3776 = vmatpush1.msra.mxu0 %v3761
          %3777 = vmatprep.subr.mxu0 0.0
          %3778 = vmatpush1.msra.mxu0 %v3762
          %3779 = vmatprep.subr.mxu0 0.0
          %3780 = vmatpush1.msra.mxu0 %v3763
          %3781 = vmatprep.subr.mxu0 0.0
          %3782 = vmatpush1.msra.mxu0 0.0
          %3783 = vmatprep.subr.mxu0 0.0
          %3784 = vmatpush1.msra.mxu0 0.0
          %3785 = vmatprep.subr.mxu0 0.0
          %3786 = vmatpush1.msra.mxu0 0.0
          %3787 = vmatprep.subr.mxu0 0.0
          %3788 = vmatpush1.msra.mxu0 0.0
          %3789 = vmatprep.subr.mxu0 0.0
          %3790 = vmatpush1.msra.mxu0 0.0
          %3791 = vmatprep.subr.mxu0 0.0
          %3792 = vmatpush1.msra.mxu0 0.0
          %3793 = vmatprep.subr.mxu0 0.0
          %3794 = vmatpush1.msra.mxu0 0.0
          %3795 = vmatprep.subr.mxu0 0.0
          %3796 = vmatpush1.msra.mxu0 0.0
          %3797 = vmatprep.subr.mxu0 0.0
          %3798 = vmatpush1.msra.mxu0 0.0
          %3799 = vmatprep.subr.mxu0 0.0
          %3800 = vmatpush1.msra.mxu0 0.0
          %3801 = vmatprep.subr.mxu0 0.0
          %3802 = vmatpush1.msra.mxu0 0.0
          %3803 = vmatprep.subr.mxu0 0.0
          %3804 = vmatpush1.msra.mxu0 0.0
          %3805 = vmatprep.subr.mxu0 0.0
          %3806 = vmatpush1.msra.mxu0 0.0
          %3807 = vmatprep.subr.mxu0 0.0
          %3808 = vmatpush1.msra.mxu0 0.0
          %3809 = vmatprep.subr.mxu0 0.0
          %3810 = vmatpush1.msra.mxu0 0.0
          %3811 = vmatprep.subr.mxu0 0.0
          %3812 = vmatpush1.msra.mxu0 0.0
          %3813 = vmatprep.subr.mxu0 0.0
          %3814 = vmatpush1.msra.mxu0 0.0
          %3815 = vmatprep.subr.mxu0 0.0
          %3816 = vmatpush1.msra.mxu0 0.0
          %3817 = vmatprep.subr.mxu0 0.0
          %3818 = vmatpush1.msra.mxu0 0.0
          %3819 = vmatprep.subr.mxu0 0.0
          %3820 = vmatpush1.msra.mxu0 0.0
          %3821 = vmatprep.subr.mxu0 0.0
          %3822 = vmatpush1.msra.mxu0 0.0
          %3823 = vmatprep.subr.mxu0 0.0
          %3824 = vmatpush1.msra.mxu0 0.0
          %3825 = vmatprep.subr.mxu0 0.0
          %3826 = vmatpush1.msra.mxu0 0.0
          %3827 = vmatprep.subr.mxu0 0.0
          %3828 = vmatpush1.msra.mxu0 0.0
          %3829 = vmatprep.subr.mxu0 0.0
          %3830 = vmatpush1.msra.mxu0 0.0
          %3831 = vmatprep.subr.mxu0 0.0
          %3832 = vmatpush1.msra.mxu0 0.0
          %3833 = vmatprep.subr.mxu0 0.0
          %3834 = vmatpush1.msra.mxu0 0.0
          %3835 = vmatprep.subr.mxu0 0.0
          %3836 = vmatpush1.msra.mxu0 0.0
          %3837 = vmatprep.mubr.f32.mxu0 0.0
          %3838 = vmatmul.mubr.f32.gmra.mrb[0].mxu0 %v3765
          %v3839 = vpop.f32.mrb[0].mxu0
          %v3840 = vadd.f32 0.0, %v3839
          %v3841 = vpop.f32.mrb[0].mxu0
          %3842 = vmatprep.mubr.f32.mxu0 0.0
          %3843 = vmatmul.mubr.f32.gmra.mrb[0].mxu0 %v3768
          %v3844 = vpop.f32.mrb[0].mxu0
          %v3845 = vadd.f32 0.0, %v3844
          %v3846 = vpop.f32.mrb[0].mxu0
          %3847 = vmatprep.mubr.f32.mxu0 0.0
          %3848 = vmatmul.mubr.f32.gmra.mrb[0].mxu0 %v3771
          %v3849 = vpop.f32.mrb[0].mxu0
          %v3850 = vadd.f32 0.0, %v3849
          %v3851 = vpop.f32.mrb[0].mxu0
          %3852 = vdwg.mxu0
          %v3853 = vadd.f32 %v3753, %v3840
          %v3854 = vadd.f32 %v3754, %v3845
          %v3855 = vadd.f32 %v3755, %v3850
          %v3857 = vlaneseq
          %v3858 = vshrl.u32 %v3857, 7
          %v3859 = vsub.s32 0, %v3858
          %v3860 = vrot.slane %v1340, %v3859
          %v3862 = vmul.f32 %v3853, %v3860
          %v3863 = vmul.f32 %v3854, %v3860
          %v3864 = vmul.f32 %v3855, %v3860
          %v3866 = vlaneseq
          %v3867 = vshrl.u32 %v3866, 7
          %v3868 = vsub.s32 0, %v3867
          %v3869 = vrot.slane %v1341, %v3868
          %v3871 = vadd.f32 %v3862, %v3869
          %v3872 = vadd.f32 %v3863, %v3869
          %v3873 = vadd.f32 %v3864, %v3869
          %v3874 = vmax.f32 %v3871, 0.0
          %v3875 = vmax.f32 %v3872, 0.0
          %v3876 = vmax.f32 %v3873, 0.0
          %s3877 = scalar_lea.vmem [#allocation3], %s1348
          %3878 = vst.msk [vmem:[%s3877] sm:$0xff] %vm1365, %v3874
          %3879 = vst.msk [vmem:[%s3877 + $0x8] sm:$0xff] %vm1365, %v3875
          %vm3880 = vcmask 257024
          %3881 = vst.msk [vmem:[%s3877 + $0x10] sm:$0xf] %vm3880, %v3876
        $region92: #{cnn_forward.1} parent=79 // loop_footer
          %s1347 = sadd.s32 1, %s1343
        $region93: #{cnn_forward.1} parent=79 // loop_footer_branch
          %1342 = sbr.rel target = $region89
        $region94: #{cnn_forward.1} parent=79 // loop_exit
          _
        %v3882 = vlaneseq
        %v3883 = vshrl.u32 %v3882, 7
        %v3884 = vadd.s32 %v3883, 8
        %v3885 = vlaneseq
        %v3886 = vand.u32 %v3885, 127
        %v3887 = vmul.u32 %v3883, 2
        %v3888 = vmul.u32 %v3884, 2
        %vm3889 = vcmp.eq.s32.totalorder %v3886, %v3887
        %vm3890 = vcmp.eq.s32.totalorder %v3886, %v3888
        %v3891 = vsel %vm3889, 1, 0
        %v3892 = vsel %vm3890, 1, 0
        %v3893 = vcvt.s32.f32 %v3891
        %v3894 = vcvt.s32.f32 %v3892
        %v3895 = vadd.s32 %v3887, 1
        %v3896 = vadd.s32 %v3888, 1
        %vm3897 = vcmp.eq.s32.totalorder %v3886, %v3895
        %vm3898 = vcmp.eq.s32.totalorder %v3886, %v3896
        %v3899 = vsel %vm3897, 1, 0
        %v3900 = vsel %vm3898, 1, 0
        %v3901 = vcvt.s32.f32 %v3899
        %v3902 = vcvt.s32.f32 %v3900
        loop: start=0, step=1, limit=10
        $region95: #{cnn_forward.1} parent=79 // loop_pre_header
          _
        $region96: #{cnn_forward.1} parent=79 // loop_header
          %s3904 = sphi 0, %s3908
          %p3905 = scmp.ge.s32.totalorder %s3904, 10
        $region97: #{cnn_forward.1} parent=79 // loop_header_branch
          %3907 = sbr.rel (%p3905) target = $region101
        $region98: #{cnn_forward.1} parent=79 // loop_body
          %s3909 = smul.u32 %s3904, 2
          %s3910 = smul.u32 %s3909, 24
          %s3911 = scalar_lea.vmem [#allocation3], %s3910
          %v3912 = vld [vmem:[%s3911] sm:$0xff]
          %v3913 = vld [vmem:[%s3911 + $0x8] sm:$0xff]
          %v3914 = vld [vmem:[%s3911 + $0x10] sm:$0xf]
          %s3915 = sadd.s32 %s3909, 1
          %s3916 = smul.u32 %s3915, 24
          %s3917 = scalar_lea.vmem [#allocation3], %s3916
          %v3918 = vld [vmem:[%s3917] sm:$0xff]
          %v3919 = vld [vmem:[%s3917 + $0x8] sm:$0xff]
          %v3920 = vld [vmem:[%s3917 + $0x10] sm:$0xf]
          %v3921 = vmax.f32 %v3912, %v3918
          %v3922 = vmax.f32 %v3913, %v3919
          %v3923 = vmax.f32 %v3914, %v3920
          %vm3924 = vcmask 162816
          %v3926 = vsel %vm3924, %v3893, 0
          %v3929 = vsel %vm3924, %v3894, 0
          %vm3931 = vcmask 1043456
          %v3933 = vsel %vm3931, %v3923, 0
          %3935 = vmatprep.subr.mxu0 0.0
          %3936 = vmatpush1.msra.mxu0 %v3921
          %3937 = vmatprep.subr.mxu0 0.0
          %3938 = vmatpush1.msra.mxu0 %v3922
          %3939 = vmatprep.subr.mxu0 0.0
          %3940 = vmatpush1.msra.mxu0 %v3933
          %3941 = vmatprep.subr.mxu0 0.0
          %3942 = vmatpush1.msra.mxu0 0.0
          %3943 = vmatprep.subr.mxu0 0.0
          %3944 = vmatpush1.msra.mxu0 0.0
          %3945 = vmatprep.subr.mxu0 0.0
          %3946 = vmatpush1.msra.mxu0 0.0
          %3947 = vmatprep.subr.mxu0 0.0
          %3948 = vmatpush1.msra.mxu0 0.0
          %3949 = vmatprep.subr.mxu0 0.0
          %3950 = vmatpush1.msra.mxu0 0.0
          %3951 = vmatprep.subr.mxu0 0.0
          %3952 = vmatpush1.msra.mxu0 0.0
          %3953 = vmatprep.subr.mxu0 0.0
          %3954 = vmatpush1.msra.mxu0 0.0
          %3955 = vmatprep.subr.mxu0 0.0
          %3956 = vmatpush1.msra.mxu0 0.0
          %3957 = vmatprep.subr.mxu0 0.0
          %3958 = vmatpush1.msra.mxu0 0.0
          %3959 = vmatprep.subr.mxu0 0.0
          %3960 = vmatpush1.msra.mxu0 0.0
          %3961 = vmatprep.subr.mxu0 0.0
          %3962 = vmatpush1.msra.mxu0 0.0
          %3963 = vmatprep.subr.mxu0 0.0
          %3964 = vmatpush1.msra.mxu0 0.0
          %3965 = vmatprep.subr.mxu0 0.0
          %3966 = vmatpush1.msra.mxu0 0.0
          %3967 = vmatprep.subr.mxu0 0.0
          %3968 = vmatpush1.msra.mxu0 0.0
          %3969 = vmatprep.subr.mxu0 0.0
          %3970 = vmatpush1.msra.mxu0 0.0
          %3971 = vmatprep.subr.mxu0 0.0
          %3972 = vmatpush1.msra.mxu0 0.0
          %3973 = vmatprep.subr.mxu0 0.0
          %3974 = vmatpush1.msra.mxu0 0.0
          %3975 = vmatprep.subr.mxu0 0.0
          %3976 = vmatpush1.msra.mxu0 0.0
          %3977 = vmatprep.subr.mxu0 0.0
          %3978 = vmatpush1.msra.mxu0 0.0
          %3979 = vmatprep.subr.mxu0 0.0
          %3980 = vmatpush1.msra.mxu0 0.0
          %3981 = vmatprep.subr.mxu0 0.0
          %3982 = vmatpush1.msra.mxu0 0.0
          %3983 = vmatprep.subr.mxu0 0.0
          %3984 = vmatpush1.msra.mxu0 0.0
          %3985 = vmatprep.subr.mxu0 0.0
          %3986 = vmatpush1.msra.mxu0 0.0
          %3987 = vmatprep.subr.mxu0 0.0
          %3988 = vmatpush1.msra.mxu0 0.0
          %3989 = vmatprep.subr.mxu0 0.0
          %3990 = vmatpush1.msra.mxu0 0.0
          %3991 = vmatprep.subr.mxu0 0.0
          %3992 = vmatpush1.msra.mxu0 0.0
          %3993 = vmatprep.subr.mxu0 0.0
          %3994 = vmatpush1.msra.mxu0 0.0
          %3995 = vmatprep.subr.mxu0 0.0
          %3996 = vmatpush1.msra.mxu0 0.0
          %3997 = vmatprep.subr.mxu0 0.0
          %3998 = vmatpush1.msra.mxu0 0.0
          %3999 = vmatprep.mubr.f32.mxu0 0.0
          %4000 = vmatmul.mubr.f32.gmra.mrb[0].mxu0 %v3926
          %v4001 = vpop.f32.mrb[0].mxu0
          %v4002 = vadd.f32 0.0, %v4001
          %v4003 = vpop.f32.mrb[0].mxu0
          %4004 = vmatprep.mubr.f32.mxu0 0.0
          %4005 = vmatmul.mubr.f32.gmra.mrb[0].mxu0 %v3929
          %v4006 = vpop.f32.mrb[0].mxu0
          %v4007 = vadd.f32 0.0, %v4006
          %v4008 = vpop.f32.mrb[0].mxu0
          %4009 = vdwg.mxu0
          %v4011 = vsel %vm3924, %v3901, 0
          %v4014 = vsel %vm3924, %v3902, 0
          %4016 = vmatprep.subr.mxu0 0.0
          %4017 = vmatpush1.msra.mxu0 %v3921
          %4018 = vmatprep.subr.mxu0 0.0
          %4019 = vmatpush1.msra.mxu0 %v3922
          %4020 = vmatprep.subr.mxu0 0.0
          %4021 = vmatpush1.msra.mxu0 %v3933
          %4022 = vmatprep.subr.mxu0 0.0
          %4023 = vmatpush1.msra.mxu0 0.0
          %4024 = vmatprep.subr.mxu0 0.0
          %4025 = vmatpush1.msra.mxu0 0.0
          %4026 = vmatprep.subr.mxu0 0.0
          %4027 = vmatpush1.msra.mxu0 0.0
          %4028 = vmatprep.subr.mxu0 0.0
          %4029 = vmatpush1.msra.mxu0 0.0
          %4030 = vmatprep.subr.mxu0 0.0
          %4031 = vmatpush1.msra.mxu0 0.0
          %4032 = vmatprep.subr.mxu0 0.0
          %4033 = vmatpush1.msra.mxu0 0.0
          %4034 = vmatprep.subr.mxu0 0.0
          %4035 = vmatpush1.msra.mxu0 0.0
          %4036 = vmatprep.subr.mxu0 0.0
          %4037 = vmatpush1.msra.mxu0 0.0
          %4038 = vmatprep.subr.mxu0 0.0
          %4039 = vmatpush1.msra.mxu0 0.0
          %4040 = vmatprep.subr.mxu0 0.0
          %4041 = vmatpush1.msra.mxu0 0.0
          %4042 = vmatprep.subr.mxu0 0.0
          %4043 = vmatpush1.msra.mxu0 0.0
          %4044 = vmatprep.subr.mxu0 0.0
          %4045 = vmatpush1.msra.mxu0 0.0
          %4046 = vmatprep.subr.mxu0 0.0
          %4047 = vmatpush1.msra.mxu0 0.0
          %4048 = vmatprep.subr.mxu0 0.0
          %4049 = vmatpush1.msra.mxu0 0.0
          %4050 = vmatprep.subr.mxu0 0.0
          %4051 = vmatpush1.msra.mxu0 0.0
          %4052 = vmatprep.subr.mxu0 0.0
          %4053 = vmatpush1.msra.mxu0 0.0
          %4054 = vmatprep.subr.mxu0 0.0
          %4055 = vmatpush1.msra.mxu0 0.0
          %4056 = vmatprep.subr.mxu0 0.0
          %4057 = vmatpush1.msra.mxu0 0.0
          %4058 = vmatprep.subr.mxu0 0.0
          %4059 = vmatpush1.msra.mxu0 0.0
          %4060 = vmatprep.subr.mxu0 0.0
          %4061 = vmatpush1.msra.mxu0 0.0
          %4062 = vmatprep.subr.mxu0 0.0
          %4063 = vmatpush1.msra.mxu0 0.0
          %4064 = vmatprep.subr.mxu0 0.0
          %4065 = vmatpush1.msra.mxu0 0.0
          %4066 = vmatprep.subr.mxu0 0.0
          %4067 = vmatpush1.msra.mxu0 0.0
          %4068 = vmatprep.subr.mxu0 0.0
          %4069 = vmatpush1.msra.mxu0 0.0
          %4070 = vmatprep.subr.mxu0 0.0
          %4071 = vmatpush1.msra.mxu0 0.0
          %4072 = vmatprep.subr.mxu0 0.0
          %4073 = vmatpush1.msra.mxu0 0.0
          %4074 = vmatprep.subr.mxu0 0.0
          %4075 = vmatpush1.msra.mxu0 0.0
          %4076 = vmatprep.subr.mxu0 0.0
          %4077 = vmatpush1.msra.mxu0 0.0
          %4078 = vmatprep.subr.mxu0 0.0
          %4079 = vmatpush1.msra.mxu0 0.0
          %4080 = vmatprep.mubr.f32.mxu0 0.0
          %4081 = vmatmul.mubr.f32.gmra.mrb[0].mxu0 %v4011
          %v4082 = vpop.f32.mrb[0].mxu0
          %v4083 = vadd.f32 0.0, %v4082
          %v4084 = vpop.f32.mrb[0].mxu0
          %4085 = vmatprep.mubr.f32.mxu0 0.0
          %4086 = vmatmul.mubr.f32.gmra.mrb[0].mxu0 %v4014
          %v4087 = vpop.f32.mrb[0].mxu0
          %v4088 = vadd.f32 0.0, %v4087
          %v4089 = vpop.f32.mrb[0].mxu0
          %4090 = vdwg.mxu0
          %v4091 = vmax.f32 %v4002, %v4083
          %v4092 = vmax.f32 %v4007, %v4088
          %s4093 = smul.u32 %s3904, 16
          %s4094 = scalar_lea.vmem [#allocation4], %s4093
          %vm4095 = vcmask 261120
          %4096 = vst.msk [vmem:[%s4094] sm:$0xff] %vm4095, %v4091
          %vm4097 = vcmask 254976
          %4098 = vst.msk [vmem:[%s4094 + $0x8] sm:$0x3] %vm4097, %v4092
        $region99: #{cnn_forward.1} parent=79 // loop_footer
          %s3908 = sadd.s32 1, %s3904
        $region100: #{cnn_forward.1} parent=79 // loop_footer_branch
          %3903 = sbr.rel target = $region96
        $region101: #{cnn_forward.1} parent=79 // loop_exit
          _
        %vm4099 = vcmask 523264
        %4100 = vst.msk [vmem:[#allocation5] sm:$0xff] %vm4099, 0.0
        %vm4101 = vcmask 517120
        %4102 = vst.msk [vmem:[#allocation5 + $0x8] sm:$0x3] %vm4101, 0.0
        %4103 = vst.msk [vmem:[#allocation5 + $0x10] sm:$0xff] %vm4099, 0.0
        %4104 = vst.msk [vmem:[#allocation5 + $0x18] sm:$0x3] %vm4101, 0.0
        %4105 = vst.msk [vmem:[#allocation5 + $0x20] sm:$0xff] %vm4099, 0.0
        %4106 = vst.msk [vmem:[#allocation5 + $0x28] sm:$0x3] %vm4101, 0.0
        %4107 = vst.msk [vmem:[#allocation5 + $0x30] sm:$0xff] %vm4099, 0.0
        %4108 = vst.msk [vmem:[#allocation5 + $0x38] sm:$0x3] %vm4101, 0.0
        %4109 = vst.msk [vmem:[#allocation5 + $0x40] sm:$0xff] %vm4099, 0.0
        %4110 = vst.msk [vmem:[#allocation5 + $0x48] sm:$0x3] %vm4101, 0.0
        %4111 = vst.msk [vmem:[#allocation5 + $0x50] sm:$0xff] %vm4099, 0.0
        %4112 = vst.msk [vmem:[#allocation5 + $0x58] sm:$0x3] %vm4101, 0.0
        %4113 = vst.msk [vmem:[#allocation5 + $0x60] sm:$0xff] %vm4099, 0.0
        %4114 = vst.msk [vmem:[#allocation5 + $0x68] sm:$0x3] %vm4101, 0.0
        %4115 = vst.msk [vmem:[#allocation5 + $0x70] sm:$0xff] %vm4099, 0.0
        %4116 = vst.msk [vmem:[#allocation5 + $0x78] sm:$0x3] %vm4101, 0.0
        %4117 = vst.msk [vmem:[#allocation5 + $0x80] sm:$0xff] %vm4099, 0.0
        %4118 = vst.msk [vmem:[#allocation5 + $0x88] sm:$0x3] %vm4101, 0.0
        %4119 = vst.msk [vmem:[#allocation5 + $0x90] sm:$0xff] %vm4099, 0.0
        %4120 = vst.msk [vmem:[#allocation5 + $0x98] sm:$0x3] %vm4101, 0.0
        %v4121 = vld [vmem:[%s8] sm:$0x1]
        %v4122 = vld [vmem:[%s9] sm:$0x1]
        loop: start=0, step=1, limit=8
        $region102: #{cnn_forward.1} parent=79 // loop_pre_header
          _
        $region103: #{cnn_forward.1} parent=79 // loop_header
          %s4124 = sphi 0, %s4128
          %p4125 = scmp.ge.s32.totalorder %s4124, 8
        $region104: #{cnn_forward.1} parent=79 // loop_header_branch
          %4127 = sbr.rel (%p4125) target = $region108
        $region105: #{cnn_forward.1} parent=79 // loop_body
          %s4129 = smul.u32 %s4124, 16
          %s4130 = scalar_lea.vmem [#allocation4], %s4129
          %v4131 = vld [vmem:[%s4130] sm:$0xff]
          %v4132 = vld [vmem:[%s7] sm:$0xff]
          %v4133 = vld [vmem:[%s7 + $0x8] sm:$0xff]
          %v4134 = vld [vmem:[%s7 + $0x10] sm:$0xff]
          %v4135 = vld [vmem:[%s7 + $0x18] sm:$0xff]
          %v4136 = vld [vmem:[%s4130 + $0x1] sm:$0xff]
          %s4137 = scalar_lea.vmem %s7, 32
          %v4138 = vld [vmem:[%s4137] sm:$0xff]
          %v4139 = vld [vmem:[%s4137 + $0x8] sm:$0xff]
          %v4140 = vld [vmem:[%s4137 + $0x10] sm:$0xff]
          %v4141 = vld [vmem:[%s4137 + $0x18] sm:$0xff]
          %vm4142 = vcmask 261120
          %v4144 = vsel %vm4142, %v4136, 0
          %4146 = vmatprep.subr.mxu0 0.0
          %4147 = vmatpush1.msra.mxu0 %v4138
          %4148 = vmatprep.subr.mxu0 0.0
          %4149 = vmatpush1.msra.mxu0 %v4139
          %4150 = vmatprep.subr.mxu0 0.0
          %4151 = vmatpush1.msra.mxu0 %v4140
          %4152 = vmatprep.subr.mxu0 0.0
          %4153 = vmatpush1.msra.mxu0 %v4141
          %4154 = vmatprep.subr.mxu0 0.0
          %4155 = vmatpush1.msra.mxu0 0.0
          %4156 = vmatprep.subr.mxu0 0.0
          %4157 = vmatpush1.msra.mxu0 0.0
          %4158 = vmatprep.subr.mxu0 0.0
          %4159 = vmatpush1.msra.mxu0 0.0
          %4160 = vmatprep.subr.mxu0 0.0
          %4161 = vmatpush1.msra.mxu0 0.0
          %4162 = vmatprep.subr.mxu0 0.0
          %4163 = vmatpush1.msra.mxu0 0.0
          %4164 = vmatprep.subr.mxu0 0.0
          %4165 = vmatpush1.msra.mxu0 0.0
          %4166 = vmatprep.subr.mxu0 0.0
          %4167 = vmatpush1.msra.mxu0 0.0
          %4168 = vmatprep.subr.mxu0 0.0
          %4169 = vmatpush1.msra.mxu0 0.0
          %4170 = vmatprep.subr.mxu0 0.0
          %4171 = vmatpush1.msra.mxu0 0.0
          %4172 = vmatprep.subr.mxu0 0.0
          %4173 = vmatpush1.msra.mxu0 0.0
          %4174 = vmatprep.subr.mxu0 0.0
          %4175 = vmatpush1.msra.mxu0 0.0
          %4176 = vmatprep.subr.mxu0 0.0
          %4177 = vmatpush1.msra.mxu0 0.0
          %4178 = vmatprep.subr.mxu0 0.0
          %4179 = vmatpush1.msra.mxu0 0.0
          %4180 = vmatprep.subr.mxu0 0.0
          %4181 = vmatpush1.msra.mxu0 0.0
          %4182 = vmatprep.subr.mxu0 0.0
          %4183 = vmatpush1.msra.mxu0 0.0
          %4184 = vmatprep.subr.mxu0 0.0
          %4185 = vmatpush1.msra.mxu0 0.0
          %4186 = vmatprep.subr.mxu0 0.0
          %4187 = vmatpush1.msra.mxu0 0.0
          %4188 = vmatprep.subr.mxu0 0.0
          %4189 = vmatpush1.msra.mxu0 0.0
          %4190 = vmatprep.subr.mxu0 0.0
          %4191 = vmatpush1.msra.mxu0 0.0
          %4192 = vmatprep.subr.mxu0 0.0
          %4193 = vmatpush1.msra.mxu0 0.0
          %4194 = vmatprep.subr.mxu0 0.0
          %4195 = vmatpush1.msra.mxu0 0.0
          %4196 = vmatprep.subr.mxu0 0.0
          %4197 = vmatpush1.msra.mxu0 0.0
          %4198 = vmatprep.subr.mxu0 0.0
          %4199 = vmatpush1.msra.mxu0 0.0
          %4200 = vmatprep.subr.mxu0 0.0
          %4201 = vmatpush1.msra.mxu0 0.0
          %4202 = vmatprep.subr.mxu0 0.0
          %4203 = vmatpush1.msra.mxu0 0.0
          %4204 = vmatprep.subr.mxu0 0.0
          %4205 = vmatpush1.msra.mxu0 0.0
          %4206 = vmatprep.subr.mxu0 0.0
          %4207 = vmatpush1.msra.mxu0 0.0
          %4208 = vmatprep.subr.mxu0 0.0
          %4209 = vmatpush1.msra.mxu0 0.0
          %4210 = vmatprep.mubr.f32.mxu0 0.0
          %4211 = vmatmul.mubr.f32.gmra.mrb[0].mxu0 %v4144
          %v4212 = vpop.f32.mrb[0].mxu0
          %v4213 = vadd.f32 0.0, %v4212
          %v4214 = vpop.f32.mrb[0].mxu0
          %4215 = vdwg.mxu0
          %v4217 = vsel %vm4142, %v4131, 0
          %4219 = vmatprep.subr.mxu0 0.0
          %4220 = vmatpush1.msra.mxu0 %v4132
          %4221 = vmatprep.subr.mxu0 0.0
          %4222 = vmatpush1.msra.mxu0 %v4133
          %4223 = vmatprep.subr.mxu0 0.0
          %4224 = vmatpush1.msra.mxu0 %v4134
          %4225 = vmatprep.subr.mxu0 0.0
          %4226 = vmatpush1.msra.mxu0 %v4135
          %4227 = vmatprep.subr.mxu0 0.0
          %4228 = vmatpush1.msra.mxu0 0.0
          %4229 = vmatprep.subr.mxu0 0.0
          %4230 = vmatpush1.msra.mxu0 0.0
          %4231 = vmatprep.subr.mxu0 0.0
          %4232 = vmatpush1.msra.mxu0 0.0
          %4233 = vmatprep.subr.mxu0 0.0
          %4234 = vmatpush1.msra.mxu0 0.0
          %4235 = vmatprep.subr.mxu0 0.0
          %4236 = vmatpush1.msra.mxu0 0.0
          %4237 = vmatprep.subr.mxu0 0.0
          %4238 = vmatpush1.msra.mxu0 0.0
          %4239 = vmatprep.subr.mxu0 0.0
          %4240 = vmatpush1.msra.mxu0 0.0
          %4241 = vmatprep.subr.mxu0 0.0
          %4242 = vmatpush1.msra.mxu0 0.0
          %4243 = vmatprep.subr.mxu0 0.0
          %4244 = vmatpush1.msra.mxu0 0.0
          %4245 = vmatprep.subr.mxu0 0.0
          %4246 = vmatpush1.msra.mxu0 0.0
          %4247 = vmatprep.subr.mxu0 0.0
          %4248 = vmatpush1.msra.mxu0 0.0
          %4249 = vmatprep.subr.mxu0 0.0
          %4250 = vmatpush1.msra.mxu0 0.0
          %4251 = vmatprep.subr.mxu0 0.0
          %4252 = vmatpush1.msra.mxu0 0.0
          %4253 = vmatprep.subr.mxu0 0.0
          %4254 = vmatpush1.msra.mxu0 0.0
          %4255 = vmatprep.subr.mxu0 0.0
          %4256 = vmatpush1.msra.mxu0 0.0
          %4257 = vmatprep.subr.mxu0 0.0
          %4258 = vmatpush1.msra.mxu0 0.0
          %4259 = vmatprep.subr.mxu0 0.0
          %4260 = vmatpush1.msra.mxu0 0.0
          %4261 = vmatprep.subr.mxu0 0.0
          %4262 = vmatpush1.msra.mxu0 0.0
          %4263 = vmatprep.subr.mxu0 0.0
          %4264 = vmatpush1.msra.mxu0 0.0
          %4265 = vmatprep.subr.mxu0 0.0
          %4266 = vmatpush1.msra.mxu0 0.0
          %4267 = vmatprep.subr.mxu0 0.0
          %4268 = vmatpush1.msra.mxu0 0.0
          %4269 = vmatprep.subr.mxu0 0.0
          %4270 = vmatpush1.msra.mxu0 0.0
          %4271 = vmatprep.subr.mxu0 0.0
          %4272 = vmatpush1.msra.mxu0 0.0
          %4273 = vmatprep.subr.mxu0 0.0
          %4274 = vmatpush1.msra.mxu0 0.0
          %4275 = vmatprep.subr.mxu0 0.0
          %4276 = vmatpush1.msra.mxu0 0.0
          %4277 = vmatprep.subr.mxu0 0.0
          %4278 = vmatpush1.msra.mxu0 0.0
          %4279 = vmatprep.subr.mxu0 0.0
          %4280 = vmatpush1.msra.mxu0 0.0
          %4281 = vmatprep.subr.mxu0 0.0
          %4282 = vmatpush1.msra.mxu0 0.0
          %4283 = vmatprep.mubr.f32.mxu0 0.0
          %4284 = vmatmul.mubr.f32.gmra.mrb[0].mxu0 %v4217
          %v4285 = vpop.f32.mrb[0].mxu0
          %v4286 = vadd.f32 %v4213, %v4285
          %v4287 = vpop.f32.mrb[0].mxu0
          %4288 = vdwg.mxu0
          %v4289 = vld [vmem:[%s4130 + $0x2] sm:$0xff]
          %s4290 = scalar_lea.vmem %s7, 64
          %v4291 = vld [vmem:[%s4290] sm:$0xff]
          %v4292 = vld [vmem:[%s4290 + $0x8] sm:$0xff]
          %v4293 = vld [vmem:[%s4290 + $0x10] sm:$0xff]
          %v4294 = vld [vmem:[%s4290 + $0x18] sm:$0xff]
          %v4296 = vsel %vm4142, %v4289, 0
          %4298 = vmatprep.subr.mxu0 0.0
          %4299 = vmatpush1.msra.mxu0 %v4291
          %4300 = vmatprep.subr.mxu0 0.0
          %4301 = vmatpush1.msra.mxu0 %v4292
          %4302 = vmatprep.subr.mxu0 0.0
          %4303 = vmatpush1.msra.mxu0 %v4293
          %4304 = vmatprep.subr.mxu0 0.0
          %4305 = vmatpush1.msra.mxu0 %v4294
          %4306 = vmatprep.subr.mxu0 0.0
          %4307 = vmatpush1.msra.mxu0 0.0
          %4308 = vmatprep.subr.mxu0 0.0
          %4309 = vmatpush1.msra.mxu0 0.0
          %4310 = vmatprep.subr.mxu0 0.0
          %4311 = vmatpush1.msra.mxu0 0.0
          %4312 = vmatprep.subr.mxu0 0.0
          %4313 = vmatpush1.msra.mxu0 0.0
          %4314 = vmatprep.subr.mxu0 0.0
          %4315 = vmatpush1.msra.mxu0 0.0
          %4316 = vmatprep.subr.mxu0 0.0
          %4317 = vmatpush1.msra.mxu0 0.0
          %4318 = vmatprep.subr.mxu0 0.0
          %4319 = vmatpush1.msra.mxu0 0.0
          %4320 = vmatprep.subr.mxu0 0.0
          %4321 = vmatpush1.msra.mxu0 0.0
          %4322 = vmatprep.subr.mxu0 0.0
          %4323 = vmatpush1.msra.mxu0 0.0
          %4324 = vmatprep.subr.mxu0 0.0
          %4325 = vmatpush1.msra.mxu0 0.0
          %4326 = vmatprep.subr.mxu0 0.0
          %4327 = vmatpush1.msra.mxu0 0.0
          %4328 = vmatprep.subr.mxu0 0.0
          %4329 = vmatpush1.msra.mxu0 0.0
          %4330 = vmatprep.subr.mxu0 0.0
          %4331 = vmatpush1.msra.mxu0 0.0
          %4332 = vmatprep.subr.mxu0 0.0
          %4333 = vmatpush1.msra.mxu0 0.0
          %4334 = vmatprep.subr.mxu0 0.0
          %4335 = vmatpush1.msra.mxu0 0.0
          %4336 = vmatprep.subr.mxu0 0.0
          %4337 = vmatpush1.msra.mxu0 0.0
          %4338 = vmatprep.subr.mxu0 0.0
          %4339 = vmatpush1.msra.mxu0 0.0
          %4340 = vmatprep.subr.mxu0 0.0
          %4341 = vmatpush1.msra.mxu0 0.0
          %4342 = vmatprep.subr.mxu0 0.0
          %4343 = vmatpush1.msra.mxu0 0.0
          %4344 = vmatprep.subr.mxu0 0.0
          %4345 = vmatpush1.msra.mxu0 0.0
          %4346 = vmatprep.subr.mxu0 0.0
          %4347 = vmatpush1.msra.mxu0 0.0
          %4348 = vmatprep.subr.mxu0 0.0
          %4349 = vmatpush1.msra.mxu0 0.0
          %4350 = vmatprep.subr.mxu0 0.0
          %4351 = vmatpush1.msra.mxu0 0.0
          %4352 = vmatprep.subr.mxu0 0.0
          %4353 = vmatpush1.msra.mxu0 0.0
          %4354 = vmatprep.subr.mxu0 0.0
          %4355 = vmatpush1.msra.mxu0 0.0
          %4356 = vmatprep.subr.mxu0 0.0
          %4357 = vmatpush1.msra.mxu0 0.0
          %4358 = vmatprep.subr.mxu0 0.0
          %4359 = vmatpush1.msra.mxu0 0.0
          %4360 = vmatprep.subr.mxu0 0.0
          %4361 = vmatpush1.msra.mxu0 0.0
          %4362 = vmatprep.mubr.f32.mxu0 0.0
          %4363 = vmatmul.mubr.f32.gmra.mrb[0].mxu0 %v4296
          %v4364 = vpop.f32.mrb[0].mxu0
          %v4365 = vadd.f32 0.0, %v4364
          %v4366 = vpop.f32.mrb[0].mxu0
          %4367 = vdwg.mxu0
          %v4368 = vadd.f32 %v4286, %v4365
          %s4369 = sadd.s32 %s4124, 1
          %s4370 = smul.u32 %s4369, 16
          %s4371 = scalar_lea.vmem [#allocation4], %s4370
          %v4372 = vld [vmem:[%s4371] sm:$0xff]
          %s4373 = scalar_lea.vmem %s7, 96
          %v4374 = vld [vmem:[%s4373] sm:$0xff]
          %v4375 = vld [vmem:[%s4373 + $0x8] sm:$0xff]
          %v4376 = vld [vmem:[%s4373 + $0x10] sm:$0xff]
          %v4377 = vld [vmem:[%s4373 + $0x18] sm:$0xff]
          %v4379 = vsel %vm4142, %v4372, 0
          %4381 = vmatprep.subr.mxu0 0.0
          %4382 = vmatpush1.msra.mxu0 %v4374
          %4383 = vmatprep.subr.mxu0 0.0
          %4384 = vmatpush1.msra.mxu0 %v4375
          %4385 = vmatprep.subr.mxu0 0.0
          %4386 = vmatpush1.msra.mxu0 %v4376
          %4387 = vmatprep.subr.mxu0 0.0
          %4388 = vmatpush1.msra.mxu0 %v4377
          %4389 = vmatprep.subr.mxu0 0.0
          %4390 = vmatpush1.msra.mxu0 0.0
          %4391 = vmatprep.subr.mxu0 0.0
          %4392 = vmatpush1.msra.mxu0 0.0
          %4393 = vmatprep.subr.mxu0 0.0
          %4394 = vmatpush1.msra.mxu0 0.0
          %4395 = vmatprep.subr.mxu0 0.0
          %4396 = vmatpush1.msra.mxu0 0.0
          %4397 = vmatprep.subr.mxu0 0.0
          %4398 = vmatpush1.msra.mxu0 0.0
          %4399 = vmatprep.subr.mxu0 0.0
          %4400 = vmatpush1.msra.mxu0 0.0
          %4401 = vmatprep.subr.mxu0 0.0
          %4402 = vmatpush1.msra.mxu0 0.0
          %4403 = vmatprep.subr.mxu0 0.0
          %4404 = vmatpush1.msra.mxu0 0.0
          %4405 = vmatprep.subr.mxu0 0.0
          %4406 = vmatpush1.msra.mxu0 0.0
          %4407 = vmatprep.subr.mxu0 0.0
          %4408 = vmatpush1.msra.mxu0 0.0
          %4409 = vmatprep.subr.mxu0 0.0
          %4410 = vmatpush1.msra.mxu0 0.0
          %4411 = vmatprep.subr.mxu0 0.0
          %4412 = vmatpush1.msra.mxu0 0.0
          %4413 = vmatprep.subr.mxu0 0.0
          %4414 = vmatpush1.msra.mxu0 0.0
          %4415 = vmatprep.subr.mxu0 0.0
          %4416 = vmatpush1.msra.mxu0 0.0
          %4417 = vmatprep.subr.mxu0 0.0
          %4418 = vmatpush1.msra.mxu0 0.0
          %4419 = vmatprep.subr.mxu0 0.0
          %4420 = vmatpush1.msra.mxu0 0.0
          %4421 = vmatprep.subr.mxu0 0.0
          %4422 = vmatpush1.msra.mxu0 0.0
          %4423 = vmatprep.subr.mxu0 0.0
          %4424 = vmatpush1.msra.mxu0 0.0
          %4425 = vmatprep.subr.mxu0 0.0
          %4426 = vmatpush1.msra.mxu0 0.0
          %4427 = vmatprep.subr.mxu0 0.0
          %4428 = vmatpush1.msra.mxu0 0.0
          %4429 = vmatprep.subr.mxu0 0.0
          %4430 = vmatpush1.msra.mxu0 0.0
          %4431 = vmatprep.subr.mxu0 0.0
          %4432 = vmatpush1.msra.mxu0 0.0
          %4433 = vmatprep.subr.mxu0 0.0
          %4434 = vmatpush1.msra.mxu0 0.0
          %4435 = vmatprep.subr.mxu0 0.0
          %4436 = vmatpush1.msra.mxu0 0.0
          %4437 = vmatprep.subr.mxu0 0.0
          %4438 = vmatpush1.msra.mxu0 0.0
          %4439 = vmatprep.subr.mxu0 0.0
          %4440 = vmatpush1.msra.mxu0 0.0
          %4441 = vmatprep.subr.mxu0 0.0
          %4442 = vmatpush1.msra.mxu0 0.0
          %4443 = vmatprep.subr.mxu0 0.0
          %4444 = vmatpush1.msra.mxu0 0.0
          %4445 = vmatprep.mubr.f32.mxu0 0.0
          %4446 = vmatmul.mubr.f32.gmra.mrb[0].mxu0 %v4379
          %v4447 = vpop.f32.mrb[0].mxu0
          %v4448 = vadd.f32 0.0, %v4447
          %v4449 = vpop.f32.mrb[0].mxu0
          %4450 = vdwg.mxu0
          %v4451 = vadd.f32 %v4368, %v4448
          %v4452 = vld [vmem:[%s4371 + $0x1] sm:$0xff]
          %s4453 = scalar_lea.vmem %s7, 128
          %v4454 = vld [vmem:[%s4453] sm:$0xff]
          %v4455 = vld [vmem:[%s4453 + $0x8] sm:$0xff]
          %v4456 = vld [vmem:[%s4453 + $0x10] sm:$0xff]
          %v4457 = vld [vmem:[%s4453 + $0x18] sm:$0xff]
          %v4459 = vsel %vm4142, %v4452, 0
          %4461 = vmatprep.subr.mxu0 0.0
          %4462 = vmatpush1.msra.mxu0 %v4454
          %4463 = vmatprep.subr.mxu0 0.0
          %4464 = vmatpush1.msra.mxu0 %v4455
          %4465 = vmatprep.subr.mxu0 0.0
          %4466 = vmatpush1.msra.mxu0 %v4456
          %4467 = vmatprep.subr.mxu0 0.0
          %4468 = vmatpush1.msra.mxu0 %v4457
          %4469 = vmatprep.subr.mxu0 0.0
          %4470 = vmatpush1.msra.mxu0 0.0
          %4471 = vmatprep.subr.mxu0 0.0
          %4472 = vmatpush1.msra.mxu0 0.0
          %4473 = vmatprep.subr.mxu0 0.0
          %4474 = vmatpush1.msra.mxu0 0.0
          %4475 = vmatprep.subr.mxu0 0.0
          %4476 = vmatpush1.msra.mxu0 0.0
          %4477 = vmatprep.subr.mxu0 0.0
          %4478 = vmatpush1.msra.mxu0 0.0
          %4479 = vmatprep.subr.mxu0 0.0
          %4480 = vmatpush1.msra.mxu0 0.0
          %4481 = vmatprep.subr.mxu0 0.0
          %4482 = vmatpush1.msra.mxu0 0.0
          %4483 = vmatprep.subr.mxu0 0.0
          %4484 = vmatpush1.msra.mxu0 0.0
          %4485 = vmatprep.subr.mxu0 0.0
          %4486 = vmatpush1.msra.mxu0 0.0
          %4487 = vmatprep.subr.mxu0 0.0
          %4488 = vmatpush1.msra.mxu0 0.0
          %4489 = vmatprep.subr.mxu0 0.0
          %4490 = vmatpush1.msra.mxu0 0.0
          %4491 = vmatprep.subr.mxu0 0.0
          %4492 = vmatpush1.msra.mxu0 0.0
          %4493 = vmatprep.subr.mxu0 0.0
          %4494 = vmatpush1.msra.mxu0 0.0
          %4495 = vmatprep.subr.mxu0 0.0
          %4496 = vmatpush1.msra.mxu0 0.0
          %4497 = vmatprep.subr.mxu0 0.0
          %4498 = vmatpush1.msra.mxu0 0.0
          %4499 = vmatprep.subr.mxu0 0.0
          %4500 = vmatpush1.msra.mxu0 0.0
          %4501 = vmatprep.subr.mxu0 0.0
          %4502 = vmatpush1.msra.mxu0 0.0
          %4503 = vmatprep.subr.mxu0 0.0
          %4504 = vmatpush1.msra.mxu0 0.0
          %4505 = vmatprep.subr.mxu0 0.0
          %4506 = vmatpush1.msra.mxu0 0.0
          %4507 = vmatprep.subr.mxu0 0.0
          %4508 = vmatpush1.msra.mxu0 0.0
          %4509 = vmatprep.subr.mxu0 0.0
          %4510 = vmatpush1.msra.mxu0 0.0
          %4511 = vmatprep.subr.mxu0 0.0
          %4512 = vmatpush1.msra.mxu0 0.0
          %4513 = vmatprep.subr.mxu0 0.0
          %4514 = vmatpush1.msra.mxu0 0.0
          %4515 = vmatprep.subr.mxu0 0.0
          %4516 = vmatpush1.msra.mxu0 0.0
          %4517 = vmatprep.subr.mxu0 0.0
          %4518 = vmatpush1.msra.mxu0 0.0
          %4519 = vmatprep.subr.mxu0 0.0
          %4520 = vmatpush1.msra.mxu0 0.0
          %4521 = vmatprep.subr.mxu0 0.0
          %4522 = vmatpush1.msra.mxu0 0.0
          %4523 = vmatprep.subr.mxu0 0.0
          %4524 = vmatpush1.msra.mxu0 0.0
          %4525 = vmatprep.mubr.f32.mxu0 0.0
          %4526 = vmatmul.mubr.f32.gmra.mrb[0].mxu0 %v4459
          %v4527 = vpop.f32.mrb[0].mxu0
          %v4528 = vadd.f32 0.0, %v4527
          %v4529 = vpop.f32.mrb[0].mxu0
          %4530 = vdwg.mxu0
          %v4531 = vadd.f32 %v4451, %v4528
          %v4532 = vld [vmem:[%s4371 + $0x2] sm:$0xff]
          %s4533 = scalar_lea.vmem %s7, 160
          %v4534 = vld [vmem:[%s4533] sm:$0xff]
          %v4535 = vld [vmem:[%s4533 + $0x8] sm:$0xff]
          %v4536 = vld [vmem:[%s4533 + $0x10] sm:$0xff]
          %v4537 = vld [vmem:[%s4533 + $0x18] sm:$0xff]
          %v4539 = vsel %vm4142, %v4532, 0
          %4541 = vmatprep.subr.mxu0 0.0
          %4542 = vmatpush1.msra.mxu0 %v4534
          %4543 = vmatprep.subr.mxu0 0.0
          %4544 = vmatpush1.msra.mxu0 %v4535
          %4545 = vmatprep.subr.mxu0 0.0
          %4546 = vmatpush1.msra.mxu0 %v4536
          %4547 = vmatprep.subr.mxu0 0.0
          %4548 = vmatpush1.msra.mxu0 %v4537
          %4549 = vmatprep.subr.mxu0 0.0
          %4550 = vmatpush1.msra.mxu0 0.0
          %4551 = vmatprep.subr.mxu0 0.0
          %4552 = vmatpush1.msra.mxu0 0.0
          %4553 = vmatprep.subr.mxu0 0.0
          %4554 = vmatpush1.msra.mxu0 0.0
          %4555 = vmatprep.subr.mxu0 0.0
          %4556 = vmatpush1.msra.mxu0 0.0
          %4557 = vmatprep.subr.mxu0 0.0
          %4558 = vmatpush1.msra.mxu0 0.0
          %4559 = vmatprep.subr.mxu0 0.0
          %4560 = vmatpush1.msra.mxu0 0.0
          %4561 = vmatprep.subr.mxu0 0.0
          %4562 = vmatpush1.msra.mxu0 0.0
          %4563 = vmatprep.subr.mxu0 0.0
          %4564 = vmatpush1.msra.mxu0 0.0
          %4565 = vmatprep.subr.mxu0 0.0
          %4566 = vmatpush1.msra.mxu0 0.0
          %4567 = vmatprep.subr.mxu0 0.0
          %4568 = vmatpush1.msra.mxu0 0.0
          %4569 = vmatprep.subr.mxu0 0.0
          %4570 = vmatpush1.msra.mxu0 0.0
          %4571 = vmatprep.subr.mxu0 0.0
          %4572 = vmatpush1.msra.mxu0 0.0
          %4573 = vmatprep.subr.mxu0 0.0
          %4574 = vmatpush1.msra.mxu0 0.0
          %4575 = vmatprep.subr.mxu0 0.0
          %4576 = vmatpush1.msra.mxu0 0.0
          %4577 = vmatprep.subr.mxu0 0.0
          %4578 = vmatpush1.msra.mxu0 0.0
          %4579 = vmatprep.subr.mxu0 0.0
          %4580 = vmatpush1.msra.mxu0 0.0
          %4581 = vmatprep.subr.mxu0 0.0
          %4582 = vmatpush1.msra.mxu0 0.0
          %4583 = vmatprep.subr.mxu0 0.0
          %4584 = vmatpush1.msra.mxu0 0.0
          %4585 = vmatprep.subr.mxu0 0.0
          %4586 = vmatpush1.msra.mxu0 0.0
          %4587 = vmatprep.subr.mxu0 0.0
          %4588 = vmatpush1.msra.mxu0 0.0
          %4589 = vmatprep.subr.mxu0 0.0
          %4590 = vmatpush1.msra.mxu0 0.0
          %4591 = vmatprep.subr.mxu0 0.0
          %4592 = vmatpush1.msra.mxu0 0.0
          %4593 = vmatprep.subr.mxu0 0.0
          %4594 = vmatpush1.msra.mxu0 0.0
          %4595 = vmatprep.subr.mxu0 0.0
          %4596 = vmatpush1.msra.mxu0 0.0
          %4597 = vmatprep.subr.mxu0 0.0
          %4598 = vmatpush1.msra.mxu0 0.0
          %4599 = vmatprep.subr.mxu0 0.0
          %4600 = vmatpush1.msra.mxu0 0.0
          %4601 = vmatprep.subr.mxu0 0.0
          %4602 = vmatpush1.msra.mxu0 0.0
          %4603 = vmatprep.subr.mxu0 0.0
          %4604 = vmatpush1.msra.mxu0 0.0
          %4605 = vmatprep.mubr.f32.mxu0 0.0
          %4606 = vmatmul.mubr.f32.gmra.mrb[0].mxu0 %v4539
          %v4607 = vpop.f32.mrb[0].mxu0
          %v4608 = vadd.f32 0.0, %v4607
          %v4609 = vpop.f32.mrb[0].mxu0
          %4610 = vdwg.mxu0
          %v4611 = vadd.f32 %v4531, %v4608
          %s4612 = sadd.s32 %s4124, 2
          %s4613 = smul.u32 %s4612, 16
          %s4614 = scalar_lea.vmem [#allocation4], %s4613
          %v4615 = vld [vmem:[%s4614] sm:$0xff]
          %s4616 = scalar_lea.vmem %s7, 192
          %v4617 = vld [vmem:[%s4616] sm:$0xff]
          %v4618 = vld [vmem:[%s4616 + $0x8] sm:$0xff]
          %v4619 = vld [vmem:[%s4616 + $0x10] sm:$0xff]
          %v4620 = vld [vmem:[%s4616 + $0x18] sm:$0xff]
          %v4622 = vsel %vm4142, %v4615, 0
          %4624 = vmatprep.subr.mxu0 0.0
          %4625 = vmatpush1.msra.mxu0 %v4617
          %4626 = vmatprep.subr.mxu0 0.0
          %4627 = vmatpush1.msra.mxu0 %v4618
          %4628 = vmatprep.subr.mxu0 0.0
          %4629 = vmatpush1.msra.mxu0 %v4619
          %4630 = vmatprep.subr.mxu0 0.0
          %4631 = vmatpush1.msra.mxu0 %v4620
          %4632 = vmatprep.subr.mxu0 0.0
          %4633 = vmatpush1.msra.mxu0 0.0
          %4634 = vmatprep.subr.mxu0 0.0
          %4635 = vmatpush1.msra.mxu0 0.0
          %4636 = vmatprep.subr.mxu0 0.0
          %4637 = vmatpush1.msra.mxu0 0.0
          %4638 = vmatprep.subr.mxu0 0.0
          %4639 = vmatpush1.msra.mxu0 0.0
          %4640 = vmatprep.subr.mxu0 0.0
          %4641 = vmatpush1.msra.mxu0 0.0
          %4642 = vmatprep.subr.mxu0 0.0
          %4643 = vmatpush1.msra.mxu0 0.0
          %4644 = vmatprep.subr.mxu0 0.0
          %4645 = vmatpush1.msra.mxu0 0.0
          %4646 = vmatprep.subr.mxu0 0.0
          %4647 = vmatpush1.msra.mxu0 0.0
          %4648 = vmatprep.subr.mxu0 0.0
          %4649 = vmatpush1.msra.mxu0 0.0
          %4650 = vmatprep.subr.mxu0 0.0
          %4651 = vmatpush1.msra.mxu0 0.0
          %4652 = vmatprep.subr.mxu0 0.0
          %4653 = vmatpush1.msra.mxu0 0.0
          %4654 = vmatprep.subr.mxu0 0.0
          %4655 = vmatpush1.msra.mxu0 0.0
          %4656 = vmatprep.subr.mxu0 0.0
          %4657 = vmatpush1.msra.mxu0 0.0
          %4658 = vmatprep.subr.mxu0 0.0
          %4659 = vmatpush1.msra.mxu0 0.0
          %4660 = vmatprep.subr.mxu0 0.0
          %4661 = vmatpush1.msra.mxu0 0.0
          %4662 = vmatprep.subr.mxu0 0.0
          %4663 = vmatpush1.msra.mxu0 0.0
          %4664 = vmatprep.subr.mxu0 0.0
          %4665 = vmatpush1.msra.mxu0 0.0
          %4666 = vmatprep.subr.mxu0 0.0
          %4667 = vmatpush1.msra.mxu0 0.0
          %4668 = vmatprep.subr.mxu0 0.0
          %4669 = vmatpush1.msra.mxu0 0.0
          %4670 = vmatprep.subr.mxu0 0.0
          %4671 = vmatpush1.msra.mxu0 0.0
          %4672 = vmatprep.subr.mxu0 0.0
          %4673 = vmatpush1.msra.mxu0 0.0
          %4674 = vmatprep.subr.mxu0 0.0
          %4675 = vmatpush1.msra.mxu0 0.0
          %4676 = vmatprep.subr.mxu0 0.0
          %4677 = vmatpush1.msra.mxu0 0.0
          %4678 = vmatprep.subr.mxu0 0.0
          %4679 = vmatpush1.msra.mxu0 0.0
          %4680 = vmatprep.subr.mxu0 0.0
          %4681 = vmatpush1.msra.mxu0 0.0
          %4682 = vmatprep.subr.mxu0 0.0
          %4683 = vmatpush1.msra.mxu0 0.0
          %4684 = vmatprep.subr.mxu0 0.0
          %4685 = vmatpush1.msra.mxu0 0.0
          %4686 = vmatprep.subr.mxu0 0.0
          %4687 = vmatpush1.msra.mxu0 0.0
          %4688 = vmatprep.mubr.f32.mxu0 0.0
          %4689 = vmatmul.mubr.f32.gmra.mrb[0].mxu0 %v4622
          %v4690 = vpop.f32.mrb[0].mxu0
          %v4691 = vadd.f32 0.0, %v4690
          %v4692 = vpop.f32.mrb[0].mxu0
          %4693 = vdwg.mxu0
          %v4694 = vadd.f32 %v4611, %v4691
          %v4695 = vld [vmem:[%s4614 + $0x1] sm:$0xff]
          %s4696 = scalar_lea.vmem %s7, 224
          %v4697 = vld [vmem:[%s4696] sm:$0xff]
          %v4698 = vld [vmem:[%s4696 + $0x8] sm:$0xff]
          %v4699 = vld [vmem:[%s4696 + $0x10] sm:$0xff]
          %v4700 = vld [vmem:[%s4696 + $0x18] sm:$0xff]
          %v4702 = vsel %vm4142, %v4695, 0
          %4704 = vmatprep.subr.mxu0 0.0
          %4705 = vmatpush1.msra.mxu0 %v4697
          %4706 = vmatprep.subr.mxu0 0.0
          %4707 = vmatpush1.msra.mxu0 %v4698
          %4708 = vmatprep.subr.mxu0 0.0
          %4709 = vmatpush1.msra.mxu0 %v4699
          %4710 = vmatprep.subr.mxu0 0.0
          %4711 = vmatpush1.msra.mxu0 %v4700
          %4712 = vmatprep.subr.mxu0 0.0
          %4713 = vmatpush1.msra.mxu0 0.0
          %4714 = vmatprep.subr.mxu0 0.0
          %4715 = vmatpush1.msra.mxu0 0.0
          %4716 = vmatprep.subr.mxu0 0.0
          %4717 = vmatpush1.msra.mxu0 0.0
          %4718 = vmatprep.subr.mxu0 0.0
          %4719 = vmatpush1.msra.mxu0 0.0
          %4720 = vmatprep.subr.mxu0 0.0
          %4721 = vmatpush1.msra.mxu0 0.0
          %4722 = vmatprep.subr.mxu0 0.0
          %4723 = vmatpush1.msra.mxu0 0.0
          %4724 = vmatprep.subr.mxu0 0.0
          %4725 = vmatpush1.msra.mxu0 0.0
          %4726 = vmatprep.subr.mxu0 0.0
          %4727 = vmatpush1.msra.mxu0 0.0
          %4728 = vmatprep.subr.mxu0 0.0
          %4729 = vmatpush1.msra.mxu0 0.0
          %4730 = vmatprep.subr.mxu0 0.0
          %4731 = vmatpush1.msra.mxu0 0.0
          %4732 = vmatprep.subr.mxu0 0.0
          %4733 = vmatpush1.msra.mxu0 0.0
          %4734 = vmatprep.subr.mxu0 0.0
          %4735 = vmatpush1.msra.mxu0 0.0
          %4736 = vmatprep.subr.mxu0 0.0
          %4737 = vmatpush1.msra.mxu0 0.0
          %4738 = vmatprep.subr.mxu0 0.0
          %4739 = vmatpush1.msra.mxu0 0.0
          %4740 = vmatprep.subr.mxu0 0.0
          %4741 = vmatpush1.msra.mxu0 0.0
          %4742 = vmatprep.subr.mxu0 0.0
          %4743 = vmatpush1.msra.mxu0 0.0
          %4744 = vmatprep.subr.mxu0 0.0
          %4745 = vmatpush1.msra.mxu0 0.0
          %4746 = vmatprep.subr.mxu0 0.0
          %4747 = vmatpush1.msra.mxu0 0.0
          %4748 = vmatprep.subr.mxu0 0.0
          %4749 = vmatpush1.msra.mxu0 0.0
          %4750 = vmatprep.subr.mxu0 0.0
          %4751 = vmatpush1.msra.mxu0 0.0
          %4752 = vmatprep.subr.mxu0 0.0
          %4753 = vmatpush1.msra.mxu0 0.0
          %4754 = vmatprep.subr.mxu0 0.0
          %4755 = vmatpush1.msra.mxu0 0.0
          %4756 = vmatprep.subr.mxu0 0.0
          %4757 = vmatpush1.msra.mxu0 0.0
          %4758 = vmatprep.subr.mxu0 0.0
          %4759 = vmatpush1.msra.mxu0 0.0
          %4760 = vmatprep.subr.mxu0 0.0
          %4761 = vmatpush1.msra.mxu0 0.0
          %4762 = vmatprep.subr.mxu0 0.0
          %4763 = vmatpush1.msra.mxu0 0.0
          %4764 = vmatprep.subr.mxu0 0.0
          %4765 = vmatpush1.msra.mxu0 0.0
          %4766 = vmatprep.subr.mxu0 0.0
          %4767 = vmatpush1.msra.mxu0 0.0
          %4768 = vmatprep.mubr.f32.mxu0 0.0
          %4769 = vmatmul.mubr.f32.gmra.mrb[0].mxu0 %v4702
          %v4770 = vpop.f32.mrb[0].mxu0
          %v4771 = vadd.f32 0.0, %v4770
          %v4772 = vpop.f32.mrb[0].mxu0
          %4773 = vdwg.mxu0
          %v4774 = vadd.f32 %v4694, %v4771
          %v4775 = vld [vmem:[%s4614 + $0x2] sm:$0xff]
          %s4776 = scalar_lea.vmem %s7, 256
          %v4777 = vld [vmem:[%s4776] sm:$0xff]
          %v4778 = vld [vmem:[%s4776 + $0x8] sm:$0xff]
          %v4779 = vld [vmem:[%s4776 + $0x10] sm:$0xff]
          %v4780 = vld [vmem:[%s4776 + $0x18] sm:$0xff]
          %v4782 = vsel %vm4142, %v4775, 0
          %4784 = vmatprep.subr.mxu0 0.0
          %4785 = vmatpush1.msra.mxu0 %v4777
          %4786 = vmatprep.subr.mxu0 0.0
          %4787 = vmatpush1.msra.mxu0 %v4778
          %4788 = vmatprep.subr.mxu0 0.0
          %4789 = vmatpush1.msra.mxu0 %v4779
          %4790 = vmatprep.subr.mxu0 0.0
          %4791 = vmatpush1.msra.mxu0 %v4780
          %4792 = vmatprep.subr.mxu0 0.0
          %4793 = vmatpush1.msra.mxu0 0.0
          %4794 = vmatprep.subr.mxu0 0.0
          %4795 = vmatpush1.msra.mxu0 0.0
          %4796 = vmatprep.subr.mxu0 0.0
          %4797 = vmatpush1.msra.mxu0 0.0
          %4798 = vmatprep.subr.mxu0 0.0
          %4799 = vmatpush1.msra.mxu0 0.0
          %4800 = vmatprep.subr.mxu0 0.0
          %4801 = vmatpush1.msra.mxu0 0.0
          %4802 = vmatprep.subr.mxu0 0.0
          %4803 = vmatpush1.msra.mxu0 0.0
          %4804 = vmatprep.subr.mxu0 0.0
          %4805 = vmatpush1.msra.mxu0 0.0
          %4806 = vmatprep.subr.mxu0 0.0
          %4807 = vmatpush1.msra.mxu0 0.0
          %4808 = vmatprep.subr.mxu0 0.0
          %4809 = vmatpush1.msra.mxu0 0.0
          %4810 = vmatprep.subr.mxu0 0.0
          %4811 = vmatpush1.msra.mxu0 0.0
          %4812 = vmatprep.subr.mxu0 0.0
          %4813 = vmatpush1.msra.mxu0 0.0
          %4814 = vmatprep.subr.mxu0 0.0
          %4815 = vmatpush1.msra.mxu0 0.0
          %4816 = vmatprep.subr.mxu0 0.0
          %4817 = vmatpush1.msra.mxu0 0.0
          %4818 = vmatprep.subr.mxu0 0.0
          %4819 = vmatpush1.msra.mxu0 0.0
          %4820 = vmatprep.subr.mxu0 0.0
          %4821 = vmatpush1.msra.mxu0 0.0
          %4822 = vmatprep.subr.mxu0 0.0
          %4823 = vmatpush1.msra.mxu0 0.0
          %4824 = vmatprep.subr.mxu0 0.0
          %4825 = vmatpush1.msra.mxu0 0.0
          %4826 = vmatprep.subr.mxu0 0.0
          %4827 = vmatpush1.msra.mxu0 0.0
          %4828 = vmatprep.subr.mxu0 0.0
          %4829 = vmatpush1.msra.mxu0 0.0
          %4830 = vmatprep.subr.mxu0 0.0
          %4831 = vmatpush1.msra.mxu0 0.0
          %4832 = vmatprep.subr.mxu0 0.0
          %4833 = vmatpush1.msra.mxu0 0.0
          %4834 = vmatprep.subr.mxu0 0.0
          %4835 = vmatpush1.msra.mxu0 0.0
          %4836 = vmatprep.subr.mxu0 0.0
          %4837 = vmatpush1.msra.mxu0 0.0
          %4838 = vmatprep.subr.mxu0 0.0
          %4839 = vmatpush1.msra.mxu0 0.0
          %4840 = vmatprep.subr.mxu0 0.0
          %4841 = vmatpush1.msra.mxu0 0.0
          %4842 = vmatprep.subr.mxu0 0.0
          %4843 = vmatpush1.msra.mxu0 0.0
          %4844 = vmatprep.subr.mxu0 0.0
          %4845 = vmatpush1.msra.mxu0 0.0
          %4846 = vmatprep.subr.mxu0 0.0
          %4847 = vmatpush1.msra.mxu0 0.0
          %4848 = vmatprep.mubr.f32.mxu0 0.0
          %4849 = vmatmul.mubr.f32.gmra.mrb[0].mxu0 %v4782
          %v4850 = vpop.f32.mrb[0].mxu0
          %v4851 = vadd.f32 0.0, %v4850
          %v4852 = vpop.f32.mrb[0].mxu0
          %4853 = vdwg.mxu0
          %v4854 = vadd.f32 %v4774, %v4851
          %v4856 = vlaneseq
          %v4857 = vshrl.u32 %v4856, 7
          %v4858 = vsub.s32 0, %v4857
          %v4859 = vrot.slane %v4121, %v4858
          %v4861 = vmul.f32 %v4854, %v4859
          %v4863 = vlaneseq
          %v4864 = vshrl.u32 %v4863, 7
          %v4865 = vsub.s32 0, %v4864
          %v4866 = vrot.slane %v4122, %v4865
          %v4868 = vadd.f32 %v4861, %v4866
          %v4869 = vmax.f32 %v4868, 0.0
          %s4870 = scalar_lea.vmem [#allocation5], %s4370
          %4871 = vst.msk [vmem:[%s4870 + $0x1] sm:$0xff] %vm4099, %v4869
        $region106: #{cnn_forward.1} parent=79 // loop_footer
          %s4128 = sadd.s32 1, %s4124
        $region107: #{cnn_forward.1} parent=79 // loop_footer_branch
          %4123 = sbr.rel target = $region103
        $region108: #{cnn_forward.1} parent=79 // loop_exit
          _
        %v4872 = vld [vmem:[%s11] sm:$0x1]
        %v4873 = vld [vmem:[%s12] sm:$0x1]
        loop: start=0, step=1, limit=4
        $region109: #{cnn_forward.1} parent=79 // loop_pre_header
          _
        $region110: #{cnn_forward.1} parent=79 // loop_header
          %s4875 = sphi 0, %s4879
          %p4876 = scmp.ge.s32.totalorder %s4875, 4
        $region111: #{cnn_forward.1} parent=79 // loop_header_branch
          %4878 = sbr.rel (%p4876) target = $region115
        $region112: #{cnn_forward.1} parent=79 // loop_body
          %s4880 = smul.u32 %s4875, 2
          %s4881 = smul.u32 %s4880, 16
          %s4882 = scalar_lea.vmem [#allocation5], %s4881
          %v4883 = vld [vmem:[%s4882] sm:$0xff]
          %v4884 = vld [vmem:[%s10] sm:$0xff]
          %v4885 = vld [vmem:[%s10 + $0x8] sm:$0xff]
          %v4886 = vld [vmem:[%s10 + $0x10] sm:$0xff]
          %v4887 = vld [vmem:[%s10 + $0x18] sm:$0xff]
          %v4888 = vld [vmem:[%s10 + $0x20] sm:$0xff]
          %v4889 = vld [vmem:[%s10 + $0x28] sm:$0xff]
          %v4890 = vld [vmem:[%s10 + $0x30] sm:$0xff]
          %v4891 = vld [vmem:[%s10 + $0x38] sm:$0xff]
          %v4892 = vld [vmem:[%s4882 + $0x1] sm:$0xff]
          %s4893 = scalar_lea.vmem %s10, 64
          %v4894 = vld [vmem:[%s4893] sm:$0xff]
          %v4895 = vld [vmem:[%s4893 + $0x8] sm:$0xff]
          %v4896 = vld [vmem:[%s4893 + $0x10] sm:$0xff]
          %v4897 = vld [vmem:[%s4893 + $0x18] sm:$0xff]
          %v4898 = vld [vmem:[%s4893 + $0x20] sm:$0xff]
          %v4899 = vld [vmem:[%s4893 + $0x28] sm:$0xff]
          %v4900 = vld [vmem:[%s4893 + $0x30] sm:$0xff]
          %v4901 = vld [vmem:[%s4893 + $0x38] sm:$0xff]
          %v4903 = vsel %vm4099, %v4892, 0
          %4905 = vmatprep.subr.mxu0 0.0
          %4906 = vmatpush1.msra.mxu0 %v4894
          %4907 = vmatprep.subr.mxu0 0.0
          %4908 = vmatpush1.msra.mxu0 %v4895
          %4909 = vmatprep.subr.mxu0 0.0
          %4910 = vmatpush1.msra.mxu0 %v4896
          %4911 = vmatprep.subr.mxu0 0.0
          %4912 = vmatpush1.msra.mxu0 %v4897
          %4913 = vmatprep.subr.mxu0 0.0
          %4914 = vmatpush1.msra.mxu0 %v4898
          %4915 = vmatprep.subr.mxu0 0.0
          %4916 = vmatpush1.msra.mxu0 %v4899
          %4917 = vmatprep.subr.mxu0 0.0
          %4918 = vmatpush1.msra.mxu0 %v4900
          %4919 = vmatprep.subr.mxu0 0.0
          %4920 = vmatpush1.msra.mxu0 %v4901
          %4921 = vmatprep.subr.mxu0 0.0
          %4922 = vmatpush1.msra.mxu0 0.0
          %4923 = vmatprep.subr.mxu0 0.0
          %4924 = vmatpush1.msra.mxu0 0.0
          %4925 = vmatprep.subr.mxu0 0.0
          %4926 = vmatpush1.msra.mxu0 0.0
          %4927 = vmatprep.subr.mxu0 0.0
          %4928 = vmatpush1.msra.mxu0 0.0
          %4929 = vmatprep.subr.mxu0 0.0
          %4930 = vmatpush1.msra.mxu0 0.0
          %4931 = vmatprep.subr.mxu0 0.0
          %4932 = vmatpush1.msra.mxu0 0.0
          %4933 = vmatprep.subr.mxu0 0.0
          %4934 = vmatpush1.msra.mxu0 0.0
          %4935 = vmatprep.subr.mxu0 0.0
          %4936 = vmatpush1.msra.mxu0 0.0
          %4937 = vmatprep.subr.mxu0 0.0
          %4938 = vmatpush1.msra.mxu0 0.0
          %4939 = vmatprep.subr.mxu0 0.0
          %4940 = vmatpush1.msra.mxu0 0.0
          %4941 = vmatprep.subr.mxu0 0.0
          %4942 = vmatpush1.msra.mxu0 0.0
          %4943 = vmatprep.subr.mxu0 0.0
          %4944 = vmatpush1.msra.mxu0 0.0
          %4945 = vmatprep.subr.mxu0 0.0
          %4946 = vmatpush1.msra.mxu0 0.0
          %4947 = vmatprep.subr.mxu0 0.0
          %4948 = vmatpush1.msra.mxu0 0.0
          %4949 = vmatprep.subr.mxu0 0.0
          %4950 = vmatpush1.msra.mxu0 0.0
          %4951 = vmatprep.subr.mxu0 0.0
          %4952 = vmatpush1.msra.mxu0 0.0
          %4953 = vmatprep.subr.mxu0 0.0
          %4954 = vmatpush1.msra.mxu0 0.0
          %4955 = vmatprep.subr.mxu0 0.0
          %4956 = vmatpush1.msra.mxu0 0.0
          %4957 = vmatprep.subr.mxu0 0.0
          %4958 = vmatpush1.msra.mxu0 0.0
          %4959 = vmatprep.subr.mxu0 0.0
          %4960 = vmatpush1.msra.mxu0 0.0
          %4961 = vmatprep.subr.mxu0 0.0
          %4962 = vmatpush1.msra.mxu0 0.0
          %4963 = vmatprep.subr.mxu0 0.0
          %4964 = vmatpush1.msra.mxu0 0.0
          %4965 = vmatprep.subr.mxu0 0.0
          %4966 = vmatpush1.msra.mxu0 0.0
          %4967 = vmatprep.subr.mxu0 0.0
          %4968 = vmatpush1.msra.mxu0 0.0
          %4969 = vmatprep.mubr.f32.mxu0 0.0
          %4970 = vmatmul.mubr.f32.gmra.mrb[0].mxu0 %v4903
          %v4971 = vpop.f32.mrb[0].mxu0
          %v4972 = vadd.f32 0.0, %v4971
          %v4973 = vpop.f32.mrb[0].mxu0
          %4974 = vdwg.mxu0
          %v4976 = vsel %vm4099, %v4883, 0
          %4978 = vmatprep.subr.mxu0 0.0
          %4979 = vmatpush1.msra.mxu0 %v4884
          %4980 = vmatprep.subr.mxu0 0.0
          %4981 = vmatpush1.msra.mxu0 %v4885
          %4982 = vmatprep.subr.mxu0 0.0
          %4983 = vmatpush1.msra.mxu0 %v4886
          %4984 = vmatprep.subr.mxu0 0.0
          %4985 = vmatpush1.msra.mxu0 %v4887
          %4986 = vmatprep.subr.mxu0 0.0
          %4987 = vmatpush1.msra.mxu0 %v4888
          %4988 = vmatprep.subr.mxu0 0.0
          %4989 = vmatpush1.msra.mxu0 %v4889
          %4990 = vmatprep.subr.mxu0 0.0
          %4991 = vmatpush1.msra.mxu0 %v4890
          %4992 = vmatprep.subr.mxu0 0.0
          %4993 = vmatpush1.msra.mxu0 %v4891
          %4994 = vmatprep.subr.mxu0 0.0
          %4995 = vmatpush1.msra.mxu0 0.0
          %4996 = vmatprep.subr.mxu0 0.0
          %4997 = vmatpush1.msra.mxu0 0.0
          %4998 = vmatprep.subr.mxu0 0.0
          %4999 = vmatpush1.msra.mxu0 0.0
          %5000 = vmatprep.subr.mxu0 0.0
          %5001 = vmatpush1.msra.mxu0 0.0
          %5002 = vmatprep.subr.mxu0 0.0
          %5003 = vmatpush1.msra.mxu0 0.0
          %5004 = vmatprep.subr.mxu0 0.0
          %5005 = vmatpush1.msra.mxu0 0.0
          %5006 = vmatprep.subr.mxu0 0.0
          %5007 = vmatpush1.msra.mxu0 0.0
          %5008 = vmatprep.subr.mxu0 0.0
          %5009 = vmatpush1.msra.mxu0 0.0
          %5010 = vmatprep.subr.mxu0 0.0
          %5011 = vmatpush1.msra.mxu0 0.0
          %5012 = vmatprep.subr.mxu0 0.0
          %5013 = vmatpush1.msra.mxu0 0.0
          %5014 = vmatprep.subr.mxu0 0.0
          %5015 = vmatpush1.msra.mxu0 0.0
          %5016 = vmatprep.subr.mxu0 0.0
          %5017 = vmatpush1.msra.mxu0 0.0
          %5018 = vmatprep.subr.mxu0 0.0
          %5019 = vmatpush1.msra.mxu0 0.0
          %5020 = vmatprep.subr.mxu0 0.0
          %5021 = vmatpush1.msra.mxu0 0.0
          %5022 = vmatprep.subr.mxu0 0.0
          %5023 = vmatpush1.msra.mxu0 0.0
          %5024 = vmatprep.subr.mxu0 0.0
          %5025 = vmatpush1.msra.mxu0 0.0
          %5026 = vmatprep.subr.mxu0 0.0
          %5027 = vmatpush1.msra.mxu0 0.0
          %5028 = vmatprep.subr.mxu0 0.0
          %5029 = vmatpush1.msra.mxu0 0.0
          %5030 = vmatprep.subr.mxu0 0.0
          %5031 = vmatpush1.msra.mxu0 0.0
          %5032 = vmatprep.subr.mxu0 0.0
          %5033 = vmatpush1.msra.mxu0 0.0
          %5034 = vmatprep.subr.mxu0 0.0
          %5035 = vmatpush1.msra.mxu0 0.0
          %5036 = vmatprep.subr.mxu0 0.0
          %5037 = vmatpush1.msra.mxu0 0.0
          %5038 = vmatprep.subr.mxu0 0.0
          %5039 = vmatpush1.msra.mxu0 0.0
          %5040 = vmatprep.subr.mxu0 0.0
          %5041 = vmatpush1.msra.mxu0 0.0
          %5042 = vmatprep.mubr.f32.mxu0 0.0
          %5043 = vmatmul.mubr.f32.gmra.mrb[0].mxu0 %v4976
          %v5044 = vpop.f32.mrb[0].mxu0
          %v5045 = vadd.f32 %v4972, %v5044
          %v5046 = vpop.f32.mrb[0].mxu0
          %5047 = vdwg.mxu0
          %v5048 = vld [vmem:[%s4882 + $0x2] sm:$0xff]
          %s5049 = scalar_lea.vmem %s10, 128
          %v5050 = vld [vmem:[%s5049] sm:$0xff]
          %v5051 = vld [vmem:[%s5049 + $0x8] sm:$0xff]
          %v5052 = vld [vmem:[%s5049 + $0x10] sm:$0xff]
          %v5053 = vld [vmem:[%s5049 + $0x18] sm:$0xff]
          %v5054 = vld [vmem:[%s5049 + $0x20] sm:$0xff]
          %v5055 = vld [vmem:[%s5049 + $0x28] sm:$0xff]
          %v5056 = vld [vmem:[%s5049 + $0x30] sm:$0xff]
          %v5057 = vld [vmem:[%s5049 + $0x38] sm:$0xff]
          %v5059 = vsel %vm4099, %v5048, 0
          %5061 = vmatprep.subr.mxu0 0.0
          %5062 = vmatpush1.msra.mxu0 %v5050
          %5063 = vmatprep.subr.mxu0 0.0
          %5064 = vmatpush1.msra.mxu0 %v5051
          %5065 = vmatprep.subr.mxu0 0.0
          %5066 = vmatpush1.msra.mxu0 %v5052
          %5067 = vmatprep.subr.mxu0 0.0
          %5068 = vmatpush1.msra.mxu0 %v5053
          %5069 = vmatprep.subr.mxu0 0.0
          %5070 = vmatpush1.msra.mxu0 %v5054
          %5071 = vmatprep.subr.mxu0 0.0
          %5072 = vmatpush1.msra.mxu0 %v5055
          %5073 = vmatprep.subr.mxu0 0.0
          %5074 = vmatpush1.msra.mxu0 %v5056
          %5075 = vmatprep.subr.mxu0 0.0
          %5076 = vmatpush1.msra.mxu0 %v5057
          %5077 = vmatprep.subr.mxu0 0.0
          %5078 = vmatpush1.msra.mxu0 0.0
          %5079 = vmatprep.subr.mxu0 0.0
          %5080 = vmatpush1.msra.mxu0 0.0
          %5081 = vmatprep.subr.mxu0 0.0
          %5082 = vmatpush1.msra.mxu0 0.0
          %5083 = vmatprep.subr.mxu0 0.0
          %5084 = vmatpush1.msra.mxu0 0.0
          %5085 = vmatprep.subr.mxu0 0.0
          %5086 = vmatpush1.msra.mxu0 0.0
          %5087 = vmatprep.subr.mxu0 0.0
          %5088 = vmatpush1.msra.mxu0 0.0
          %5089 = vmatprep.subr.mxu0 0.0
          %5090 = vmatpush1.msra.mxu0 0.0
          %5091 = vmatprep.subr.mxu0 0.0
          %5092 = vmatpush1.msra.mxu0 0.0
          %5093 = vmatprep.subr.mxu0 0.0
          %5094 = vmatpush1.msra.mxu0 0.0
          %5095 = vmatprep.subr.mxu0 0.0
          %5096 = vmatpush1.msra.mxu0 0.0
          %5097 = vmatprep.subr.mxu0 0.0
          %5098 = vmatpush1.msra.mxu0 0.0
          %5099 = vmatprep.subr.mxu0 0.0
          %5100 = vmatpush1.msra.mxu0 0.0
          %5101 = vmatprep.subr.mxu0 0.0
          %5102 = vmatpush1.msra.mxu0 0.0
          %5103 = vmatprep.subr.mxu0 0.0
          %5104 = vmatpush1.msra.mxu0 0.0
          %5105 = vmatprep.subr.mxu0 0.0
          %5106 = vmatpush1.msra.mxu0 0.0
          %5107 = vmatprep.subr.mxu0 0.0
          %5108 = vmatpush1.msra.mxu0 0.0
          %5109 = vmatprep.subr.mxu0 0.0
          %5110 = vmatpush1.msra.mxu0 0.0
          %5111 = vmatprep.subr.mxu0 0.0
          %5112 = vmatpush1.msra.mxu0 0.0
          %5113 = vmatprep.subr.mxu0 0.0
          %5114 = vmatpush1.msra.mxu0 0.0
          %5115 = vmatprep.subr.mxu0 0.0
          %5116 = vmatpush1.msra.mxu0 0.0
          %5117 = vmatprep.subr.mxu0 0.0
          %5118 = vmatpush1.msra.mxu0 0.0
          %5119 = vmatprep.subr.mxu0 0.0
          %5120 = vmatpush1.msra.mxu0 0.0
          %5121 = vmatprep.subr.mxu0 0.0
          %5122 = vmatpush1.msra.mxu0 0.0
          %5123 = vmatprep.subr.mxu0 0.0
          %5124 = vmatpush1.msra.mxu0 0.0
          %5125 = vmatprep.mubr.f32.mxu0 0.0
          %5126 = vmatmul.mubr.f32.gmra.mrb[0].mxu0 %v5059
          %v5127 = vpop.f32.mrb[0].mxu0
          %v5128 = vadd.f32 0.0, %v5127
          %v5129 = vpop.f32.mrb[0].mxu0
          %5130 = vdwg.mxu0
          %v5131 = vadd.f32 %v5045, %v5128
          %s5132 = sadd.s32 %s4880, 1
          %s5133 = smul.u32 %s5132, 16
          %s5134 = scalar_lea.vmem [#allocation5], %s5133
          %v5135 = vld [vmem:[%s5134] sm:$0xff]
          %s5136 = scalar_lea.vmem %s10, 192
          %v5137 = vld [vmem:[%s5136] sm:$0xff]
          %v5138 = vld [vmem:[%s5136 + $0x8] sm:$0xff]
          %v5139 = vld [vmem:[%s5136 + $0x10] sm:$0xff]
          %v5140 = vld [vmem:[%s5136 + $0x18] sm:$0xff]
          %v5141 = vld [vmem:[%s5136 + $0x20] sm:$0xff]
          %v5142 = vld [vmem:[%s5136 + $0x28] sm:$0xff]
          %v5143 = vld [vmem:[%s5136 + $0x30] sm:$0xff]
          %v5144 = vld [vmem:[%s5136 + $0x38] sm:$0xff]
          %v5146 = vsel %vm4099, %v5135, 0
          %5148 = vmatprep.subr.mxu0 0.0
          %5149 = vmatpush1.msra.mxu0 %v5137
          %5150 = vmatprep.subr.mxu0 0.0
          %5151 = vmatpush1.msra.mxu0 %v5138
          %5152 = vmatprep.subr.mxu0 0.0
          %5153 = vmatpush1.msra.mxu0 %v5139
          %5154 = vmatprep.subr.mxu0 0.0
          %5155 = vmatpush1.msra.mxu0 %v5140
          %5156 = vmatprep.subr.mxu0 0.0
          %5157 = vmatpush1.msra.mxu0 %v5141
          %5158 = vmatprep.subr.mxu0 0.0
          %5159 = vmatpush1.msra.mxu0 %v5142
          %5160 = vmatprep.subr.mxu0 0.0
          %5161 = vmatpush1.msra.mxu0 %v5143
          %5162 = vmatprep.subr.mxu0 0.0
          %5163 = vmatpush1.msra.mxu0 %v5144
          %5164 = vmatprep.subr.mxu0 0.0
          %5165 = vmatpush1.msra.mxu0 0.0
          %5166 = vmatprep.subr.mxu0 0.0
          %5167 = vmatpush1.msra.mxu0 0.0
          %5168 = vmatprep.subr.mxu0 0.0
          %5169 = vmatpush1.msra.mxu0 0.0
          %5170 = vmatprep.subr.mxu0 0.0
          %5171 = vmatpush1.msra.mxu0 0.0
          %5172 = vmatprep.subr.mxu0 0.0
          %5173 = vmatpush1.msra.mxu0 0.0
          %5174 = vmatprep.subr.mxu0 0.0
          %5175 = vmatpush1.msra.mxu0 0.0
          %5176 = vmatprep.subr.mxu0 0.0
          %5177 = vmatpush1.msra.mxu0 0.0
          %5178 = vmatprep.subr.mxu0 0.0
          %5179 = vmatpush1.msra.mxu0 0.0
          %5180 = vmatprep.subr.mxu0 0.0
          %5181 = vmatpush1.msra.mxu0 0.0
          %5182 = vmatprep.subr.mxu0 0.0
          %5183 = vmatpush1.msra.mxu0 0.0
          %5184 = vmatprep.subr.mxu0 0.0
          %5185 = vmatpush1.msra.mxu0 0.0
          %5186 = vmatprep.subr.mxu0 0.0
          %5187 = vmatpush1.msra.mxu0 0.0
          %5188 = vmatprep.subr.mxu0 0.0
          %5189 = vmatpush1.msra.mxu0 0.0
          %5190 = vmatprep.subr.mxu0 0.0
          %5191 = vmatpush1.msra.mxu0 0.0
          %5192 = vmatprep.subr.mxu0 0.0
          %5193 = vmatpush1.msra.mxu0 0.0
          %5194 = vmatprep.subr.mxu0 0.0
          %5195 = vmatpush1.msra.mxu0 0.0
          %5196 = vmatprep.subr.mxu0 0.0
          %5197 = vmatpush1.msra.mxu0 0.0
          %5198 = vmatprep.subr.mxu0 0.0
          %5199 = vmatpush1.msra.mxu0 0.0
          %5200 = vmatprep.subr.mxu0 0.0
          %5201 = vmatpush1.msra.mxu0 0.0
          %5202 = vmatprep.subr.mxu0 0.0
          %5203 = vmatpush1.msra.mxu0 0.0
          %5204 = vmatprep.subr.mxu0 0.0
          %5205 = vmatpush1.msra.mxu0 0.0
          %5206 = vmatprep.subr.mxu0 0.0
          %5207 = vmatpush1.msra.mxu0 0.0
          %5208 = vmatprep.subr.mxu0 0.0
          %5209 = vmatpush1.msra.mxu0 0.0
          %5210 = vmatprep.subr.mxu0 0.0
          %5211 = vmatpush1.msra.mxu0 0.0
          %5212 = vmatprep.mubr.f32.mxu0 0.0
          %5213 = vmatmul.mubr.f32.gmra.mrb[0].mxu0 %v5146
          %v5214 = vpop.f32.mrb[0].mxu0
          %v5215 = vadd.f32 0.0, %v5214
          %v5216 = vpop.f32.mrb[0].mxu0
          %5217 = vdwg.mxu0
          %v5218 = vadd.f32 %v5131, %v5215
          %v5219 = vld [vmem:[%s5134 + $0x1] sm:$0xff]
          %s5220 = scalar_lea.vmem %s10, 256
          %v5221 = vld [vmem:[%s5220] sm:$0xff]
          %v5222 = vld [vmem:[%s5220 + $0x8] sm:$0xff]
          %v5223 = vld [vmem:[%s5220 + $0x10] sm:$0xff]
          %v5224 = vld [vmem:[%s5220 + $0x18] sm:$0xff]
          %v5225 = vld [vmem:[%s5220 + $0x20] sm:$0xff]
          %v5226 = vld [vmem:[%s5220 + $0x28] sm:$0xff]
          %v5227 = vld [vmem:[%s5220 + $0x30] sm:$0xff]
          %v5228 = vld [vmem:[%s5220 + $0x38] sm:$0xff]
          %v5230 = vsel %vm4099, %v5219, 0
          %5232 = vmatprep.subr.mxu0 0.0
          %5233 = vmatpush1.msra.mxu0 %v5221
          %5234 = vmatprep.subr.mxu0 0.0
          %5235 = vmatpush1.msra.mxu0 %v5222
          %5236 = vmatprep.subr.mxu0 0.0
          %5237 = vmatpush1.msra.mxu0 %v5223
          %5238 = vmatprep.subr.mxu0 0.0
          %5239 = vmatpush1.msra.mxu0 %v5224
          %5240 = vmatprep.subr.mxu0 0.0
          %5241 = vmatpush1.msra.mxu0 %v5225
          %5242 = vmatprep.subr.mxu0 0.0
          %5243 = vmatpush1.msra.mxu0 %v5226
          %5244 = vmatprep.subr.mxu0 0.0
          %5245 = vmatpush1.msra.mxu0 %v5227
          %5246 = vmatprep.subr.mxu0 0.0
          %5247 = vmatpush1.msra.mxu0 %v5228
          %5248 = vmatprep.subr.mxu0 0.0
          %5249 = vmatpush1.msra.mxu0 0.0
          %5250 = vmatprep.subr.mxu0 0.0
          %5251 = vmatpush1.msra.mxu0 0.0
          %5252 = vmatprep.subr.mxu0 0.0
          %5253 = vmatpush1.msra.mxu0 0.0
          %5254 = vmatprep.subr.mxu0 0.0
          %5255 = vmatpush1.msra.mxu0 0.0
          %5256 = vmatprep.subr.mxu0 0.0
          %5257 = vmatpush1.msra.mxu0 0.0
          %5258 = vmatprep.subr.mxu0 0.0
          %5259 = vmatpush1.msra.mxu0 0.0
          %5260 = vmatprep.subr.mxu0 0.0
          %5261 = vmatpush1.msra.mxu0 0.0
          %5262 = vmatprep.subr.mxu0 0.0
          %5263 = vmatpush1.msra.mxu0 0.0
          %5264 = vmatprep.subr.mxu0 0.0
          %5265 = vmatpush1.msra.mxu0 0.0
          %5266 = vmatprep.subr.mxu0 0.0
          %5267 = vmatpush1.msra.mxu0 0.0
          %5268 = vmatprep.subr.mxu0 0.0
          %5269 = vmatpush1.msra.mxu0 0.0
          %5270 = vmatprep.subr.mxu0 0.0
          %5271 = vmatpush1.msra.mxu0 0.0
          %5272 = vmatprep.subr.mxu0 0.0
          %5273 = vmatpush1.msra.mxu0 0.0
          %5274 = vmatprep.subr.mxu0 0.0
          %5275 = vmatpush1.msra.mxu0 0.0
          %5276 = vmatprep.subr.mxu0 0.0
          %5277 = vmatpush1.msra.mxu0 0.0
          %5278 = vmatprep.subr.mxu0 0.0
          %5279 = vmatpush1.msra.mxu0 0.0
          %5280 = vmatprep.subr.mxu0 0.0
          %5281 = vmatpush1.msra.mxu0 0.0
          %5282 = vmatprep.subr.mxu0 0.0
          %5283 = vmatpush1.msra.mxu0 0.0
          %5284 = vmatprep.subr.mxu0 0.0
          %5285 = vmatpush1.msra.mxu0 0.0
          %5286 = vmatprep.subr.mxu0 0.0
          %5287 = vmatpush1.msra.mxu0 0.0
          %5288 = vmatprep.subr.mxu0 0.0
          %5289 = vmatpush1.msra.mxu0 0.0
          %5290 = vmatprep.subr.mxu0 0.0
          %5291 = vmatpush1.msra.mxu0 0.0
          %5292 = vmatprep.subr.mxu0 0.0
          %5293 = vmatpush1.msra.mxu0 0.0
          %5294 = vmatprep.subr.mxu0 0.0
          %5295 = vmatpush1.msra.mxu0 0.0
          %5296 = vmatprep.mubr.f32.mxu0 0.0
          %5297 = vmatmul.mubr.f32.gmra.mrb[0].mxu0 %v5230
          %v5298 = vpop.f32.mrb[0].mxu0
          %v5299 = vadd.f32 0.0, %v5298
          %v5300 = vpop.f32.mrb[0].mxu0
          %5301 = vdwg.mxu0
          %v5302 = vadd.f32 %v5218, %v5299
          %v5303 = vld [vmem:[%s5134 + $0x2] sm:$0xff]
          %s5304 = scalar_lea.vmem %s10, 320
          %v5305 = vld [vmem:[%s5304] sm:$0xff]
          %v5306 = vld [vmem:[%s5304 + $0x8] sm:$0xff]
          %v5307 = vld [vmem:[%s5304 + $0x10] sm:$0xff]
          %v5308 = vld [vmem:[%s5304 + $0x18] sm:$0xff]
          %v5309 = vld [vmem:[%s5304 + $0x20] sm:$0xff]
          %v5310 = vld [vmem:[%s5304 + $0x28] sm:$0xff]
          %v5311 = vld [vmem:[%s5304 + $0x30] sm:$0xff]
          %v5312 = vld [vmem:[%s5304 + $0x38] sm:$0xff]
          %v5314 = vsel %vm4099, %v5303, 0
          %5316 = vmatprep.subr.mxu0 0.0
          %5317 = vmatpush1.msra.mxu0 %v5305
          %5318 = vmatprep.subr.mxu0 0.0
          %5319 = vmatpush1.msra.mxu0 %v5306
          %5320 = vmatprep.subr.mxu0 0.0
          %5321 = vmatpush1.msra.mxu0 %v5307
          %5322 = vmatprep.subr.mxu0 0.0
          %5323 = vmatpush1.msra.mxu0 %v5308
          %5324 = vmatprep.subr.mxu0 0.0
          %5325 = vmatpush1.msra.mxu0 %v5309
          %5326 = vmatprep.subr.mxu0 0.0
          %5327 = vmatpush1.msra.mxu0 %v5310
          %5328 = vmatprep.subr.mxu0 0.0
          %5329 = vmatpush1.msra.mxu0 %v5311
          %5330 = vmatprep.subr.mxu0 0.0
          %5331 = vmatpush1.msra.mxu0 %v5312
          %5332 = vmatprep.subr.mxu0 0.0
          %5333 = vmatpush1.msra.mxu0 0.0
          %5334 = vmatprep.subr.mxu0 0.0
          %5335 = vmatpush1.msra.mxu0 0.0
          %5336 = vmatprep.subr.mxu0 0.0
          %5337 = vmatpush1.msra.mxu0 0.0
          %5338 = vmatprep.subr.mxu0 0.0
          %5339 = vmatpush1.msra.mxu0 0.0
          %5340 = vmatprep.subr.mxu0 0.0
          %5341 = vmatpush1.msra.mxu0 0.0
          %5342 = vmatprep.subr.mxu0 0.0
          %5343 = vmatpush1.msra.mxu0 0.0
          %5344 = vmatprep.subr.mxu0 0.0
          %5345 = vmatpush1.msra.mxu0 0.0
          %5346 = vmatprep.subr.mxu0 0.0
          %5347 = vmatpush1.msra.mxu0 0.0
          %5348 = vmatprep.subr.mxu0 0.0
          %5349 = vmatpush1.msra.mxu0 0.0
          %5350 = vmatprep.subr.mxu0 0.0
          %5351 = vmatpush1.msra.mxu0 0.0
          %5352 = vmatprep.subr.mxu0 0.0
          %5353 = vmatpush1.msra.mxu0 0.0
          %5354 = vmatprep.subr.mxu0 0.0
          %5355 = vmatpush1.msra.mxu0 0.0
          %5356 = vmatprep.subr.mxu0 0.0
          %5357 = vmatpush1.msra.mxu0 0.0
          %5358 = vmatprep.subr.mxu0 0.0
          %5359 = vmatpush1.msra.mxu0 0.0
          %5360 = vmatprep.subr.mxu0 0.0
          %5361 = vmatpush1.msra.mxu0 0.0
          %5362 = vmatprep.subr.mxu0 0.0
          %5363 = vmatpush1.msra.mxu0 0.0
          %5364 = vmatprep.subr.mxu0 0.0
          %5365 = vmatpush1.msra.mxu0 0.0
          %5366 = vmatprep.subr.mxu0 0.0
          %5367 = vmatpush1.msra.mxu0 0.0
          %5368 = vmatprep.subr.mxu0 0.0
          %5369 = vmatpush1.msra.mxu0 0.0
          %5370 = vmatprep.subr.mxu0 0.0
          %5371 = vmatpush1.msra.mxu0 0.0
          %5372 = vmatprep.subr.mxu0 0.0
          %5373 = vmatpush1.msra.mxu0 0.0
          %5374 = vmatprep.subr.mxu0 0.0
          %5375 = vmatpush1.msra.mxu0 0.0
          %5376 = vmatprep.subr.mxu0 0.0
          %5377 = vmatpush1.msra.mxu0 0.0
          %5378 = vmatprep.subr.mxu0 0.0
          %5379 = vmatpush1.msra.mxu0 0.0
          %5380 = vmatprep.mubr.f32.mxu0 0.0
          %5381 = vmatmul.mubr.f32.gmra.mrb[0].mxu0 %v5314
          %v5382 = vpop.f32.mrb[0].mxu0
          %v5383 = vadd.f32 0.0, %v5382
          %v5384 = vpop.f32.mrb[0].mxu0
          %5385 = vdwg.mxu0
          %v5386 = vadd.f32 %v5302, %v5383
          %s5387 = sadd.s32 %s4880, 2
          %s5388 = smul.u32 %s5387, 16
          %s5389 = scalar_lea.vmem [#allocation5], %s5388
          %v5390 = vld [vmem:[%s5389] sm:$0xff]
          %s5391 = scalar_lea.vmem %s10, 384
          %v5392 = vld [vmem:[%s5391] sm:$0xff]
          %v5393 = vld [vmem:[%s5391 + $0x8] sm:$0xff]
          %v5394 = vld [vmem:[%s5391 + $0x10] sm:$0xff]
          %v5395 = vld [vmem:[%s5391 + $0x18] sm:$0xff]
          %v5396 = vld [vmem:[%s5391 + $0x20] sm:$0xff]
          %v5397 = vld [vmem:[%s5391 + $0x28] sm:$0xff]
          %v5398 = vld [vmem:[%s5391 + $0x30] sm:$0xff]
          %v5399 = vld [vmem:[%s5391 + $0x38] sm:$0xff]
          %v5401 = vsel %vm4099, %v5390, 0
          %5403 = vmatprep.subr.mxu0 0.0
          %5404 = vmatpush1.msra.mxu0 %v5392
          %5405 = vmatprep.subr.mxu0 0.0
          %5406 = vmatpush1.msra.mxu0 %v5393
          %5407 = vmatprep.subr.mxu0 0.0
          %5408 = vmatpush1.msra.mxu0 %v5394
          %5409 = vmatprep.subr.mxu0 0.0
          %5410 = vmatpush1.msra.mxu0 %v5395
          %5411 = vmatprep.subr.mxu0 0.0
          %5412 = vmatpush1.msra.mxu0 %v5396
          %5413 = vmatprep.subr.mxu0 0.0
          %5414 = vmatpush1.msra.mxu0 %v5397
          %5415 = vmatprep.subr.mxu0 0.0
          %5416 = vmatpush1.msra.mxu0 %v5398
          %5417 = vmatprep.subr.mxu0 0.0
          %5418 = vmatpush1.msra.mxu0 %v5399
          %5419 = vmatprep.subr.mxu0 0.0
          %5420 = vmatpush1.msra.mxu0 0.0
          %5421 = vmatprep.subr.mxu0 0.0
          %5422 = vmatpush1.msra.mxu0 0.0
          %5423 = vmatprep.subr.mxu0 0.0
          %5424 = vmatpush1.msra.mxu0 0.0
          %5425 = vmatprep.subr.mxu0 0.0
          %5426 = vmatpush1.msra.mxu0 0.0
          %5427 = vmatprep.subr.mxu0 0.0
          %5428 = vmatpush1.msra.mxu0 0.0
          %5429 = vmatprep.subr.mxu0 0.0
          %5430 = vmatpush1.msra.mxu0 0.0
          %5431 = vmatprep.subr.mxu0 0.0
          %5432 = vmatpush1.msra.mxu0 0.0
          %5433 = vmatprep.subr.mxu0 0.0
          %5434 = vmatpush1.msra.mxu0 0.0
          %5435 = vmatprep.subr.mxu0 0.0
          %5436 = vmatpush1.msra.mxu0 0.0
          %5437 = vmatprep.subr.mxu0 0.0
          %5438 = vmatpush1.msra.mxu0 0.0
          %5439 = vmatprep.subr.mxu0 0.0
          %5440 = vmatpush1.msra.mxu0 0.0
          %5441 = vmatprep.subr.mxu0 0.0
          %5442 = vmatpush1.msra.mxu0 0.0
          %5443 = vmatprep.subr.mxu0 0.0
          %5444 = vmatpush1.msra.mxu0 0.0
          %5445 = vmatprep.subr.mxu0 0.0
          %5446 = vmatpush1.msra.mxu0 0.0
          %5447 = vmatprep.subr.mxu0 0.0
          %5448 = vmatpush1.msra.mxu0 0.0
          %5449 = vmatprep.subr.mxu0 0.0
          %5450 = vmatpush1.msra.mxu0 0.0
          %5451 = vmatprep.subr.mxu0 0.0
          %5452 = vmatpush1.msra.mxu0 0.0
          %5453 = vmatprep.subr.mxu0 0.0
          %5454 = vmatpush1.msra.mxu0 0.0
          %5455 = vmatprep.subr.mxu0 0.0
          %5456 = vmatpush1.msra.mxu0 0.0
          %5457 = vmatprep.subr.mxu0 0.0
          %5458 = vmatpush1.msra.mxu0 0.0
          %5459 = vmatprep.subr.mxu0 0.0
          %5460 = vmatpush1.msra.mxu0 0.0
          %5461 = vmatprep.subr.mxu0 0.0
          %5462 = vmatpush1.msra.mxu0 0.0
          %5463 = vmatprep.subr.mxu0 0.0
          %5464 = vmatpush1.msra.mxu0 0.0
          %5465 = vmatprep.subr.mxu0 0.0
          %5466 = vmatpush1.msra.mxu0 0.0
          %5467 = vmatprep.mubr.f32.mxu0 0.0
          %5468 = vmatmul.mubr.f32.gmra.mrb[0].mxu0 %v5401
          %v5469 = vpop.f32.mrb[0].mxu0
          %v5470 = vadd.f32 0.0, %v5469
          %v5471 = vpop.f32.mrb[0].mxu0
          %5472 = vdwg.mxu0
          %v5473 = vadd.f32 %v5386, %v5470
          %v5474 = vld [vmem:[%s5389 + $0x1] sm:$0xff]
          %s5475 = scalar_lea.vmem %s10, 448
          %v5476 = vld [vmem:[%s5475] sm:$0xff]
          %v5477 = vld [vmem:[%s5475 + $0x8] sm:$0xff]
          %v5478 = vld [vmem:[%s5475 + $0x10] sm:$0xff]
          %v5479 = vld [vmem:[%s5475 + $0x18] sm:$0xff]
          %v5480 = vld [vmem:[%s5475 + $0x20] sm:$0xff]
          %v5481 = vld [vmem:[%s5475 + $0x28] sm:$0xff]
          %v5482 = vld [vmem:[%s5475 + $0x30] sm:$0xff]
          %v5483 = vld [vmem:[%s5475 + $0x38] sm:$0xff]
          %v5485 = vsel %vm4099, %v5474, 0
          %5487 = vmatprep.subr.mxu0 0.0
          %5488 = vmatpush1.msra.mxu0 %v5476
          %5489 = vmatprep.subr.mxu0 0.0
          %5490 = vmatpush1.msra.mxu0 %v5477
          %5491 = vmatprep.subr.mxu0 0.0
          %5492 = vmatpush1.msra.mxu0 %v5478
          %5493 = vmatprep.subr.mxu0 0.0
          %5494 = vmatpush1.msra.mxu0 %v5479
          %5495 = vmatprep.subr.mxu0 0.0
          %5496 = vmatpush1.msra.mxu0 %v5480
          %5497 = vmatprep.subr.mxu0 0.0
          %5498 = vmatpush1.msra.mxu0 %v5481
          %5499 = vmatprep.subr.mxu0 0.0
          %5500 = vmatpush1.msra.mxu0 %v5482
          %5501 = vmatprep.subr.mxu0 0.0
          %5502 = vmatpush1.msra.mxu0 %v5483
          %5503 = vmatprep.subr.mxu0 0.0
          %5504 = vmatpush1.msra.mxu0 0.0
          %5505 = vmatprep.subr.mxu0 0.0
          %5506 = vmatpush1.msra.mxu0 0.0
          %5507 = vmatprep.subr.mxu0 0.0
          %5508 = vmatpush1.msra.mxu0 0.0
          %5509 = vmatprep.subr.mxu0 0.0
          %5510 = vmatpush1.msra.mxu0 0.0
          %5511 = vmatprep.subr.mxu0 0.0
          %5512 = vmatpush1.msra.mxu0 0.0
          %5513 = vmatprep.subr.mxu0 0.0
          %5514 = vmatpush1.msra.mxu0 0.0
          %5515 = vmatprep.subr.mxu0 0.0
          %5516 = vmatpush1.msra.mxu0 0.0
          %5517 = vmatprep.subr.mxu0 0.0
          %5518 = vmatpush1.msra.mxu0 0.0
          %5519 = vmatprep.subr.mxu0 0.0
          %5520 = vmatpush1.msra.mxu0 0.0
          %5521 = vmatprep.subr.mxu0 0.0
          %5522 = vmatpush1.msra.mxu0 0.0
          %5523 = vmatprep.subr.mxu0 0.0
          %5524 = vmatpush1.msra.mxu0 0.0
          %5525 = vmatprep.subr.mxu0 0.0
          %5526 = vmatpush1.msra.mxu0 0.0
          %5527 = vmatprep.subr.mxu0 0.0
          %5528 = vmatpush1.msra.mxu0 0.0
          %5529 = vmatprep.subr.mxu0 0.0
          %5530 = vmatpush1.msra.mxu0 0.0
          %5531 = vmatprep.subr.mxu0 0.0
          %5532 = vmatpush1.msra.mxu0 0.0
          %5533 = vmatprep.subr.mxu0 0.0
          %5534 = vmatpush1.msra.mxu0 0.0
          %5535 = vmatprep.subr.mxu0 0.0
          %5536 = vmatpush1.msra.mxu0 0.0
          %5537 = vmatprep.subr.mxu0 0.0
          %5538 = vmatpush1.msra.mxu0 0.0
          %5539 = vmatprep.subr.mxu0 0.0
          %5540 = vmatpush1.msra.mxu0 0.0
          %5541 = vmatprep.subr.mxu0 0.0
          %5542 = vmatpush1.msra.mxu0 0.0
          %5543 = vmatprep.subr.mxu0 0.0
          %5544 = vmatpush1.msra.mxu0 0.0
          %5545 = vmatprep.subr.mxu0 0.0
          %5546 = vmatpush1.msra.mxu0 0.0
          %5547 = vmatprep.subr.mxu0 0.0
          %5548 = vmatpush1.msra.mxu0 0.0
          %5549 = vmatprep.subr.mxu0 0.0
          %5550 = vmatpush1.msra.mxu0 0.0
          %5551 = vmatprep.mubr.f32.mxu0 0.0
          %5552 = vmatmul.mubr.f32.gmra.mrb[0].mxu0 %v5485
          %v5553 = vpop.f32.mrb[0].mxu0
          %v5554 = vadd.f32 0.0, %v5553
          %v5555 = vpop.f32.mrb[0].mxu0
          %5556 = vdwg.mxu0
          %v5557 = vadd.f32 %v5473, %v5554
          %v5558 = vld [vmem:[%s5389 + $0x2] sm:$0xff]
          %s5559 = scalar_lea.vmem %s10, 512
          %v5560 = vld [vmem:[%s5559] sm:$0xff]
          %v5561 = vld [vmem:[%s5559 + $0x8] sm:$0xff]
          %v5562 = vld [vmem:[%s5559 + $0x10] sm:$0xff]
          %v5563 = vld [vmem:[%s5559 + $0x18] sm:$0xff]
          %v5564 = vld [vmem:[%s5559 + $0x20] sm:$0xff]
          %v5565 = vld [vmem:[%s5559 + $0x28] sm:$0xff]
          %v5566 = vld [vmem:[%s5559 + $0x30] sm:$0xff]
          %v5567 = vld [vmem:[%s5559 + $0x38] sm:$0xff]
          %v5569 = vsel %vm4099, %v5558, 0
          %5571 = vmatprep.subr.mxu0 0.0
          %5572 = vmatpush1.msra.mxu0 %v5560
          %5573 = vmatprep.subr.mxu0 0.0
          %5574 = vmatpush1.msra.mxu0 %v5561
          %5575 = vmatprep.subr.mxu0 0.0
          %5576 = vmatpush1.msra.mxu0 %v5562
          %5577 = vmatprep.subr.mxu0 0.0
          %5578 = vmatpush1.msra.mxu0 %v5563
          %5579 = vmatprep.subr.mxu0 0.0
          %5580 = vmatpush1.msra.mxu0 %v5564
          %5581 = vmatprep.subr.mxu0 0.0
          %5582 = vmatpush1.msra.mxu0 %v5565
          %5583 = vmatprep.subr.mxu0 0.0
          %5584 = vmatpush1.msra.mxu0 %v5566
          %5585 = vmatprep.subr.mxu0 0.0
          %5586 = vmatpush1.msra.mxu0 %v5567
          %5587 = vmatprep.subr.mxu0 0.0
          %5588 = vmatpush1.msra.mxu0 0.0
          %5589 = vmatprep.subr.mxu0 0.0
          %5590 = vmatpush1.msra.mxu0 0.0
          %5591 = vmatprep.subr.mxu0 0.0
          %5592 = vmatpush1.msra.mxu0 0.0
          %5593 = vmatprep.subr.mxu0 0.0
          %5594 = vmatpush1.msra.mxu0 0.0
          %5595 = vmatprep.subr.mxu0 0.0
          %5596 = vmatpush1.msra.mxu0 0.0
          %5597 = vmatprep.subr.mxu0 0.0
          %5598 = vmatpush1.msra.mxu0 0.0
          %5599 = vmatprep.subr.mxu0 0.0
          %5600 = vmatpush1.msra.mxu0 0.0
          %5601 = vmatprep.subr.mxu0 0.0
          %5602 = vmatpush1.msra.mxu0 0.0
          %5603 = vmatprep.subr.mxu0 0.0
          %5604 = vmatpush1.msra.mxu0 0.0
          %5605 = vmatprep.subr.mxu0 0.0
          %5606 = vmatpush1.msra.mxu0 0.0
          %5607 = vmatprep.subr.mxu0 0.0
          %5608 = vmatpush1.msra.mxu0 0.0
          %5609 = vmatprep.subr.mxu0 0.0
          %5610 = vmatpush1.msra.mxu0 0.0
          %5611 = vmatprep.subr.mxu0 0.0
          %5612 = vmatpush1.msra.mxu0 0.0
          %5613 = vmatprep.subr.mxu0 0.0
          %5614 = vmatpush1.msra.mxu0 0.0
          %5615 = vmatprep.subr.mxu0 0.0
          %5616 = vmatpush1.msra.mxu0 0.0
          %5617 = vmatprep.subr.mxu0 0.0
          %5618 = vmatpush1.msra.mxu0 0.0
          %5619 = vmatprep.subr.mxu0 0.0
          %5620 = vmatpush1.msra.mxu0 0.0
          %5621 = vmatprep.subr.mxu0 0.0
          %5622 = vmatpush1.msra.mxu0 0.0
          %5623 = vmatprep.subr.mxu0 0.0
          %5624 = vmatpush1.msra.mxu0 0.0
          %5625 = vmatprep.subr.mxu0 0.0
          %5626 = vmatpush1.msra.mxu0 0.0
          %5627 = vmatprep.subr.mxu0 0.0
          %5628 = vmatpush1.msra.mxu0 0.0
          %5629 = vmatprep.subr.mxu0 0.0
          %5630 = vmatpush1.msra.mxu0 0.0
          %5631 = vmatprep.subr.mxu0 0.0
          %5632 = vmatpush1.msra.mxu0 0.0
          %5633 = vmatprep.subr.mxu0 0.0
          %5634 = vmatpush1.msra.mxu0 0.0
          %5635 = vmatprep.mubr.f32.mxu0 0.0
          %5636 = vmatmul.mubr.f32.gmra.mrb[0].mxu0 %v5569
          %v5637 = vpop.f32.mrb[0].mxu0
          %v5638 = vadd.f32 0.0, %v5637
          %v5639 = vpop.f32.mrb[0].mxu0
          %5640 = vdwg.mxu0
          %v5641 = vadd.f32 %v5557, %v5638
          %vm5642 = vcmask 64512
          %v5644 = vsel %vm5642, %v3893, 0
          %5646 = vmatprep.subr.mxu0 0.0
          %5647 = vmatpush1.msra.mxu0 %v5641
          %5648 = vmatprep.subr.mxu0 0.0
          %5649 = vmatpush1.msra.mxu0 0.0
          %5650 = vmatprep.subr.mxu0 0.0
          %5651 = vmatpush1.msra.mxu0 0.0
          %5652 = vmatprep.subr.mxu0 0.0
          %5653 = vmatpush1.msra.mxu0 0.0
          %5654 = vmatprep.subr.mxu0 0.0
          %5655 = vmatpush1.msra.mxu0 0.0
          %5656 = vmatprep.subr.mxu0 0.0
          %5657 = vmatpush1.msra.mxu0 0.0
          %5658 = vmatprep.subr.mxu0 0.0
          %5659 = vmatpush1.msra.mxu0 0.0
          %5660 = vmatprep.subr.mxu0 0.0
          %5661 = vmatpush1.msra.mxu0 0.0
          %5662 = vmatprep.subr.mxu0 0.0
          %5663 = vmatpush1.msra.mxu0 0.0
          %5664 = vmatprep.subr.mxu0 0.0
          %5665 = vmatpush1.msra.mxu0 0.0
          %5666 = vmatprep.subr.mxu0 0.0
          %5667 = vmatpush1.msra.mxu0 0.0
          %5668 = vmatprep.subr.mxu0 0.0
          %5669 = vmatpush1.msra.mxu0 0.0
          %5670 = vmatprep.subr.mxu0 0.0
          %5671 = vmatpush1.msra.mxu0 0.0
          %5672 = vmatprep.subr.mxu0 0.0
          %5673 = vmatpush1.msra.mxu0 0.0
          %5674 = vmatprep.subr.mxu0 0.0
          %5675 = vmatpush1.msra.mxu0 0.0
          %5676 = vmatprep.subr.mxu0 0.0
          %5677 = vmatpush1.msra.mxu0 0.0
          %5678 = vmatprep.subr.mxu0 0.0
          %5679 = vmatpush1.msra.mxu0 0.0
          %5680 = vmatprep.subr.mxu0 0.0
          %5681 = vmatpush1.msra.mxu0 0.0
          %5682 = vmatprep.subr.mxu0 0.0
          %5683 = vmatpush1.msra.mxu0 0.0
          %5684 = vmatprep.subr.mxu0 0.0
          %5685 = vmatpush1.msra.mxu0 0.0
          %5686 = vmatprep.subr.mxu0 0.0
          %5687 = vmatpush1.msra.mxu0 0.0
          %5688 = vmatprep.subr.mxu0 0.0
          %5689 = vmatpush1.msra.mxu0 0.0
          %5690 = vmatprep.subr.mxu0 0.0
          %5691 = vmatpush1.msra.mxu0 0.0
          %5692 = vmatprep.subr.mxu0 0.0
          %5693 = vmatpush1.msra.mxu0 0.0
          %5694 = vmatprep.subr.mxu0 0.0
          %5695 = vmatpush1.msra.mxu0 0.0
          %5696 = vmatprep.subr.mxu0 0.0
          %5697 = vmatpush1.msra.mxu0 0.0
          %5698 = vmatprep.subr.mxu0 0.0
          %5699 = vmatpush1.msra.mxu0 0.0
          %5700 = vmatprep.subr.mxu0 0.0
          %5701 = vmatpush1.msra.mxu0 0.0
          %5702 = vmatprep.subr.mxu0 0.0
          %5703 = vmatpush1.msra.mxu0 0.0
          %5704 = vmatprep.subr.mxu0 0.0
          %5705 = vmatpush1.msra.mxu0 0.0
          %5706 = vmatprep.subr.mxu0 0.0
          %5707 = vmatpush1.msra.mxu0 0.0
          %5708 = vmatprep.subr.mxu0 0.0
          %5709 = vmatpush1.msra.mxu0 0.0
          %5710 = vmatprep.mubr.f32.mxu0 0.0
          %5711 = vmatmul.mubr.f32.gmra.mrb[0].mxu0 %v5644
          %v5712 = vpop.f32.mrb[0].mxu0
          %v5713 = vadd.f32 0.0, %v5712
          %v5714 = vpop.f32.mrb[0].mxu0
          %5715 = vdwg.mxu0
          %v5717 = vlaneseq
          %v5718 = vshrl.u32 %v5717, 7
          %v5719 = vsub.s32 0, %v5718
          %v5720 = vrot.slane %v4872, %v5719
          %v5722 = vmul.f32 %v5713, %v5720
          %v5724 = vlaneseq
          %v5725 = vshrl.u32 %v5724, 7
          %v5726 = vsub.s32 0, %v5725
          %v5727 = vrot.slane %v4873, %v5726
          %v5729 = vadd.f32 %v5722, %v5727
          %v5730 = vmax.f32 %v5729, 0.0
          %s5731 = smul.u32 %s4875, 4
          %s5732 = scalar_lea.vmem [#allocation6], %s5731
          %vm5733 = vcmask 519168
          %5734 = vst.msk [vmem:[%s5732] sm:$0xf] %vm5733, %v5730
        $region113: #{cnn_forward.1} parent=79 // loop_footer
          %s4879 = sadd.s32 1, %s4875
        $region114: #{cnn_forward.1} parent=79 // loop_footer_branch
          %4874 = sbr.rel target = $region110
        $region115: #{cnn_forward.1} parent=79 // loop_exit
          _
        loop: start=0, step=1, limit=2
        $region116: #{cnn_forward.1} parent=79 // loop_pre_header
          _
        $region117: #{cnn_forward.1} parent=79 // loop_header
          %s5736 = sphi 0, %s5740
          %p5737 = scmp.ge.s32.totalorder %s5736, 2
        $region118: #{cnn_forward.1} parent=79 // loop_header_branch
          %5739 = sbr.rel (%p5737) target = $region122
        $region119: #{cnn_forward.1} parent=79 // loop_body
          %s5741 = smul.u32 %s5736, 2
          %s5742 = smul.u32 %s5741, 4
          %s5743 = scalar_lea.vmem [#allocation6], %s5742
          %v5744 = vld [vmem:[%s5743] sm:$0xf]
          %s5745 = sadd.s32 %s5741, 1
          %s5746 = smul.u32 %s5745, 4
          %s5747 = scalar_lea.vmem [#allocation6], %s5746
          %v5748 = vld [vmem:[%s5747] sm:$0xf]
          %v5749 = vmax.f32 %v5744, %v5748
          %vm5750 = vcmask 31744
          %v5752 = vsel %vm5750, %v3893, 0
          %vm5754 = vcmask 1043456
          %v5756 = vsel %vm5754, %v5749, 0
          %5758 = vmatprep.subr.mxu0 0.0
          %5759 = vmatpush1.msra.mxu0 %v5756
          %5760 = vmatprep.subr.mxu0 0.0
          %5761 = vmatpush1.msra.mxu0 0.0
          %5762 = vmatprep.subr.mxu0 0.0
          %5763 = vmatpush1.msra.mxu0 0.0
          %5764 = vmatprep.subr.mxu0 0.0
          %5765 = vmatpush1.msra.mxu0 0.0
          %5766 = vmatprep.subr.mxu0 0.0
          %5767 = vmatpush1.msra.mxu0 0.0
          %5768 = vmatprep.subr.mxu0 0.0
          %5769 = vmatpush1.msra.mxu0 0.0
          %5770 = vmatprep.subr.mxu0 0.0
          %5771 = vmatpush1.msra.mxu0 0.0
          %5772 = vmatprep.subr.mxu0 0.0
          %5773 = vmatpush1.msra.mxu0 0.0
          %5774 = vmatprep.subr.mxu0 0.0
          %5775 = vmatpush1.msra.mxu0 0.0
          %5776 = vmatprep.subr.mxu0 0.0
          %5777 = vmatpush1.msra.mxu0 0.0
          %5778 = vmatprep.subr.mxu0 0.0
          %5779 = vmatpush1.msra.mxu0 0.0
          %5780 = vmatprep.subr.mxu0 0.0
          %5781 = vmatpush1.msra.mxu0 0.0
          %5782 = vmatprep.subr.mxu0 0.0
          %5783 = vmatpush1.msra.mxu0 0.0
          %5784 = vmatprep.subr.mxu0 0.0
          %5785 = vmatpush1.msra.mxu0 0.0
          %5786 = vmatprep.subr.mxu0 0.0
          %5787 = vmatpush1.msra.mxu0 0.0
          %5788 = vmatprep.subr.mxu0 0.0
          %5789 = vmatpush1.msra.mxu0 0.0
          %5790 = vmatprep.subr.mxu0 0.0
          %5791 = vmatpush1.msra.mxu0 0.0
          %5792 = vmatprep.subr.mxu0 0.0
          %5793 = vmatpush1.msra.mxu0 0.0
          %5794 = vmatprep.subr.mxu0 0.0
          %5795 = vmatpush1.msra.mxu0 0.0
          %5796 = vmatprep.subr.mxu0 0.0
          %5797 = vmatpush1.msra.mxu0 0.0
          %5798 = vmatprep.subr.mxu0 0.0
          %5799 = vmatpush1.msra.mxu0 0.0
          %5800 = vmatprep.subr.mxu0 0.0
          %5801 = vmatpush1.msra.mxu0 0.0
          %5802 = vmatprep.subr.mxu0 0.0
          %5803 = vmatpush1.msra.mxu0 0.0
          %5804 = vmatprep.subr.mxu0 0.0
          %5805 = vmatpush1.msra.mxu0 0.0
          %5806 = vmatprep.subr.mxu0 0.0
          %5807 = vmatpush1.msra.mxu0 0.0
          %5808 = vmatprep.subr.mxu0 0.0
          %5809 = vmatpush1.msra.mxu0 0.0
          %5810 = vmatprep.subr.mxu0 0.0
          %5811 = vmatpush1.msra.mxu0 0.0
          %5812 = vmatprep.subr.mxu0 0.0
          %5813 = vmatpush1.msra.mxu0 0.0
          %5814 = vmatprep.subr.mxu0 0.0
          %5815 = vmatpush1.msra.mxu0 0.0
          %5816 = vmatprep.subr.mxu0 0.0
          %5817 = vmatpush1.msra.mxu0 0.0
          %5818 = vmatprep.subr.mxu0 0.0
          %5819 = vmatpush1.msra.mxu0 0.0
          %5820 = vmatprep.subr.mxu0 0.0
          %5821 = vmatpush1.msra.mxu0 0.0
          %5822 = vmatprep.mubr.f32.mxu0 0.0
          %5823 = vmatmul.mubr.f32.gmra.mrb[0].mxu0 %v5752
          %v5824 = vpop.f32.mrb[0].mxu0
          %v5825 = vadd.f32 0.0, %v5824
          %v5826 = vpop.f32.mrb[0].mxu0
          %5827 = vdwg.mxu0
          %v5829 = vsel %vm5750, %v3901, 0
          %5831 = vmatprep.subr.mxu0 0.0
          %5832 = vmatpush1.msra.mxu0 %v5756
          %5833 = vmatprep.subr.mxu0 0.0
          %5834 = vmatpush1.msra.mxu0 0.0
          %5835 = vmatprep.subr.mxu0 0.0
          %5836 = vmatpush1.msra.mxu0 0.0
          %5837 = vmatprep.subr.mxu0 0.0
          %5838 = vmatpush1.msra.mxu0 0.0
          %5839 = vmatprep.subr.mxu0 0.0
          %5840 = vmatpush1.msra.mxu0 0.0
          %5841 = vmatprep.subr.mxu0 0.0
          %5842 = vmatpush1.msra.mxu0 0.0
          %5843 = vmatprep.subr.mxu0 0.0
          %5844 = vmatpush1.msra.mxu0 0.0
          %5845 = vmatprep.subr.mxu0 0.0
          %5846 = vmatpush1.msra.mxu0 0.0
          %5847 = vmatprep.subr.mxu0 0.0
          %5848 = vmatpush1.msra.mxu0 0.0
          %5849 = vmatprep.subr.mxu0 0.0
          %5850 = vmatpush1.msra.mxu0 0.0
          %5851 = vmatprep.subr.mxu0 0.0
          %5852 = vmatpush1.msra.mxu0 0.0
          %5853 = vmatprep.subr.mxu0 0.0
          %5854 = vmatpush1.msra.mxu0 0.0
          %5855 = vmatprep.subr.mxu0 0.0
          %5856 = vmatpush1.msra.mxu0 0.0
          %5857 = vmatprep.subr.mxu0 0.0
          %5858 = vmatpush1.msra.mxu0 0.0
          %5859 = vmatprep.subr.mxu0 0.0
          %5860 = vmatpush1.msra.mxu0 0.0
          %5861 = vmatprep.subr.mxu0 0.0
          %5862 = vmatpush1.msra.mxu0 0.0
          %5863 = vmatprep.subr.mxu0 0.0
          %5864 = vmatpush1.msra.mxu0 0.0
          %5865 = vmatprep.subr.mxu0 0.0
          %5866 = vmatpush1.msra.mxu0 0.0
          %5867 = vmatprep.subr.mxu0 0.0
          %5868 = vmatpush1.msra.mxu0 0.0
          %5869 = vmatprep.subr.mxu0 0.0
          %5870 = vmatpush1.msra.mxu0 0.0
          %5871 = vmatprep.subr.mxu0 0.0
          %5872 = vmatpush1.msra.mxu0 0.0
          %5873 = vmatprep.subr.mxu0 0.0
          %5874 = vmatpush1.msra.mxu0 0.0
          %5875 = vmatprep.subr.mxu0 0.0
          %5876 = vmatpush1.msra.mxu0 0.0
          %5877 = vmatprep.subr.mxu0 0.0
          %5878 = vmatpush1.msra.mxu0 0.0
          %5879 = vmatprep.subr.mxu0 0.0
          %5880 = vmatpush1.msra.mxu0 0.0
          %5881 = vmatprep.subr.mxu0 0.0
          %5882 = vmatpush1.msra.mxu0 0.0
          %5883 = vmatprep.subr.mxu0 0.0
          %5884 = vmatpush1.msra.mxu0 0.0
          %5885 = vmatprep.subr.mxu0 0.0
          %5886 = vmatpush1.msra.mxu0 0.0
          %5887 = vmatprep.subr.mxu0 0.0
          %5888 = vmatpush1.msra.mxu0 0.0
          %5889 = vmatprep.subr.mxu0 0.0
          %5890 = vmatpush1.msra.mxu0 0.0
          %5891 = vmatprep.subr.mxu0 0.0
          %5892 = vmatpush1.msra.mxu0 0.0
          %5893 = vmatprep.subr.mxu0 0.0
          %5894 = vmatpush1.msra.mxu0 0.0
          %5895 = vmatprep.mubr.f32.mxu0 0.0
          %5896 = vmatmul.mubr.f32.gmra.mrb[0].mxu0 %v5829
          %v5897 = vpop.f32.mrb[0].mxu0
          %v5898 = vadd.f32 0.0, %v5897
          %v5899 = vpop.f32.mrb[0].mxu0
          %5900 = vdwg.mxu0
          %v5901 = vmax.f32 %v5825, %v5898
          %s5902 = scalar_lea.vmem [#allocation7], %s5741
          %5903 = vst.msk [vmem:[%s5902] sm:$0x3] %vm4101, %v5901
        $region120: #{cnn_forward.1} parent=79 // loop_footer
          %s5740 = sadd.s32 1, %s5736
        $region121: #{cnn_forward.1} parent=79 // loop_footer_branch
          %5735 = sbr.rel target = $region117
        $region122: #{cnn_forward.1} parent=79 // loop_exit
          _
        %v5904 = vld [vmem:[%s14] sm:$0x1]
        %v5905 = vld [vmem:[#allocation7] sm:$0x1]
        %v5906 = vld [vmem:[%s13] sm:$0xff]
        %v5907 = vld [vmem:[%s13 + $0x8] sm:$0xff]
        %v5908 = vld [vmem:[%s13 + $0x10] sm:$0xff]
        %v5909 = vld [vmem:[%s13 + $0x18] sm:$0xff]
        %v5910 = vld [vmem:[%s13 + $0x20] sm:$0xff]
        %v5911 = vld [vmem:[%s13 + $0x28] sm:$0xff]
        %v5912 = vld [vmem:[%s13 + $0x30] sm:$0xff]
        %v5913 = vld [vmem:[%s13 + $0x38] sm:$0xff]
        %v5915 = vsel %vm4099, %v5905, 0
        %5917 = vmatprep.subr.mxu0 0.0
        %5918 = vmatpush1.msra.mxu0 %v5906
        %5919 = vmatprep.subr.mxu0 0.0
        %5920 = vmatpush1.msra.mxu0 %v5907
        %5921 = vmatprep.subr.mxu0 0.0
        %5922 = vmatpush1.msra.mxu0 %v5908
        %5923 = vmatprep.subr.mxu0 0.0
        %5924 = vmatpush1.msra.mxu0 %v5909
        %5925 = vmatprep.subr.mxu0 0.0
        %5926 = vmatpush1.msra.mxu0 %v5910
        %5927 = vmatprep.subr.mxu0 0.0
        %5928 = vmatpush1.msra.mxu0 %v5911
        %5929 = vmatprep.subr.mxu0 0.0
        %5930 = vmatpush1.msra.mxu0 %v5912
        %5931 = vmatprep.subr.mxu0 0.0
        %5932 = vmatpush1.msra.mxu0 %v5913
        %5933 = vmatprep.subr.mxu0 0.0
        %5934 = vmatpush1.msra.mxu0 0.0
        %5935 = vmatprep.subr.mxu0 0.0
        %5936 = vmatpush1.msra.mxu0 0.0
        %5937 = vmatprep.subr.mxu0 0.0
        %5938 = vmatpush1.msra.mxu0 0.0
        %5939 = vmatprep.subr.mxu0 0.0
        %5940 = vmatpush1.msra.mxu0 0.0
        %5941 = vmatprep.subr.mxu0 0.0
        %5942 = vmatpush1.msra.mxu0 0.0
        %5943 = vmatprep.subr.mxu0 0.0
        %5944 = vmatpush1.msra.mxu0 0.0
        %5945 = vmatprep.subr.mxu0 0.0
        %5946 = vmatpush1.msra.mxu0 0.0
        %5947 = vmatprep.subr.mxu0 0.0
        %5948 = vmatpush1.msra.mxu0 0.0
        %5949 = vmatprep.subr.mxu0 0.0
        %5950 = vmatpush1.msra.mxu0 0.0
        %5951 = vmatprep.subr.mxu0 0.0
        %5952 = vmatpush1.msra.mxu0 0.0
        %5953 = vmatprep.subr.mxu0 0.0
        %5954 = vmatpush1.msra.mxu0 0.0
        %5955 = vmatprep.subr.mxu0 0.0
        %5956 = vmatpush1.msra.mxu0 0.0
        %5957 = vmatprep.subr.mxu0 0.0
        %5958 = vmatpush1.msra.mxu0 0.0
        %5959 = vmatprep.subr.mxu0 0.0
        %5960 = vmatpush1.msra.mxu0 0.0
        %5961 = vmatprep.subr.mxu0 0.0
        %5962 = vmatpush1.msra.mxu0 0.0
        %5963 = vmatprep.subr.mxu0 0.0
        %5964 = vmatpush1.msra.mxu0 0.0
        %5965 = vmatprep.subr.mxu0 0.0
        %5966 = vmatpush1.msra.mxu0 0.0
        %5967 = vmatprep.subr.mxu0 0.0
        %5968 = vmatpush1.msra.mxu0 0.0
        %5969 = vmatprep.subr.mxu0 0.0
        %5970 = vmatpush1.msra.mxu0 0.0
        %5971 = vmatprep.subr.mxu0 0.0
        %5972 = vmatpush1.msra.mxu0 0.0
        %5973 = vmatprep.subr.mxu0 0.0
        %5974 = vmatpush1.msra.mxu0 0.0
        %5975 = vmatprep.subr.mxu0 0.0
        %5976 = vmatpush1.msra.mxu0 0.0
        %5977 = vmatprep.subr.mxu0 0.0
        %5978 = vmatpush1.msra.mxu0 0.0
        %5979 = vmatprep.subr.mxu0 0.0
        %5980 = vmatpush1.msra.mxu0 0.0
        %5981 = vmatprep.mubr.f32.mxu0 0.0
        %5982 = vmatmul.mubr.f32.gmra.mrb[0].mxu0 %v5915
        %v5983 = vpop.f32.mrb[0].mxu0
        %v5984 = vadd.f32 0.0, %v5983
        %v5985 = vpop.f32.mrb[0].mxu0
        %5986 = vdwg.mxu0
        %v5987 = vadd.f32 %v5904, %v5984
        %v5988 = vld [vmem:[#allocation7 + $0x1] sm:$0x1]
        %s5989 = scalar_lea.vmem %s13, 64
        %v5990 = vld [vmem:[%s5989] sm:$0xff]
        %v5991 = vld [vmem:[%s5989 + $0x8] sm:$0xff]
        %v5992 = vld [vmem:[%s5989 + $0x10] sm:$0xff]
        %v5993 = vld [vmem:[%s5989 + $0x18] sm:$0xff]
        %v5994 = vld [vmem:[%s5989 + $0x20] sm:$0xff]
        %v5995 = vld [vmem:[%s5989 + $0x28] sm:$0xff]
        %v5996 = vld [vmem:[%s5989 + $0x30] sm:$0xff]
        %v5997 = vld [vmem:[%s5989 + $0x38] sm:$0xff]
        %v5999 = vsel %vm4099, %v5988, 0
        %6001 = vmatprep.subr.mxu0 0.0
        %6002 = vmatpush1.msra.mxu0 %v5990
        %6003 = vmatprep.subr.mxu0 0.0
        %6004 = vmatpush1.msra.mxu0 %v5991
        %6005 = vmatprep.subr.mxu0 0.0
        %6006 = vmatpush1.msra.mxu0 %v5992
        %6007 = vmatprep.subr.mxu0 0.0
        %6008 = vmatpush1.msra.mxu0 %v5993
        %6009 = vmatprep.subr.mxu0 0.0
        %6010 = vmatpush1.msra.mxu0 %v5994
        %6011 = vmatprep.subr.mxu0 0.0
        %6012 = vmatpush1.msra.mxu0 %v5995
        %6013 = vmatprep.subr.mxu0 0.0
        %6014 = vmatpush1.msra.mxu0 %v5996
        %6015 = vmatprep.subr.mxu0 0.0
        %6016 = vmatpush1.msra.mxu0 %v5997
        %6017 = vmatprep.subr.mxu0 0.0
        %6018 = vmatpush1.msra.mxu0 0.0
        %6019 = vmatprep.subr.mxu0 0.0
        %6020 = vmatpush1.msra.mxu0 0.0
        %6021 = vmatprep.subr.mxu0 0.0
        %6022 = vmatpush1.msra.mxu0 0.0
        %6023 = vmatprep.subr.mxu0 0.0
        %6024 = vmatpush1.msra.mxu0 0.0
        %6025 = vmatprep.subr.mxu0 0.0
        %6026 = vmatpush1.msra.mxu0 0.0
        %6027 = vmatprep.subr.mxu0 0.0
        %6028 = vmatpush1.msra.mxu0 0.0
        %6029 = vmatprep.subr.mxu0 0.0
        %6030 = vmatpush1.msra.mxu0 0.0
        %6031 = vmatprep.subr.mxu0 0.0
        %6032 = vmatpush1.msra.mxu0 0.0
        %6033 = vmatprep.subr.mxu0 0.0
        %6034 = vmatpush1.msra.mxu0 0.0
        %6035 = vmatprep.subr.mxu0 0.0
        %6036 = vmatpush1.msra.mxu0 0.0
        %6037 = vmatprep.subr.mxu0 0.0
        %6038 = vmatpush1.msra.mxu0 0.0
        %6039 = vmatprep.subr.mxu0 0.0
        %6040 = vmatpush1.msra.mxu0 0.0
        %6041 = vmatprep.subr.mxu0 0.0
        %6042 = vmatpush1.msra.mxu0 0.0
        %6043 = vmatprep.subr.mxu0 0.0
        %6044 = vmatpush1.msra.mxu0 0.0
        %6045 = vmatprep.subr.mxu0 0.0
        %6046 = vmatpush1.msra.mxu0 0.0
        %6047 = vmatprep.subr.mxu0 0.0
        %6048 = vmatpush1.msra.mxu0 0.0
        %6049 = vmatprep.subr.mxu0 0.0
        %6050 = vmatpush1.msra.mxu0 0.0
        %6051 = vmatprep.subr.mxu0 0.0
        %6052 = vmatpush1.msra.mxu0 0.0
        %6053 = vmatprep.subr.mxu0 0.0
        %6054 = vmatpush1.msra.mxu0 0.0
        %6055 = vmatprep.subr.mxu0 0.0
        %6056 = vmatpush1.msra.mxu0 0.0
        %6057 = vmatprep.subr.mxu0 0.0
        %6058 = vmatpush1.msra.mxu0 0.0
        %6059 = vmatprep.subr.mxu0 0.0
        %6060 = vmatpush1.msra.mxu0 0.0
        %6061 = vmatprep.subr.mxu0 0.0
        %6062 = vmatpush1.msra.mxu0 0.0
        %6063 = vmatprep.subr.mxu0 0.0
        %6064 = vmatpush1.msra.mxu0 0.0
        %6065 = vmatprep.mubr.f32.mxu0 0.0
        %6066 = vmatmul.mubr.f32.gmra.mrb[0].mxu0 %v5999
        %v6067 = vpop.f32.mrb[0].mxu0
        %v6068 = vadd.f32 0.0, %v6067
        %v6069 = vpop.f32.mrb[0].mxu0
        %6070 = vdwg.mxu0
        %v6071 = vadd.f32 %v5987, %v6068
        %s6072 = scalar_lea.vmem [#allocation7], 2
        %v6073 = vld [vmem:[%s6072] sm:$0x1]
        %s6074 = scalar_lea.vmem %s13, 128
        %v6075 = vld [vmem:[%s6074] sm:$0xff]
        %v6076 = vld [vmem:[%s6074 + $0x8] sm:$0xff]
        %v6077 = vld [vmem:[%s6074 + $0x10] sm:$0xff]
        %v6078 = vld [vmem:[%s6074 + $0x18] sm:$0xff]
        %v6079 = vld [vmem:[%s6074 + $0x20] sm:$0xff]
        %v6080 = vld [vmem:[%s6074 + $0x28] sm:$0xff]
        %v6081 = vld [vmem:[%s6074 + $0x30] sm:$0xff]
        %v6082 = vld [vmem:[%s6074 + $0x38] sm:$0xff]
        %v6084 = vsel %vm4099, %v6073, 0
        %6086 = vmatprep.subr.mxu0 0.0
        %6087 = vmatpush1.msra.mxu0 %v6075
        %6088 = vmatprep.subr.mxu0 0.0
        %6089 = vmatpush1.msra.mxu0 %v6076
        %6090 = vmatprep.subr.mxu0 0.0
        %6091 = vmatpush1.msra.mxu0 %v6077
        %6092 = vmatprep.subr.mxu0 0.0
        %6093 = vmatpush1.msra.mxu0 %v6078
        %6094 = vmatprep.subr.mxu0 0.0
        %6095 = vmatpush1.msra.mxu0 %v6079
        %6096 = vmatprep.subr.mxu0 0.0
        %6097 = vmatpush1.msra.mxu0 %v6080
        %6098 = vmatprep.subr.mxu0 0.0
        %6099 = vmatpush1.msra.mxu0 %v6081
        %6100 = vmatprep.subr.mxu0 0.0
        %6101 = vmatpush1.msra.mxu0 %v6082
        %6102 = vmatprep.subr.mxu0 0.0
        %6103 = vmatpush1.msra.mxu0 0.0
        %6104 = vmatprep.subr.mxu0 0.0
        %6105 = vmatpush1.msra.mxu0 0.0
        %6106 = vmatprep.subr.mxu0 0.0
        %6107 = vmatpush1.msra.mxu0 0.0
        %6108 = vmatprep.subr.mxu0 0.0
        %6109 = vmatpush1.msra.mxu0 0.0
        %6110 = vmatprep.subr.mxu0 0.0
        %6111 = vmatpush1.msra.mxu0 0.0
        %6112 = vmatprep.subr.mxu0 0.0
        %6113 = vmatpush1.msra.mxu0 0.0
        %6114 = vmatprep.subr.mxu0 0.0
        %6115 = vmatpush1.msra.mxu0 0.0
        %6116 = vmatprep.subr.mxu0 0.0
        %6117 = vmatpush1.msra.mxu0 0.0
        %6118 = vmatprep.subr.mxu0 0.0
        %6119 = vmatpush1.msra.mxu0 0.0
        %6120 = vmatprep.subr.mxu0 0.0
        %6121 = vmatpush1.msra.mxu0 0.0
        %6122 = vmatprep.subr.mxu0 0.0
        %6123 = vmatpush1.msra.mxu0 0.0
        %6124 = vmatprep.subr.mxu0 0.0
        %6125 = vmatpush1.msra.mxu0 0.0
        %6126 = vmatprep.subr.mxu0 0.0
        %6127 = vmatpush1.msra.mxu0 0.0
        %6128 = vmatprep.subr.mxu0 0.0
        %6129 = vmatpush1.msra.mxu0 0.0
        %6130 = vmatprep.subr.mxu0 0.0
        %6131 = vmatpush1.msra.mxu0 0.0
        %6132 = vmatprep.subr.mxu0 0.0
        %6133 = vmatpush1.msra.mxu0 0.0
        %6134 = vmatprep.subr.mxu0 0.0
        %6135 = vmatpush1.msra.mxu0 0.0
        %6136 = vmatprep.subr.mxu0 0.0
        %6137 = vmatpush1.msra.mxu0 0.0
        %6138 = vmatprep.subr.mxu0 0.0
        %6139 = vmatpush1.msra.mxu0 0.0
        %6140 = vmatprep.subr.mxu0 0.0
        %6141 = vmatpush1.msra.mxu0 0.0
        %6142 = vmatprep.subr.mxu0 0.0
        %6143 = vmatpush1.msra.mxu0 0.0
        %6144 = vmatprep.subr.mxu0 0.0
        %6145 = vmatpush1.msra.mxu0 0.0
        %6146 = vmatprep.subr.mxu0 0.0
        %6147 = vmatpush1.msra.mxu0 0.0
        %6148 = vmatprep.subr.mxu0 0.0
        %6149 = vmatpush1.msra.mxu0 0.0
        %6150 = vmatprep.mubr.f32.mxu0 0.0
        %6151 = vmatmul.mubr.f32.gmra.mrb[0].mxu0 %v6084
        %v6152 = vpop.f32.mrb[0].mxu0
        %v6153 = vadd.f32 0.0, %v6152
        %v6154 = vpop.f32.mrb[0].mxu0
        %6155 = vdwg.mxu0
        %v6156 = vadd.f32 %v6071, %v6153
        %v6157 = vld [vmem:[%s6072 + $0x1] sm:$0x1]
        %s6158 = scalar_lea.vmem %s13, 192
        %v6159 = vld [vmem:[%s6158] sm:$0xff]
        %v6160 = vld [vmem:[%s6158 + $0x8] sm:$0xff]
        %v6161 = vld [vmem:[%s6158 + $0x10] sm:$0xff]
        %v6162 = vld [vmem:[%s6158 + $0x18] sm:$0xff]
        %v6163 = vld [vmem:[%s6158 + $0x20] sm:$0xff]
        %v6164 = vld [vmem:[%s6158 + $0x28] sm:$0xff]
        %v6165 = vld [vmem:[%s6158 + $0x30] sm:$0xff]
        %v6166 = vld [vmem:[%s6158 + $0x38] sm:$0xff]
        %v6168 = vsel %vm4099, %v6157, 0
        %6170 = vmatprep.subr.mxu0 0.0
        %6171 = vmatpush1.msra.mxu0 %v6159
        %6172 = vmatprep.subr.mxu0 0.0
        %6173 = vmatpush1.msra.mxu0 %v6160
        %6174 = vmatprep.subr.mxu0 0.0
        %6175 = vmatpush1.msra.mxu0 %v6161
        %6176 = vmatprep.subr.mxu0 0.0
        %6177 = vmatpush1.msra.mxu0 %v6162
        %6178 = vmatprep.subr.mxu0 0.0
        %6179 = vmatpush1.msra.mxu0 %v6163
        %6180 = vmatprep.subr.mxu0 0.0
        %6181 = vmatpush1.msra.mxu0 %v6164
        %6182 = vmatprep.subr.mxu0 0.0
        %6183 = vmatpush1.msra.mxu0 %v6165
        %6184 = vmatprep.subr.mxu0 0.0
        %6185 = vmatpush1.msra.mxu0 %v6166
        %6186 = vmatprep.subr.mxu0 0.0
        %6187 = vmatpush1.msra.mxu0 0.0
        %6188 = vmatprep.subr.mxu0 0.0
        %6189 = vmatpush1.msra.mxu0 0.0
        %6190 = vmatprep.subr.mxu0 0.0
        %6191 = vmatpush1.msra.mxu0 0.0
        %6192 = vmatprep.subr.mxu0 0.0
        %6193 = vmatpush1.msra.mxu0 0.0
        %6194 = vmatprep.subr.mxu0 0.0
        %6195 = vmatpush1.msra.mxu0 0.0
        %6196 = vmatprep.subr.mxu0 0.0
        %6197 = vmatpush1.msra.mxu0 0.0
        %6198 = vmatprep.subr.mxu0 0.0
        %6199 = vmatpush1.msra.mxu0 0.0
        %6200 = vmatprep.subr.mxu0 0.0
        %6201 = vmatpush1.msra.mxu0 0.0
        %6202 = vmatprep.subr.mxu0 0.0
        %6203 = vmatpush1.msra.mxu0 0.0
        %6204 = vmatprep.subr.mxu0 0.0
        %6205 = vmatpush1.msra.mxu0 0.0
        %6206 = vmatprep.subr.mxu0 0.0
        %6207 = vmatpush1.msra.mxu0 0.0
        %6208 = vmatprep.subr.mxu0 0.0
        %6209 = vmatpush1.msra.mxu0 0.0
        %6210 = vmatprep.subr.mxu0 0.0
        %6211 = vmatpush1.msra.mxu0 0.0
        %6212 = vmatprep.subr.mxu0 0.0
        %6213 = vmatpush1.msra.mxu0 0.0
        %6214 = vmatprep.subr.mxu0 0.0
        %6215 = vmatpush1.msra.mxu0 0.0
        %6216 = vmatprep.subr.mxu0 0.0
        %6217 = vmatpush1.msra.mxu0 0.0
        %6218 = vmatprep.subr.mxu0 0.0
        %6219 = vmatpush1.msra.mxu0 0.0
        %6220 = vmatprep.subr.mxu0 0.0
        %6221 = vmatpush1.msra.mxu0 0.0
        %6222 = vmatprep.subr.mxu0 0.0
        %6223 = vmatpush1.msra.mxu0 0.0
        %6224 = vmatprep.subr.mxu0 0.0
        %6225 = vmatpush1.msra.mxu0 0.0
        %6226 = vmatprep.subr.mxu0 0.0
        %6227 = vmatpush1.msra.mxu0 0.0
        %6228 = vmatprep.subr.mxu0 0.0
        %6229 = vmatpush1.msra.mxu0 0.0
        %6230 = vmatprep.subr.mxu0 0.0
        %6231 = vmatpush1.msra.mxu0 0.0
        %6232 = vmatprep.subr.mxu0 0.0
        %6233 = vmatpush1.msra.mxu0 0.0
        %6234 = vmatprep.mubr.f32.mxu0 0.0
        %6235 = vmatmul.mubr.f32.gmra.mrb[0].mxu0 %v6168
        %v6236 = vpop.f32.mrb[0].mxu0
        %v6237 = vadd.f32 0.0, %v6236
        %v6238 = vpop.f32.mrb[0].mxu0
        %6239 = vdwg.mxu0
        %v6240 = vadd.f32 %v6156, %v6237
        %vm6241 = vcmask 73728
        %6242 = vst.msk [vmem:[%s486] sm:$0x1] %vm6241, %v6240
        %s6243 = sand.u32 %s357, 1
        %s6244 = scalar_lea.sflag [#allocation9], %s6243
        %s6245 = sand.u32 %s357, 1
        %s6246 = scalar_lea.vmem [#allocation8], %s6245
        // Predicated region
        $region123: #{cnn_forward.1} parent=79 // pred_check
          %p6247 = pneg %p367
        $region124: #{cnn_forward.1} parent=79 // pred_check_branch
          %6249 = sbr.rel (%p6247) target = $region126
        $region125: #{cnn_forward.1} parent=79 // pred_region
          %s6251 = ssub.s32 16, 16
          %6252 = vsyncadd %s6244, %s6251
          %s6253 = smul.addr %s29, 16
          %s6254 = scalar_lea.hbm %s15, %s6253
          %s6256 = sshll.u32 %s6246, 4
          %s6257 = int_to_ptr.vmem [resolvable:$true] %s6256
          %6259 = dma.vmem_to_hbm [thread:$0]  %s6257, 16, %s6254, %s6244
        $region126: #{cnn_forward.1} parent=79 // pred_fallthru
          _
      $region80: #{cnn_forward.1} parent=5 // pred_fallthru
        _
      %p6260 = scmp.le.s32.totalorder 2, %s24
      // Predicated region
      $region127: #{cnn_forward.1} parent=5 // pred_check
        %p6261 = pneg %p6260
      $region128: #{cnn_forward.1} parent=5 // pred_check_branch
        %6263 = sbr.rel (%p6261) target = $region130
      $region129: #{cnn_forward.1} parent=5 // pred_region
        %s6264 = ssub.s32 %s24, 2
        // Predicated region
        $region131: #{cnn_forward.1} parent=129 // pred_check
          %p6265 = pneg %p373
        $region132: #{cnn_forward.1} parent=129 // pred_check_branch
          %6267 = sbr.rel (%p6265) target = $region134
        $region133: #{cnn_forward.1} parent=129 // pred_region
          %s6268 = sand.u32 %s358, 1
          %s6269 = scalar_lea.sflag [#allocation9], %s6268
          %s6270 = sand.u32 %s358, 1
          %s6271 = scalar_lea.vmem [#allocation8], %s6270
          %6272 = dma.done %s6269, 16
        $region134: #{cnn_forward.1} parent=129 // pred_fallthru
          _
      $region130: #{cnn_forward.1} parent=5 // pred_fallthru
        _
    $region6: #{cnn_forward.1} parent=1 // loop_footer
      %s28 = sadd.s32 1, %s24
    $region7: #{cnn_forward.1} parent=1 // loop_footer_branch
      %23 = sbr.rel target = $region3
    $region8: #{cnn_forward.1} parent=1 // loop_exit
      _
    %6273 = vsyncpa [#allocation9], 1
    %s6274 = scalar_lea.sflag [#allocation9], 1
    %6275 = vsyncpa %s6274, 1

</llo_original>
